<compile_context>
chip_gen: v7x
topology: tpu7x:2x2x1
jax: 0.10.0
libtpu: 0.0.40
codegen_flags: <defaults>
</compile_context>

<pallas_src>
import functools
import math

import jax
import jax.numpy as jnp
import numpy as np
from jax import lax
from jax.experimental import pallas as pl
from jax.experimental.pallas import tpu as pltpu

FRONT_K = 5          # front Conv1d kernel size
FRONT_STRIDE = 2     # front Conv1d stride
KP = 8               # front conv taps zero-padded to a sublane-friendly count
DW_K = 31            # Squeezeformer conv-module depthwise kernel size
LP = 128             # lane padding (attention key axis / logits width)

# rows of the packed (V_ROWS, D) f32 "vecs" parameter array -------------------
(V_IN_B, V_QB, V_KB, V_VB, V_U, V_V, V_OB, V_LN1G, V_LN1B, V_FFN1B2,
 V_LN2G, V_LN2B, V_PW1AB, V_PW1GB, V_DWB, V_BNS, V_BNB, V_PW2B,
 V_LN3G, V_LN3B, V_FFN2B2, V_LN4G, V_LN4B, V_FC1B) = range(24)
V_IN_W = 24          # 8 rows: front conv taps (5 real + 3 zero)
V_DW_W = 32          # 31 rows: depthwise conv taps
V_ROWS = 64          # total rows (padded to a multiple of 8)

# slices of the packed (9, D, D) bf16 matrix stack ----------------------------
(M_QW, M_KW, M_VW, M_POSW, M_OW, M_PW1A, M_PW1G, M_PW2, M_FC1) = range(9)


# -----------------------------------------------------------------------------
# The single fused kernel: whole forward pass, whole batch.
# -----------------------------------------------------------------------------
def _fused_forward_kernel(im2col_ref, pos_ref, smat_ref, mats_ref, ffnw1_ref,
                          ffnw2_ref, fcw_ref, vecs_ref, ffnb1_ref, out_ref,
                          *, B, T, TP, D):
    f32, bf16 = jnp.float32, jnp.bfloat16
    BT = B * TP

    def vec(i):                                   # (1, D) f32 parameter row
        return vecs_ref[i:i + 1, :]

    def bdot(a, b):                               # bf16 MXU dot, f32 accum
        return jnp.dot(a, b, preferred_element_type=f32)

    def dot_nt(a, b):                             # (M, D) x (N, D) -> (M, N)
        return lax.dot_general(a, b, (((1,), (1,)), ((), ())),
                               preferred_element_type=f32)

    def layer_norm(y, gi, bi):
        mean = jnp.mean(y, axis=-1, keepdims=True)
        var = jnp.mean((y - mean) ** 2, axis=-1, keepdims=True)
        return (y - mean) * lax.rsqrt(var + 1e-5) * vec(gi) + vec(bi)

    def swish(y):
        return y * jax.nn.sigmoid(y)

    # ---- front Conv1d(1, D, k=5, s=2) + ReLU as one small MXU dot (im2col) ---
    in_w = vecs_ref[V_IN_W:V_IN_W + KP, :]                         # (8, D) f32
    x = jnp.dot(im2col_ref[...], in_w, preferred_element_type=f32) + vec(V_IN_B)
    x = jnp.maximum(x, 0.0)                                         # (BT, D)

    # ---- MHSA (single head, relative positions) ------------------------------
    xb = x.astype(bf16)                                             # cast once
    q = bdot(xb, mats_ref[M_QW]) + vec(V_QB)   # 1/sqrt(D) folded into q_w/q_b/u/v
    k = bdot(xb, mats_ref[M_KW]) + vec(V_KB)
    v = bdot(xb, mats_ref[M_VW]) + vec(V_VB)
    posp = bdot(pos_ref[...].astype(bf16), mats_ref[M_POSW]).astype(bf16)  # (LP, D)

    qu = (q + vec(V_U)).astype(bf16)
    qv = (q + vec(V_V)).astype(bf16)
    kb = k.astype(bf16)
    vb = v.astype(bf16)
    zpad = jnp.zeros((LP - TP, D), bf16)
    col = lax.broadcasted_iota(jnp.int32, (TP, LP), 1)
    row = lax.broadcasted_iota(jnp.int32, (TP, LP), 0)

    ctx_parts = []
    for b in range(B):                             # B is tiny and static
        sl = slice(b * TP, (b + 1) * TP)           # 8-aligned sublane slices
        k_pad = jnp.concatenate([kb[sl], zpad], axis=0)             # (LP, D)
        v_pad = jnp.concatenate([vb[sl], zpad], axis=0)
        content = dot_nt(qu[sl], k_pad)                             # (TP, LP)
        pos_sc = dot_nt(qv[sl], posp)                               # (TP, LP)

        # Exact torch-style relative shift rebuilt from strided XLU lane
        # rotations instead of ~90 ragged slices/concats.
        # (assumes pltpu.roll matches jnp.roll: positive shift -> higher index,
        #  per-row amount = shift + stride * row)
        r_up0 = pltpu.roll(pos_sc, 1, 1, stride=1, stride_axis=0)   # rot a+1
        r_low = pltpu.roll(r_up0, LP - T, 1)                        # rot a+LP-T+1
        r_up = jnp.concatenate([r_up0[1:], r_up0[:1]], axis=0)      # rows up by 1
        shifted = jnp.where(col <= row, r_low,
                            jnp.where(col == row + 1, 0.0, r_up))

        score = jnp.where(col < T, content + shifted, -1e30)        # mask padding
        score = score - jnp.max(score, axis=-1, keepdims=True)
        p = jnp.exp(score)
        inv = pl.reciprocal(jnp.sum(p, axis=-1, keepdims=True), approx=True)
        ctx_parts.append(bdot((p * inv).astype(bf16), v_pad))       # (TP, D)
    ctx = jnp.concatenate(ctx_parts, axis=0)                        # (BT, D)
    attn = bdot(ctx.astype(bf16), mats_ref[M_OW]) + vec(V_OB)
    x = layer_norm(x + attn, V_LN1G, V_LN1B)

    # ---- FFN 1 ---------------------------------------------------------------
    h = swish(bdot(x.astype(bf16), ffnw1_ref[0]) + ffnb1_ref[0:1, :])
    x = layer_norm(x + bdot(h.astype(bf16), ffnw2_ref[0]) + vec(V_FFN1B2),
                   V_LN2G, V_LN2B)

    # ---- Conv module: pointwise GLU -> depthwise(31) -> BN -> swish -> pw ----
    xb = x.astype(bf16)
    glu = (bdot(xb, mats_ref[M_PW1A]) + vec(V_PW1AB)) * jax.nn.sigmoid(
        bdot(xb, mats_ref[M_PW1G]) + vec(V_PW1GB))
    hb = glu.astype(bf16)
    # Depthwise taps as matmuls against constant block-diagonal shift matrices
    # (idle MXU): no unaligned sublane slices, batch/padding rows handled by the
    # constants themselves.
    acc = jnp.zeros((BT, D), f32)
    for kk in range(DW_K):
        wk = vecs_ref[V_DW_W + kk:V_DW_W + kk + 1, :]               # (1, D) f32
        acc = acc + bdot(smat_ref[kk], hb) * wk
    y = acc + vec(V_DWB)
    y = y * vec(V_BNS) + vec(V_BNB)               # BatchNorm (eval, folded)
    y = swish(y)
    y = bdot(y.astype(bf16), mats_ref[M_PW2]) + vec(V_PW2B)
    x = layer_norm(x + y, V_LN3G, V_LN3B)

    # ---- FFN 2 ---------------------------------------------------------------
    h = swish(bdot(x.astype(bf16), ffnw1_ref[1]) + ffnb1_ref[1:2, :])
    x = layer_norm(x + bdot(h.astype(bf16), ffnw2_ref[1]) + vec(V_FFN2B2),
                   V_LN4G, V_LN4B)

    # ---- mean pool over the T valid rows per batch (MXU) + classifier head ---
    prow = lax.broadcasted_iota(jnp.int32, (B, BT), 0)
    pcol = lax.broadcasted_iota(jnp.int32, (B, BT), 1)
    poolm = jnp.where((pcol >= prow * TP) & (pcol < prow * TP + T),
                      1.0 / T, 0.0)
    pooled = jnp.dot(poolm, x, preferred_element_type=f32)          # (B, D)
    h1 = bdot(pooled.astype(bf16), mats_ref[M_FC1]) + vec(V_FC1B)   # (B, D)
    logits = bdot(h1.astype(bf16), fcw_ref[...])  # (B, 128); fc bias folded in
    out_ref[...] = logits.astype(out_ref.dtype)   # lane-dense store


# -----------------------------------------------------------------------------
# Wrapper: constants, im2col, parameter packing.
# -----------------------------------------------------------------------------
def _sinusoidal_pe_padded(T, D):
    pe = np.zeros((LP, D), np.float32)
    position = np.arange(T, dtype=np.float32)[:, None]
    div_term = np.exp(np.arange(0, D, 2, dtype=np.float32)
                      * -(math.log(10000.0) / D))
    pe[:T, 0::2] = np.sin(position * div_term)
    pe[:T, 1::2] = np.cos(position * div_term)
    return pe


def _depthwise_shift_mats(B, TP, T):
    """S[k] @ h == h shifted in (batch-local) time by k - pad, zero-padded."""
    pad = (DW_K - 1) // 2
    S = np.zeros((DW_K, B * TP, B * TP), np.float32)
    t = np.arange(T)
    for kk in range(DW_K):
        src = t + kk - pad
        m = (src >= 0) & (src < T)
        for b in range(B):
            S[kk, b * TP + t[m], b * TP + src[m]] = 1.0
    return S


def tran_medical_forward(x, packed, num_class=3):
    """x: (B, L) raw 1-D signal  ->  (B, num_class) logits."""
    B, L = x.shape
    D = packed["mats"].shape[-1]
    T = (L - FRONT_K) // FRONT_STRIDE + 1
    TP = ((T + 7) // 8) * 8
    assert T <= LP and TP <= LP

    # im2col for the front conv (tiny, wrapper-side): one lane-dense MXU dot in
    # the kernel instead of a lane-sparse tap loop.
    cols = jnp.stack([x[:, kk:kk + FRONT_STRIDE * T:FRONT_STRIDE]
                      for kk in range(FRONT_K)], axis=-1)            # (B, T, 5)
    cols = jnp.pad(cols, ((0, 0), (0, TP - T), (0, KP - FRONT_K)))
    im2col = cols.reshape(B * TP, KP)

    # trace-time constants (embedded in the executable, no per-call cost)
    pos_pad = jnp.asarray(_sinusoidal_pe_padded(T, D))               # (LP, D) f32
    shift_mats = jnp.asarray(_depthwise_shift_mats(B, TP, T), jnp.bfloat16)

    out = pl.pallas_call(
        functools.partial(_fused_forward_kernel, B=B, T=T, TP=TP, D=D),
        out_shape=jax.ShapeDtypeStruct((B, LP), jnp.float32),
        in_specs=[pl.BlockSpec(memory_space=pltpu.MemorySpace.VMEM)] * 9,
        out_specs=pl.BlockSpec(memory_space=pltpu.MemorySpace.VMEM),
    )(im2col, pos_pad, shift_mats, packed["mats"], packed["ffn_w1"],
      packed["ffn_w2"], packed["fc_w"], packed["vecs"], packed["ffn_b1"])
    return out[:, :num_class]


def pack_params(params):
    """Group the 38 per-layer parameters into 6 DMA-friendly arrays (call once)."""
    D = params["q_w"].shape[0]
    Dq = D // 4
    num_class = params["fc_w"].shape[1]
    scale = 1.0 / math.sqrt(D)                   # attention scale, folded here
    bf16 = jnp.bfloat16

    fc1_b_pad = (jnp.zeros((D,), jnp.float32)
                 .at[:Dq].set(params["fc1_b"]).at[Dq].set(1.0))   # 1 -> fc bias row
    vec_rows = jnp.stack([
        params["in_b"],
        params["q_b"] * scale, params["k_b"], params["v_b"],
        params["u_bias"] * scale, params["v_bias"] * scale,
        params["o_b"],
        params["ln1_g"], params["ln1_b"],
        params["ffn1_b2"], params["ln2_g"], params["ln2_b"],
        params["pw1a_b"], params["pw1g_b"],
        params["dw_b"], params["bn_scale"], params["bn_shift"], params["pw2_b"],
        params["ln3_g"], params["ln3_b"],
        params["ffn2_b2"], params["ln4_g"], params["ln4_b"],
        fc1_b_pad,
    ], axis=0)
    in_w_pad = jnp.zeros((KP, D), jnp.float32).at[:FRONT_K].set(params["in_w"])
    pad_rows = V_ROWS - 24 - KP - DW_K
    vecs = jnp.concatenate(
        [vec_rows, in_w_pad, params["dw_w"],
         jnp.zeros((pad_rows, D), jnp.float32)], axis=0)

    mats = jnp.stack([
        params["q_w"] * scale, params["k_w"], params["v_w"], params["pos_w"],
        params["o_w"], params["pw1a_w"], params["pw1g_w"], params["pw2_w"],
        jnp.zeros((D, D), jnp.float32).at[:, :Dq].set(params["fc1_w"]),
    ], axis=0).astype(bf16)
    ffn_w1 = jnp.stack([params["ffn1_w1"], params["ffn2_w1"]], 0).astype(bf16)
    ffn_w2 = jnp.stack([params["ffn1_w2"], params["ffn2_w2"]], 0).astype(bf16)
    ffn_b1 = jnp.stack([params["ffn1_b1"], params["ffn2_b1"]], 0)     # (2, 4D) f32
    fc_w = (jnp.zeros((D, LP), jnp.float32)
            .at[:Dq, :num_class].set(params["fc_w"])
            .at[Dq, :num_class].set(params["fc_b"])).astype(bf16)     # bias row
    return dict(mats=mats, ffn_w1=ffn_w1, ffn_w2=ffn_w2, ffn_b1=ffn_b1,
                vecs=vecs, fc_w=fc_w)


# -----------------------------------------------------------------------------
# Deterministic parameter init (natural per-layer layout).
# -----------------------------------------------------------------------------
def init_params(key, hidden_dim=64, num_class=3):
    D = hidden_dim
    keys = iter(jax.random.split(key, 40))

    def xavier(shape):
        std = math.sqrt(2.0 / (shape[0] + shape[-1]))
        return std * jax.random.normal(next(keys), shape, jnp.float32)

    z = lambda s: jnp.zeros(s, jnp.float32)
    o = lambda s: jnp.ones(s, jnp.float32)

    return {
        "in_w": xavier((FRONT_K, D)), "in_b": z((D,)),
        "q_w": xavier((D, D)), "q_b": z((D,)),
        "k_w": xavier((D, D)), "k_b": z((D,)),
        "v_w": xavier((D, D)), "v_b": z((D,)),
        "pos_w": xavier((D, D)),
        "u_bias": 0.1 * jax.random.normal(next(keys), (D,), jnp.float32),
        "v_bias": 0.1 * jax.random.normal(next(keys), (D,), jnp.float32),
        "o_w": xavier((D, D)), "o_b": z((D,)),
        "ln1_g": o((D,)), "ln1_b": z((D,)),
        "ffn1_w1": xavier((D, 4 * D)), "ffn1_b1": z((4 * D,)),
        "ffn1_w2": xavier((4 * D, D)), "ffn1_b2": z((D,)),
        "ln2_g": o((D,)), "ln2_b": z((D,)),
        "pw1a_w": xavier((D, D)), "pw1a_b": z((D,)),
        "pw1g_w": xavier((D, D)), "pw1g_b": z((D,)),
        "dw_w": 0.1 * jax.random.normal(next(keys), (DW_K, D), jnp.float32),
        "dw_b": z((D,)),
        # BatchNorm1d eval with default running stats (mean=0, var=1)
        "bn_scale": jnp.full((D,), 1.0 / math.sqrt(1.0 + 1e-5), jnp.float32),
        "bn_shift": z((D,)),
        "pw2_w": xavier((D, D)), "pw2_b": z((D,)),
        "ln3_g": o((D,)), "ln3_b": z((D,)),
        "ffn2_w1": xavier((D, 4 * D)), "ffn2_b1": z((4 * D,)),
        "ffn2_w2": xavier((4 * D, D)), "ffn2_b2": z((D,)),
        "ln4_g": o((D,)), "ln4_b": z((D,)),
        "fc1_w": xavier((D, D // 4)), "fc1_b": z((D // 4,)),
        "fc_w": xavier((D // 4, num_class)), "fc_b": z((num_class,)),
    }


# -----------------------------------------------------------------------------
if __name__ == "__main__":
    key = jax.random.PRNGKey(0)
    kx, kp = jax.random.split(key)

    B, L = 2, 64                      # raw 1-D signal; torch unsqueezes channel
    x = jax.random.normal(kx, (B, L), dtype=jnp.float32)
    params = init_params(kp, hidden_dim=64, num_class=3)
    packed = pack_params(params)      # one-time parameter packing

    fwd = jax.jit(tran_medical_forward, static_argnames=("num_class",))
    out = jax.block_until_ready(fwd(x, packed, num_class=3))

    assert out.shape == (B, 3), out.shape
    assert bool(jnp.all(jnp.isfinite(out)))
    print("KERNEL_OK")
</pallas_src>

<mosaic_0001>
module attributes {stable_mosaic.version = 11 : i64} {
  func.func @_fused_forward_kernel(%arg0: memref<64x8xf32, #tpu.memory_space<vmem>>, %arg1: memref<128x64xf32, #tpu.memory_space<vmem>>, %arg2: memref<31x64x64xbf16, #tpu.memory_space<vmem>>, %arg3: memref<9x64x64xbf16, #tpu.memory_space<vmem>>, %arg4: memref<2x64x256xbf16, #tpu.memory_space<vmem>>, %arg5: memref<2x256x64xbf16, #tpu.memory_space<vmem>>, %arg6: memref<64x128xbf16, #tpu.memory_space<vmem>>, %arg7: memref<64x64xf32, #tpu.memory_space<vmem>>, %arg8: memref<2x256xf32, #tpu.memory_space<vmem>>, %arg9: memref<2x128xf32, #tpu.memory_space<vmem>>) attributes {dimension_semantics = [], scalar_prefetch = 0 : i64, scratch_operands = 0 : i64, tpu.core_type = #tpu.core_type<tc>} {
    %c24 = arith.constant 24 : index
    %c0 = arith.constant 0 : index
    %0 = vector.load %arg7[%c24, %c0] : memref<64x64xf32, #tpu.memory_space<vmem>>, vector<8x64xf32>
    %c0_0 = arith.constant 0 : index
    %c0_1 = arith.constant 0 : index
    %1 = vector.load %arg0[%c0_0, %c0_1] : memref<64x8xf32, #tpu.memory_space<vmem>>, vector<64x8xf32>
    %cst = arith.constant dense<0.000000e+00> : vector<64x64xf32>
    %2 = tpu.matmul %1, %0, %cst {dimension_numbers = #tpu.dot_dimension_numbers<[1], [0], [0], [1], [0, 0, 1, 1], [], []>} : vector<64x8xf32>, vector<8x64xf32>, vector<64x64xf32> -> vector<64x64xf32>
    %c0_2 = arith.constant 0 : index
    %c0_3 = arith.constant 0 : index
    %3 = vector.load %arg7[%c0_2, %c0_3] : memref<64x64xf32, #tpu.memory_space<vmem>>, vector<1x64xf32>
    %4 = vector.broadcast %3 : vector<1x64xf32> to vector<64x64xf32>
    %5 = arith.addf %2, %4 : vector<64x64xf32>
    %cst_4 = arith.constant 0.000000e+00 : f32
    %6 = vector.broadcast %cst_4 : f32 to vector<64x64xf32>
    %7 = arith.maximumf %5, %6 : vector<64x64xf32>
    %8 = arith.truncf %7 : vector<64x64xf32> to vector<64x64xbf16>
    %c0_5 = arith.constant 0 : index
    %c0_6 = arith.constant 0 : index
    %c0_7 = arith.constant 0 : index
    %9 = vector.load %arg3[%c0_5, %c0_6, %c0_7] : memref<9x64x64xbf16, #tpu.memory_space<vmem>>, vector<1x64x64xbf16>
    %10 = vector.shape_cast %9 : vector<1x64x64xbf16> to vector<64x64xbf16>
    %cst_8 = arith.constant dense<0.000000e+00> : vector<64x64xf32>
    %11 = tpu.matmul %8, %10, %cst_8 {dimension_numbers = #tpu.dot_dimension_numbers<[1], [0], [0], [1], [0, 0, 1, 1], [], []>} : vector<64x64xbf16>, vector<64x64xbf16>, vector<64x64xf32> -> vector<64x64xf32>
    %c1 = arith.constant 1 : index
    %c0_9 = arith.constant 0 : index
    %12 = vector.load %arg7[%c1, %c0_9] : memref<64x64xf32, #tpu.memory_space<vmem>>, vector<1x64xf32>
    %13 = vector.broadcast %12 : vector<1x64xf32> to vector<64x64xf32>
    %14 = arith.addf %11, %13 : vector<64x64xf32>
    %c1_10 = arith.constant 1 : index
    %c0_11 = arith.constant 0 : index
    %c0_12 = arith.constant 0 : index
    %15 = vector.load %arg3[%c1_10, %c0_11, %c0_12] : memref<9x64x64xbf16, #tpu.memory_space<vmem>>, vector<1x64x64xbf16>
    %16 = vector.shape_cast %15 : vector<1x64x64xbf16> to vector<64x64xbf16>
    %cst_13 = arith.constant dense<0.000000e+00> : vector<64x64xf32>
    %17 = tpu.matmul %8, %16, %cst_13 {dimension_numbers = #tpu.dot_dimension_numbers<[1], [0], [0], [1], [0, 0, 1, 1], [], []>} : vector<64x64xbf16>, vector<64x64xbf16>, vector<64x64xf32> -> vector<64x64xf32>
    %c2 = arith.constant 2 : index
    %c0_14 = arith.constant 0 : index
    %18 = vector.load %arg7[%c2, %c0_14] : memref<64x64xf32, #tpu.memory_space<vmem>>, vector<1x64xf32>
    %19 = vector.broadcast %18 : vector<1x64xf32> to vector<64x64xf32>
    %20 = arith.addf %17, %19 : vector<64x64xf32>
    %c2_15 = arith.constant 2 : index
    %c0_16 = arith.constant 0 : index
    %c0_17 = arith.constant 0 : index
    %21 = vector.load %arg3[%c2_15, %c0_16, %c0_17] : memref<9x64x64xbf16, #tpu.memory_space<vmem>>, vector<1x64x64xbf16>
    %22 = vector.shape_cast %21 : vector<1x64x64xbf16> to vector<64x64xbf16>
    %cst_18 = arith.constant dense<0.000000e+00> : vector<64x64xf32>
    %23 = tpu.matmul %8, %22, %cst_18 {dimension_numbers = #tpu.dot_dimension_numbers<[1], [0], [0], [1], [0, 0, 1, 1], [], []>} : vector<64x64xbf16>, vector<64x64xbf16>, vector<64x64xf32> -> vector<64x64xf32>
    %c3 = arith.constant 3 : index
    %c0_19 = arith.constant 0 : index
    %24 = vector.load %arg7[%c3, %c0_19] : memref<64x64xf32, #tpu.memory_space<vmem>>, vector<1x64xf32>
    %25 = vector.broadcast %24 : vector<1x64xf32> to vector<64x64xf32>
    %26 = arith.addf %23, %25 : vector<64x64xf32>
    %c0_20 = arith.constant 0 : index
    %c0_21 = arith.constant 0 : index
    %27 = vector.load %arg1[%c0_20, %c0_21] : memref<128x64xf32, #tpu.memory_space<vmem>>, vector<128x64xf32>
    %28 = arith.truncf %27 : vector<128x64xf32> to vector<128x64xbf16>
    %c3_22 = arith.constant 3 : index
    %c0_23 = arith.constant 0 : index
    %c0_24 = arith.constant 0 : index
    %29 = vector.load %arg3[%c3_22, %c0_23, %c0_24] : memref<9x64x64xbf16, #tpu.memory_space<vmem>>, vector<1x64x64xbf16>
    %30 = vector.shape_cast %29 : vector<1x64x64xbf16> to vector<64x64xbf16>
    %cst_25 = arith.constant dense<0.000000e+00> : vector<128x64xf32>
    %31 = tpu.matmul %28, %30, %cst_25 {dimension_numbers = #tpu.dot_dimension_numbers<[1], [0], [0], [1], [0, 0, 1, 1], [], []>} : vector<128x64xbf16>, vector<64x64xbf16>, vector<128x64xf32> -> vector<128x64xf32>
    %32 = arith.truncf %31 : vector<128x64xf32> to vector<128x64xbf16>
    %c4 = arith.constant 4 : index
    %c0_26 = arith.constant 0 : index
    %33 = vector.load %arg7[%c4, %c0_26] : memref<64x64xf32, #tpu.memory_space<vmem>>, vector<1x64xf32>
    %34 = vector.broadcast %33 : vector<1x64xf32> to vector<64x64xf32>
    %35 = arith.addf %14, %34 : vector<64x64xf32>
    %36 = arith.truncf %35 : vector<64x64xf32> to vector<64x64xbf16>
    %c5 = arith.constant 5 : index
    %c0_27 = arith.constant 0 : index
    %37 = vector.load %arg7[%c5, %c0_27] : memref<64x64xf32, #tpu.memory_space<vmem>>, vector<1x64xf32>
    %38 = vector.broadcast %37 : vector<1x64xf32> to vector<64x64xf32>
    %39 = arith.addf %14, %38 : vector<64x64xf32>
    %40 = arith.truncf %39 : vector<64x64xf32> to vector<64x64xbf16>
    %41 = arith.truncf %20 : vector<64x64xf32> to vector<64x64xbf16>
    %42 = arith.truncf %26 : vector<64x64xf32> to vector<64x64xbf16>
    %cst_28 = arith.constant 0.000000e+00 : bf16
    %43 = vector.broadcast %cst_28 : bf16 to vector<96x64xbf16>
    %44 = tpu.iota {dimensions = array<i32: 1>} : vector<32x128xi32>
    %45 = tpu.iota {dimensions = array<i32: 0>} : vector<32x128xi32>
    %46 = vector.extract_strided_slice %41 {offsets = [0, 0], sizes = [32, 64], strides = [1, 1]} : vector<64x64xbf16> to vector<32x64xbf16>
    %47 = tpu.concatenate %46, %43 in 0 : vector<32x64xbf16>, vector<96x64xbf16> -> vector<128x64xbf16>
    %48 = vector.extract_strided_slice %42 {offsets = [0, 0], sizes = [32, 64], strides = [1, 1]} : vector<64x64xbf16> to vector<32x64xbf16>
    %49 = tpu.concatenate %48, %43 in 0 : vector<32x64xbf16>, vector<96x64xbf16> -> vector<128x64xbf16>
    %50 = vector.extract_strided_slice %36 {offsets = [0, 0], sizes = [32, 64], strides = [1, 1]} : vector<64x64xbf16> to vector<32x64xbf16>
    %cst_29 = arith.constant dense<0.000000e+00> : vector<32x128xf32>
    %51 = tpu.matmul %50, %47, %cst_29 {dimension_numbers = #tpu.dot_dimension_numbers<[1], [1], [0], [0], [0, 0, 1, 0], [], []>} : vector<32x64xbf16>, vector<128x64xbf16>, vector<32x128xf32> -> vector<32x128xf32>
    %52 = vector.extract_strided_slice %40 {offsets = [0, 0], sizes = [32, 64], strides = [1, 1]} : vector<64x64xbf16> to vector<32x64xbf16>
    %cst_30 = arith.constant dense<0.000000e+00> : vector<32x128xf32>
    %53 = tpu.matmul %52, %32, %cst_30 {dimension_numbers = #tpu.dot_dimension_numbers<[1], [1], [0], [0], [0, 0, 1, 0], [], []>} : vector<32x64xbf16>, vector<128x64xbf16>, vector<32x128xf32> -> vector<32x128xf32>
    %c1_i32 = arith.constant 1 : i32
    %54 = tpu.dynamic_rotate %53 by %c1_i32 dim 1 {stride = 1 : si32, stride_dimension = 0 : si32} : vector<32x128xf32>, i32 -> vector<32x128xf32>
    %c98_i32 = arith.constant 98 : i32
    %55 = tpu.dynamic_rotate %54 by %c98_i32 dim 1 : vector<32x128xf32>, i32 -> vector<32x128xf32>
    %56 = vector.extract_strided_slice %54 {offsets = [1, 0], sizes = [31, 128], strides = [1, 1]} : vector<32x128xf32> to vector<31x128xf32>
    %57 = vector.extract_strided_slice %54 {offsets = [0, 0], sizes = [1, 128], strides = [1, 1]} : vector<32x128xf32> to vector<1x128xf32>
    %58 = tpu.concatenate %56, %57 in 0 : vector<31x128xf32>, vector<1x128xf32> -> vector<32x128xf32>
    %59 = arith.cmpi sle, %44, %45 : vector<32x128xi32>
    %c1_i32_31 = arith.constant 1 : i32
    %60 = vector.broadcast %c1_i32_31 : i32 to vector<32x128xi32>
    %61 = arith.addi %45, %60 : vector<32x128xi32>
    %62 = arith.cmpi eq, %44, %61 : vector<32x128xi32>
    %cst_32 = arith.constant 0.000000e+00 : f32
    %63 = vector.broadcast %cst_32 : f32 to vector<32x128xf32>
    %64 = arith.select %62, %63, %58 : vector<32x128xi1>, vector<32x128xf32>
    %65 = arith.select %59, %55, %64 : vector<32x128xi1>, vector<32x128xf32>
    %c30_i32 = arith.constant 30 : i32
    %66 = vector.broadcast %c30_i32 : i32 to vector<32x128xi32>
    %67 = arith.cmpi slt, %44, %66 : vector<32x128xi32>
    %68 = arith.addf %51, %65 : vector<32x128xf32>
    %cst_33 = arith.constant -1.000000e+30 : f32
    %69 = vector.broadcast %cst_33 : f32 to vector<32x128xf32>
    %70 = arith.select %67, %68, %69 : vector<32x128xi1>, vector<32x128xf32>
    %cst_34 = arith.constant dense<0xFF800000> : vector<32xf32>
    %71 = vector.multi_reduction <maximumf>, %70, %cst_34 [1] : vector<32x128xf32> to vector<32xf32>
    %72 = vector.shape_cast %71 : vector<32xf32> to vector<32x1xf32>
    %73 = vector.broadcast %72 : vector<32x1xf32> to vector<32x128xf32>
    %74 = arith.subf %70, %73 : vector<32x128xf32>
    %75 = math.exp %74 : vector<32x128xf32>
    %cst_35 = arith.constant dense<0.000000e+00> : vector<32xf32>
    %76 = vector.multi_reduction <add>, %75, %cst_35 [1] : vector<32x128xf32> to vector<32xf32>
    %77 = vector.shape_cast %76 : vector<32xf32> to vector<32x1xf32>
    %78 = tpu.reciprocal %77 {approx = true} : vector<32x1xf32> -> vector<32x1xf32>
    %79 = vector.broadcast %78 : vector<32x1xf32> to vector<32x128xf32>
    %80 = arith.mulf %75, %79 : vector<32x128xf32>
    %81 = arith.truncf %80 : vector<32x128xf32> to vector<32x128xbf16>
    %cst_36 = arith.constant dense<0.000000e+00> : vector<32x64xf32>
    %82 = tpu.matmul %81, %49, %cst_36 {dimension_numbers = #tpu.dot_dimension_numbers<[1], [0], [0], [1], [0, 0, 1, 1], [], []>} : vector<32x128xbf16>, vector<128x64xbf16>, vector<32x64xf32> -> vector<32x64xf32>
    %83 = vector.extract_strided_slice %41 {offsets = [32, 0], sizes = [32, 64], strides = [1, 1]} : vector<64x64xbf16> to vector<32x64xbf16>
    %84 = tpu.concatenate %83, %43 in 0 : vector<32x64xbf16>, vector<96x64xbf16> -> vector<128x64xbf16>
    %85 = vector.extract_strided_slice %42 {offsets = [32, 0], sizes = [32, 64], strides = [1, 1]} : vector<64x64xbf16> to vector<32x64xbf16>
    %86 = tpu.concatenate %85, %43 in 0 : vector<32x64xbf16>, vector<96x64xbf16> -> vector<128x64xbf16>
    %87 = vector.extract_strided_slice %36 {offsets = [32, 0], sizes = [32, 64], strides = [1, 1]} : vector<64x64xbf16> to vector<32x64xbf16>
    %cst_37 = arith.constant dense<0.000000e+00> : vector<32x128xf32>
    %88 = tpu.matmul %87, %84, %cst_37 {dimension_numbers = #tpu.dot_dimension_numbers<[1], [1], [0], [0], [0, 0, 1, 0], [], []>} : vector<32x64xbf16>, vector<128x64xbf16>, vector<32x128xf32> -> vector<32x128xf32>
    %89 = vector.extract_strided_slice %40 {offsets = [32, 0], sizes = [32, 64], strides = [1, 1]} : vector<64x64xbf16> to vector<32x64xbf16>
    %cst_38 = arith.constant dense<0.000000e+00> : vector<32x128xf32>
    %90 = tpu.matmul %89, %32, %cst_38 {dimension_numbers = #tpu.dot_dimension_numbers<[1], [1], [0], [0], [0, 0, 1, 0], [], []>} : vector<32x64xbf16>, vector<128x64xbf16>, vector<32x128xf32> -> vector<32x128xf32>
    %c1_i32_39 = arith.constant 1 : i32
    %91 = tpu.dynamic_rotate %90 by %c1_i32_39 dim 1 {stride = 1 : si32, stride_dimension = 0 : si32} : vector<32x128xf32>, i32 -> vector<32x128xf32>
    %c98_i32_40 = arith.constant 98 : i32
    %92 = tpu.dynamic_rotate %91 by %c98_i32_40 dim 1 : vector<32x128xf32>, i32 -> vector<32x128xf32>
    %93 = vector.extract_strided_slice %91 {offsets = [1, 0], sizes = [31, 128], strides = [1, 1]} : vector<32x128xf32> to vector<31x128xf32>
    %94 = vector.extract_strided_slice %91 {offsets = [0, 0], sizes = [1, 128], strides = [1, 1]} : vector<32x128xf32> to vector<1x128xf32>
    %95 = tpu.concatenate %93, %94 in 0 : vector<31x128xf32>, vector<1x128xf32> -> vector<32x128xf32>
    %96 = arith.cmpi sle, %44, %45 : vector<32x128xi32>
    %c1_i32_41 = arith.constant 1 : i32
    %97 = vector.broadcast %c1_i32_41 : i32 to vector<32x128xi32>
    %98 = arith.addi %45, %97 : vector<32x128xi32>
    %99 = arith.cmpi eq, %44, %98 : vector<32x128xi32>
    %cst_42 = arith.constant 0.000000e+00 : f32
    %100 = vector.broadcast %cst_42 : f32 to vector<32x128xf32>
    %101 = arith.select %99, %100, %95 : vector<32x128xi1>, vector<32x128xf32>
    %102 = arith.select %96, %92, %101 : vector<32x128xi1>, vector<32x128xf32>
    %c30_i32_43 = arith.constant 30 : i32
    %103 = vector.broadcast %c30_i32_43 : i32 to vector<32x128xi32>
    %104 = arith.cmpi slt, %44, %103 : vector<32x128xi32>
    %105 = arith.addf %88, %102 : vector<32x128xf32>
    %cst_44 = arith.constant -1.000000e+30 : f32
    %106 = vector.broadcast %cst_44 : f32 to vector<32x128xf32>
    %107 = arith.select %104, %105, %106 : vector<32x128xi1>, vector<32x128xf32>
    %cst_45 = arith.constant dense<0xFF800000> : vector<32xf32>
    %108 = vector.multi_reduction <maximumf>, %107, %cst_45 [1] : vector<32x128xf32> to vector<32xf32>
    %109 = vector.shape_cast %108 : vector<32xf32> to vector<32x1xf32>
    %110 = vector.broadcast %109 : vector<32x1xf32> to vector<32x128xf32>
    %111 = arith.subf %107, %110 : vector<32x128xf32>
    %112 = math.exp %111 : vector<32x128xf32>
    %cst_46 = arith.constant dense<0.000000e+00> : vector<32xf32>
    %113 = vector.multi_reduction <add>, %112, %cst_46 [1] : vector<32x128xf32> to vector<32xf32>
    %114 = vector.shape_cast %113 : vector<32xf32> to vector<32x1xf32>
    %115 = tpu.reciprocal %114 {approx = true} : vector<32x1xf32> -> vector<32x1xf32>
    %116 = vector.broadcast %115 : vector<32x1xf32> to vector<32x128xf32>
    %117 = arith.mulf %112, %116 : vector<32x128xf32>
    %118 = arith.truncf %117 : vector<32x128xf32> to vector<32x128xbf16>
    %cst_47 = arith.constant dense<0.000000e+00> : vector<32x64xf32>
    %119 = tpu.matmul %118, %86, %cst_47 {dimension_numbers = #tpu.dot_dimension_numbers<[1], [0], [0], [1], [0, 0, 1, 1], [], []>} : vector<32x128xbf16>, vector<128x64xbf16>, vector<32x64xf32> -> vector<32x64xf32>
    %120 = tpu.concatenate %82, %119 in 0 : vector<32x64xf32>, vector<32x64xf32> -> vector<64x64xf32>
    %121 = arith.truncf %120 : vector<64x64xf32> to vector<64x64xbf16>
    %c4_48 = arith.constant 4 : index
    %c0_49 = arith.constant 0 : index
    %c0_50 = arith.constant 0 : index
    %122 = vector.load %arg3[%c4_48, %c0_49, %c0_50] : memref<9x64x64xbf16, #tpu.memory_space<vmem>>, vector<1x64x64xbf16>
    %123 = vector.shape_cast %122 : vector<1x64x64xbf16> to vector<64x64xbf16>
    %cst_51 = arith.constant dense<0.000000e+00> : vector<64x64xf32>
    %124 = tpu.matmul %121, %123, %cst_51 {dimension_numbers = #tpu.dot_dimension_numbers<[1], [0], [0], [1], [0, 0, 1, 1], [], []>} : vector<64x64xbf16>, vector<64x64xbf16>, vector<64x64xf32> -> vector<64x64xf32>
    %c6 = arith.constant 6 : index
    %c0_52 = arith.constant 0 : index
    %125 = vector.load %arg7[%c6, %c0_52] : memref<64x64xf32, #tpu.memory_space<vmem>>, vector<1x64xf32>
    %126 = vector.broadcast %125 : vector<1x64xf32> to vector<64x64xf32>
    %127 = arith.addf %124, %126 : vector<64x64xf32>
    %128 = arith.addf %7, %127 : vector<64x64xf32>
    %cst_53 = arith.constant dense<0.000000e+00> : vector<64xf32>
    %129 = vector.multi_reduction <add>, %128, %cst_53 [1] : vector<64x64xf32> to vector<64xf32>
    %130 = vector.shape_cast %129 : vector<64xf32> to vector<64x1xf32>
    %cst_54 = arith.constant 6.400000e+01 : f32
    %131 = vector.broadcast %cst_54 : f32 to vector<64x1xf32>
    %132 = arith.divf %130, %131 : vector<64x1xf32>
    %133 = vector.broadcast %132 : vector<64x1xf32> to vector<64x64xf32>
    %134 = arith.subf %128, %133 : vector<64x64xf32>
    %135 = arith.mulf %134, %134 : vector<64x64xf32>
    %cst_55 = arith.constant dense<0.000000e+00> : vector<64xf32>
    %136 = vector.multi_reduction <add>, %135, %cst_55 [1] : vector<64x64xf32> to vector<64xf32>
    %137 = vector.shape_cast %136 : vector<64xf32> to vector<64x1xf32>
    %cst_56 = arith.constant 6.400000e+01 : f32
    %138 = vector.broadcast %cst_56 : f32 to vector<64x1xf32>
    %139 = arith.divf %137, %138 : vector<64x1xf32>
    %140 = vector.broadcast %132 : vector<64x1xf32> to vector<64x64xf32>
    %141 = arith.subf %128, %140 : vector<64x64xf32>
    %cst_57 = arith.constant 9.99999974E-6 : f32
    %142 = vector.broadcast %cst_57 : f32 to vector<64x1xf32>
    %143 = arith.addf %139, %142 : vector<64x1xf32>
    %144 = math.rsqrt %143 : vector<64x1xf32>
    %145 = vector.broadcast %144 : vector<64x1xf32> to vector<64x64xf32>
    %146 = arith.mulf %141, %145 : vector<64x64xf32>
    %c7 = arith.constant 7 : index
    %c0_58 = arith.constant 0 : index
    %147 = vector.load %arg7[%c7, %c0_58] : memref<64x64xf32, #tpu.memory_space<vmem>>, vector<1x64xf32>
    %148 = vector.broadcast %147 : vector<1x64xf32> to vector<64x64xf32>
    %149 = arith.mulf %146, %148 : vector<64x64xf32>
    %c8 = arith.constant 8 : index
    %c0_59 = arith.constant 0 : index
    %150 = vector.load %arg7[%c8, %c0_59] : memref<64x64xf32, #tpu.memory_space<vmem>>, vector<1x64xf32>
    %151 = vector.broadcast %150 : vector<1x64xf32> to vector<64x64xf32>
    %152 = arith.addf %149, %151 : vector<64x64xf32>
    %153 = arith.truncf %152 : vector<64x64xf32> to vector<64x64xbf16>
    %c0_60 = arith.constant 0 : index
    %c0_61 = arith.constant 0 : index
    %c0_62 = arith.constant 0 : index
    %154 = vector.load %arg4[%c0_60, %c0_61, %c0_62] : memref<2x64x256xbf16, #tpu.memory_space<vmem>>, vector<1x64x256xbf16>
    %155 = vector.shape_cast %154 : vector<1x64x256xbf16> to vector<64x256xbf16>
    %cst_63 = arith.constant dense<0.000000e+00> : vector<64x256xf32>
    %156 = tpu.matmul %153, %155, %cst_63 {dimension_numbers = #tpu.dot_dimension_numbers<[1], [0], [0], [1], [0, 0, 1, 1], [], []>} : vector<64x64xbf16>, vector<64x256xbf16>, vector<64x256xf32> -> vector<64x256xf32>
    %c0_64 = arith.constant 0 : index
    %c0_65 = arith.constant 0 : index
    %157 = vector.load %arg8[%c0_64, %c0_65] : memref<2x256xf32, #tpu.memory_space<vmem>>, vector<1x256xf32>
    %158 = vector.broadcast %157 : vector<1x256xf32> to vector<64x256xf32>
    %159 = arith.addf %156, %158 : vector<64x256xf32>
    %160 = arith.negf %159 : vector<64x256xf32>
    %161 = math.exp %160 : vector<64x256xf32>
    %cst_66 = arith.constant 1.000000e+00 : f32
    %162 = vector.broadcast %cst_66 : f32 to vector<64x256xf32>
    %163 = arith.addf %162, %161 : vector<64x256xf32>
    %164 = arith.divf %162, %163 : vector<64x256xf32>
    %165 = arith.mulf %159, %164 : vector<64x256xf32>
    %166 = arith.truncf %165 : vector<64x256xf32> to vector<64x256xbf16>
    %c0_67 = arith.constant 0 : index
    %c0_68 = arith.constant 0 : index
    %c0_69 = arith.constant 0 : index
    %167 = vector.load %arg5[%c0_67, %c0_68, %c0_69] : memref<2x256x64xbf16, #tpu.memory_space<vmem>>, vector<1x256x64xbf16>
    %168 = vector.shape_cast %167 : vector<1x256x64xbf16> to vector<256x64xbf16>
    %cst_70 = arith.constant dense<0.000000e+00> : vector<64x64xf32>
    %169 = tpu.matmul %166, %168, %cst_70 {dimension_numbers = #tpu.dot_dimension_numbers<[1], [0], [0], [1], [0, 0, 1, 1], [], []>} : vector<64x256xbf16>, vector<256x64xbf16>, vector<64x64xf32> -> vector<64x64xf32>
    %170 = arith.addf %152, %169 : vector<64x64xf32>
    %c9 = arith.constant 9 : index
    %c0_71 = arith.constant 0 : index
    %171 = vector.load %arg7[%c9, %c0_71] : memref<64x64xf32, #tpu.memory_space<vmem>>, vector<1x64xf32>
    %172 = vector.broadcast %171 : vector<1x64xf32> to vector<64x64xf32>
    %173 = arith.addf %170, %172 : vector<64x64xf32>
    %cst_72 = arith.constant dense<0.000000e+00> : vector<64xf32>
    %174 = vector.multi_reduction <add>, %173, %cst_72 [1] : vector<64x64xf32> to vector<64xf32>
    %175 = vector.shape_cast %174 : vector<64xf32> to vector<64x1xf32>
    %cst_73 = arith.constant 6.400000e+01 : f32
    %176 = vector.broadcast %cst_73 : f32 to vector<64x1xf32>
    %177 = arith.divf %175, %176 : vector<64x1xf32>
    %178 = vector.broadcast %177 : vector<64x1xf32> to vector<64x64xf32>
    %179 = arith.subf %173, %178 : vector<64x64xf32>
    %180 = arith.mulf %179, %179 : vector<64x64xf32>
    %cst_74 = arith.constant dense<0.000000e+00> : vector<64xf32>
    %181 = vector.multi_reduction <add>, %180, %cst_74 [1] : vector<64x64xf32> to vector<64xf32>
    %182 = vector.shape_cast %181 : vector<64xf32> to vector<64x1xf32>
    %cst_75 = arith.constant 6.400000e+01 : f32
    %183 = vector.broadcast %cst_75 : f32 to vector<64x1xf32>
    %184 = arith.divf %182, %183 : vector<64x1xf32>
    %185 = vector.broadcast %177 : vector<64x1xf32> to vector<64x64xf32>
    %186 = arith.subf %173, %185 : vector<64x64xf32>
    %cst_76 = arith.constant 9.99999974E-6 : f32
    %187 = vector.broadcast %cst_76 : f32 to vector<64x1xf32>
    %188 = arith.addf %184, %187 : vector<64x1xf32>
    %189 = math.rsqrt %188 : vector<64x1xf32>
    %190 = vector.broadcast %189 : vector<64x1xf32> to vector<64x64xf32>
    %191 = arith.mulf %186, %190 : vector<64x64xf32>
    %c10 = arith.constant 10 : index
    %c0_77 = arith.constant 0 : index
    %192 = vector.load %arg7[%c10, %c0_77] : memref<64x64xf32, #tpu.memory_space<vmem>>, vector<1x64xf32>
    %193 = vector.broadcast %192 : vector<1x64xf32> to vector<64x64xf32>
    %194 = arith.mulf %191, %193 : vector<64x64xf32>
    %c11 = arith.constant 11 : index
    %c0_78 = arith.constant 0 : index
    %195 = vector.load %arg7[%c11, %c0_78] : memref<64x64xf32, #tpu.memory_space<vmem>>, vector<1x64xf32>
    %196 = vector.broadcast %195 : vector<1x64xf32> to vector<64x64xf32>
    %197 = arith.addf %194, %196 : vector<64x64xf32>
    %198 = arith.truncf %197 : vector<64x64xf32> to vector<64x64xbf16>
    %c5_79 = arith.constant 5 : index
    %c0_80 = arith.constant 0 : index
    %c0_81 = arith.constant 0 : index
    %199 = vector.load %arg3[%c5_79, %c0_80, %c0_81] : memref<9x64x64xbf16, #tpu.memory_space<vmem>>, vector<1x64x64xbf16>
    %200 = vector.shape_cast %199 : vector<1x64x64xbf16> to vector<64x64xbf16>
    %cst_82 = arith.constant dense<0.000000e+00> : vector<64x64xf32>
    %201 = tpu.matmul %198, %200, %cst_82 {dimension_numbers = #tpu.dot_dimension_numbers<[1], [0], [0], [1], [0, 0, 1, 1], [], []>} : vector<64x64xbf16>, vector<64x64xbf16>, vector<64x64xf32> -> vector<64x64xf32>
    %c12 = arith.constant 12 : index
    %c0_83 = arith.constant 0 : index
    %202 = vector.load %arg7[%c12, %c0_83] : memref<64x64xf32, #tpu.memory_space<vmem>>, vector<1x64xf32>
    %203 = vector.broadcast %202 : vector<1x64xf32> to vector<64x64xf32>
    %204 = arith.addf %201, %203 : vector<64x64xf32>
    %c6_84 = arith.constant 6 : index
    %c0_85 = arith.constant 0 : index
    %c0_86 = arith.constant 0 : index
    %205 = vector.load %arg3[%c6_84, %c0_85, %c0_86] : memref<9x64x64xbf16, #tpu.memory_space<vmem>>, vector<1x64x64xbf16>
    %206 = vector.shape_cast %205 : vector<1x64x64xbf16> to vector<64x64xbf16>
    %cst_87 = arith.constant dense<0.000000e+00> : vector<64x64xf32>
    %207 = tpu.matmul %198, %206, %cst_87 {dimension_numbers = #tpu.dot_dimension_numbers<[1], [0], [0], [1], [0, 0, 1, 1], [], []>} : vector<64x64xbf16>, vector<64x64xbf16>, vector<64x64xf32> -> vector<64x64xf32>
    %c13 = arith.constant 13 : index
    %c0_88 = arith.constant 0 : index
    %208 = vector.load %arg7[%c13, %c0_88] : memref<64x64xf32, #tpu.memory_space<vmem>>, vector<1x64xf32>
    %209 = vector.broadcast %208 : vector<1x64xf32> to vector<64x64xf32>
    %210 = arith.addf %207, %209 : vector<64x64xf32>
    %211 = arith.negf %210 : vector<64x64xf32>
    %212 = math.exp %211 : vector<64x64xf32>
    %cst_89 = arith.constant 1.000000e+00 : f32
    %213 = vector.broadcast %cst_89 : f32 to vector<64x64xf32>
    %214 = arith.addf %213, %212 : vector<64x64xf32>
    %215 = arith.divf %213, %214 : vector<64x64xf32>
    %216 = arith.mulf %204, %215 : vector<64x64xf32>
    %217 = arith.truncf %216 : vector<64x64xf32> to vector<64x64xbf16>
    %cst_90 = arith.constant 0.000000e+00 : f32
    %218 = vector.broadcast %cst_90 : f32 to vector<64x64xf32>
    %c32 = arith.constant 32 : index
    %c0_91 = arith.constant 0 : index
    %219 = vector.load %arg7[%c32, %c0_91] : memref<64x64xf32, #tpu.memory_space<vmem>>, vector<1x64xf32>
    %c0_92 = arith.constant 0 : index
    %c0_93 = arith.constant 0 : index
    %c0_94 = arith.constant 0 : index
    %220 = vector.load %arg2[%c0_92, %c0_93, %c0_94] : memref<31x64x64xbf16, #tpu.memory_space<vmem>>, vector<1x64x64xbf16>
    %221 = vector.shape_cast %220 : vector<1x64x64xbf16> to vector<64x64xbf16>
    %cst_95 = arith.constant dense<0.000000e+00> : vector<64x64xf32>
    %222 = tpu.matmul %221, %217, %cst_95 {dimension_numbers = #tpu.dot_dimension_numbers<[1], [0], [0], [1], [0, 0, 1, 1], [], []>} : vector<64x64xbf16>, vector<64x64xbf16>, vector<64x64xf32> -> vector<64x64xf32>
    %223 = vector.broadcast %219 : vector<1x64xf32> to vector<64x64xf32>
    %224 = arith.mulf %222, %223 : vector<64x64xf32>
    %225 = arith.addf %218, %224 : vector<64x64xf32>
    %c33 = arith.constant 33 : index
    %c0_96 = arith.constant 0 : index
    %226 = vector.load %arg7[%c33, %c0_96] : memref<64x64xf32, #tpu.memory_space<vmem>>, vector<1x64xf32>
    %c1_97 = arith.constant 1 : index
    %c0_98 = arith.constant 0 : index
    %c0_99 = arith.constant 0 : index
    %227 = vector.load %arg2[%c1_97, %c0_98, %c0_99] : memref<31x64x64xbf16, #tpu.memory_space<vmem>>, vector<1x64x64xbf16>
    %228 = vector.shape_cast %227 : vector<1x64x64xbf16> to vector<64x64xbf16>
    %cst_100 = arith.constant dense<0.000000e+00> : vector<64x64xf32>
    %229 = tpu.matmul %228, %217, %cst_100 {dimension_numbers = #tpu.dot_dimension_numbers<[1], [0], [0], [1], [0, 0, 1, 1], [], []>} : vector<64x64xbf16>, vector<64x64xbf16>, vector<64x64xf32> -> vector<64x64xf32>
    %230 = vector.broadcast %226 : vector<1x64xf32> to vector<64x64xf32>
    %231 = arith.mulf %229, %230 : vector<64x64xf32>
    %232 = arith.addf %225, %231 : vector<64x64xf32>
    %c34 = arith.constant 34 : index
    %c0_101 = arith.constant 0 : index
    %233 = vector.load %arg7[%c34, %c0_101] : memref<64x64xf32, #tpu.memory_space<vmem>>, vector<1x64xf32>
    %c2_102 = arith.constant 2 : index
    %c0_103 = arith.constant 0 : index
    %c0_104 = arith.constant 0 : index
    %234 = vector.load %arg2[%c2_102, %c0_103, %c0_104] : memref<31x64x64xbf16, #tpu.memory_space<vmem>>, vector<1x64x64xbf16>
    %235 = vector.shape_cast %234 : vector<1x64x64xbf16> to vector<64x64xbf16>
    %cst_105 = arith.constant dense<0.000000e+00> : vector<64x64xf32>
    %236 = tpu.matmul %235, %217, %cst_105 {dimension_numbers = #tpu.dot_dimension_numbers<[1], [0], [0], [1], [0, 0, 1, 1], [], []>} : vector<64x64xbf16>, vector<64x64xbf16>, vector<64x64xf32> -> vector<64x64xf32>
    %237 = vector.broadcast %233 : vector<1x64xf32> to vector<64x64xf32>
    %238 = arith.mulf %236, %237 : vector<64x64xf32>
    %239 = arith.addf %232, %238 : vector<64x64xf32>
    %c35 = arith.constant 35 : index
    %c0_106 = arith.constant 0 : index
    %240 = vector.load %arg7[%c35, %c0_106] : memref<64x64xf32, #tpu.memory_space<vmem>>, vector<1x64xf32>
    %c3_107 = arith.constant 3 : index
    %c0_108 = arith.constant 0 : index
    %c0_109 = arith.constant 0 : index
    %241 = vector.load %arg2[%c3_107, %c0_108, %c0_109] : memref<31x64x64xbf16, #tpu.memory_space<vmem>>, vector<1x64x64xbf16>
    %242 = vector.shape_cast %241 : vector<1x64x64xbf16> to vector<64x64xbf16>
    %cst_110 = arith.constant dense<0.000000e+00> : vector<64x64xf32>
    %243 = tpu.matmul %242, %217, %cst_110 {dimension_numbers = #tpu.dot_dimension_numbers<[1], [0], [0], [1], [0, 0, 1, 1], [], []>} : vector<64x64xbf16>, vector<64x64xbf16>, vector<64x64xf32> -> vector<64x64xf32>
    %244 = vector.broadcast %240 : vector<1x64xf32> to vector<64x64xf32>
    %245 = arith.mulf %243, %244 : vector<64x64xf32>
    %246 = arith.addf %239, %245 : vector<64x64xf32>
    %c36 = arith.constant 36 : index
    %c0_111 = arith.constant 0 : index
    %247 = vector.load %arg7[%c36, %c0_111] : memref<64x64xf32, #tpu.memory_space<vmem>>, vector<1x64xf32>
    %c4_112 = arith.constant 4 : index
    %c0_113 = arith.constant 0 : index
    %c0_114 = arith.constant 0 : index
    %248 = vector.load %arg2[%c4_112, %c0_113, %c0_114] : memref<31x64x64xbf16, #tpu.memory_space<vmem>>, vector<1x64x64xbf16>
    %249 = vector.shape_cast %248 : vector<1x64x64xbf16> to vector<64x64xbf16>
    %cst_115 = arith.constant dense<0.000000e+00> : vector<64x64xf32>
    %250 = tpu.matmul %249, %217, %cst_115 {dimension_numbers = #tpu.dot_dimension_numbers<[1], [0], [0], [1], [0, 0, 1, 1], [], []>} : vector<64x64xbf16>, vector<64x64xbf16>, vector<64x64xf32> -> vector<64x64xf32>
    %251 = vector.broadcast %247 : vector<1x64xf32> to vector<64x64xf32>
    %252 = arith.mulf %250, %251 : vector<64x64xf32>
    %253 = arith.addf %246, %252 : vector<64x64xf32>
    %c37 = arith.constant 37 : index
    %c0_116 = arith.constant 0 : index
    %254 = vector.load %arg7[%c37, %c0_116] : memref<64x64xf32, #tpu.memory_space<vmem>>, vector<1x64xf32>
    %c5_117 = arith.constant 5 : index
    %c0_118 = arith.constant 0 : index
    %c0_119 = arith.constant 0 : index
    %255 = vector.load %arg2[%c5_117, %c0_118, %c0_119] : memref<31x64x64xbf16, #tpu.memory_space<vmem>>, vector<1x64x64xbf16>
    %256 = vector.shape_cast %255 : vector<1x64x64xbf16> to vector<64x64xbf16>
    %cst_120 = arith.constant dense<0.000000e+00> : vector<64x64xf32>
    %257 = tpu.matmul %256, %217, %cst_120 {dimension_numbers = #tpu.dot_dimension_numbers<[1], [0], [0], [1], [0, 0, 1, 1], [], []>} : vector<64x64xbf16>, vector<64x64xbf16>, vector<64x64xf32> -> vector<64x64xf32>
    %258 = vector.broadcast %254 : vector<1x64xf32> to vector<64x64xf32>
    %259 = arith.mulf %257, %258 : vector<64x64xf32>
    %260 = arith.addf %253, %259 : vector<64x64xf32>
    %c38 = arith.constant 38 : index
    %c0_121 = arith.constant 0 : index
    %261 = vector.load %arg7[%c38, %c0_121] : memref<64x64xf32, #tpu.memory_space<vmem>>, vector<1x64xf32>
    %c6_122 = arith.constant 6 : index
    %c0_123 = arith.constant 0 : index
    %c0_124 = arith.constant 0 : index
    %262 = vector.load %arg2[%c6_122, %c0_123, %c0_124] : memref<31x64x64xbf16, #tpu.memory_space<vmem>>, vector<1x64x64xbf16>
    %263 = vector.shape_cast %262 : vector<1x64x64xbf16> to vector<64x64xbf16>
    %cst_125 = arith.constant dense<0.000000e+00> : vector<64x64xf32>
    %264 = tpu.matmul %263, %217, %cst_125 {dimension_numbers = #tpu.dot_dimension_numbers<[1], [0], [0], [1], [0, 0, 1, 1], [], []>} : vector<64x64xbf16>, vector<64x64xbf16>, vector<64x64xf32> -> vector<64x64xf32>
    %265 = vector.broadcast %261 : vector<1x64xf32> to vector<64x64xf32>
    %266 = arith.mulf %264, %265 : vector<64x64xf32>
    %267 = arith.addf %260, %266 : vector<64x64xf32>
    %c39 = arith.constant 39 : index
    %c0_126 = arith.constant 0 : index
    %268 = vector.load %arg7[%c39, %c0_126] : memref<64x64xf32, #tpu.memory_space<vmem>>, vector<1x64xf32>
    %c7_127 = arith.constant 7 : index
    %c0_128 = arith.constant 0 : index
    %c0_129 = arith.constant 0 : index
    %269 = vector.load %arg2[%c7_127, %c0_128, %c0_129] : memref<31x64x64xbf16, #tpu.memory_space<vmem>>, vector<1x64x64xbf16>
    %270 = vector.shape_cast %269 : vector<1x64x64xbf16> to vector<64x64xbf16>
    %cst_130 = arith.constant dense<0.000000e+00> : vector<64x64xf32>
    %271 = tpu.matmul %270, %217, %cst_130 {dimension_numbers = #tpu.dot_dimension_numbers<[1], [0], [0], [1], [0, 0, 1, 1], [], []>} : vector<64x64xbf16>, vector<64x64xbf16>, vector<64x64xf32> -> vector<64x64xf32>
    %272 = vector.broadcast %268 : vector<1x64xf32> to vector<64x64xf32>
    %273 = arith.mulf %271, %272 : vector<64x64xf32>
    %274 = arith.addf %267, %273 : vector<64x64xf32>
    %c40 = arith.constant 40 : index
    %c0_131 = arith.constant 0 : index
    %275 = vector.load %arg7[%c40, %c0_131] : memref<64x64xf32, #tpu.memory_space<vmem>>, vector<1x64xf32>
    %c8_132 = arith.constant 8 : index
    %c0_133 = arith.constant 0 : index
    %c0_134 = arith.constant 0 : index
    %276 = vector.load %arg2[%c8_132, %c0_133, %c0_134] : memref<31x64x64xbf16, #tpu.memory_space<vmem>>, vector<1x64x64xbf16>
    %277 = vector.shape_cast %276 : vector<1x64x64xbf16> to vector<64x64xbf16>
    %cst_135 = arith.constant dense<0.000000e+00> : vector<64x64xf32>
    %278 = tpu.matmul %277, %217, %cst_135 {dimension_numbers = #tpu.dot_dimension_numbers<[1], [0], [0], [1], [0, 0, 1, 1], [], []>} : vector<64x64xbf16>, vector<64x64xbf16>, vector<64x64xf32> -> vector<64x64xf32>
    %279 = vector.broadcast %275 : vector<1x64xf32> to vector<64x64xf32>
    %280 = arith.mulf %278, %279 : vector<64x64xf32>
    %281 = arith.addf %274, %280 : vector<64x64xf32>
    %c41 = arith.constant 41 : index
    %c0_136 = arith.constant 0 : index
    %282 = vector.load %arg7[%c41, %c0_136] : memref<64x64xf32, #tpu.memory_space<vmem>>, vector<1x64xf32>
    %c9_137 = arith.constant 9 : index
    %c0_138 = arith.constant 0 : index
    %c0_139 = arith.constant 0 : index
    %283 = vector.load %arg2[%c9_137, %c0_138, %c0_139] : memref<31x64x64xbf16, #tpu.memory_space<vmem>>, vector<1x64x64xbf16>
    %284 = vector.shape_cast %283 : vector<1x64x64xbf16> to vector<64x64xbf16>
    %cst_140 = arith.constant dense<0.000000e+00> : vector<64x64xf32>
    %285 = tpu.matmul %284, %217, %cst_140 {dimension_numbers = #tpu.dot_dimension_numbers<[1], [0], [0], [1], [0, 0, 1, 1], [], []>} : vector<64x64xbf16>, vector<64x64xbf16>, vector<64x64xf32> -> vector<64x64xf32>
    %286 = vector.broadcast %282 : vector<1x64xf32> to vector<64x64xf32>
    %287 = arith.mulf %285, %286 : vector<64x64xf32>
    %288 = arith.addf %281, %287 : vector<64x64xf32>
    %c42 = arith.constant 42 : index
    %c0_141 = arith.constant 0 : index
    %289 = vector.load %arg7[%c42, %c0_141] : memref<64x64xf32, #tpu.memory_space<vmem>>, vector<1x64xf32>
    %c10_142 = arith.constant 10 : index
    %c0_143 = arith.constant 0 : index
    %c0_144 = arith.constant 0 : index
    %290 = vector.load %arg2[%c10_142, %c0_143, %c0_144] : memref<31x64x64xbf16, #tpu.memory_space<vmem>>, vector<1x64x64xbf16>
    %291 = vector.shape_cast %290 : vector<1x64x64xbf16> to vector<64x64xbf16>
    %cst_145 = arith.constant dense<0.000000e+00> : vector<64x64xf32>
    %292 = tpu.matmul %291, %217, %cst_145 {dimension_numbers = #tpu.dot_dimension_numbers<[1], [0], [0], [1], [0, 0, 1, 1], [], []>} : vector<64x64xbf16>, vector<64x64xbf16>, vector<64x64xf32> -> vector<64x64xf32>
    %293 = vector.broadcast %289 : vector<1x64xf32> to vector<64x64xf32>
    %294 = arith.mulf %292, %293 : vector<64x64xf32>
    %295 = arith.addf %288, %294 : vector<64x64xf32>
    %c43 = arith.constant 43 : index
    %c0_146 = arith.constant 0 : index
    %296 = vector.load %arg7[%c43, %c0_146] : memref<64x64xf32, #tpu.memory_space<vmem>>, vector<1x64xf32>
    %c11_147 = arith.constant 11 : index
    %c0_148 = arith.constant 0 : index
    %c0_149 = arith.constant 0 : index
    %297 = vector.load %arg2[%c11_147, %c0_148, %c0_149] : memref<31x64x64xbf16, #tpu.memory_space<vmem>>, vector<1x64x64xbf16>
    %298 = vector.shape_cast %297 : vector<1x64x64xbf16> to vector<64x64xbf16>
    %cst_150 = arith.constant dense<0.000000e+00> : vector<64x64xf32>
    %299 = tpu.matmul %298, %217, %cst_150 {dimension_numbers = #tpu.dot_dimension_numbers<[1], [0], [0], [1], [0, 0, 1, 1], [], []>} : vector<64x64xbf16>, vector<64x64xbf16>, vector<64x64xf32> -> vector<64x64xf32>
    %300 = vector.broadcast %296 : vector<1x64xf32> to vector<64x64xf32>
    %301 = arith.mulf %299, %300 : vector<64x64xf32>
    %302 = arith.addf %295, %301 : vector<64x64xf32>
    %c44 = arith.constant 44 : index
    %c0_151 = arith.constant 0 : index
    %303 = vector.load %arg7[%c44, %c0_151] : memref<64x64xf32, #tpu.memory_space<vmem>>, vector<1x64xf32>
    %c12_152 = arith.constant 12 : index
    %c0_153 = arith.constant 0 : index
    %c0_154 = arith.constant 0 : index
    %304 = vector.load %arg2[%c12_152, %c0_153, %c0_154] : memref<31x64x64xbf16, #tpu.memory_space<vmem>>, vector<1x64x64xbf16>
    %305 = vector.shape_cast %304 : vector<1x64x64xbf16> to vector<64x64xbf16>
    %cst_155 = arith.constant dense<0.000000e+00> : vector<64x64xf32>
    %306 = tpu.matmul %305, %217, %cst_155 {dimension_numbers = #tpu.dot_dimension_numbers<[1], [0], [0], [1], [0, 0, 1, 1], [], []>} : vector<64x64xbf16>, vector<64x64xbf16>, vector<64x64xf32> -> vector<64x64xf32>
    %307 = vector.broadcast %303 : vector<1x64xf32> to vector<64x64xf32>
    %308 = arith.mulf %306, %307 : vector<64x64xf32>
    %309 = arith.addf %302, %308 : vector<64x64xf32>
    %c45 = arith.constant 45 : index
    %c0_156 = arith.constant 0 : index
    %310 = vector.load %arg7[%c45, %c0_156] : memref<64x64xf32, #tpu.memory_space<vmem>>, vector<1x64xf32>
    %c13_157 = arith.constant 13 : index
    %c0_158 = arith.constant 0 : index
    %c0_159 = arith.constant 0 : index
    %311 = vector.load %arg2[%c13_157, %c0_158, %c0_159] : memref<31x64x64xbf16, #tpu.memory_space<vmem>>, vector<1x64x64xbf16>
    %312 = vector.shape_cast %311 : vector<1x64x64xbf16> to vector<64x64xbf16>
    %cst_160 = arith.constant dense<0.000000e+00> : vector<64x64xf32>
    %313 = tpu.matmul %312, %217, %cst_160 {dimension_numbers = #tpu.dot_dimension_numbers<[1], [0], [0], [1], [0, 0, 1, 1], [], []>} : vector<64x64xbf16>, vector<64x64xbf16>, vector<64x64xf32> -> vector<64x64xf32>
    %314 = vector.broadcast %310 : vector<1x64xf32> to vector<64x64xf32>
    %315 = arith.mulf %313, %314 : vector<64x64xf32>
    %316 = arith.addf %309, %315 : vector<64x64xf32>
    %c46 = arith.constant 46 : index
    %c0_161 = arith.constant 0 : index
    %317 = vector.load %arg7[%c46, %c0_161] : memref<64x64xf32, #tpu.memory_space<vmem>>, vector<1x64xf32>
    %c14 = arith.constant 14 : index
    %c0_162 = arith.constant 0 : index
    %c0_163 = arith.constant 0 : index
    %318 = vector.load %arg2[%c14, %c0_162, %c0_163] : memref<31x64x64xbf16, #tpu.memory_space<vmem>>, vector<1x64x64xbf16>
    %319 = vector.shape_cast %318 : vector<1x64x64xbf16> to vector<64x64xbf16>
    %cst_164 = arith.constant dense<0.000000e+00> : vector<64x64xf32>
    %320 = tpu.matmul %319, %217, %cst_164 {dimension_numbers = #tpu.dot_dimension_numbers<[1], [0], [0], [1], [0, 0, 1, 1], [], []>} : vector<64x64xbf16>, vector<64x64xbf16>, vector<64x64xf32> -> vector<64x64xf32>
    %321 = vector.broadcast %317 : vector<1x64xf32> to vector<64x64xf32>
    %322 = arith.mulf %320, %321 : vector<64x64xf32>
    %323 = arith.addf %316, %322 : vector<64x64xf32>
    %c47 = arith.constant 47 : index
    %c0_165 = arith.constant 0 : index
    %324 = vector.load %arg7[%c47, %c0_165] : memref<64x64xf32, #tpu.memory_space<vmem>>, vector<1x64xf32>
    %c15 = arith.constant 15 : index
    %c0_166 = arith.constant 0 : index
    %c0_167 = arith.constant 0 : index
    %325 = vector.load %arg2[%c15, %c0_166, %c0_167] : memref<31x64x64xbf16, #tpu.memory_space<vmem>>, vector<1x64x64xbf16>
    %326 = vector.shape_cast %325 : vector<1x64x64xbf16> to vector<64x64xbf16>
    %cst_168 = arith.constant dense<0.000000e+00> : vector<64x64xf32>
    %327 = tpu.matmul %326, %217, %cst_168 {dimension_numbers = #tpu.dot_dimension_numbers<[1], [0], [0], [1], [0, 0, 1, 1], [], []>} : vector<64x64xbf16>, vector<64x64xbf16>, vector<64x64xf32> -> vector<64x64xf32>
    %328 = vector.broadcast %324 : vector<1x64xf32> to vector<64x64xf32>
    %329 = arith.mulf %327, %328 : vector<64x64xf32>
    %330 = arith.addf %323, %329 : vector<64x64xf32>
    %c48 = arith.constant 48 : index
    %c0_169 = arith.constant 0 : index
    %331 = vector.load %arg7[%c48, %c0_169] : memref<64x64xf32, #tpu.memory_space<vmem>>, vector<1x64xf32>
    %c16 = arith.constant 16 : index
    %c0_170 = arith.constant 0 : index
    %c0_171 = arith.constant 0 : index
    %332 = vector.load %arg2[%c16, %c0_170, %c0_171] : memref<31x64x64xbf16, #tpu.memory_space<vmem>>, vector<1x64x64xbf16>
    %333 = vector.shape_cast %332 : vector<1x64x64xbf16> to vector<64x64xbf16>
    %cst_172 = arith.constant dense<0.000000e+00> : vector<64x64xf32>
    %334 = tpu.matmul %333, %217, %cst_172 {dimension_numbers = #tpu.dot_dimension_numbers<[1], [0], [0], [1], [0, 0, 1, 1], [], []>} : vector<64x64xbf16>, vector<64x64xbf16>, vector<64x64xf32> -> vector<64x64xf32>
    %335 = vector.broadcast %331 : vector<1x64xf32> to vector<64x64xf32>
    %336 = arith.mulf %334, %335 : vector<64x64xf32>
    %337 = arith.addf %330, %336 : vector<64x64xf32>
    %c49 = arith.constant 49 : index
    %c0_173 = arith.constant 0 : index
    %338 = vector.load %arg7[%c49, %c0_173] : memref<64x64xf32, #tpu.memory_space<vmem>>, vector<1x64xf32>
    %c17 = arith.constant 17 : index
    %c0_174 = arith.constant 0 : index
    %c0_175 = arith.constant 0 : index
    %339 = vector.load %arg2[%c17, %c0_174, %c0_175] : memref<31x64x64xbf16, #tpu.memory_space<vmem>>, vector<1x64x64xbf16>
    %340 = vector.shape_cast %339 : vector<1x64x64xbf16> to vector<64x64xbf16>
    %cst_176 = arith.constant dense<0.000000e+00> : vector<64x64xf32>
    %341 = tpu.matmul %340, %217, %cst_176 {dimension_numbers = #tpu.dot_dimension_numbers<[1], [0], [0], [1], [0, 0, 1, 1], [], []>} : vector<64x64xbf16>, vector<64x64xbf16>, vector<64x64xf32> -> vector<64x64xf32>
    %342 = vector.broadcast %338 : vector<1x64xf32> to vector<64x64xf32>
    %343 = arith.mulf %341, %342 : vector<64x64xf32>
    %344 = arith.addf %337, %343 : vector<64x64xf32>
    %c50 = arith.constant 50 : index
    %c0_177 = arith.constant 0 : index
    %345 = vector.load %arg7[%c50, %c0_177] : memref<64x64xf32, #tpu.memory_space<vmem>>, vector<1x64xf32>
    %c18 = arith.constant 18 : index
    %c0_178 = arith.constant 0 : index
    %c0_179 = arith.constant 0 : index
    %346 = vector.load %arg2[%c18, %c0_178, %c0_179] : memref<31x64x64xbf16, #tpu.memory_space<vmem>>, vector<1x64x64xbf16>
    %347 = vector.shape_cast %346 : vector<1x64x64xbf16> to vector<64x64xbf16>
    %cst_180 = arith.constant dense<0.000000e+00> : vector<64x64xf32>
    %348 = tpu.matmul %347, %217, %cst_180 {dimension_numbers = #tpu.dot_dimension_numbers<[1], [0], [0], [1], [0, 0, 1, 1], [], []>} : vector<64x64xbf16>, vector<64x64xbf16>, vector<64x64xf32> -> vector<64x64xf32>
    %349 = vector.broadcast %345 : vector<1x64xf32> to vector<64x64xf32>
    %350 = arith.mulf %348, %349 : vector<64x64xf32>
    %351 = arith.addf %344, %350 : vector<64x64xf32>
    %c51 = arith.constant 51 : index
    %c0_181 = arith.constant 0 : index
    %352 = vector.load %arg7[%c51, %c0_181] : memref<64x64xf32, #tpu.memory_space<vmem>>, vector<1x64xf32>
    %c19 = arith.constant 19 : index
    %c0_182 = arith.constant 0 : index
    %c0_183 = arith.constant 0 : index
    %353 = vector.load %arg2[%c19, %c0_182, %c0_183] : memref<31x64x64xbf16, #tpu.memory_space<vmem>>, vector<1x64x64xbf16>
    %354 = vector.shape_cast %353 : vector<1x64x64xbf16> to vector<64x64xbf16>
    %cst_184 = arith.constant dense<0.000000e+00> : vector<64x64xf32>
    %355 = tpu.matmul %354, %217, %cst_184 {dimension_numbers = #tpu.dot_dimension_numbers<[1], [0], [0], [1], [0, 0, 1, 1], [], []>} : vector<64x64xbf16>, vector<64x64xbf16>, vector<64x64xf32> -> vector<64x64xf32>
    %356 = vector.broadcast %352 : vector<1x64xf32> to vector<64x64xf32>
    %357 = arith.mulf %355, %356 : vector<64x64xf32>
    %358 = arith.addf %351, %357 : vector<64x64xf32>
    %c52 = arith.constant 52 : index
    %c0_185 = arith.constant 0 : index
    %359 = vector.load %arg7[%c52, %c0_185] : memref<64x64xf32, #tpu.memory_space<vmem>>, vector<1x64xf32>
    %c20 = arith.constant 20 : index
    %c0_186 = arith.constant 0 : index
    %c0_187 = arith.constant 0 : index
    %360 = vector.load %arg2[%c20, %c0_186, %c0_187] : memref<31x64x64xbf16, #tpu.memory_space<vmem>>, vector<1x64x64xbf16>
    %361 = vector.shape_cast %360 : vector<1x64x64xbf16> to vector<64x64xbf16>
    %cst_188 = arith.constant dense<0.000000e+00> : vector<64x64xf32>
    %362 = tpu.matmul %361, %217, %cst_188 {dimension_numbers = #tpu.dot_dimension_numbers<[1], [0], [0], [1], [0, 0, 1, 1], [], []>} : vector<64x64xbf16>, vector<64x64xbf16>, vector<64x64xf32> -> vector<64x64xf32>
    %363 = vector.broadcast %359 : vector<1x64xf32> to vector<64x64xf32>
    %364 = arith.mulf %362, %363 : vector<64x64xf32>
    %365 = arith.addf %358, %364 : vector<64x64xf32>
    %c53 = arith.constant 53 : index
    %c0_189 = arith.constant 0 : index
    %366 = vector.load %arg7[%c53, %c0_189] : memref<64x64xf32, #tpu.memory_space<vmem>>, vector<1x64xf32>
    %c21 = arith.constant 21 : index
    %c0_190 = arith.constant 0 : index
    %c0_191 = arith.constant 0 : index
    %367 = vector.load %arg2[%c21, %c0_190, %c0_191] : memref<31x64x64xbf16, #tpu.memory_space<vmem>>, vector<1x64x64xbf16>
    %368 = vector.shape_cast %367 : vector<1x64x64xbf16> to vector<64x64xbf16>
    %cst_192 = arith.constant dense<0.000000e+00> : vector<64x64xf32>
    %369 = tpu.matmul %368, %217, %cst_192 {dimension_numbers = #tpu.dot_dimension_numbers<[1], [0], [0], [1], [0, 0, 1, 1], [], []>} : vector<64x64xbf16>, vector<64x64xbf16>, vector<64x64xf32> -> vector<64x64xf32>
    %370 = vector.broadcast %366 : vector<1x64xf32> to vector<64x64xf32>
    %371 = arith.mulf %369, %370 : vector<64x64xf32>
    %372 = arith.addf %365, %371 : vector<64x64xf32>
    %c54 = arith.constant 54 : index
    %c0_193 = arith.constant 0 : index
    %373 = vector.load %arg7[%c54, %c0_193] : memref<64x64xf32, #tpu.memory_space<vmem>>, vector<1x64xf32>
    %c22 = arith.constant 22 : index
    %c0_194 = arith.constant 0 : index
    %c0_195 = arith.constant 0 : index
    %374 = vector.load %arg2[%c22, %c0_194, %c0_195] : memref<31x64x64xbf16, #tpu.memory_space<vmem>>, vector<1x64x64xbf16>
    %375 = vector.shape_cast %374 : vector<1x64x64xbf16> to vector<64x64xbf16>
    %cst_196 = arith.constant dense<0.000000e+00> : vector<64x64xf32>
    %376 = tpu.matmul %375, %217, %cst_196 {dimension_numbers = #tpu.dot_dimension_numbers<[1], [0], [0], [1], [0, 0, 1, 1], [], []>} : vector<64x64xbf16>, vector<64x64xbf16>, vector<64x64xf32> -> vector<64x64xf32>
    %377 = vector.broadcast %373 : vector<1x64xf32> to vector<64x64xf32>
    %378 = arith.mulf %376, %377 : vector<64x64xf32>
    %379 = arith.addf %372, %378 : vector<64x64xf32>
    %c55 = arith.constant 55 : index
    %c0_197 = arith.constant 0 : index
    %380 = vector.load %arg7[%c55, %c0_197] : memref<64x64xf32, #tpu.memory_space<vmem>>, vector<1x64xf32>
    %c23 = arith.constant 23 : index
    %c0_198 = arith.constant 0 : index
    %c0_199 = arith.constant 0 : index
    %381 = vector.load %arg2[%c23, %c0_198, %c0_199] : memref<31x64x64xbf16, #tpu.memory_space<vmem>>, vector<1x64x64xbf16>
    %382 = vector.shape_cast %381 : vector<1x64x64xbf16> to vector<64x64xbf16>
    %cst_200 = arith.constant dense<0.000000e+00> : vector<64x64xf32>
    %383 = tpu.matmul %382, %217, %cst_200 {dimension_numbers = #tpu.dot_dimension_numbers<[1], [0], [0], [1], [0, 0, 1, 1], [], []>} : vector<64x64xbf16>, vector<64x64xbf16>, vector<64x64xf32> -> vector<64x64xf32>
    %384 = vector.broadcast %380 : vector<1x64xf32> to vector<64x64xf32>
    %385 = arith.mulf %383, %384 : vector<64x64xf32>
    %386 = arith.addf %379, %385 : vector<64x64xf32>
    %c56 = arith.constant 56 : index
    %c0_201 = arith.constant 0 : index
    %387 = vector.load %arg7[%c56, %c0_201] : memref<64x64xf32, #tpu.memory_space<vmem>>, vector<1x64xf32>
    %c24_202 = arith.constant 24 : index
    %c0_203 = arith.constant 0 : index
    %c0_204 = arith.constant 0 : index
    %388 = vector.load %arg2[%c24_202, %c0_203, %c0_204] : memref<31x64x64xbf16, #tpu.memory_space<vmem>>, vector<1x64x64xbf16>
    %389 = vector.shape_cast %388 : vector<1x64x64xbf16> to vector<64x64xbf16>
    %cst_205 = arith.constant dense<0.000000e+00> : vector<64x64xf32>
    %390 = tpu.matmul %389, %217, %cst_205 {dimension_numbers = #tpu.dot_dimension_numbers<[1], [0], [0], [1], [0, 0, 1, 1], [], []>} : vector<64x64xbf16>, vector<64x64xbf16>, vector<64x64xf32> -> vector<64x64xf32>
    %391 = vector.broadcast %387 : vector<1x64xf32> to vector<64x64xf32>
    %392 = arith.mulf %390, %391 : vector<64x64xf32>
    %393 = arith.addf %386, %392 : vector<64x64xf32>
    %c57 = arith.constant 57 : index
    %c0_206 = arith.constant 0 : index
    %394 = vector.load %arg7[%c57, %c0_206] : memref<64x64xf32, #tpu.memory_space<vmem>>, vector<1x64xf32>
    %c25 = arith.constant 25 : index
    %c0_207 = arith.constant 0 : index
    %c0_208 = arith.constant 0 : index
    %395 = vector.load %arg2[%c25, %c0_207, %c0_208] : memref<31x64x64xbf16, #tpu.memory_space<vmem>>, vector<1x64x64xbf16>
    %396 = vector.shape_cast %395 : vector<1x64x64xbf16> to vector<64x64xbf16>
    %cst_209 = arith.constant dense<0.000000e+00> : vector<64x64xf32>
    %397 = tpu.matmul %396, %217, %cst_209 {dimension_numbers = #tpu.dot_dimension_numbers<[1], [0], [0], [1], [0, 0, 1, 1], [], []>} : vector<64x64xbf16>, vector<64x64xbf16>, vector<64x64xf32> -> vector<64x64xf32>
    %398 = vector.broadcast %394 : vector<1x64xf32> to vector<64x64xf32>
    %399 = arith.mulf %397, %398 : vector<64x64xf32>
    %400 = arith.addf %393, %399 : vector<64x64xf32>
    %c58 = arith.constant 58 : index
    %c0_210 = arith.constant 0 : index
    %401 = vector.load %arg7[%c58, %c0_210] : memref<64x64xf32, #tpu.memory_space<vmem>>, vector<1x64xf32>
    %c26 = arith.constant 26 : index
    %c0_211 = arith.constant 0 : index
    %c0_212 = arith.constant 0 : index
    %402 = vector.load %arg2[%c26, %c0_211, %c0_212] : memref<31x64x64xbf16, #tpu.memory_space<vmem>>, vector<1x64x64xbf16>
    %403 = vector.shape_cast %402 : vector<1x64x64xbf16> to vector<64x64xbf16>
    %cst_213 = arith.constant dense<0.000000e+00> : vector<64x64xf32>
    %404 = tpu.matmul %403, %217, %cst_213 {dimension_numbers = #tpu.dot_dimension_numbers<[1], [0], [0], [1], [0, 0, 1, 1], [], []>} : vector<64x64xbf16>, vector<64x64xbf16>, vector<64x64xf32> -> vector<64x64xf32>
    %405 = vector.broadcast %401 : vector<1x64xf32> to vector<64x64xf32>
    %406 = arith.mulf %404, %405 : vector<64x64xf32>
    %407 = arith.addf %400, %406 : vector<64x64xf32>
    %c59 = arith.constant 59 : index
    %c0_214 = arith.constant 0 : index
    %408 = vector.load %arg7[%c59, %c0_214] : memref<64x64xf32, #tpu.memory_space<vmem>>, vector<1x64xf32>
    %c27 = arith.constant 27 : index
    %c0_215 = arith.constant 0 : index
    %c0_216 = arith.constant 0 : index
    %409 = vector.load %arg2[%c27, %c0_215, %c0_216] : memref<31x64x64xbf16, #tpu.memory_space<vmem>>, vector<1x64x64xbf16>
    %410 = vector.shape_cast %409 : vector<1x64x64xbf16> to vector<64x64xbf16>
    %cst_217 = arith.constant dense<0.000000e+00> : vector<64x64xf32>
    %411 = tpu.matmul %410, %217, %cst_217 {dimension_numbers = #tpu.dot_dimension_numbers<[1], [0], [0], [1], [0, 0, 1, 1], [], []>} : vector<64x64xbf16>, vector<64x64xbf16>, vector<64x64xf32> -> vector<64x64xf32>
    %412 = vector.broadcast %408 : vector<1x64xf32> to vector<64x64xf32>
    %413 = arith.mulf %411, %412 : vector<64x64xf32>
    %414 = arith.addf %407, %413 : vector<64x64xf32>
    %c60 = arith.constant 60 : index
    %c0_218 = arith.constant 0 : index
    %415 = vector.load %arg7[%c60, %c0_218] : memref<64x64xf32, #tpu.memory_space<vmem>>, vector<1x64xf32>
    %c28 = arith.constant 28 : index
    %c0_219 = arith.constant 0 : index
    %c0_220 = arith.constant 0 : index
    %416 = vector.load %arg2[%c28, %c0_219, %c0_220] : memref<31x64x64xbf16, #tpu.memory_space<vmem>>, vector<1x64x64xbf16>
    %417 = vector.shape_cast %416 : vector<1x64x64xbf16> to vector<64x64xbf16>
    %cst_221 = arith.constant dense<0.000000e+00> : vector<64x64xf32>
    %418 = tpu.matmul %417, %217, %cst_221 {dimension_numbers = #tpu.dot_dimension_numbers<[1], [0], [0], [1], [0, 0, 1, 1], [], []>} : vector<64x64xbf16>, vector<64x64xbf16>, vector<64x64xf32> -> vector<64x64xf32>
    %419 = vector.broadcast %415 : vector<1x64xf32> to vector<64x64xf32>
    %420 = arith.mulf %418, %419 : vector<64x64xf32>
    %421 = arith.addf %414, %420 : vector<64x64xf32>
    %c61 = arith.constant 61 : index
    %c0_222 = arith.constant 0 : index
    %422 = vector.load %arg7[%c61, %c0_222] : memref<64x64xf32, #tpu.memory_space<vmem>>, vector<1x64xf32>
    %c29 = arith.constant 29 : index
    %c0_223 = arith.constant 0 : index
    %c0_224 = arith.constant 0 : index
    %423 = vector.load %arg2[%c29, %c0_223, %c0_224] : memref<31x64x64xbf16, #tpu.memory_space<vmem>>, vector<1x64x64xbf16>
    %424 = vector.shape_cast %423 : vector<1x64x64xbf16> to vector<64x64xbf16>
    %cst_225 = arith.constant dense<0.000000e+00> : vector<64x64xf32>
    %425 = tpu.matmul %424, %217, %cst_225 {dimension_numbers = #tpu.dot_dimension_numbers<[1], [0], [0], [1], [0, 0, 1, 1], [], []>} : vector<64x64xbf16>, vector<64x64xbf16>, vector<64x64xf32> -> vector<64x64xf32>
    %426 = vector.broadcast %422 : vector<1x64xf32> to vector<64x64xf32>
    %427 = arith.mulf %425, %426 : vector<64x64xf32>
    %428 = arith.addf %421, %427 : vector<64x64xf32>
    %c62 = arith.constant 62 : index
    %c0_226 = arith.constant 0 : index
    %429 = vector.load %arg7[%c62, %c0_226] : memref<64x64xf32, #tpu.memory_space<vmem>>, vector<1x64xf32>
    %c30 = arith.constant 30 : index
    %c0_227 = arith.constant 0 : index
    %c0_228 = arith.constant 0 : index
    %430 = vector.load %arg2[%c30, %c0_227, %c0_228] : memref<31x64x64xbf16, #tpu.memory_space<vmem>>, vector<1x64x64xbf16>
    %431 = vector.shape_cast %430 : vector<1x64x64xbf16> to vector<64x64xbf16>
    %cst_229 = arith.constant dense<0.000000e+00> : vector<64x64xf32>
    %432 = tpu.matmul %431, %217, %cst_229 {dimension_numbers = #tpu.dot_dimension_numbers<[1], [0], [0], [1], [0, 0, 1, 1], [], []>} : vector<64x64xbf16>, vector<64x64xbf16>, vector<64x64xf32> -> vector<64x64xf32>
    %433 = vector.broadcast %429 : vector<1x64xf32> to vector<64x64xf32>
    %434 = arith.mulf %432, %433 : vector<64x64xf32>
    %435 = arith.addf %428, %434 : vector<64x64xf32>
    %c14_230 = arith.constant 14 : index
    %c0_231 = arith.constant 0 : index
    %436 = vector.load %arg7[%c14_230, %c0_231] : memref<64x64xf32, #tpu.memory_space<vmem>>, vector<1x64xf32>
    %437 = vector.broadcast %436 : vector<1x64xf32> to vector<64x64xf32>
    %438 = arith.addf %435, %437 : vector<64x64xf32>
    %c15_232 = arith.constant 15 : index
    %c0_233 = arith.constant 0 : index
    %439 = vector.load %arg7[%c15_232, %c0_233] : memref<64x64xf32, #tpu.memory_space<vmem>>, vector<1x64xf32>
    %440 = vector.broadcast %439 : vector<1x64xf32> to vector<64x64xf32>
    %441 = arith.mulf %438, %440 : vector<64x64xf32>
    %c16_234 = arith.constant 16 : index
    %c0_235 = arith.constant 0 : index
    %442 = vector.load %arg7[%c16_234, %c0_235] : memref<64x64xf32, #tpu.memory_space<vmem>>, vector<1x64xf32>
    %443 = vector.broadcast %442 : vector<1x64xf32> to vector<64x64xf32>
    %444 = arith.addf %441, %443 : vector<64x64xf32>
    %445 = arith.negf %444 : vector<64x64xf32>
    %446 = math.exp %445 : vector<64x64xf32>
    %cst_236 = arith.constant 1.000000e+00 : f32
    %447 = vector.broadcast %cst_236 : f32 to vector<64x64xf32>
    %448 = arith.addf %447, %446 : vector<64x64xf32>
    %449 = arith.divf %447, %448 : vector<64x64xf32>
    %450 = arith.mulf %444, %449 : vector<64x64xf32>
    %451 = arith.truncf %450 : vector<64x64xf32> to vector<64x64xbf16>
    %c7_237 = arith.constant 7 : index
    %c0_238 = arith.constant 0 : index
    %c0_239 = arith.constant 0 : index
    %452 = vector.load %arg3[%c7_237, %c0_238, %c0_239] : memref<9x64x64xbf16, #tpu.memory_space<vmem>>, vector<1x64x64xbf16>
    %453 = vector.shape_cast %452 : vector<1x64x64xbf16> to vector<64x64xbf16>
    %cst_240 = arith.constant dense<0.000000e+00> : vector<64x64xf32>
    %454 = tpu.matmul %451, %453, %cst_240 {dimension_numbers = #tpu.dot_dimension_numbers<[1], [0], [0], [1], [0, 0, 1, 1], [], []>} : vector<64x64xbf16>, vector<64x64xbf16>, vector<64x64xf32> -> vector<64x64xf32>
    %c17_241 = arith.constant 17 : index
    %c0_242 = arith.constant 0 : index
    %455 = vector.load %arg7[%c17_241, %c0_242] : memref<64x64xf32, #tpu.memory_space<vmem>>, vector<1x64xf32>
    %456 = vector.broadcast %455 : vector<1x64xf32> to vector<64x64xf32>
    %457 = arith.addf %454, %456 : vector<64x64xf32>
    %458 = arith.addf %197, %457 : vector<64x64xf32>
    %cst_243 = arith.constant dense<0.000000e+00> : vector<64xf32>
    %459 = vector.multi_reduction <add>, %458, %cst_243 [1] : vector<64x64xf32> to vector<64xf32>
    %460 = vector.shape_cast %459 : vector<64xf32> to vector<64x1xf32>
    %cst_244 = arith.constant 6.400000e+01 : f32
    %461 = vector.broadcast %cst_244 : f32 to vector<64x1xf32>
    %462 = arith.divf %460, %461 : vector<64x1xf32>
    %463 = vector.broadcast %462 : vector<64x1xf32> to vector<64x64xf32>
    %464 = arith.subf %458, %463 : vector<64x64xf32>
    %465 = arith.mulf %464, %464 : vector<64x64xf32>
    %cst_245 = arith.constant dense<0.000000e+00> : vector<64xf32>
    %466 = vector.multi_reduction <add>, %465, %cst_245 [1] : vector<64x64xf32> to vector<64xf32>
    %467 = vector.shape_cast %466 : vector<64xf32> to vector<64x1xf32>
    %cst_246 = arith.constant 6.400000e+01 : f32
    %468 = vector.broadcast %cst_246 : f32 to vector<64x1xf32>
    %469 = arith.divf %467, %468 : vector<64x1xf32>
    %470 = vector.broadcast %462 : vector<64x1xf32> to vector<64x64xf32>
    %471 = arith.subf %458, %470 : vector<64x64xf32>
    %cst_247 = arith.constant 9.99999974E-6 : f32
    %472 = vector.broadcast %cst_247 : f32 to vector<64x1xf32>
    %473 = arith.addf %469, %472 : vector<64x1xf32>
    %474 = math.rsqrt %473 : vector<64x1xf32>
    %475 = vector.broadcast %474 : vector<64x1xf32> to vector<64x64xf32>
    %476 = arith.mulf %471, %475 : vector<64x64xf32>
    %c18_248 = arith.constant 18 : index
    %c0_249 = arith.constant 0 : index
    %477 = vector.load %arg7[%c18_248, %c0_249] : memref<64x64xf32, #tpu.memory_space<vmem>>, vector<1x64xf32>
    %478 = vector.broadcast %477 : vector<1x64xf32> to vector<64x64xf32>
    %479 = arith.mulf %476, %478 : vector<64x64xf32>
    %c19_250 = arith.constant 19 : index
    %c0_251 = arith.constant 0 : index
    %480 = vector.load %arg7[%c19_250, %c0_251] : memref<64x64xf32, #tpu.memory_space<vmem>>, vector<1x64xf32>
    %481 = vector.broadcast %480 : vector<1x64xf32> to vector<64x64xf32>
    %482 = arith.addf %479, %481 : vector<64x64xf32>
    %483 = arith.truncf %482 : vector<64x64xf32> to vector<64x64xbf16>
    %c1_252 = arith.constant 1 : index
    %c0_253 = arith.constant 0 : index
    %c0_254 = arith.constant 0 : index
    %484 = vector.load %arg4[%c1_252, %c0_253, %c0_254] : memref<2x64x256xbf16, #tpu.memory_space<vmem>>, vector<1x64x256xbf16>
    %485 = vector.shape_cast %484 : vector<1x64x256xbf16> to vector<64x256xbf16>
    %cst_255 = arith.constant dense<0.000000e+00> : vector<64x256xf32>
    %486 = tpu.matmul %483, %485, %cst_255 {dimension_numbers = #tpu.dot_dimension_numbers<[1], [0], [0], [1], [0, 0, 1, 1], [], []>} : vector<64x64xbf16>, vector<64x256xbf16>, vector<64x256xf32> -> vector<64x256xf32>
    %c1_256 = arith.constant 1 : index
    %c0_257 = arith.constant 0 : index
    %487 = vector.load %arg8[%c1_256, %c0_257] : memref<2x256xf32, #tpu.memory_space<vmem>>, vector<1x256xf32>
    %488 = vector.broadcast %487 : vector<1x256xf32> to vector<64x256xf32>
    %489 = arith.addf %486, %488 : vector<64x256xf32>
    %490 = arith.negf %489 : vector<64x256xf32>
    %491 = math.exp %490 : vector<64x256xf32>
    %cst_258 = arith.constant 1.000000e+00 : f32
    %492 = vector.broadcast %cst_258 : f32 to vector<64x256xf32>
    %493 = arith.addf %492, %491 : vector<64x256xf32>
    %494 = arith.divf %492, %493 : vector<64x256xf32>
    %495 = arith.mulf %489, %494 : vector<64x256xf32>
    %496 = arith.truncf %495 : vector<64x256xf32> to vector<64x256xbf16>
    %c1_259 = arith.constant 1 : index
    %c0_260 = arith.constant 0 : index
    %c0_261 = arith.constant 0 : index
    %497 = vector.load %arg5[%c1_259, %c0_260, %c0_261] : memref<2x256x64xbf16, #tpu.memory_space<vmem>>, vector<1x256x64xbf16>
    %498 = vector.shape_cast %497 : vector<1x256x64xbf16> to vector<256x64xbf16>
    %cst_262 = arith.constant dense<0.000000e+00> : vector<64x64xf32>
    %499 = tpu.matmul %496, %498, %cst_262 {dimension_numbers = #tpu.dot_dimension_numbers<[1], [0], [0], [1], [0, 0, 1, 1], [], []>} : vector<64x256xbf16>, vector<256x64xbf16>, vector<64x64xf32> -> vector<64x64xf32>
    %500 = arith.addf %482, %499 : vector<64x64xf32>
    %c20_263 = arith.constant 20 : index
    %c0_264 = arith.constant 0 : index
    %501 = vector.load %arg7[%c20_263, %c0_264] : memref<64x64xf32, #tpu.memory_space<vmem>>, vector<1x64xf32>
    %502 = vector.broadcast %501 : vector<1x64xf32> to vector<64x64xf32>
    %503 = arith.addf %500, %502 : vector<64x64xf32>
    %cst_265 = arith.constant dense<0.000000e+00> : vector<64xf32>
    %504 = vector.multi_reduction <add>, %503, %cst_265 [1] : vector<64x64xf32> to vector<64xf32>
    %505 = vector.shape_cast %504 : vector<64xf32> to vector<64x1xf32>
    %cst_266 = arith.constant 6.400000e+01 : f32
    %506 = vector.broadcast %cst_266 : f32 to vector<64x1xf32>
    %507 = arith.divf %505, %506 : vector<64x1xf32>
    %508 = vector.broadcast %507 : vector<64x1xf32> to vector<64x64xf32>
    %509 = arith.subf %503, %508 : vector<64x64xf32>
    %510 = arith.mulf %509, %509 : vector<64x64xf32>
    %cst_267 = arith.constant dense<0.000000e+00> : vector<64xf32>
    %511 = vector.multi_reduction <add>, %510, %cst_267 [1] : vector<64x64xf32> to vector<64xf32>
    %512 = vector.shape_cast %511 : vector<64xf32> to vector<64x1xf32>
    %cst_268 = arith.constant 6.400000e+01 : f32
    %513 = vector.broadcast %cst_268 : f32 to vector<64x1xf32>
    %514 = arith.divf %512, %513 : vector<64x1xf32>
    %515 = vector.broadcast %507 : vector<64x1xf32> to vector<64x64xf32>
    %516 = arith.subf %503, %515 : vector<64x64xf32>
    %cst_269 = arith.constant 9.99999974E-6 : f32
    %517 = vector.broadcast %cst_269 : f32 to vector<64x1xf32>
    %518 = arith.addf %514, %517 : vector<64x1xf32>
    %519 = math.rsqrt %518 : vector<64x1xf32>
    %520 = vector.broadcast %519 : vector<64x1xf32> to vector<64x64xf32>
    %521 = arith.mulf %516, %520 : vector<64x64xf32>
    %c21_270 = arith.constant 21 : index
    %c0_271 = arith.constant 0 : index
    %522 = vector.load %arg7[%c21_270, %c0_271] : memref<64x64xf32, #tpu.memory_space<vmem>>, vector<1x64xf32>
    %523 = vector.broadcast %522 : vector<1x64xf32> to vector<64x64xf32>
    %524 = arith.mulf %521, %523 : vector<64x64xf32>
    %c22_272 = arith.constant 22 : index
    %c0_273 = arith.constant 0 : index
    %525 = vector.load %arg7[%c22_272, %c0_273] : memref<64x64xf32, #tpu.memory_space<vmem>>, vector<1x64xf32>
    %526 = vector.broadcast %525 : vector<1x64xf32> to vector<64x64xf32>
    %527 = arith.addf %524, %526 : vector<64x64xf32>
    %528 = tpu.iota {dimensions = array<i32: 0>} : vector<2x64xi32>
    %529 = tpu.iota {dimensions = array<i32: 1>} : vector<2x64xi32>
    %c32_i32 = arith.constant 32 : i32
    %530 = vector.broadcast %c32_i32 : i32 to vector<2x64xi32>
    %531 = arith.muli %528, %530 : vector<2x64xi32>
    %532 = arith.cmpi sge, %529, %531 : vector<2x64xi32>
    %c32_i32_274 = arith.constant 32 : i32
    %533 = vector.broadcast %c32_i32_274 : i32 to vector<2x64xi32>
    %534 = arith.muli %528, %533 : vector<2x64xi32>
    %c30_i32_275 = arith.constant 30 : i32
    %535 = vector.broadcast %c30_i32_275 : i32 to vector<2x64xi32>
    %536 = arith.addi %534, %535 : vector<2x64xi32>
    %537 = arith.cmpi slt, %529, %536 : vector<2x64xi32>
    %538 = arith.andi %532, %537 : vector<2x64xi1>
    %cst_276 = arith.constant 0.0333333351 : f32
    %cst_277 = arith.constant 0.000000e+00 : f32
    %539 = vector.broadcast %cst_276 : f32 to vector<2x64xf32>
    %540 = vector.broadcast %cst_277 : f32 to vector<2x64xf32>
    %541 = arith.select %538, %539, %540 : vector<2x64xi1>, vector<2x64xf32>
    %cst_278 = arith.constant dense<0.000000e+00> : vector<2x64xf32>
    %542 = tpu.matmul %541, %527, %cst_278 {dimension_numbers = #tpu.dot_dimension_numbers<[1], [0], [0], [1], [0, 0, 1, 1], [], []>} : vector<2x64xf32>, vector<64x64xf32>, vector<2x64xf32> -> vector<2x64xf32>
    %543 = arith.truncf %542 : vector<2x64xf32> to vector<2x64xbf16>
    %c8_279 = arith.constant 8 : index
    %c0_280 = arith.constant 0 : index
    %c0_281 = arith.constant 0 : index
    %544 = vector.load %arg3[%c8_279, %c0_280, %c0_281] : memref<9x64x64xbf16, #tpu.memory_space<vmem>>, vector<1x64x64xbf16>
    %545 = vector.shape_cast %544 : vector<1x64x64xbf16> to vector<64x64xbf16>
    %cst_282 = arith.constant dense<0.000000e+00> : vector<2x64xf32>
    %546 = tpu.matmul %543, %545, %cst_282 {dimension_numbers = #tpu.dot_dimension_numbers<[1], [0], [0], [1], [0, 0, 1, 1], [], []>} : vector<2x64xbf16>, vector<64x64xbf16>, vector<2x64xf32> -> vector<2x64xf32>
    %c23_283 = arith.constant 23 : index
    %c0_284 = arith.constant 0 : index
    %547 = vector.load %arg7[%c23_283, %c0_284] : memref<64x64xf32, #tpu.memory_space<vmem>>, vector<1x64xf32>
    %548 = vector.broadcast %547 : vector<1x64xf32> to vector<2x64xf32>
    %549 = arith.addf %546, %548 : vector<2x64xf32>
    %550 = arith.truncf %549 : vector<2x64xf32> to vector<2x64xbf16>
    %c0_285 = arith.constant 0 : index
    %c0_286 = arith.constant 0 : index
    %551 = vector.load %arg6[%c0_285, %c0_286] : memref<64x128xbf16, #tpu.memory_space<vmem>>, vector<64x128xbf16>
    %cst_287 = arith.constant dense<0.000000e+00> : vector<2x128xf32>
    %552 = tpu.matmul %550, %551, %cst_287 {dimension_numbers = #tpu.dot_dimension_numbers<[1], [0], [0], [1], [0, 0, 1, 1], [], []>} : vector<2x64xbf16>, vector<64x128xbf16>, vector<2x128xf32> -> vector<2x128xf32>
    %c0_288 = arith.constant 0 : index
    %c0_289 = arith.constant 0 : index
    %553 = vector.load %arg9[%c0_288, %c0_289] : memref<2x128xf32, #tpu.memory_space<vmem>>, vector<2x128xf32>
    tpu.vector_store %arg9[%c0_288, %c0_289], %552 {strides = array<i32>} : memref<2x128xf32, #tpu.memory_space<vmem>>, vector<2x128xf32>,
    return
  }
}

</mosaic_0001>

<llo_original>
// kernel: tran_medical_forward.1
$region0: #{tran_medical_forward.1}
  #allocation0 [shape = 'u32[]', space=smem, size = 0x4, offset = 0x4, fixed_abs, tag = 'smem constant byte address 0x4 - core index']
  #allocation1 [shape = 'u32[144,128]{1,0:T(1,128)}', space=vmem, size = 0x12000, scoped, tag = 'internal scratch']
  %s0 = inlined_call_operand.vmem [shape: f32[64,8], index: 0, kind: input, shape index: {}]
  %s1 = inlined_call_operand.hbm [shape: f32[128,64], index: 1, kind: input, shape index: {}]
  %s2 = inlined_call_operand.hbm [shape: bf16[31,64,64], index: 2, kind: input, shape index: {}]
  %s3 = inlined_call_operand.vmem [shape: bf16[9,64,64], index: 3, kind: input, shape index: {}]
  %s4 = inlined_call_operand.vmem [shape: bf16[2,64,256], index: 4, kind: input, shape index: {}]
  %s5 = inlined_call_operand.vmem [shape: bf16[2,256,64], index: 5, kind: input, shape index: {}]
  %s6 = inlined_call_operand.hbm [shape: bf16[64,128], index: 6, kind: input, shape index: {}]
  %s7 = inlined_call_operand.vmem [shape: f32[64,64], index: 7, kind: input, shape index: {}]
  %s8 = inlined_call_operand.vmem [shape: f32[2,256], index: 8, kind: input, shape index: {}]
  %s9 = inlined_call_operand.hbm [shape: f32[2,128], index: 9, kind: output, shape index: {}]
  %s10 = sld [smem:[#allocation0]]
  $region58: #{tran_medical_forward.1} parent=0
    _
  %s12 = ssub.s32 1, %s10
  %s13 = scalar_select 0, %s12, %s10
  $region1: #{tran_medical_forward.1} parent=0
    #allocation2 [shape = 'u8[65536]{0}', space=vmem, size = 0x10000, scoped, tag = 'input window, operand 1, single buffered']
    #allocation3 [shape = 's32[1]{0}', space=sflag, size = 0x4, scoped, tag = 'scoped memory for tran_medical_forward.1']
    #allocation4 [shape = 's32[1]{0}', space=sflag, size = 0x4, scoped, tag = 'scoped memory for tran_medical_forward.1']
    #allocation5 [shape = 'u8[507904]{0}', space=vmem, size = 0x7c000, scoped, tag = 'input window, operand 2, single buffered']
    #allocation6 [shape = 's32[1]{0}', space=sflag, size = 0x4, scoped, tag = 'scoped memory for tran_medical_forward.1']
    #allocation7 [shape = 'u8[16384]{0}', space=vmem, size = 0x4000, scoped, tag = 'input window, operand 6, single buffered']
    #allocation8 [shape = 'u8[1024]{0}', space=vmem, size = 0x400, scoped, tag = 'output window, operand 0, single buffered']
    %14 = vsyncpa [#allocation3], 0
    %15 = vsyncpa [#allocation6], 0
    %16 = vsyncpa [#allocation4], 0
    // Predicated region
    $region2: #{tran_medical_forward.1} parent=1 // pred_check
      _
    $region3: #{tran_medical_forward.1} parent=1 // pred_check_branch
      %18 = sbr.rel (0) target = $region5
    $region4: #{tran_medical_forward.1} parent=1 // pred_region
      _
    $region5: #{tran_medical_forward.1} parent=1 // pred_fallthru
      _
    // Predicated region
    $region6: #{tran_medical_forward.1} parent=1 // pred_check
      _
    $region7: #{tran_medical_forward.1} parent=1 // pred_check_branch
      %20 = sbr.rel (0) target = $region9
    $region8: #{tran_medical_forward.1} parent=1 // pred_region
      %s22 = ssub.s32 2048, 2048
      %23 = vsyncadd [#allocation3], %s22
      %s24 = sshll.u32 [#allocation2], 4
      %s25 = int_to_ptr.vmem [resolvable:$true] %s24
      %30 = dma.hbm_to_vmem [thread:$0]  %s1, 2048, %s25, [#allocation3], 128, 128, 8
    $region9: #{tran_medical_forward.1} parent=1 // pred_fallthru
      _
    // Predicated region
    $region10: #{tran_medical_forward.1} parent=1 // pred_check
      _
    $region11: #{tran_medical_forward.1} parent=1 // pred_check_branch
      %32 = sbr.rel (0) target = $region13
    $region12: #{tran_medical_forward.1} parent=1 // pred_region
      %s34 = ssub.s32 15872, 15872
      %35 = vsyncadd [#allocation6], %s34
      %s36 = sshll.u32 [#allocation5], 4
      %s37 = int_to_ptr.vmem [resolvable:$true] %s36
      %42 = dma.hbm_to_vmem [thread:$0]  %s2, 15872, %s37, [#allocation6], 64, 64, 4
    $region13: #{tran_medical_forward.1} parent=1 // pred_fallthru
      _
    // Predicated region
    $region14: #{tran_medical_forward.1} parent=1 // pred_check
      _
    $region15: #{tran_medical_forward.1} parent=1 // pred_check_branch
      %44 = sbr.rel (0) target = $region17
    $region16: #{tran_medical_forward.1} parent=1 // pred_region
      _
    $region17: #{tran_medical_forward.1} parent=1 // pred_fallthru
      _
    // Predicated region
    $region18: #{tran_medical_forward.1} parent=1 // pred_check
      _
    $region19: #{tran_medical_forward.1} parent=1 // pred_check_branch
      %46 = sbr.rel (0) target = $region21
    $region20: #{tran_medical_forward.1} parent=1 // pred_region
      _
    $region21: #{tran_medical_forward.1} parent=1 // pred_fallthru
      _
    // Predicated region
    $region22: #{tran_medical_forward.1} parent=1 // pred_check
      _
    $region23: #{tran_medical_forward.1} parent=1 // pred_check_branch
      %48 = sbr.rel (0) target = $region25
    $region24: #{tran_medical_forward.1} parent=1 // pred_region
      _
    $region25: #{tran_medical_forward.1} parent=1 // pred_fallthru
      _
    // Predicated region
    $region26: #{tran_medical_forward.1} parent=1 // pred_check
      _
    $region27: #{tran_medical_forward.1} parent=1 // pred_check_branch
      %50 = sbr.rel (0) target = $region29
    $region28: #{tran_medical_forward.1} parent=1 // pred_region
      %s52 = ssub.s32 512, 512
      %53 = vsyncadd [#allocation6], %s52
      %s54 = sshll.u32 [#allocation7], 4
      %s55 = int_to_ptr.vmem [resolvable:$true] %s54
      %60 = dma.hbm_to_vmem [thread:$0]  %s6, 512, %s55, [#allocation6], 64, 64, 4
    $region29: #{tran_medical_forward.1} parent=1 // pred_fallthru
      _
    // Predicated region
    $region30: #{tran_medical_forward.1} parent=1 // pred_check
      _
    $region31: #{tran_medical_forward.1} parent=1 // pred_check_branch
      %62 = sbr.rel (0) target = $region33
    $region32: #{tran_medical_forward.1} parent=1 // pred_region
      _
    $region33: #{tran_medical_forward.1} parent=1 // pred_fallthru
      _
    // Predicated region
    $region34: #{tran_medical_forward.1} parent=1 // pred_check
      _
    $region35: #{tran_medical_forward.1} parent=1 // pred_check_branch
      %64 = sbr.rel (0) target = $region37
    $region36: #{tran_medical_forward.1} parent=1 // pred_region
      _
    $region37: #{tran_medical_forward.1} parent=1 // pred_fallthru
      _
    // Predicated region
    $region38: #{tran_medical_forward.1} parent=1 // pred_check
      _
    $region39: #{tran_medical_forward.1} parent=1 // pred_check_branch
      %66 = sbr.rel (0) target = $region41
    $region40: #{tran_medical_forward.1} parent=1 // pred_region
      %67 = dma.done [#allocation3], 2048
    $region41: #{tran_medical_forward.1} parent=1 // pred_fallthru
      _
    // Predicated region
    $region42: #{tran_medical_forward.1} parent=1 // pred_check
      _
    $region43: #{tran_medical_forward.1} parent=1 // pred_check_branch
      %69 = sbr.rel (0) target = $region45
    $region44: #{tran_medical_forward.1} parent=1 // pred_region
      %70 = dma.done [#allocation6], 15872
    $region45: #{tran_medical_forward.1} parent=1 // pred_fallthru
      _
    // Predicated region
    $region46: #{tran_medical_forward.1} parent=1 // pred_check
      _
    $region47: #{tran_medical_forward.1} parent=1 // pred_check_branch
      %72 = sbr.rel (0) target = $region49
    $region48: #{tran_medical_forward.1} parent=1 // pred_region
      %73 = dma.done [#allocation6], 512
    $region49: #{tran_medical_forward.1} parent=1 // pred_fallthru
      _
    %v75 = vld [vmem:[%s7 + $0x18] sm:$0xff]
    %v76 = vld [vmem:[%s0] sm:$0xff]
    %v77 = vld [vmem:[%s0 + $0x8] sm:$0xff]
    %v78 = vld [vmem:[%s0 + $0x10] sm:$0xff]
    %v79 = vld [vmem:[%s0 + $0x18] sm:$0xff]
    %v80 = vld [vmem:[%s0 + $0x20] sm:$0xff]
    %v81 = vld [vmem:[%s0 + $0x28] sm:$0xff]
    %v82 = vld [vmem:[%s0 + $0x30] sm:$0xff]
    %v83 = vld [vmem:[%s0 + $0x38] sm:$0xff]
    %v84 = vld [vmem:[%s7] sm:$0x1]
    %v85 = vlaneseq
    %v86 = vshrl.u32 %v85, 7
    %v87 = vsub.s32 0, %v86
    %v88 = vrot.slane %v84, %v87
    %vm89 = vcmask 64512
    %v91 = vsel %vm89, %v76, 0
    %v94 = vsel %vm89, %v77, 0
    %v97 = vsel %vm89, %v78, 0
    %v100 = vsel %vm89, %v79, 0
    %v103 = vsel %vm89, %v80, 0
    %v106 = vsel %vm89, %v81, 0
    %v109 = vsel %vm89, %v82, 0
    %v112 = vsel %vm89, %v83, 0
    %114 = vmatprep.subr.mxu0 0.0
    %115 = vmatpush1.msra.mxu0 %v75
    %116 = vmatprep.subr.mxu0 0.0
    %117 = vmatpush1.msra.mxu0 0.0
    %118 = vmatprep.subr.mxu0 0.0
    %119 = vmatpush1.msra.mxu0 0.0
    %120 = vmatprep.subr.mxu0 0.0
    %121 = vmatpush1.msra.mxu0 0.0
    %122 = vmatprep.subr.mxu0 0.0
    %123 = vmatpush1.msra.mxu0 0.0
    %124 = vmatprep.subr.mxu0 0.0
    %125 = vmatpush1.msra.mxu0 0.0
    %126 = vmatprep.subr.mxu0 0.0
    %127 = vmatpush1.msra.mxu0 0.0
    %128 = vmatprep.subr.mxu0 0.0
    %129 = vmatpush1.msra.mxu0 0.0
    %130 = vmatprep.subr.mxu0 0.0
    %131 = vmatpush1.msra.mxu0 0.0
    %132 = vmatprep.subr.mxu0 0.0
    %133 = vmatpush1.msra.mxu0 0.0
    %134 = vmatprep.subr.mxu0 0.0
    %135 = vmatpush1.msra.mxu0 0.0
    %136 = vmatprep.subr.mxu0 0.0
    %137 = vmatpush1.msra.mxu0 0.0
    %138 = vmatprep.subr.mxu0 0.0
    %139 = vmatpush1.msra.mxu0 0.0
    %140 = vmatprep.subr.mxu0 0.0
    %141 = vmatpush1.msra.mxu0 0.0
    %142 = vmatprep.subr.mxu0 0.0
    %143 = vmatpush1.msra.mxu0 0.0
    %144 = vmatprep.subr.mxu0 0.0
    %145 = vmatpush1.msra.mxu0 0.0
    %146 = vmatprep.subr.mxu0 0.0
    %147 = vmatpush1.msra.mxu0 0.0
    %148 = vmatprep.subr.mxu0 0.0
    %149 = vmatpush1.msra.mxu0 0.0
    %150 = vmatprep.subr.mxu0 0.0
    %151 = vmatpush1.msra.mxu0 0.0
    %152 = vmatprep.subr.mxu0 0.0
    %153 = vmatpush1.msra.mxu0 0.0
    %154 = vmatprep.subr.mxu0 0.0
    %155 = vmatpush1.msra.mxu0 0.0
    %156 = vmatprep.subr.mxu0 0.0
    %157 = vmatpush1.msra.mxu0 0.0
    %158 = vmatprep.subr.mxu0 0.0
    %159 = vmatpush1.msra.mxu0 0.0
    %160 = vmatprep.subr.mxu0 0.0
    %161 = vmatpush1.msra.mxu0 0.0
    %162 = vmatprep.subr.mxu0 0.0
    %163 = vmatpush1.msra.mxu0 0.0
    %164 = vmatprep.subr.mxu0 0.0
    %165 = vmatpush1.msra.mxu0 0.0
    %166 = vmatprep.subr.mxu0 0.0
    %167 = vmatpush1.msra.mxu0 0.0
    %168 = vmatprep.subr.mxu0 0.0
    %169 = vmatpush1.msra.mxu0 0.0
    %170 = vmatprep.subr.mxu0 0.0
    %171 = vmatpush1.msra.mxu0 0.0
    %172 = vmatprep.subr.mxu0 0.0
    %173 = vmatpush1.msra.mxu0 0.0
    %174 = vmatprep.subr.mxu0 0.0
    %175 = vmatpush1.msra.mxu0 0.0
    %176 = vmatprep.subr.mxu0 0.0
    %177 = vmatpush1.msra.mxu0 0.0
    %178 = vmatprep.mubr.f32.mxu0 0.0
    %179 = vmatmul.mubr.f32.gmra.mrb[0].mxu0 %v91
    %v180 = vpop.f32.mrb[0].mxu0
    %v181 = vadd.f32 %v88, %v180
    %v182 = vpop.f32.mrb[0].mxu0
    %183 = vmatprep.mubr.f32.mxu0 0.0
    %184 = vmatmul.mubr.f32.gmra.mrb[0].mxu0 %v94
    %v185 = vpop.f32.mrb[0].mxu0
    %v186 = vadd.f32 %v88, %v185
    %v187 = vpop.f32.mrb[0].mxu0
    %188 = vmatprep.mubr.f32.mxu0 0.0
    %189 = vmatmul.mubr.f32.gmra.mrb[0].mxu0 %v97
    %v190 = vpop.f32.mrb[0].mxu0
    %v191 = vadd.f32 %v88, %v190
    %v192 = vpop.f32.mrb[0].mxu0
    %193 = vmatprep.mubr.f32.mxu0 0.0
    %194 = vmatmul.mubr.f32.gmra.mrb[0].mxu0 %v100
    %v195 = vpop.f32.mrb[0].mxu0
    %v196 = vadd.f32 %v88, %v195
    %v197 = vpop.f32.mrb[0].mxu0
    %198 = vmatprep.mubr.f32.mxu0 0.0
    %199 = vmatmul.mubr.f32.gmra.mrb[0].mxu0 %v103
    %v200 = vpop.f32.mrb[0].mxu0
    %v201 = vadd.f32 %v88, %v200
    %v202 = vpop.f32.mrb[0].mxu0
    %203 = vmatprep.mubr.f32.mxu0 0.0
    %204 = vmatmul.mubr.f32.gmra.mrb[0].mxu0 %v106
    %v205 = vpop.f32.mrb[0].mxu0
    %v206 = vadd.f32 %v88, %v205
    %v207 = vpop.f32.mrb[0].mxu0
    %208 = vmatprep.mubr.f32.mxu0 0.0
    %209 = vmatmul.mubr.f32.gmra.mrb[0].mxu0 %v109
    %v210 = vpop.f32.mrb[0].mxu0
    %v211 = vadd.f32 %v88, %v210
    %v212 = vpop.f32.mrb[0].mxu0
    %213 = vmatprep.mubr.f32.mxu0 0.0
    %214 = vmatmul.mubr.f32.gmra.mrb[0].mxu0 %v112
    %v215 = vpop.f32.mrb[0].mxu0
    %v216 = vadd.f32 %v88, %v215
    %v217 = vpop.f32.mrb[0].mxu0
    %218 = vdwg.mxu0
    %v219 = vmax.f32 %v181, 0.0
    %v220 = vmax.f32 %v186, 0.0
    %v221 = vmax.f32 %v191, 0.0
    %v222 = vmax.f32 %v196, 0.0
    %v223 = vmax.f32 %v201, 0.0
    %v224 = vmax.f32 %v206, 0.0
    %v225 = vmax.f32 %v211, 0.0
    %v226 = vmax.f32 %v216, 0.0
    %v227 = vpack.c.bf16 %v220, %v219
    %v228 = vpack.c.bf16 %v222, %v221
    %v229 = vpack.c.bf16 %v224, %v223
    %v230 = vpack.c.bf16 %v226, %v225
    %v231 = vld [vmem:[%s3] sm:$0xf]
    %v232 = vld [vmem:[%s3 + $0x4] sm:$0xf]
    %v233 = vld [vmem:[%s3 + $0x8] sm:$0xf]
    %v234 = vld [vmem:[%s3 + $0xc] sm:$0xf]
    %v235 = vld [vmem:[%s3 + $0x10] sm:$0xf]
    %v236 = vld [vmem:[%s3 + $0x14] sm:$0xf]
    %v237 = vld [vmem:[%s3 + $0x18] sm:$0xf]
    %v238 = vld [vmem:[%s3 + $0x1c] sm:$0xf]
    %v239 = vld [vmem:[%s7 + $0x1] sm:$0x1]
    %v240 = vlaneseq
    %v241 = vshrl.u32 %v240, 7
    %v242 = vsub.s32 0, %v241
    %v243 = vrot.slane %v239, %v242
    %v252 = vunpack.c.l.b16 %v231
    %v253 = vunpack.c.l.b16 %v232
    %v254 = vunpack.c.l.b16 %v233
    %v255 = vunpack.c.l.b16 %v234
    %v256 = vunpack.c.l.b16 %v235
    %v257 = vunpack.c.l.b16 %v236
    %v258 = vunpack.c.l.b16 %v237
    %v259 = vunpack.c.l.b16 %v238
    %v260 = vpack.c.b16 %v253, %v252
    %v261 = vpack.c.b16 %v255, %v254
    %v262 = vpack.c.b16 %v257, %v256
    %v263 = vpack.c.b16 %v259, %v258
    %vm268 = vcmask 523264
    %v270 = vsel %vm268, %v227, 0
    %v273 = vsel %vm268, %v228, 0
    %v276 = vsel %vm268, %v229, 0
    %v279 = vsel %vm268, %v230, 0
    %281 = vmatprep.subr.bf16.mxu0 0
    %282 = vmatpush1.bf16.msra.mxu0 %v260
    %283 = vmatprep.subr.bf16.mxu0 0
    %284 = vmatpush1.bf16.msra.mxu0 %v261
    %285 = vmatprep.subr.bf16.mxu0 0
    %286 = vmatpush1.bf16.msra.mxu0 %v262
    %287 = vmatprep.subr.bf16.mxu0 0
    %288 = vmatpush1.bf16.msra.mxu0 %v263
    %289 = vmatprep.subr.bf16.mxu0 0
    %290 = vmatpush1.bf16.msra.mxu0 0
    %291 = vmatprep.subr.bf16.mxu0 0
    %292 = vmatpush1.bf16.msra.mxu0 0
    %293 = vmatprep.subr.bf16.mxu0 0
    %294 = vmatpush1.bf16.msra.mxu0 0
    %295 = vmatprep.subr.bf16.mxu0 0
    %296 = vmatpush1.bf16.msra.mxu0 0
    %297 = vmatprep.subr.bf16.mxu0 0
    %298 = vmatpush1.bf16.msra.mxu0 0
    %299 = vmatprep.subr.bf16.mxu0 0
    %300 = vmatpush1.bf16.msra.mxu0 0
    %301 = vmatprep.subr.bf16.mxu0 0
    %302 = vmatpush1.bf16.msra.mxu0 0
    %303 = vmatprep.subr.bf16.mxu0 0
    %304 = vmatpush1.bf16.msra.mxu0 0
    %305 = vmatprep.subr.bf16.mxu0 0
    %306 = vmatpush1.bf16.msra.mxu0 0
    %307 = vmatprep.subr.bf16.mxu0 0
    %308 = vmatpush1.bf16.msra.mxu0 0
    %309 = vmatprep.subr.bf16.mxu0 0
    %310 = vmatpush1.bf16.msra.mxu0 0
    %311 = vmatprep.subr.bf16.mxu0 0
    %312 = vmatpush1.bf16.msra.mxu0 0
    %313 = vmatprep.mubr.bf16.mxu0 0
    %314 = vmatmul.mubr.bf16.gmra.mrb[0].mxu0 %v270
    %v315 = vpop.f32.mrb[0].mxu0
    %v316 = vadd.f32 %v243, %v315
    %v317 = vpop.f32.mrb[0].mxu0
    %v318 = vpop.f32.mrb[0].mxu0
    %v319 = vadd.f32 %v243, %v318
    %v320 = vpop.f32.mrb[0].mxu0
    %321 = vmatprep.mubr.bf16.mxu0 0
    %322 = vmatmul.mubr.bf16.gmra.mrb[0].mxu0 %v273
    %v323 = vpop.f32.mrb[0].mxu0
    %v324 = vadd.f32 %v243, %v323
    %v325 = vpop.f32.mrb[0].mxu0
    %v326 = vpop.f32.mrb[0].mxu0
    %v327 = vadd.f32 %v243, %v326
    %v328 = vpop.f32.mrb[0].mxu0
    %329 = vmatprep.mubr.bf16.mxu0 0
    %330 = vmatmul.mubr.bf16.gmra.mrb[0].mxu0 %v276
    %v331 = vpop.f32.mrb[0].mxu0
    %v332 = vadd.f32 %v243, %v331
    %v333 = vpop.f32.mrb[0].mxu0
    %v334 = vpop.f32.mrb[0].mxu0
    %v335 = vadd.f32 %v243, %v334
    %v336 = vpop.f32.mrb[0].mxu0
    %337 = vmatprep.mubr.bf16.mxu0 0
    %338 = vmatmul.mubr.bf16.gmra.mrb[0].mxu0 %v279
    %v339 = vpop.f32.mrb[0].mxu0
    %v340 = vadd.f32 %v243, %v339
    %v341 = vpop.f32.mrb[0].mxu0
    %v342 = vpop.f32.mrb[0].mxu0
    %v343 = vadd.f32 %v243, %v342
    %v344 = vpop.f32.mrb[0].mxu0
    %345 = vdwg.mxu0
    %s346 = scalar_lea.vmem %s3, 32
    %v347 = vld [vmem:[%s346] sm:$0xf]
    %v348 = vld [vmem:[%s346 + $0x4] sm:$0xf]
    %v349 = vld [vmem:[%s346 + $0x8] sm:$0xf]
    %v350 = vld [vmem:[%s346 + $0xc] sm:$0xf]
    %v351 = vld [vmem:[%s346 + $0x10] sm:$0xf]
    %v352 = vld [vmem:[%s346 + $0x14] sm:$0xf]
    %v353 = vld [vmem:[%s346 + $0x18] sm:$0xf]
    %v354 = vld [vmem:[%s346 + $0x1c] sm:$0xf]
    %v355 = vld [vmem:[%s7 + $0x2] sm:$0x1]
    %v356 = vlaneseq
    %v357 = vshrl.u32 %v356, 7
    %v358 = vsub.s32 0, %v357
    %v359 = vrot.slane %v355, %v358
    %v368 = vunpack.c.l.b16 %v347
    %v369 = vunpack.c.l.b16 %v348
    %v370 = vunpack.c.l.b16 %v349
    %v371 = vunpack.c.l.b16 %v350
    %v372 = vunpack.c.l.b16 %v351
    %v373 = vunpack.c.l.b16 %v352
    %v374 = vunpack.c.l.b16 %v353
    %v375 = vunpack.c.l.b16 %v354
    %v376 = vpack.c.b16 %v369, %v368
    %v377 = vpack.c.b16 %v371, %v370
    %v378 = vpack.c.b16 %v373, %v372
    %v379 = vpack.c.b16 %v375, %v374
    %384 = vmatprep.subr.bf16.mxu0 0
    %385 = vmatpush1.bf16.msra.mxu0 %v376
    %386 = vmatprep.subr.bf16.mxu0 0
    %387 = vmatpush1.bf16.msra.mxu0 %v377
    %388 = vmatprep.subr.bf16.mxu0 0
    %389 = vmatpush1.bf16.msra.mxu0 %v378
    %390 = vmatprep.subr.bf16.mxu0 0
    %391 = vmatpush1.bf16.msra.mxu0 %v379
    %392 = vmatprep.subr.bf16.mxu0 0
    %393 = vmatpush1.bf16.msra.mxu0 0
    %394 = vmatprep.subr.bf16.mxu0 0
    %395 = vmatpush1.bf16.msra.mxu0 0
    %396 = vmatprep.subr.bf16.mxu0 0
    %397 = vmatpush1.bf16.msra.mxu0 0
    %398 = vmatprep.subr.bf16.mxu0 0
    %399 = vmatpush1.bf16.msra.mxu0 0
    %400 = vmatprep.subr.bf16.mxu0 0
    %401 = vmatpush1.bf16.msra.mxu0 0
    %402 = vmatprep.subr.bf16.mxu0 0
    %403 = vmatpush1.bf16.msra.mxu0 0
    %404 = vmatprep.subr.bf16.mxu0 0
    %405 = vmatpush1.bf16.msra.mxu0 0
    %406 = vmatprep.subr.bf16.mxu0 0
    %407 = vmatpush1.bf16.msra.mxu0 0
    %408 = vmatprep.subr.bf16.mxu0 0
    %409 = vmatpush1.bf16.msra.mxu0 0
    %410 = vmatprep.subr.bf16.mxu0 0
    %411 = vmatpush1.bf16.msra.mxu0 0
    %412 = vmatprep.subr.bf16.mxu0 0
    %413 = vmatpush1.bf16.msra.mxu0 0
    %414 = vmatprep.subr.bf16.mxu0 0
    %415 = vmatpush1.bf16.msra.mxu0 0
    %416 = vmatprep.mubr.bf16.mxu0 0
    %417 = vmatmul.mubr.bf16.gmra.mrb[0].mxu0 %v270
    %v418 = vpop.f32.mrb[0].mxu0
    %v419 = vadd.f32 %v359, %v418
    %v420 = vpop.f32.mrb[0].mxu0
    %v421 = vpop.f32.mrb[0].mxu0
    %v422 = vadd.f32 %v359, %v421
    %v423 = vpop.f32.mrb[0].mxu0
    %424 = vmatprep.mubr.bf16.mxu0 0
    %425 = vmatmul.mubr.bf16.gmra.mrb[0].mxu0 %v273
    %v426 = vpop.f32.mrb[0].mxu0
    %v427 = vadd.f32 %v359, %v426
    %v428 = vpop.f32.mrb[0].mxu0
    %v429 = vpop.f32.mrb[0].mxu0
    %v430 = vadd.f32 %v359, %v429
    %v431 = vpop.f32.mrb[0].mxu0
    %432 = vmatprep.mubr.bf16.mxu0 0
    %433 = vmatmul.mubr.bf16.gmra.mrb[0].mxu0 %v276
    %v434 = vpop.f32.mrb[0].mxu0
    %v435 = vadd.f32 %v359, %v434
    %v436 = vpop.f32.mrb[0].mxu0
    %v437 = vpop.f32.mrb[0].mxu0
    %v438 = vadd.f32 %v359, %v437
    %v439 = vpop.f32.mrb[0].mxu0
    %440 = vmatprep.mubr.bf16.mxu0 0
    %441 = vmatmul.mubr.bf16.gmra.mrb[0].mxu0 %v279
    %v442 = vpop.f32.mrb[0].mxu0
    %v443 = vadd.f32 %v359, %v442
    %v444 = vpop.f32.mrb[0].mxu0
    %v445 = vpop.f32.mrb[0].mxu0
    %v446 = vadd.f32 %v359, %v445
    %v447 = vpop.f32.mrb[0].mxu0
    %448 = vdwg.mxu0
    %s449 = scalar_lea.vmem %s3, 64
    %v450 = vld [vmem:[%s449] sm:$0xf]
    %v451 = vld [vmem:[%s449 + $0x4] sm:$0xf]
    %v452 = vld [vmem:[%s449 + $0x8] sm:$0xf]
    %v453 = vld [vmem:[%s449 + $0xc] sm:$0xf]
    %v454 = vld [vmem:[%s449 + $0x10] sm:$0xf]
    %v455 = vld [vmem:[%s449 + $0x14] sm:$0xf]
    %v456 = vld [vmem:[%s449 + $0x18] sm:$0xf]
    %v457 = vld [vmem:[%s449 + $0x1c] sm:$0xf]
    %v458 = vld [vmem:[%s7 + $0x3] sm:$0x1]
    %v459 = vlaneseq
    %v460 = vshrl.u32 %v459, 7
    %v461 = vsub.s32 0, %v460
    %v462 = vrot.slane %v458, %v461
    %v471 = vunpack.c.l.b16 %v450
    %v472 = vunpack.c.l.b16 %v451
    %v473 = vunpack.c.l.b16 %v452
    %v474 = vunpack.c.l.b16 %v453
    %v475 = vunpack.c.l.b16 %v454
    %v476 = vunpack.c.l.b16 %v455
    %v477 = vunpack.c.l.b16 %v456
    %v478 = vunpack.c.l.b16 %v457
    %v479 = vpack.c.b16 %v472, %v471
    %v480 = vpack.c.b16 %v474, %v473
    %v481 = vpack.c.b16 %v476, %v475
    %v482 = vpack.c.b16 %v478, %v477
    %487 = vmatprep.subr.bf16.mxu0 0
    %488 = vmatpush1.bf16.msra.mxu0 %v479
    %489 = vmatprep.subr.bf16.mxu0 0
    %490 = vmatpush1.bf16.msra.mxu0 %v480
    %491 = vmatprep.subr.bf16.mxu0 0
    %492 = vmatpush1.bf16.msra.mxu0 %v481
    %493 = vmatprep.subr.bf16.mxu0 0
    %494 = vmatpush1.bf16.msra.mxu0 %v482
    %495 = vmatprep.subr.bf16.mxu0 0
    %496 = vmatpush1.bf16.msra.mxu0 0
    %497 = vmatprep.subr.bf16.mxu0 0
    %498 = vmatpush1.bf16.msra.mxu0 0
    %499 = vmatprep.subr.bf16.mxu0 0
    %500 = vmatpush1.bf16.msra.mxu0 0
    %501 = vmatprep.subr.bf16.mxu0 0
    %502 = vmatpush1.bf16.msra.mxu0 0
    %503 = vmatprep.subr.bf16.mxu0 0
    %504 = vmatpush1.bf16.msra.mxu0 0
    %505 = vmatprep.subr.bf16.mxu0 0
    %506 = vmatpush1.bf16.msra.mxu0 0
    %507 = vmatprep.subr.bf16.mxu0 0
    %508 = vmatpush1.bf16.msra.mxu0 0
    %509 = vmatprep.subr.bf16.mxu0 0
    %510 = vmatpush1.bf16.msra.mxu0 0
    %511 = vmatprep.subr.bf16.mxu0 0
    %512 = vmatpush1.bf16.msra.mxu0 0
    %513 = vmatprep.subr.bf16.mxu0 0
    %514 = vmatpush1.bf16.msra.mxu0 0
    %515 = vmatprep.subr.bf16.mxu0 0
    %516 = vmatpush1.bf16.msra.mxu0 0
    %517 = vmatprep.subr.bf16.mxu0 0
    %518 = vmatpush1.bf16.msra.mxu0 0
    %519 = vmatprep.mubr.bf16.mxu0 0
    %520 = vmatmul.mubr.bf16.gmra.mrb[0].mxu0 %v270
    %v521 = vpop.f32.mrb[0].mxu0
    %v522 = vadd.f32 %v462, %v521
    %v523 = vpop.f32.mrb[0].mxu0
    %v524 = vpop.f32.mrb[0].mxu0
    %v525 = vadd.f32 %v462, %v524
    %v526 = vpop.f32.mrb[0].mxu0
    %527 = vmatprep.mubr.bf16.mxu0 0
    %528 = vmatmul.mubr.bf16.gmra.mrb[0].mxu0 %v273
    %v529 = vpop.f32.mrb[0].mxu0
    %v530 = vadd.f32 %v462, %v529
    %v531 = vpop.f32.mrb[0].mxu0
    %v532 = vpop.f32.mrb[0].mxu0
    %v533 = vadd.f32 %v462, %v532
    %v534 = vpop.f32.mrb[0].mxu0
    %535 = vmatprep.mubr.bf16.mxu0 0
    %536 = vmatmul.mubr.bf16.gmra.mrb[0].mxu0 %v276
    %v537 = vpop.f32.mrb[0].mxu0
    %v538 = vadd.f32 %v462, %v537
    %v539 = vpop.f32.mrb[0].mxu0
    %v540 = vpop.f32.mrb[0].mxu0
    %v541 = vadd.f32 %v462, %v540
    %v542 = vpop.f32.mrb[0].mxu0
    %543 = vmatprep.mubr.bf16.mxu0 0
    %544 = vmatmul.mubr.bf16.gmra.mrb[0].mxu0 %v279
    %v545 = vpop.f32.mrb[0].mxu0
    %v546 = vadd.f32 %v462, %v545
    %v547 = vpop.f32.mrb[0].mxu0
    %v548 = vpop.f32.mrb[0].mxu0
    %v549 = vadd.f32 %v462, %v548
    %v550 = vpop.f32.mrb[0].mxu0
    %551 = vdwg.mxu0
    %v552 = vld [vmem:[#allocation2] sm:$0xff]
    %v553 = vld [vmem:[#allocation2 + $0x8] sm:$0xff]
    %v554 = vld [vmem:[#allocation2 + $0x10] sm:$0xff]
    %v555 = vld [vmem:[#allocation2 + $0x18] sm:$0xff]
    %v556 = vld [vmem:[#allocation2 + $0x20] sm:$0xff]
    %v557 = vld [vmem:[#allocation2 + $0x28] sm:$0xff]
    %v558 = vld [vmem:[#allocation2 + $0x30] sm:$0xff]
    %v559 = vld [vmem:[#allocation2 + $0x38] sm:$0xff]
    %v560 = vld [vmem:[#allocation2 + $0x40] sm:$0xff]
    %v561 = vld [vmem:[#allocation2 + $0x48] sm:$0xff]
    %v562 = vld [vmem:[#allocation2 + $0x50] sm:$0xff]
    %v563 = vld [vmem:[#allocation2 + $0x58] sm:$0xff]
    %v564 = vld [vmem:[#allocation2 + $0x60] sm:$0xff]
    %v565 = vld [vmem:[#allocation2 + $0x68] sm:$0xff]
    %v566 = vld [vmem:[#allocation2 + $0x70] sm:$0xff]
    %v567 = vld [vmem:[#allocation2 + $0x78] sm:$0xff]
    %v568 = vpack.c.bf16 %v553, %v552
    %v569 = vpack.c.bf16 %v555, %v554
    %v570 = vpack.c.bf16 %v557, %v556
    %v571 = vpack.c.bf16 %v559, %v558
    %v572 = vpack.c.bf16 %v561, %v560
    %v573 = vpack.c.bf16 %v563, %v562
    %v574 = vpack.c.bf16 %v565, %v564
    %v575 = vpack.c.bf16 %v567, %v566
    %s576 = scalar_lea.vmem %s3, 96
    %v577 = vld [vmem:[%s576] sm:$0xf]
    %v578 = vld [vmem:[%s576 + $0x4] sm:$0xf]
    %v579 = vld [vmem:[%s576 + $0x8] sm:$0xf]
    %v580 = vld [vmem:[%s576 + $0xc] sm:$0xf]
    %v581 = vld [vmem:[%s576 + $0x10] sm:$0xf]
    %v582 = vld [vmem:[%s576 + $0x14] sm:$0xf]
    %v583 = vld [vmem:[%s576 + $0x18] sm:$0xf]
    %v584 = vld [vmem:[%s576 + $0x1c] sm:$0xf]
    %v593 = vunpack.c.l.b16 %v577
    %v594 = vunpack.c.l.b16 %v578
    %v595 = vunpack.c.l.b16 %v579
    %v596 = vunpack.c.l.b16 %v580
    %v597 = vunpack.c.l.b16 %v581
    %v598 = vunpack.c.l.b16 %v582
    %v599 = vunpack.c.l.b16 %v583
    %v600 = vunpack.c.l.b16 %v584
    %v601 = vpack.c.b16 %v594, %v593
    %v602 = vpack.c.b16 %v596, %v595
    %v603 = vpack.c.b16 %v598, %v597
    %v604 = vpack.c.b16 %v600, %v599
    %v610 = vsel %vm268, %v568, 0
    %v613 = vsel %vm268, %v569, 0
    %v616 = vsel %vm268, %v570, 0
    %v619 = vsel %vm268, %v571, 0
    %v622 = vsel %vm268, %v572, 0
    %v625 = vsel %vm268, %v573, 0
    %v628 = vsel %vm268, %v574, 0
    %v631 = vsel %vm268, %v575, 0
    %633 = vmatprep.subr.bf16.mxu0 0
    %634 = vmatpush1.bf16.msra.mxu0 %v601
    %635 = vmatprep.subr.bf16.mxu0 0
    %636 = vmatpush1.bf16.msra.mxu0 %v602
    %637 = vmatprep.subr.bf16.mxu0 0
    %638 = vmatpush1.bf16.msra.mxu0 %v603
    %639 = vmatprep.subr.bf16.mxu0 0
    %640 = vmatpush1.bf16.msra.mxu0 %v604
    %641 = vmatprep.subr.bf16.mxu0 0
    %642 = vmatpush1.bf16.msra.mxu0 0
    %643 = vmatprep.subr.bf16.mxu0 0
    %644 = vmatpush1.bf16.msra.mxu0 0
    %645 = vmatprep.subr.bf16.mxu0 0
    %646 = vmatpush1.bf16.msra.mxu0 0
    %647 = vmatprep.subr.bf16.mxu0 0
    %648 = vmatpush1.bf16.msra.mxu0 0
    %649 = vmatprep.subr.bf16.mxu0 0
    %650 = vmatpush1.bf16.msra.mxu0 0
    %651 = vmatprep.subr.bf16.mxu0 0
    %652 = vmatpush1.bf16.msra.mxu0 0
    %653 = vmatprep.subr.bf16.mxu0 0
    %654 = vmatpush1.bf16.msra.mxu0 0
    %655 = vmatprep.subr.bf16.mxu0 0
    %656 = vmatpush1.bf16.msra.mxu0 0
    %657 = vmatprep.subr.bf16.mxu0 0
    %658 = vmatpush1.bf16.msra.mxu0 0
    %659 = vmatprep.subr.bf16.mxu0 0
    %660 = vmatpush1.bf16.msra.mxu0 0
    %661 = vmatprep.subr.bf16.mxu0 0
    %662 = vmatpush1.bf16.msra.mxu0 0
    %663 = vmatprep.subr.bf16.mxu0 0
    %664 = vmatpush1.bf16.msra.mxu0 0
    %665 = vmatprep.mubr.bf16.mxu0 0
    %666 = vmatmul.mubr.bf16.gmra.mrb[0].mxu0 %v610
    %v667 = vpop.f32.mrb[0].mxu0
    %v668 = vadd.f32 0.0, %v667
    %v669 = vpop.f32.mrb[0].mxu0
    %v670 = vpop.f32.mrb[0].mxu0
    %v671 = vadd.f32 0.0, %v670
    %v672 = vpop.f32.mrb[0].mxu0
    %673 = vmatprep.mubr.bf16.mxu0 0
    %674 = vmatmul.mubr.bf16.gmra.mrb[0].mxu0 %v613
    %v675 = vpop.f32.mrb[0].mxu0
    %v676 = vadd.f32 0.0, %v675
    %v677 = vpop.f32.mrb[0].mxu0
    %v678 = vpop.f32.mrb[0].mxu0
    %v679 = vadd.f32 0.0, %v678
    %v680 = vpop.f32.mrb[0].mxu0
    %681 = vmatprep.mubr.bf16.mxu0 0
    %682 = vmatmul.mubr.bf16.gmra.mrb[0].mxu0 %v616
    %v683 = vpop.f32.mrb[0].mxu0
    %v684 = vadd.f32 0.0, %v683
    %v685 = vpop.f32.mrb[0].mxu0
    %v686 = vpop.f32.mrb[0].mxu0
    %v687 = vadd.f32 0.0, %v686
    %v688 = vpop.f32.mrb[0].mxu0
    %689 = vmatprep.mubr.bf16.mxu0 0
    %690 = vmatmul.mubr.bf16.gmra.mrb[0].mxu0 %v619
    %v691 = vpop.f32.mrb[0].mxu0
    %v692 = vadd.f32 0.0, %v691
    %v693 = vpop.f32.mrb[0].mxu0
    %v694 = vpop.f32.mrb[0].mxu0
    %v695 = vadd.f32 0.0, %v694
    %v696 = vpop.f32.mrb[0].mxu0
    %697 = vmatprep.mubr.bf16.mxu0 0
    %698 = vmatmul.mubr.bf16.gmra.mrb[0].mxu0 %v622
    %v699 = vpop.f32.mrb[0].mxu0
    %v700 = vadd.f32 0.0, %v699
    %v701 = vpop.f32.mrb[0].mxu0
    %v702 = vpop.f32.mrb[0].mxu0
    %v703 = vadd.f32 0.0, %v702
    %v704 = vpop.f32.mrb[0].mxu0
    %705 = vmatprep.mubr.bf16.mxu0 0
    %706 = vmatmul.mubr.bf16.gmra.mrb[0].mxu0 %v625
    %v707 = vpop.f32.mrb[0].mxu0
    %v708 = vadd.f32 0.0, %v707
    %v709 = vpop.f32.mrb[0].mxu0
    %v710 = vpop.f32.mrb[0].mxu0
    %v711 = vadd.f32 0.0, %v710
    %v712 = vpop.f32.mrb[0].mxu0
    %713 = vmatprep.mubr.bf16.mxu0 0
    %714 = vmatmul.mubr.bf16.gmra.mrb[0].mxu0 %v628
    %v715 = vpop.f32.mrb[0].mxu0
    %v716 = vadd.f32 0.0, %v715
    %v717 = vpop.f32.mrb[0].mxu0
    %v718 = vpop.f32.mrb[0].mxu0
    %v719 = vadd.f32 0.0, %v718
    %v720 = vpop.f32.mrb[0].mxu0
    %721 = vmatprep.mubr.bf16.mxu0 0
    %722 = vmatmul.mubr.bf16.gmra.mrb[0].mxu0 %v631
    %v723 = vpop.f32.mrb[0].mxu0
    %v724 = vadd.f32 0.0, %v723
    %v725 = vpop.f32.mrb[0].mxu0
    %v726 = vpop.f32.mrb[0].mxu0
    %v727 = vadd.f32 0.0, %v726
    %v728 = vpop.f32.mrb[0].mxu0
    %729 = vdwg.mxu0
    %v730 = vpack.c.bf16 %v671, %v668
    %v731 = vpack.c.bf16 %v679, %v676
    %v732 = vpack.c.bf16 %v687, %v684
    %v733 = vpack.c.bf16 %v695, %v692
    %v734 = vpack.c.bf16 %v703, %v700
    %v735 = vpack.c.bf16 %v711, %v708
    %v736 = vpack.c.bf16 %v719, %v716
    %v737 = vpack.c.bf16 %v727, %v724
    %v738 = vld [vmem:[%s7 + $0x4] sm:$0x1]
    %v739 = vlaneseq
    %v740 = vshrl.u32 %v739, 7
    %v741 = vsub.s32 0, %v740
    %v742 = vrot.slane %v738, %v741
    %v743 = vadd.f32 %v316, %v742
    %v744 = vadd.f32 %v319, %v742
    %v745 = vadd.f32 %v324, %v742
    %v746 = vadd.f32 %v327, %v742
    %v747 = vadd.f32 %v332, %v742
    %v748 = vadd.f32 %v335, %v742
    %v749 = vadd.f32 %v340, %v742
    %v750 = vadd.f32 %v343, %v742
    %v751 = vpack.c.bf16 %v744, %v743
    %v752 = vpack.c.bf16 %v746, %v745
    %v753 = vpack.c.bf16 %v748, %v747
    %v754 = vpack.c.bf16 %v750, %v749
    %v755 = vld [vmem:[%s7 + $0x5] sm:$0x1]
    %v756 = vlaneseq
    %v757 = vshrl.u32 %v756, 7
    %v758 = vsub.s32 0, %v757
    %v759 = vrot.slane %v755, %v758
    %v760 = vadd.f32 %v316, %v759
    %v761 = vadd.f32 %v319, %v759
    %v762 = vadd.f32 %v324, %v759
    %v763 = vadd.f32 %v327, %v759
    %v764 = vadd.f32 %v332, %v759
    %v765 = vadd.f32 %v335, %v759
    %v766 = vadd.f32 %v340, %v759
    %v767 = vadd.f32 %v343, %v759
    %v768 = vpack.c.bf16 %v761, %v760
    %v769 = vpack.c.bf16 %v763, %v762
    %v770 = vpack.c.bf16 %v765, %v764
    %v771 = vpack.c.bf16 %v767, %v766
    %v772 = vpack.c.bf16 %v422, %v419
    %v773 = vpack.c.bf16 %v430, %v427
    %v774 = vpack.c.bf16 %v438, %v435
    %v775 = vpack.c.bf16 %v446, %v443
    %v776 = vpack.c.bf16 %v525, %v522
    %v777 = vpack.c.bf16 %v533, %v530
    %v778 = vpack.c.bf16 %v541, %v538
    %v779 = vpack.c.bf16 %v549, %v546
    %v780 = vlaneseq
    %v781 = vand.u32 %v780, 127
    %v782 = vlaneseq
    %v783 = vshrl.u32 %v782, 7
    %v784 = vadd.s32 %v783, 8
    %v785 = vadd.s32 %v783, 16
    %v786 = vadd.s32 %v783, 24
    %v788 = vsel %vm268, %v768, 0
    %v791 = vsel %vm268, %v769, 0
    %v794 = vsel %vm268, %v730, 0
    %v797 = vsel %vm268, %v731, 0
    %v800 = vsel %vm268, %v732, 0
    %v803 = vsel %vm268, %v733, 0
    %v806 = vsel %vm268, %v734, 0
    %v809 = vsel %vm268, %v735, 0
    %v812 = vsel %vm268, %v736, 0
    %v815 = vsel %vm268, %v737, 0
    %817 = vmatprep.subr.bf16.mxu0 0
    %818 = vmatpush1.bf16.xpose.msra.mxu0 %v794
    %819 = vmatprep.subr.bf16.mxu0 0
    %820 = vmatpush1.bf16.xpose.msra.mxu0 %v797
    %821 = vmatprep.subr.bf16.mxu0 0
    %822 = vmatpush1.bf16.xpose.msra.mxu0 %v800
    %823 = vmatprep.subr.bf16.mxu0 0
    %824 = vmatpush1.bf16.xpose.msra.mxu0 %v803
    %825 = vmatprep.subr.bf16.mxu0 0
    %826 = vmatpush1.bf16.xpose.msra.mxu0 %v806
    %827 = vmatprep.subr.bf16.mxu0 0
    %828 = vmatpush1.bf16.xpose.msra.mxu0 %v809
    %829 = vmatprep.subr.bf16.mxu0 0
    %830 = vmatpush1.bf16.xpose.msra.mxu0 %v812
    %831 = vmatprep.subr.bf16.mxu0 0
    %832 = vmatpush1.bf16.xpose.msra.mxu0 %v815
    %833 = vmatprep.subr.bf16.mxu0 0
    %834 = vmatpush1.bf16.xpose.msra.mxu0 0
    %835 = vmatprep.subr.bf16.mxu0 0
    %836 = vmatpush1.bf16.xpose.msra.mxu0 0
    %837 = vmatprep.subr.bf16.mxu0 0
    %838 = vmatpush1.bf16.xpose.msra.mxu0 0
    %839 = vmatprep.subr.bf16.mxu0 0
    %840 = vmatpush1.bf16.xpose.msra.mxu0 0
    %841 = vmatprep.subr.bf16.mxu0 0
    %842 = vmatpush1.bf16.xpose.msra.mxu0 0
    %843 = vmatprep.subr.bf16.mxu0 0
    %844 = vmatpush1.bf16.xpose.msra.mxu0 0
    %845 = vmatprep.subr.bf16.mxu0 0
    %846 = vmatpush1.bf16.xpose.msra.mxu0 0
    %847 = vmatprep.subr.bf16.mxu0 0
    %848 = vmatpush1.bf16.xpose.msra.mxu0 0
    %849 = vmatprep.mubr.bf16.mxu0 0
    %850 = vmatmul.mubr.bf16.gmra.mrb[0].mxu0 %v788
    %v851 = vpop.f32.mrb[0].mxu0
    %v852 = vadd.f32 0.0, %v851
    %v853 = vpop.f32.mrb[0].mxu0
    %v854 = vpop.f32.mrb[0].mxu0
    %v855 = vadd.f32 0.0, %v854
    %v856 = vpop.f32.mrb[0].mxu0
    %857 = vmatprep.mubr.bf16.mxu0 0
    %858 = vmatmul.mubr.bf16.gmra.mrb[0].mxu0 %v791
    %v859 = vpop.f32.mrb[0].mxu0
    %v860 = vadd.f32 0.0, %v859
    %v861 = vpop.f32.mrb[0].mxu0
    %v862 = vpop.f32.mrb[0].mxu0
    %v863 = vadd.f32 0.0, %v862
    %v864 = vpop.f32.mrb[0].mxu0
    %865 = vdwg.mxu0
    %s867 = sor.u32 256, 1
    %868 = vrot.lane.b32.xlu0 %v852, %s867
    %v869 = vpop.permute.xlu0 %868
    %s871 = sor.u32 256, 9
    %872 = vrot.lane.b32.xlu0 %v855, %s871
    %v873 = vpop.permute.xlu0 %872
    %s875 = sor.u32 256, 17
    %876 = vrot.lane.b32.xlu0 %v860, %s875
    %v877 = vpop.permute.xlu0 %876
    %s879 = sor.u32 256, 25
    %880 = vrot.lane.b32.xlu0 %v863, %s879
    %v881 = vpop.permute.xlu0 %880
    %882 = vrot.lane.b32.xlu0 %v869, 98
    %v883 = vpop.permute.xlu0 %882
    %884 = vrot.lane.b32.xlu0 %v873, 98
    %v885 = vpop.permute.xlu0 %884
    %886 = vrot.lane.b32.xlu0 %v877, 98
    %v887 = vpop.permute.xlu0 %886
    %888 = vrot.lane.b32.xlu0 %v881, 98
    %v889 = vpop.permute.xlu0 %888
    %vm894 = vcmask 1046528
    %v895 = vrot.slane %v869, 1
    %v896 = vrot.slane %v873, 1
    %v897 = vsel %vm894, %v895, %v896
    %v898 = vrot.slane %v877, 1
    %v899 = vsel %vm894, %v896, %v898
    %v900 = vrot.slane %v881, 1
    %v901 = vsel %vm894, %v898, %v900
    %v907 = vsel %vm894, %v900, %v895
    %vm908 = vcmp.le.s32.totalorder %v781, %v783
    %vm909 = vcmp.le.s32.totalorder %v781, %v784
    %vm910 = vcmp.le.s32.totalorder %v781, %v785
    %vm911 = vcmp.le.s32.totalorder %v781, %v786
    %v912 = vadd.s32 %v783, 1
    %v913 = vadd.s32 %v784, 1
    %v914 = vadd.s32 %v785, 1
    %v915 = vadd.s32 %v786, 1
    %vm916 = vcmp.eq.s32.totalorder %v781, %v912
    %vm917 = vcmp.eq.s32.totalorder %v781, %v913
    %vm918 = vcmp.eq.s32.totalorder %v781, %v914
    %vm919 = vcmp.eq.s32.totalorder %v781, %v915
    %v920 = vsel %vm916, 0.0, %v897
    %v921 = vsel %vm917, 0.0, %v899
    %v922 = vsel %vm918, 0.0, %v901
    %v923 = vsel %vm919, 0.0, %v907
    %v924 = vsel %vm908, %v883, %v920
    %v925 = vsel %vm909, %v885, %v921
    %v926 = vsel %vm910, %v887, %v922
    %v927 = vsel %vm911, %v889, %v923
    %vm928 = vcmp.lt.s32.totalorder %v781, 30
    %v930 = vsel %vm268, %v751, 0
    %v933 = vsel %vm268, %v752, 0
    %v936 = vsel %vm268, %v772, 0
    %v939 = vsel %vm268, %v773, 0
    %v942 = vsel %vm268, 0, 0
    %944 = vmatprep.subr.bf16.mxu0 0
    %945 = vmatpush1.bf16.xpose.msra.mxu0 %v936
    %946 = vmatprep.subr.bf16.mxu0 0
    %947 = vmatpush1.bf16.xpose.msra.mxu0 %v939
    %948 = vmatprep.subr.bf16.mxu0 0
    %949 = vmatpush1.bf16.xpose.msra.mxu0 %v942
    %950 = vmatprep.subr.bf16.mxu0 0
    %951 = vmatpush1.bf16.xpose.msra.mxu0 %v942
    %952 = vmatprep.subr.bf16.mxu0 0
    %953 = vmatpush1.bf16.xpose.msra.mxu0 %v942
    %954 = vmatprep.subr.bf16.mxu0 0
    %955 = vmatpush1.bf16.xpose.msra.mxu0 %v942
    %956 = vmatprep.subr.bf16.mxu0 0
    %957 = vmatpush1.bf16.xpose.msra.mxu0 %v942
    %958 = vmatprep.subr.bf16.mxu0 0
    %959 = vmatpush1.bf16.xpose.msra.mxu0 %v942
    %960 = vmatprep.subr.bf16.mxu0 0
    %961 = vmatpush1.bf16.xpose.msra.mxu0 0
    %962 = vmatprep.subr.bf16.mxu0 0
    %963 = vmatpush1.bf16.xpose.msra.mxu0 0
    %964 = vmatprep.subr.bf16.mxu0 0
    %965 = vmatpush1.bf16.xpose.msra.mxu0 0
    %966 = vmatprep.subr.bf16.mxu0 0
    %967 = vmatpush1.bf16.xpose.msra.mxu0 0
    %968 = vmatprep.subr.bf16.mxu0 0
    %969 = vmatpush1.bf16.xpose.msra.mxu0 0
    %970 = vmatprep.subr.bf16.mxu0 0
    %971 = vmatpush1.bf16.xpose.msra.mxu0 0
    %972 = vmatprep.subr.bf16.mxu0 0
    %973 = vmatpush1.bf16.xpose.msra.mxu0 0
    %974 = vmatprep.subr.bf16.mxu0 0
    %975 = vmatpush1.bf16.xpose.msra.mxu0 0
    %976 = vmatprep.mubr.bf16.mxu0 0
    %977 = vmatmul.mubr.bf16.gmra.mrb[0].mxu0 %v930
    %v978 = vpop.f32.mrb[0].mxu0
    %v979 = vadd.f32 %v924, %v978
    %v980 = vpop.f32.mrb[0].mxu0
    %v981 = vpop.f32.mrb[0].mxu0
    %v982 = vadd.f32 %v925, %v981
    %v983 = vpop.f32.mrb[0].mxu0
    %984 = vmatprep.mubr.bf16.mxu0 0
    %985 = vmatmul.mubr.bf16.gmra.mrb[0].mxu0 %v933
    %v986 = vpop.f32.mrb[0].mxu0
    %v987 = vadd.f32 %v926, %v986
    %v988 = vpop.f32.mrb[0].mxu0
    %v989 = vpop.f32.mrb[0].mxu0
    %v990 = vadd.f32 %v927, %v989
    %v991 = vpop.f32.mrb[0].mxu0
    %992 = vdwg.mxu0
    %v993 = vsel %vm928, %v979, -1e+30
    %v994 = vsel %vm928, %v982, -1e+30
    %v995 = vsel %vm928, %v987, -1e+30
    %v996 = vsel %vm928, %v990, -1e+30
    %997 = vmax.xlane.f32.xlu0 %v993
    %v998 = vpop.xlane.xlu0 %997
    %999 = vmax.xlane.f32.xlu0 %v994
    %v1000 = vpop.xlane.xlu0 %999
    %1001 = vmax.xlane.f32.xlu0 %v995
    %v1002 = vpop.xlane.xlu0 %1001
    %1003 = vmax.xlane.f32.xlu0 %v996
    %v1004 = vpop.xlane.xlu0 %1003
    %v1005 = vsub.f32 %v993, %v998
    %v1006 = vsub.f32 %v994, %v1000
    %v1007 = vsub.f32 %v995, %v1002
    %v1008 = vsub.f32 %v996, %v1004
    %v1009 = vmul.f32 %v1005, 1.442695
    %v1010 = vpow.pop %v1009
    %v1011 = vmul.f32 %v1006, 1.442695
    %v1012 = vpow.pop %v1011
    %v1013 = vmul.f32 %v1007, 1.442695
    %v1014 = vpow.pop %v1013
    %v1015 = vmul.f32 %v1008, 1.442695
    %v1016 = vpow.pop %v1015
    %1017 = vadd.xlane.f32.xlu0 %v1010
    %v1018 = vpop.xlane.xlu0 %1017
    %1019 = vadd.xlane.f32.xlu0 %v1012
    %v1020 = vpop.xlane.xlu0 %1019
    %1021 = vadd.xlane.f32.xlu0 %v1014
    %v1022 = vpop.xlane.xlu0 %1021
    %1023 = vadd.xlane.f32.xlu0 %v1016
    %v1024 = vpop.xlane.xlu0 %1023
    %v1025 = vrcp.pop %v1018
    %v1026 = vrcp.pop %v1020
    %v1027 = vrcp.pop %v1022
    %v1028 = vrcp.pop %v1024
    %v1029 = vmul.f32 %v1010, %v1025
    %v1030 = vmul.f32 %v1012, %v1026
    %v1031 = vmul.f32 %v1014, %v1027
    %v1032 = vmul.f32 %v1016, %v1028
    %v1033 = vpack.c.bf16 %v1030, %v1029
    %v1034 = vpack.c.bf16 %v1032, %v1031
    %1035 = vmatprep.subr.bf16.mxu0 0
    %1036 = vmatpush1.bf16.msra.mxu0 %v776
    %1037 = vmatprep.subr.bf16.mxu0 0
    %1038 = vmatpush1.bf16.msra.mxu0 %v777
    %1039 = vmatprep.subr.bf16.mxu0 0
    %1040 = vmatpush1.bf16.msra.mxu0 0
    %1041 = vmatprep.subr.bf16.mxu0 0
    %1042 = vmatpush1.bf16.msra.mxu0 0
    %1043 = vmatprep.subr.bf16.mxu0 0
    %1044 = vmatpush1.bf16.msra.mxu0 0
    %1045 = vmatprep.subr.bf16.mxu0 0
    %1046 = vmatpush1.bf16.msra.mxu0 0
    %1047 = vmatprep.subr.bf16.mxu0 0
    %1048 = vmatpush1.bf16.msra.mxu0 0
    %1049 = vmatprep.subr.bf16.mxu0 0
    %1050 = vmatpush1.bf16.msra.mxu0 0
    %1051 = vmatprep.subr.bf16.mxu0 0
    %1052 = vmatpush1.bf16.msra.mxu0 0
    %1053 = vmatprep.subr.bf16.mxu0 0
    %1054 = vmatpush1.bf16.msra.mxu0 0
    %1055 = vmatprep.subr.bf16.mxu0 0
    %1056 = vmatpush1.bf16.msra.mxu0 0
    %1057 = vmatprep.subr.bf16.mxu0 0
    %1058 = vmatpush1.bf16.msra.mxu0 0
    %1059 = vmatprep.subr.bf16.mxu0 0
    %1060 = vmatpush1.bf16.msra.mxu0 0
    %1061 = vmatprep.subr.bf16.mxu0 0
    %1062 = vmatpush1.bf16.msra.mxu0 0
    %1063 = vmatprep.subr.bf16.mxu0 0
    %1064 = vmatpush1.bf16.msra.mxu0 0
    %1065 = vmatprep.subr.bf16.mxu0 0
    %1066 = vmatpush1.bf16.msra.mxu0 0
    %1067 = vmatprep.mubr.bf16.mxu0 0
    %1068 = vmatmul.mubr.bf16.gmra.mrb[0].mxu0 %v1033
    %v1069 = vpop.f32.mrb[0].mxu0
    %v1070 = vadd.f32 0.0, %v1069
    %v1071 = vpop.f32.mrb[0].mxu0
    %v1072 = vpop.f32.mrb[0].mxu0
    %v1073 = vadd.f32 0.0, %v1072
    %v1074 = vpop.f32.mrb[0].mxu0
    %1075 = vmatprep.mubr.bf16.mxu0 0
    %1076 = vmatmul.mubr.bf16.gmra.mrb[0].mxu0 %v1034
    %v1077 = vpop.f32.mrb[0].mxu0
    %v1078 = vadd.f32 0.0, %v1077
    %v1079 = vpop.f32.mrb[0].mxu0
    %v1080 = vpop.f32.mrb[0].mxu0
    %v1081 = vadd.f32 0.0, %v1080
    %v1082 = vpop.f32.mrb[0].mxu0
    %1083 = vdwg.mxu0
    %v1085 = vsel %vm268, %v770, 0
    %v1088 = vsel %vm268, %v771, 0
    %1090 = vmatprep.subr.bf16.mxu0 0
    %1091 = vmatpush1.bf16.xpose.msra.mxu0 %v794
    %1092 = vmatprep.subr.bf16.mxu0 0
    %1093 = vmatpush1.bf16.xpose.msra.mxu0 %v797
    %1094 = vmatprep.subr.bf16.mxu0 0
    %1095 = vmatpush1.bf16.xpose.msra.mxu0 %v800
    %1096 = vmatprep.subr.bf16.mxu0 0
    %1097 = vmatpush1.bf16.xpose.msra.mxu0 %v803
    %1098 = vmatprep.subr.bf16.mxu0 0
    %1099 = vmatpush1.bf16.xpose.msra.mxu0 %v806
    %1100 = vmatprep.subr.bf16.mxu0 0
    %1101 = vmatpush1.bf16.xpose.msra.mxu0 %v809
    %1102 = vmatprep.subr.bf16.mxu0 0
    %1103 = vmatpush1.bf16.xpose.msra.mxu0 %v812
    %1104 = vmatprep.subr.bf16.mxu0 0
    %1105 = vmatpush1.bf16.xpose.msra.mxu0 %v815
    %1106 = vmatprep.subr.bf16.mxu0 0
    %1107 = vmatpush1.bf16.xpose.msra.mxu0 0
    %1108 = vmatprep.subr.bf16.mxu0 0
    %1109 = vmatpush1.bf16.xpose.msra.mxu0 0
    %1110 = vmatprep.subr.bf16.mxu0 0
    %1111 = vmatpush1.bf16.xpose.msra.mxu0 0
    %1112 = vmatprep.subr.bf16.mxu0 0
    %1113 = vmatpush1.bf16.xpose.msra.mxu0 0
    %1114 = vmatprep.subr.bf16.mxu0 0
    %1115 = vmatpush1.bf16.xpose.msra.mxu0 0
    %1116 = vmatprep.subr.bf16.mxu0 0
    %1117 = vmatpush1.bf16.xpose.msra.mxu0 0
    %1118 = vmatprep.subr.bf16.mxu0 0
    %1119 = vmatpush1.bf16.xpose.msra.mxu0 0
    %1120 = vmatprep.subr.bf16.mxu0 0
    %1121 = vmatpush1.bf16.xpose.msra.mxu0 0
    %1122 = vmatprep.mubr.bf16.mxu0 0
    %1123 = vmatmul.mubr.bf16.gmra.mrb[0].mxu0 %v1085
    %v1124 = vpop.f32.mrb[0].mxu0
    %v1125 = vadd.f32 0.0, %v1124
    %v1126 = vpop.f32.mrb[0].mxu0
    %v1127 = vpop.f32.mrb[0].mxu0
    %v1128 = vadd.f32 0.0, %v1127
    %v1129 = vpop.f32.mrb[0].mxu0
    %1130 = vmatprep.mubr.bf16.mxu0 0
    %1131 = vmatmul.mubr.bf16.gmra.mrb[0].mxu0 %v1088
    %v1132 = vpop.f32.mrb[0].mxu0
    %v1133 = vadd.f32 0.0, %v1132
    %v1134 = vpop.f32.mrb[0].mxu0
    %v1135 = vpop.f32.mrb[0].mxu0
    %v1136 = vadd.f32 0.0, %v1135
    %v1137 = vpop.f32.mrb[0].mxu0
    %1138 = vdwg.mxu0
    %s1140 = sor.u32 256, 1
    %1141 = vrot.lane.b32.xlu0 %v1125, %s1140
    %v1142 = vpop.permute.xlu0 %1141
    %s1144 = sor.u32 256, 9
    %1145 = vrot.lane.b32.xlu0 %v1128, %s1144
    %v1146 = vpop.permute.xlu0 %1145
    %s1148 = sor.u32 256, 17
    %1149 = vrot.lane.b32.xlu0 %v1133, %s1148
    %v1150 = vpop.permute.xlu0 %1149
    %s1152 = sor.u32 256, 25
    %1153 = vrot.lane.b32.xlu0 %v1136, %s1152
    %v1154 = vpop.permute.xlu0 %1153
    %1155 = vrot.lane.b32.xlu0 %v1142, 98
    %v1156 = vpop.permute.xlu0 %1155
    %1157 = vrot.lane.b32.xlu0 %v1146, 98
    %v1158 = vpop.permute.xlu0 %1157
    %1159 = vrot.lane.b32.xlu0 %v1150, 98
    %v1160 = vpop.permute.xlu0 %1159
    %1161 = vrot.lane.b32.xlu0 %v1154, 98
    %v1162 = vpop.permute.xlu0 %1161
    %v1167 = vrot.slane %v1142, 1
    %v1168 = vrot.slane %v1146, 1
    %v1169 = vsel %vm894, %v1167, %v1168
    %v1170 = vrot.slane %v1150, 1
    %v1171 = vsel %vm894, %v1168, %v1170
    %v1172 = vrot.slane %v1154, 1
    %v1173 = vsel %vm894, %v1170, %v1172
    %v1179 = vsel %vm894, %v1172, %v1167
    %v1180 = vsel %vm916, 0.0, %v1169
    %v1181 = vsel %vm917, 0.0, %v1171
    %v1182 = vsel %vm918, 0.0, %v1173
    %v1183 = vsel %vm919, 0.0, %v1179
    %v1184 = vsel %vm908, %v1156, %v1180
    %v1185 = vsel %vm909, %v1158, %v1181
    %v1186 = vsel %vm910, %v1160, %v1182
    %v1187 = vsel %vm911, %v1162, %v1183
    %v1189 = vsel %vm268, %v753, 0
    %v1192 = vsel %vm268, %v754, 0
    %v1195 = vsel %vm268, %v774, 0
    %v1198 = vsel %vm268, %v775, 0
    %1200 = vmatprep.subr.bf16.mxu0 0
    %1201 = vmatpush1.bf16.xpose.msra.mxu0 %v1195
    %1202 = vmatprep.subr.bf16.mxu0 0
    %1203 = vmatpush1.bf16.xpose.msra.mxu0 %v1198
    %1204 = vmatprep.subr.bf16.mxu0 0
    %1205 = vmatpush1.bf16.xpose.msra.mxu0 %v942
    %1206 = vmatprep.subr.bf16.mxu0 0
    %1207 = vmatpush1.bf16.xpose.msra.mxu0 %v942
    %1208 = vmatprep.subr.bf16.mxu0 0
    %1209 = vmatpush1.bf16.xpose.msra.mxu0 %v942
    %1210 = vmatprep.subr.bf16.mxu0 0
    %1211 = vmatpush1.bf16.xpose.msra.mxu0 %v942
    %1212 = vmatprep.subr.bf16.mxu0 0
    %1213 = vmatpush1.bf16.xpose.msra.mxu0 %v942
    %1214 = vmatprep.subr.bf16.mxu0 0
    %1215 = vmatpush1.bf16.xpose.msra.mxu0 %v942
    %1216 = vmatprep.subr.bf16.mxu0 0
    %1217 = vmatpush1.bf16.xpose.msra.mxu0 0
    %1218 = vmatprep.subr.bf16.mxu0 0
    %1219 = vmatpush1.bf16.xpose.msra.mxu0 0
    %1220 = vmatprep.subr.bf16.mxu0 0
    %1221 = vmatpush1.bf16.xpose.msra.mxu0 0
    %1222 = vmatprep.subr.bf16.mxu0 0
    %1223 = vmatpush1.bf16.xpose.msra.mxu0 0
    %1224 = vmatprep.subr.bf16.mxu0 0
    %1225 = vmatpush1.bf16.xpose.msra.mxu0 0
    %1226 = vmatprep.subr.bf16.mxu0 0
    %1227 = vmatpush1.bf16.xpose.msra.mxu0 0
    %1228 = vmatprep.subr.bf16.mxu0 0
    %1229 = vmatpush1.bf16.xpose.msra.mxu0 0
    %1230 = vmatprep.subr.bf16.mxu0 0
    %1231 = vmatpush1.bf16.xpose.msra.mxu0 0
    %1232 = vmatprep.mubr.bf16.mxu0 0
    %1233 = vmatmul.mubr.bf16.gmra.mrb[0].mxu0 %v1189
    %v1234 = vpop.f32.mrb[0].mxu0
    %v1235 = vadd.f32 %v1184, %v1234
    %v1236 = vpop.f32.mrb[0].mxu0
    %v1237 = vpop.f32.mrb[0].mxu0
    %v1238 = vadd.f32 %v1185, %v1237
    %v1239 = vpop.f32.mrb[0].mxu0
    %1240 = vmatprep.mubr.bf16.mxu0 0
    %1241 = vmatmul.mubr.bf16.gmra.mrb[0].mxu0 %v1192
    %v1242 = vpop.f32.mrb[0].mxu0
    %v1243 = vadd.f32 %v1186, %v1242
    %v1244 = vpop.f32.mrb[0].mxu0
    %v1245 = vpop.f32.mrb[0].mxu0
    %v1246 = vadd.f32 %v1187, %v1245
    %v1247 = vpop.f32.mrb[0].mxu0
    %1248 = vdwg.mxu0
    %v1249 = vsel %vm928, %v1235, -1e+30
    %v1250 = vsel %vm928, %v1238, -1e+30
    %v1251 = vsel %vm928, %v1243, -1e+30
    %v1252 = vsel %vm928, %v1246, -1e+30
    %1253 = vmax.xlane.f32.xlu0 %v1249
    %v1254 = vpop.xlane.xlu0 %1253
    %1255 = vmax.xlane.f32.xlu0 %v1250
    %v1256 = vpop.xlane.xlu0 %1255
    %1257 = vmax.xlane.f32.xlu0 %v1251
    %v1258 = vpop.xlane.xlu0 %1257
    %1259 = vmax.xlane.f32.xlu0 %v1252
    %v1260 = vpop.xlane.xlu0 %1259
    %v1261 = vsub.f32 %v1249, %v1254
    %v1262 = vsub.f32 %v1250, %v1256
    %v1263 = vsub.f32 %v1251, %v1258
    %v1264 = vsub.f32 %v1252, %v1260
    %v1265 = vmul.f32 %v1261, 1.442695
    %v1266 = vpow.pop %v1265
    %v1267 = vmul.f32 %v1262, 1.442695
    %v1268 = vpow.pop %v1267
    %v1269 = vmul.f32 %v1263, 1.442695
    %v1270 = vpow.pop %v1269
    %v1271 = vmul.f32 %v1264, 1.442695
    %v1272 = vpow.pop %v1271
    %1273 = vadd.xlane.f32.xlu0 %v1266
    %v1274 = vpop.xlane.xlu0 %1273
    %1275 = vadd.xlane.f32.xlu0 %v1268
    %v1276 = vpop.xlane.xlu0 %1275
    %1277 = vadd.xlane.f32.xlu0 %v1270
    %v1278 = vpop.xlane.xlu0 %1277
    %1279 = vadd.xlane.f32.xlu0 %v1272
    %v1280 = vpop.xlane.xlu0 %1279
    %v1281 = vrcp.pop %v1274
    %v1282 = vrcp.pop %v1276
    %v1283 = vrcp.pop %v1278
    %v1284 = vrcp.pop %v1280
    %v1285 = vmul.f32 %v1266, %v1281
    %v1286 = vmul.f32 %v1268, %v1282
    %v1287 = vmul.f32 %v1270, %v1283
    %v1288 = vmul.f32 %v1272, %v1284
    %v1289 = vpack.c.bf16 %v1286, %v1285
    %v1290 = vpack.c.bf16 %v1288, %v1287
    %1291 = vmatprep.subr.bf16.mxu0 0
    %1292 = vmatpush1.bf16.msra.mxu0 %v778
    %1293 = vmatprep.subr.bf16.mxu0 0
    %1294 = vmatpush1.bf16.msra.mxu0 %v779
    %1295 = vmatprep.subr.bf16.mxu0 0
    %1296 = vmatpush1.bf16.msra.mxu0 0
    %1297 = vmatprep.subr.bf16.mxu0 0
    %1298 = vmatpush1.bf16.msra.mxu0 0
    %1299 = vmatprep.subr.bf16.mxu0 0
    %1300 = vmatpush1.bf16.msra.mxu0 0
    %1301 = vmatprep.subr.bf16.mxu0 0
    %1302 = vmatpush1.bf16.msra.mxu0 0
    %1303 = vmatprep.subr.bf16.mxu0 0
    %1304 = vmatpush1.bf16.msra.mxu0 0
    %1305 = vmatprep.subr.bf16.mxu0 0
    %1306 = vmatpush1.bf16.msra.mxu0 0
    %1307 = vmatprep.subr.bf16.mxu0 0
    %1308 = vmatpush1.bf16.msra.mxu0 0
    %1309 = vmatprep.subr.bf16.mxu0 0
    %1310 = vmatpush1.bf16.msra.mxu0 0
    %1311 = vmatprep.subr.bf16.mxu0 0
    %1312 = vmatpush1.bf16.msra.mxu0 0
    %1313 = vmatprep.subr.bf16.mxu0 0
    %1314 = vmatpush1.bf16.msra.mxu0 0
    %1315 = vmatprep.subr.bf16.mxu0 0
    %1316 = vmatpush1.bf16.msra.mxu0 0
    %1317 = vmatprep.subr.bf16.mxu0 0
    %1318 = vmatpush1.bf16.msra.mxu0 0
    %1319 = vmatprep.subr.bf16.mxu0 0
    %1320 = vmatpush1.bf16.msra.mxu0 0
    %1321 = vmatprep.subr.bf16.mxu0 0
    %1322 = vmatpush1.bf16.msra.mxu0 0
    %1323 = vmatprep.mubr.bf16.mxu0 0
    %1324 = vmatmul.mubr.bf16.gmra.mrb[0].mxu0 %v1289
    %v1325 = vpop.f32.mrb[0].mxu0
    %v1326 = vadd.f32 0.0, %v1325
    %v1327 = vpop.f32.mrb[0].mxu0
    %v1328 = vpop.f32.mrb[0].mxu0
    %v1329 = vadd.f32 0.0, %v1328
    %v1330 = vpop.f32.mrb[0].mxu0
    %1331 = vmatprep.mubr.bf16.mxu0 0
    %1332 = vmatmul.mubr.bf16.gmra.mrb[0].mxu0 %v1290
    %v1333 = vpop.f32.mrb[0].mxu0
    %v1334 = vadd.f32 0.0, %v1333
    %v1335 = vpop.f32.mrb[0].mxu0
    %v1336 = vpop.f32.mrb[0].mxu0
    %v1337 = vadd.f32 0.0, %v1336
    %v1338 = vpop.f32.mrb[0].mxu0
    %1339 = vdwg.mxu0
    %v1340 = vpack.c.bf16 %v1073, %v1070
    %v1341 = vpack.c.bf16 %v1081, %v1078
    %v1342 = vpack.c.bf16 %v1329, %v1326
    %v1343 = vpack.c.bf16 %v1337, %v1334
    %s1344 = scalar_lea.vmem %s3, 128
    %v1345 = vld [vmem:[%s1344] sm:$0xf]
    %v1346 = vld [vmem:[%s1344 + $0x4] sm:$0xf]
    %v1347 = vld [vmem:[%s1344 + $0x8] sm:$0xf]
    %v1348 = vld [vmem:[%s1344 + $0xc] sm:$0xf]
    %v1349 = vld [vmem:[%s1344 + $0x10] sm:$0xf]
    %v1350 = vld [vmem:[%s1344 + $0x14] sm:$0xf]
    %v1351 = vld [vmem:[%s1344 + $0x18] sm:$0xf]
    %v1352 = vld [vmem:[%s1344 + $0x1c] sm:$0xf]
    %v1353 = vld [vmem:[%s7 + $0x6] sm:$0x1]
    %v1354 = vlaneseq
    %v1355 = vshrl.u32 %v1354, 7
    %v1356 = vsub.s32 0, %v1355
    %v1357 = vrot.slane %v1353, %v1356
    %v1366 = vunpack.c.l.b16 %v1345
    %v1367 = vunpack.c.l.b16 %v1346
    %v1368 = vunpack.c.l.b16 %v1347
    %v1369 = vunpack.c.l.b16 %v1348
    %v1370 = vunpack.c.l.b16 %v1349
    %v1371 = vunpack.c.l.b16 %v1350
    %v1372 = vunpack.c.l.b16 %v1351
    %v1373 = vunpack.c.l.b16 %v1352
    %v1374 = vpack.c.b16 %v1367, %v1366
    %v1375 = vpack.c.b16 %v1369, %v1368
    %v1376 = vpack.c.b16 %v1371, %v1370
    %v1377 = vpack.c.b16 %v1373, %v1372
    %v1383 = vsel %vm268, %v1340, 0
    %v1386 = vsel %vm268, %v1341, 0
    %v1389 = vsel %vm268, %v1342, 0
    %v1392 = vsel %vm268, %v1343, 0
    %1394 = vmatprep.subr.bf16.mxu0 0
    %1395 = vmatpush1.bf16.msra.mxu0 %v1374
    %1396 = vmatprep.subr.bf16.mxu0 0
    %1397 = vmatpush1.bf16.msra.mxu0 %v1375
    %1398 = vmatprep.subr.bf16.mxu0 0
    %1399 = vmatpush1.bf16.msra.mxu0 %v1376
    %1400 = vmatprep.subr.bf16.mxu0 0
    %1401 = vmatpush1.bf16.msra.mxu0 %v1377
    %1402 = vmatprep.subr.bf16.mxu0 0
    %1403 = vmatpush1.bf16.msra.mxu0 0
    %1404 = vmatprep.subr.bf16.mxu0 0
    %1405 = vmatpush1.bf16.msra.mxu0 0
    %1406 = vmatprep.subr.bf16.mxu0 0
    %1407 = vmatpush1.bf16.msra.mxu0 0
    %1408 = vmatprep.subr.bf16.mxu0 0
    %1409 = vmatpush1.bf16.msra.mxu0 0
    %1410 = vmatprep.subr.bf16.mxu0 0
    %1411 = vmatpush1.bf16.msra.mxu0 0
    %1412 = vmatprep.subr.bf16.mxu0 0
    %1413 = vmatpush1.bf16.msra.mxu0 0
    %1414 = vmatprep.subr.bf16.mxu0 0
    %1415 = vmatpush1.bf16.msra.mxu0 0
    %1416 = vmatprep.subr.bf16.mxu0 0
    %1417 = vmatpush1.bf16.msra.mxu0 0
    %1418 = vmatprep.subr.bf16.mxu0 0
    %1419 = vmatpush1.bf16.msra.mxu0 0
    %1420 = vmatprep.subr.bf16.mxu0 0
    %1421 = vmatpush1.bf16.msra.mxu0 0
    %1422 = vmatprep.subr.bf16.mxu0 0
    %1423 = vmatpush1.bf16.msra.mxu0 0
    %1424 = vmatprep.subr.bf16.mxu0 0
    %1425 = vmatpush1.bf16.msra.mxu0 0
    %1426 = vmatprep.mubr.bf16.mxu0 0
    %1427 = vmatmul.mubr.bf16.gmra.mrb[0].mxu0 %v1383
    %v1428 = vpop.f32.mrb[0].mxu0
    %v1429 = vadd.f32 %v1357, %v1428
    %v1430 = vpop.f32.mrb[0].mxu0
    %v1431 = vpop.f32.mrb[0].mxu0
    %v1432 = vadd.f32 %v1357, %v1431
    %v1433 = vpop.f32.mrb[0].mxu0
    %1434 = vmatprep.mubr.bf16.mxu0 0
    %1435 = vmatmul.mubr.bf16.gmra.mrb[0].mxu0 %v1386
    %v1436 = vpop.f32.mrb[0].mxu0
    %v1437 = vadd.f32 %v1357, %v1436
    %v1438 = vpop.f32.mrb[0].mxu0
    %v1439 = vpop.f32.mrb[0].mxu0
    %v1440 = vadd.f32 %v1357, %v1439
    %v1441 = vpop.f32.mrb[0].mxu0
    %1442 = vmatprep.mubr.bf16.mxu0 0
    %1443 = vmatmul.mubr.bf16.gmra.mrb[0].mxu0 %v1389
    %v1444 = vpop.f32.mrb[0].mxu0
    %v1445 = vadd.f32 %v1357, %v1444
    %v1446 = vpop.f32.mrb[0].mxu0
    %v1447 = vpop.f32.mrb[0].mxu0
    %v1448 = vadd.f32 %v1357, %v1447
    %v1449 = vpop.f32.mrb[0].mxu0
    %1450 = vmatprep.mubr.bf16.mxu0 0
    %1451 = vmatmul.mubr.bf16.gmra.mrb[0].mxu0 %v1392
    %v1452 = vpop.f32.mrb[0].mxu0
    %v1453 = vadd.f32 %v1357, %v1452
    %v1454 = vpop.f32.mrb[0].mxu0
    %v1455 = vpop.f32.mrb[0].mxu0
    %v1456 = vadd.f32 %v1357, %v1455
    %v1457 = vpop.f32.mrb[0].mxu0
    %1458 = vdwg.mxu0
    %v1459 = vadd.f32 %v219, %v1429
    %v1460 = vadd.f32 %v220, %v1432
    %v1461 = vadd.f32 %v221, %v1437
    %v1462 = vadd.f32 %v222, %v1440
    %v1463 = vadd.f32 %v223, %v1445
    %v1464 = vadd.f32 %v224, %v1448
    %v1465 = vadd.f32 %v225, %v1453
    %v1466 = vadd.f32 %v226, %v1456
    %v1467 = vsel %vm268, %v1459, 0.0
    %1468 = vadd.xlane.f32.xlu0 %v1467
    %v1469 = vpop.xlane.xlu0 %1468
    %v1470 = vsel %vm268, %v1460, 0.0
    %1471 = vadd.xlane.f32.xlu0 %v1470
    %v1472 = vpop.xlane.xlu0 %1471
    %v1473 = vsel %vm268, %v1461, 0.0
    %1474 = vadd.xlane.f32.xlu0 %v1473
    %v1475 = vpop.xlane.xlu0 %1474
    %v1476 = vsel %vm268, %v1462, 0.0
    %1477 = vadd.xlane.f32.xlu0 %v1476
    %v1478 = vpop.xlane.xlu0 %1477
    %v1479 = vsel %vm268, %v1463, 0.0
    %1480 = vadd.xlane.f32.xlu0 %v1479
    %v1481 = vpop.xlane.xlu0 %1480
    %v1482 = vsel %vm268, %v1464, 0.0
    %1483 = vadd.xlane.f32.xlu0 %v1482
    %v1484 = vpop.xlane.xlu0 %1483
    %v1485 = vsel %vm268, %v1465, 0.0
    %1486 = vadd.xlane.f32.xlu0 %v1485
    %v1487 = vpop.xlane.xlu0 %1486
    %v1488 = vsel %vm268, %v1466, 0.0
    %1489 = vadd.xlane.f32.xlu0 %v1488
    %v1490 = vpop.xlane.xlu0 %1489
    %v1491 = vrcp.pop 64.0
    %v1492 = vmul.f32 %v1469, %v1491
    %v1493 = vmul.f32 %v1472, %v1491
    %v1494 = vmul.f32 %v1475, %v1491
    %v1495 = vmul.f32 %v1478, %v1491
    %v1496 = vmul.f32 %v1481, %v1491
    %v1497 = vmul.f32 %v1484, %v1491
    %v1498 = vmul.f32 %v1487, %v1491
    %v1499 = vmul.f32 %v1490, %v1491
    %v1500 = vsub.f32 %v1459, %v1492
    %v1501 = vsub.f32 %v1460, %v1493
    %v1502 = vsub.f32 %v1461, %v1494
    %v1503 = vsub.f32 %v1462, %v1495
    %v1504 = vsub.f32 %v1463, %v1496
    %v1505 = vsub.f32 %v1464, %v1497
    %v1506 = vsub.f32 %v1465, %v1498
    %v1507 = vsub.f32 %v1466, %v1499
    %v1508 = vmul.f32 %v1500, %v1500
    %v1509 = vmul.f32 %v1501, %v1501
    %v1510 = vmul.f32 %v1502, %v1502
    %v1511 = vmul.f32 %v1503, %v1503
    %v1512 = vmul.f32 %v1504, %v1504
    %v1513 = vmul.f32 %v1505, %v1505
    %v1514 = vmul.f32 %v1506, %v1506
    %v1515 = vmul.f32 %v1507, %v1507
    %v1516 = vsel %vm268, %v1508, 0.0
    %1517 = vadd.xlane.f32.xlu0 %v1516
    %v1518 = vpop.xlane.xlu0 %1517
    %v1519 = vsel %vm268, %v1509, 0.0
    %1520 = vadd.xlane.f32.xlu0 %v1519
    %v1521 = vpop.xlane.xlu0 %1520
    %v1522 = vsel %vm268, %v1510, 0.0
    %1523 = vadd.xlane.f32.xlu0 %v1522
    %v1524 = vpop.xlane.xlu0 %1523
    %v1525 = vsel %vm268, %v1511, 0.0
    %1526 = vadd.xlane.f32.xlu0 %v1525
    %v1527 = vpop.xlane.xlu0 %1526
    %v1528 = vsel %vm268, %v1512, 0.0
    %1529 = vadd.xlane.f32.xlu0 %v1528
    %v1530 = vpop.xlane.xlu0 %1529
    %v1531 = vsel %vm268, %v1513, 0.0
    %1532 = vadd.xlane.f32.xlu0 %v1531
    %v1533 = vpop.xlane.xlu0 %1532
    %v1534 = vsel %vm268, %v1514, 0.0
    %1535 = vadd.xlane.f32.xlu0 %v1534
    %v1536 = vpop.xlane.xlu0 %1535
    %v1537 = vsel %vm268, %v1515, 0.0
    %1538 = vadd.xlane.f32.xlu0 %v1537
    %v1539 = vpop.xlane.xlu0 %1538
    %v1540 = vmul.f32 %v1518, %v1491
    %v1541 = vmul.f32 %v1521, %v1491
    %v1542 = vmul.f32 %v1524, %v1491
    %v1543 = vmul.f32 %v1527, %v1491
    %v1544 = vmul.f32 %v1530, %v1491
    %v1545 = vmul.f32 %v1533, %v1491
    %v1546 = vmul.f32 %v1536, %v1491
    %v1547 = vmul.f32 %v1539, %v1491
    %v1548 = vadd.f32 %v1540, 1e-05
    %v1549 = vadd.f32 %v1541, 1e-05
    %v1550 = vadd.f32 %v1542, 1e-05
    %v1551 = vadd.f32 %v1543, 1e-05
    %v1552 = vadd.f32 %v1544, 1e-05
    %v1553 = vadd.f32 %v1545, 1e-05
    %v1554 = vadd.f32 %v1546, 1e-05
    %v1555 = vadd.f32 %v1547, 1e-05
    %v1556 = vrsqrt.pop %v1548
    %v1557 = vrsqrt.pop %v1549
    %v1558 = vrsqrt.pop %v1550
    %v1559 = vrsqrt.pop %v1551
    %v1560 = vrsqrt.pop %v1552
    %v1561 = vrsqrt.pop %v1553
    %v1562 = vrsqrt.pop %v1554
    %v1563 = vrsqrt.pop %v1555
    %v1564 = vmul.f32 %v1500, %v1556
    %v1565 = vmul.f32 %v1501, %v1557
    %v1566 = vmul.f32 %v1502, %v1558
    %v1567 = vmul.f32 %v1503, %v1559
    %v1568 = vmul.f32 %v1504, %v1560
    %v1569 = vmul.f32 %v1505, %v1561
    %v1570 = vmul.f32 %v1506, %v1562
    %v1571 = vmul.f32 %v1507, %v1563
    %v1572 = vld [vmem:[%s7 + $0x7] sm:$0x1]
    %v1573 = vlaneseq
    %v1574 = vshrl.u32 %v1573, 7
    %v1575 = vsub.s32 0, %v1574
    %v1576 = vrot.slane %v1572, %v1575
    %v1577 = vmul.f32 %v1564, %v1576
    %v1578 = vmul.f32 %v1565, %v1576
    %v1579 = vmul.f32 %v1566, %v1576
    %v1580 = vmul.f32 %v1567, %v1576
    %v1581 = vmul.f32 %v1568, %v1576
    %v1582 = vmul.f32 %v1569, %v1576
    %v1583 = vmul.f32 %v1570, %v1576
    %v1584 = vmul.f32 %v1571, %v1576
    %v1585 = vld [vmem:[%s7 + $0x8] sm:$0x1]
    %v1586 = vlaneseq
    %v1587 = vshrl.u32 %v1586, 7
    %v1588 = vsub.s32 0, %v1587
    %v1589 = vrot.slane %v1585, %v1588
    %v1590 = vadd.f32 %v1577, %v1589
    %v1591 = vadd.f32 %v1578, %v1589
    %v1592 = vadd.f32 %v1579, %v1589
    %v1593 = vadd.f32 %v1580, %v1589
    %v1594 = vadd.f32 %v1581, %v1589
    %v1595 = vadd.f32 %v1582, %v1589
    %v1596 = vadd.f32 %v1583, %v1589
    %v1597 = vadd.f32 %v1584, %v1589
    %v1598 = vpack.c.bf16 %v1591, %v1590
    %v1599 = vpack.c.bf16 %v1593, %v1592
    %v1600 = vpack.c.bf16 %v1595, %v1594
    %v1601 = vpack.c.bf16 %v1597, %v1596
    %v1602 = vld [vmem:[%s4] sm:$0xff]
    %v1603 = vld [vmem:[%s4 + $0x8] sm:$0xff]
    %v1604 = vld [vmem:[%s4 + $0x10] sm:$0xff]
    %v1605 = vld [vmem:[%s4 + $0x18] sm:$0xff]
    %v1606 = vld [vmem:[%s4 + $0x20] sm:$0xff]
    %v1607 = vld [vmem:[%s4 + $0x28] sm:$0xff]
    %v1608 = vld [vmem:[%s4 + $0x30] sm:$0xff]
    %v1609 = vld [vmem:[%s4 + $0x38] sm:$0xff]
    %v1610 = vld [vmem:[%s8] ss:$2 sm:$0x3]
    %v1612 = vlaneseq
    %v1613 = vshrl.u32 %v1612, 7
    %v1614 = vsub.s32 0, %v1613
    %v1615 = vrot.slane %v1610, %v1614
    %v1616 = vlaneseq
    %v1617 = vshrl.u32 %v1616, 7
    %v1618 = vsub.s32 1, %v1617
    %v1619 = vrot.slane %v1610, %v1618
    %v1630 = vunpack.c.l.b16 %v1602
    %v1631 = vunpack.c.h.b16 %v1602
    %v1632 = vunpack.c.l.b16 %v1603
    %v1633 = vunpack.c.h.b16 %v1603
    %v1634 = vunpack.c.l.b16 %v1604
    %v1635 = vunpack.c.h.b16 %v1604
    %v1636 = vunpack.c.l.b16 %v1605
    %v1637 = vunpack.c.h.b16 %v1605
    %v1638 = vunpack.c.l.b16 %v1606
    %v1639 = vunpack.c.h.b16 %v1606
    %v1640 = vunpack.c.l.b16 %v1607
    %v1641 = vunpack.c.h.b16 %v1607
    %v1642 = vunpack.c.l.b16 %v1608
    %v1643 = vunpack.c.h.b16 %v1608
    %v1644 = vunpack.c.l.b16 %v1609
    %v1645 = vunpack.c.h.b16 %v1609
    %v1646 = vpack.c.b16 %v1632, %v1630
    %v1647 = vpack.c.b16 %v1633, %v1631
    %v1648 = vpack.c.b16 %v1636, %v1634
    %v1649 = vpack.c.b16 %v1637, %v1635
    %v1650 = vpack.c.b16 %v1640, %v1638
    %v1651 = vpack.c.b16 %v1641, %v1639
    %v1652 = vpack.c.b16 %v1644, %v1642
    %v1653 = vpack.c.b16 %v1645, %v1643
    %v1663 = vsel %vm268, %v1598, 0
    %v1666 = vsel %vm268, %v1599, 0
    %v1669 = vsel %vm268, %v1600, 0
    %v1672 = vsel %vm268, %v1601, 0
    %1674 = vmatprep.subr.bf16.mxu0 %v1647
    %1675 = vmatpush1.bf16.msra.mxu0 %v1646
    %1676 = vmatprep.subr.bf16.mxu0 %v1649
    %1677 = vmatpush1.bf16.msra.mxu0 %v1648
    %1678 = vmatprep.subr.bf16.mxu0 %v1651
    %1679 = vmatpush1.bf16.msra.mxu0 %v1650
    %1680 = vmatprep.subr.bf16.mxu0 %v1653
    %1681 = vmatpush1.bf16.msra.mxu0 %v1652
    %1682 = vmatprep.subr.bf16.mxu0 0
    %1683 = vmatpush1.bf16.msra.mxu0 0
    %1684 = vmatprep.subr.bf16.mxu0 0
    %1685 = vmatpush1.bf16.msra.mxu0 0
    %1686 = vmatprep.subr.bf16.mxu0 0
    %1687 = vmatpush1.bf16.msra.mxu0 0
    %1688 = vmatprep.subr.bf16.mxu0 0
    %1689 = vmatpush1.bf16.msra.mxu0 0
    %1690 = vmatprep.subr.bf16.mxu0 0
    %1691 = vmatpush1.bf16.msra.mxu0 0
    %1692 = vmatprep.subr.bf16.mxu0 0
    %1693 = vmatpush1.bf16.msra.mxu0 0
    %1694 = vmatprep.subr.bf16.mxu0 0
    %1695 = vmatpush1.bf16.msra.mxu0 0
    %1696 = vmatprep.subr.bf16.mxu0 0
    %1697 = vmatpush1.bf16.msra.mxu0 0
    %1698 = vmatprep.subr.bf16.mxu0 0
    %1699 = vmatpush1.bf16.msra.mxu0 0
    %1700 = vmatprep.subr.bf16.mxu0 0
    %1701 = vmatpush1.bf16.msra.mxu0 0
    %1702 = vmatprep.subr.bf16.mxu0 0
    %1703 = vmatpush1.bf16.msra.mxu0 0
    %1704 = vmatprep.subr.bf16.mxu0 0
    %1705 = vmatpush1.bf16.msra.mxu0 0
    %1706 = vmatprep.mubr.bf16.mxu0 0
    %1707 = vmatmul.mubr.bf16.gmra.mrb[0].mxu0 %v1663
    %v1708 = vpop.f32.mrb[0].mxu0
    %v1709 = vadd.f32 %v1615, %v1708
    %v1710 = vpop.f32.mrb[0].mxu0
    %v1711 = vadd.f32 %v1619, %v1710
    %v1712 = vpop.f32.mrb[0].mxu0
    %v1713 = vadd.f32 %v1615, %v1712
    %v1714 = vpop.f32.mrb[0].mxu0
    %v1715 = vadd.f32 %v1619, %v1714
    %1716 = vmatprep.mubr.bf16.mxu0 0
    %1717 = vmatmul.mubr.bf16.gmra.mrb[0].mxu0 %v1666
    %v1718 = vpop.f32.mrb[0].mxu0
    %v1719 = vadd.f32 %v1615, %v1718
    %v1720 = vpop.f32.mrb[0].mxu0
    %v1721 = vadd.f32 %v1619, %v1720
    %v1722 = vpop.f32.mrb[0].mxu0
    %v1723 = vadd.f32 %v1615, %v1722
    %v1724 = vpop.f32.mrb[0].mxu0
    %v1725 = vadd.f32 %v1619, %v1724
    %1726 = vmatprep.mubr.bf16.mxu0 0
    %1727 = vmatmul.mubr.bf16.gmra.mrb[0].mxu0 %v1669
    %v1728 = vpop.f32.mrb[0].mxu0
    %v1729 = vadd.f32 %v1615, %v1728
    %v1730 = vpop.f32.mrb[0].mxu0
    %v1731 = vadd.f32 %v1619, %v1730
    %v1732 = vpop.f32.mrb[0].mxu0
    %v1733 = vadd.f32 %v1615, %v1732
    %v1734 = vpop.f32.mrb[0].mxu0
    %v1735 = vadd.f32 %v1619, %v1734
    %1736 = vmatprep.mubr.bf16.mxu0 0
    %1737 = vmatmul.mubr.bf16.gmra.mrb[0].mxu0 %v1672
    %v1738 = vpop.f32.mrb[0].mxu0
    %v1739 = vadd.f32 %v1615, %v1738
    %v1740 = vpop.f32.mrb[0].mxu0
    %v1741 = vadd.f32 %v1619, %v1740
    %v1742 = vpop.f32.mrb[0].mxu0
    %v1743 = vadd.f32 %v1615, %v1742
    %v1744 = vpop.f32.mrb[0].mxu0
    %v1745 = vadd.f32 %v1619, %v1744
    %1746 = vdwg.mxu0
    %v1747 = vxor.u32 %v1709, 2147483648
    %v1748 = vxor.u32 %v1711, 2147483648
    %v1749 = vxor.u32 %v1713, 2147483648
    %v1750 = vxor.u32 %v1715, 2147483648
    %v1751 = vxor.u32 %v1719, 2147483648
    %v1752 = vxor.u32 %v1721, 2147483648
    %v1753 = vxor.u32 %v1723, 2147483648
    %v1754 = vxor.u32 %v1725, 2147483648
    %v1755 = vxor.u32 %v1729, 2147483648
    %v1756 = vxor.u32 %v1731, 2147483648
    %v1757 = vxor.u32 %v1733, 2147483648
    %v1758 = vxor.u32 %v1735, 2147483648
    %v1759 = vxor.u32 %v1739, 2147483648
    %v1760 = vxor.u32 %v1741, 2147483648
    %v1761 = vxor.u32 %v1743, 2147483648
    %v1762 = vxor.u32 %v1745, 2147483648
    %v1763 = vmul.f32 %v1747, 1.442695
    %v1764 = vpow.pop %v1763
    %v1765 = vmul.f32 %v1748, 1.442695
    %v1766 = vpow.pop %v1765
    %v1767 = vmul.f32 %v1749, 1.442695
    %v1768 = vpow.pop %v1767
    %v1769 = vmul.f32 %v1750, 1.442695
    %v1770 = vpow.pop %v1769
    %v1771 = vmul.f32 %v1751, 1.442695
    %v1772 = vpow.pop %v1771
    %v1773 = vmul.f32 %v1752, 1.442695
    %v1774 = vpow.pop %v1773
    %v1775 = vmul.f32 %v1753, 1.442695
    %v1776 = vpow.pop %v1775
    %v1777 = vmul.f32 %v1754, 1.442695
    %v1778 = vpow.pop %v1777
    %v1779 = vmul.f32 %v1755, 1.442695
    %v1780 = vpow.pop %v1779
    %v1781 = vmul.f32 %v1756, 1.442695
    %v1782 = vpow.pop %v1781
    %v1783 = vmul.f32 %v1757, 1.442695
    %v1784 = vpow.pop %v1783
    %v1785 = vmul.f32 %v1758, 1.442695
    %v1786 = vpow.pop %v1785
    %v1787 = vmul.f32 %v1759, 1.442695
    %v1788 = vpow.pop %v1787
    %v1789 = vmul.f32 %v1760, 1.442695
    %v1790 = vpow.pop %v1789
    %v1791 = vmul.f32 %v1761, 1.442695
    %v1792 = vpow.pop %v1791
    %v1793 = vmul.f32 %v1762, 1.442695
    %v1794 = vpow.pop %v1793
    %v1795 = vadd.f32 %v1764, 1.0
    %v1796 = vadd.f32 %v1766, 1.0
    %v1797 = vadd.f32 %v1768, 1.0
    %v1798 = vadd.f32 %v1770, 1.0
    %v1799 = vadd.f32 %v1772, 1.0
    %v1800 = vadd.f32 %v1774, 1.0
    %v1801 = vadd.f32 %v1776, 1.0
    %v1802 = vadd.f32 %v1778, 1.0
    %v1803 = vadd.f32 %v1780, 1.0
    %v1804 = vadd.f32 %v1782, 1.0
    %v1805 = vadd.f32 %v1784, 1.0
    %v1806 = vadd.f32 %v1786, 1.0
    %v1807 = vadd.f32 %v1788, 1.0
    %v1808 = vadd.f32 %v1790, 1.0
    %v1809 = vadd.f32 %v1792, 1.0
    %v1810 = vadd.f32 %v1794, 1.0
    %v1811 = vrcp.pop %v1795
    %v1812 = vmul.f32 1.0, %v1811
    %v1813 = vrcp.pop %v1796
    %v1814 = vmul.f32 1.0, %v1813
    %v1815 = vrcp.pop %v1797
    %v1816 = vmul.f32 1.0, %v1815
    %v1817 = vrcp.pop %v1798
    %v1818 = vmul.f32 1.0, %v1817
    %v1819 = vrcp.pop %v1799
    %v1820 = vmul.f32 1.0, %v1819
    %v1821 = vrcp.pop %v1800
    %v1822 = vmul.f32 1.0, %v1821
    %v1823 = vrcp.pop %v1801
    %v1824 = vmul.f32 1.0, %v1823
    %v1825 = vrcp.pop %v1802
    %v1826 = vmul.f32 1.0, %v1825
    %v1827 = vrcp.pop %v1803
    %v1828 = vmul.f32 1.0, %v1827
    %v1829 = vrcp.pop %v1804
    %v1830 = vmul.f32 1.0, %v1829
    %v1831 = vrcp.pop %v1805
    %v1832 = vmul.f32 1.0, %v1831
    %v1833 = vrcp.pop %v1806
    %v1834 = vmul.f32 1.0, %v1833
    %v1835 = vrcp.pop %v1807
    %v1836 = vmul.f32 1.0, %v1835
    %v1837 = vrcp.pop %v1808
    %v1838 = vmul.f32 1.0, %v1837
    %v1839 = vrcp.pop %v1809
    %v1840 = vmul.f32 1.0, %v1839
    %v1841 = vrcp.pop %v1810
    %v1842 = vmul.f32 1.0, %v1841
    %v1843 = vmul.f32 %v1709, %v1812
    %v1844 = vmul.f32 %v1711, %v1814
    %v1845 = vmul.f32 %v1713, %v1816
    %v1846 = vmul.f32 %v1715, %v1818
    %v1847 = vmul.f32 %v1719, %v1820
    %v1848 = vmul.f32 %v1721, %v1822
    %v1849 = vmul.f32 %v1723, %v1824
    %v1850 = vmul.f32 %v1725, %v1826
    %v1851 = vmul.f32 %v1729, %v1828
    %v1852 = vmul.f32 %v1731, %v1830
    %v1853 = vmul.f32 %v1733, %v1832
    %v1854 = vmul.f32 %v1735, %v1834
    %v1855 = vmul.f32 %v1739, %v1836
    %v1856 = vmul.f32 %v1741, %v1838
    %v1857 = vmul.f32 %v1743, %v1840
    %v1858 = vmul.f32 %v1745, %v1842
    %v1859 = vpack.c.bf16 %v1845, %v1843
    %v1860 = vpack.c.bf16 %v1846, %v1844
    %v1861 = vpack.c.bf16 %v1849, %v1847
    %v1862 = vpack.c.bf16 %v1850, %v1848
    %v1863 = vpack.c.bf16 %v1853, %v1851
    %v1864 = vpack.c.bf16 %v1854, %v1852
    %v1865 = vpack.c.bf16 %v1857, %v1855
    %v1866 = vpack.c.bf16 %v1858, %v1856
    %v1867 = vld [vmem:[%s5] sm:$0xf]
    %v1868 = vld [vmem:[%s5 + $0x4] sm:$0xf]
    %v1869 = vld [vmem:[%s5 + $0x8] sm:$0xf]
    %v1870 = vld [vmem:[%s5 + $0xc] sm:$0xf]
    %v1871 = vld [vmem:[%s5 + $0x10] sm:$0xf]
    %v1872 = vld [vmem:[%s5 + $0x14] sm:$0xf]
    %v1873 = vld [vmem:[%s5 + $0x18] sm:$0xf]
    %v1874 = vld [vmem:[%s5 + $0x1c] sm:$0xf]
    %v1875 = vld [vmem:[%s5 + $0x20] sm:$0xf]
    %v1876 = vld [vmem:[%s5 + $0x24] sm:$0xf]
    %v1877 = vld [vmem:[%s5 + $0x28] sm:$0xf]
    %v1878 = vld [vmem:[%s5 + $0x2c] sm:$0xf]
    %v1879 = vld [vmem:[%s5 + $0x30] sm:$0xf]
    %v1880 = vld [vmem:[%s5 + $0x34] sm:$0xf]
    %v1881 = vld [vmem:[%s5 + $0x38] sm:$0xf]
    %v1882 = vld [vmem:[%s5 + $0x3c] sm:$0xf]
    %v1883 = vld [vmem:[%s5 + $0x40] sm:$0xf]
    %v1884 = vld [vmem:[%s5 + $0x44] sm:$0xf]
    %v1885 = vld [vmem:[%s5 + $0x48] sm:$0xf]
    %v1886 = vld [vmem:[%s5 + $0x4c] sm:$0xf]
    %v1887 = vld [vmem:[%s5 + $0x50] sm:$0xf]
    %v1888 = vld [vmem:[%s5 + $0x54] sm:$0xf]
    %v1889 = vld [vmem:[%s5 + $0x58] sm:$0xf]
    %v1890 = vld [vmem:[%s5 + $0x5c] sm:$0xf]
    %v1891 = vld [vmem:[%s5 + $0x60] sm:$0xf]
    %v1892 = vld [vmem:[%s5 + $0x64] sm:$0xf]
    %v1893 = vld [vmem:[%s5 + $0x68] sm:$0xf]
    %v1894 = vld [vmem:[%s5 + $0x6c] sm:$0xf]
    %v1895 = vld [vmem:[%s5 + $0x70] sm:$0xf]
    %v1896 = vld [vmem:[%s5 + $0x74] sm:$0xf]
    %v1897 = vld [vmem:[%s5 + $0x78] sm:$0xf]
    %v1898 = vld [vmem:[%s5 + $0x7c] sm:$0xf]
    %v1931 = vunpack.c.l.b16 %v1867
    %v1932 = vunpack.c.l.b16 %v1868
    %v1933 = vunpack.c.l.b16 %v1869
    %v1934 = vunpack.c.l.b16 %v1870
    %v1935 = vunpack.c.l.b16 %v1871
    %v1936 = vunpack.c.l.b16 %v1872
    %v1937 = vunpack.c.l.b16 %v1873
    %v1938 = vunpack.c.l.b16 %v1874
    %v1939 = vunpack.c.l.b16 %v1875
    %v1940 = vunpack.c.l.b16 %v1876
    %v1941 = vunpack.c.l.b16 %v1877
    %v1942 = vunpack.c.l.b16 %v1878
    %v1943 = vunpack.c.l.b16 %v1879
    %v1944 = vunpack.c.l.b16 %v1880
    %v1945 = vunpack.c.l.b16 %v1881
    %v1946 = vunpack.c.l.b16 %v1882
    %v1947 = vunpack.c.l.b16 %v1883
    %v1948 = vunpack.c.l.b16 %v1884
    %v1949 = vunpack.c.l.b16 %v1885
    %v1950 = vunpack.c.l.b16 %v1886
    %v1951 = vunpack.c.l.b16 %v1887
    %v1952 = vunpack.c.l.b16 %v1888
    %v1953 = vunpack.c.l.b16 %v1889
    %v1954 = vunpack.c.l.b16 %v1890
    %v1955 = vunpack.c.l.b16 %v1891
    %v1956 = vunpack.c.l.b16 %v1892
    %v1957 = vunpack.c.l.b16 %v1893
    %v1958 = vunpack.c.l.b16 %v1894
    %v1959 = vunpack.c.l.b16 %v1895
    %v1960 = vunpack.c.l.b16 %v1896
    %v1961 = vunpack.c.l.b16 %v1897
    %v1962 = vunpack.c.l.b16 %v1898
    %v1963 = vpack.c.b16 %v1932, %v1931
    %v1964 = vpack.c.b16 %v1934, %v1933
    %v1965 = vpack.c.b16 %v1936, %v1935
    %v1966 = vpack.c.b16 %v1938, %v1937
    %v1967 = vpack.c.b16 %v1940, %v1939
    %v1968 = vpack.c.b16 %v1942, %v1941
    %v1969 = vpack.c.b16 %v1944, %v1943
    %v1970 = vpack.c.b16 %v1946, %v1945
    %v1971 = vpack.c.b16 %v1948, %v1947
    %v1972 = vpack.c.b16 %v1950, %v1949
    %v1973 = vpack.c.b16 %v1952, %v1951
    %v1974 = vpack.c.b16 %v1954, %v1953
    %v1975 = vpack.c.b16 %v1956, %v1955
    %v1976 = vpack.c.b16 %v1958, %v1957
    %v1977 = vpack.c.b16 %v1960, %v1959
    %v1978 = vpack.c.b16 %v1962, %v1961
    %1995 = vmatprep.subr.bf16.mxu0 0
    %1996 = vmatpush1.bf16.msra.mxu0 %v1963
    %1997 = vmatprep.subr.bf16.mxu0 0
    %1998 = vmatpush1.bf16.msra.mxu0 %v1964
    %1999 = vmatprep.subr.bf16.mxu0 0
    %2000 = vmatpush1.bf16.msra.mxu0 %v1965
    %2001 = vmatprep.subr.bf16.mxu0 0
    %2002 = vmatpush1.bf16.msra.mxu0 %v1966
    %2003 = vmatprep.subr.bf16.mxu0 0
    %2004 = vmatpush1.bf16.msra.mxu0 %v1967
    %2005 = vmatprep.subr.bf16.mxu0 0
    %2006 = vmatpush1.bf16.msra.mxu0 %v1968
    %2007 = vmatprep.subr.bf16.mxu0 0
    %2008 = vmatpush1.bf16.msra.mxu0 %v1969
    %2009 = vmatprep.subr.bf16.mxu0 0
    %2010 = vmatpush1.bf16.msra.mxu0 %v1970
    %2011 = vmatprep.subr.bf16.mxu0 0
    %2012 = vmatpush1.bf16.msra.mxu0 %v1971
    %2013 = vmatprep.subr.bf16.mxu0 0
    %2014 = vmatpush1.bf16.msra.mxu0 %v1972
    %2015 = vmatprep.subr.bf16.mxu0 0
    %2016 = vmatpush1.bf16.msra.mxu0 %v1973
    %2017 = vmatprep.subr.bf16.mxu0 0
    %2018 = vmatpush1.bf16.msra.mxu0 %v1974
    %2019 = vmatprep.subr.bf16.mxu0 0
    %2020 = vmatpush1.bf16.msra.mxu0 %v1975
    %2021 = vmatprep.subr.bf16.mxu0 0
    %2022 = vmatpush1.bf16.msra.mxu0 %v1976
    %2023 = vmatprep.subr.bf16.mxu0 0
    %2024 = vmatpush1.bf16.msra.mxu0 %v1977
    %2025 = vmatprep.subr.bf16.mxu0 0
    %2026 = vmatpush1.bf16.msra.mxu0 %v1978
    %2027 = vmatprep.mubr.bf16.mxu0 %v1860
    %2028 = vmatmul.mubr.bf16.gmra.mrb[0].mxu0 %v1859
    %v2029 = vpop.f32.mrb[0].mxu0
    %v2030 = vadd.f32 0.0, %v2029
    %v2031 = vpop.f32.mrb[0].mxu0
    %v2032 = vpop.f32.mrb[0].mxu0
    %v2033 = vadd.f32 0.0, %v2032
    %v2034 = vpop.f32.mrb[0].mxu0
    %2035 = vmatprep.mubr.bf16.mxu0 %v1862
    %2036 = vmatmul.mubr.bf16.gmra.mrb[0].mxu0 %v1861
    %v2037 = vpop.f32.mrb[0].mxu0
    %v2038 = vadd.f32 0.0, %v2037
    %v2039 = vpop.f32.mrb[0].mxu0
    %v2040 = vpop.f32.mrb[0].mxu0
    %v2041 = vadd.f32 0.0, %v2040
    %v2042 = vpop.f32.mrb[0].mxu0
    %2043 = vmatprep.mubr.bf16.mxu0 %v1864
    %2044 = vmatmul.mubr.bf16.gmra.mrb[0].mxu0 %v1863
    %v2045 = vpop.f32.mrb[0].mxu0
    %v2046 = vadd.f32 0.0, %v2045
    %v2047 = vpop.f32.mrb[0].mxu0
    %v2048 = vpop.f32.mrb[0].mxu0
    %v2049 = vadd.f32 0.0, %v2048
    %v2050 = vpop.f32.mrb[0].mxu0
    %2051 = vmatprep.mubr.bf16.mxu0 %v1866
    %2052 = vmatmul.mubr.bf16.gmra.mrb[0].mxu0 %v1865
    %v2053 = vpop.f32.mrb[0].mxu0
    %v2054 = vadd.f32 0.0, %v2053
    %v2055 = vpop.f32.mrb[0].mxu0
    %v2056 = vpop.f32.mrb[0].mxu0
    %v2057 = vadd.f32 0.0, %v2056
    %v2058 = vpop.f32.mrb[0].mxu0
    %2059 = vdwg.mxu0
    %v2060 = vadd.f32 %v1590, %v2030
    %v2061 = vadd.f32 %v1591, %v2033
    %v2062 = vadd.f32 %v1592, %v2038
    %v2063 = vadd.f32 %v1593, %v2041
    %v2064 = vadd.f32 %v1594, %v2046
    %v2065 = vadd.f32 %v1595, %v2049
    %v2066 = vadd.f32 %v1596, %v2054
    %v2067 = vadd.f32 %v1597, %v2057
    %v2068 = vld [vmem:[%s7 + $0x9] sm:$0x1]
    %v2069 = vlaneseq
    %v2070 = vshrl.u32 %v2069, 7
    %v2071 = vsub.s32 0, %v2070
    %v2072 = vrot.slane %v2068, %v2071
    %v2073 = vadd.f32 %v2060, %v2072
    %v2074 = vadd.f32 %v2061, %v2072
    %v2075 = vadd.f32 %v2062, %v2072
    %v2076 = vadd.f32 %v2063, %v2072
    %v2077 = vadd.f32 %v2064, %v2072
    %v2078 = vadd.f32 %v2065, %v2072
    %v2079 = vadd.f32 %v2066, %v2072
    %v2080 = vadd.f32 %v2067, %v2072
    %v2081 = vsel %vm268, %v2073, 0.0
    %2082 = vadd.xlane.f32.xlu0 %v2081
    %v2083 = vpop.xlane.xlu0 %2082
    %v2084 = vsel %vm268, %v2074, 0.0
    %2085 = vadd.xlane.f32.xlu0 %v2084
    %v2086 = vpop.xlane.xlu0 %2085
    %v2087 = vsel %vm268, %v2075, 0.0
    %2088 = vadd.xlane.f32.xlu0 %v2087
    %v2089 = vpop.xlane.xlu0 %2088
    %v2090 = vsel %vm268, %v2076, 0.0
    %2091 = vadd.xlane.f32.xlu0 %v2090
    %v2092 = vpop.xlane.xlu0 %2091
    %v2093 = vsel %vm268, %v2077, 0.0
    %2094 = vadd.xlane.f32.xlu0 %v2093
    %v2095 = vpop.xlane.xlu0 %2094
    %v2096 = vsel %vm268, %v2078, 0.0
    %2097 = vadd.xlane.f32.xlu0 %v2096
    %v2098 = vpop.xlane.xlu0 %2097
    %v2099 = vsel %vm268, %v2079, 0.0
    %2100 = vadd.xlane.f32.xlu0 %v2099
    %v2101 = vpop.xlane.xlu0 %2100
    %v2102 = vsel %vm268, %v2080, 0.0
    %2103 = vadd.xlane.f32.xlu0 %v2102
    %v2104 = vpop.xlane.xlu0 %2103
    %v2105 = vmul.f32 %v2083, %v1491
    %v2106 = vmul.f32 %v2086, %v1491
    %v2107 = vmul.f32 %v2089, %v1491
    %v2108 = vmul.f32 %v2092, %v1491
    %v2109 = vmul.f32 %v2095, %v1491
    %v2110 = vmul.f32 %v2098, %v1491
    %v2111 = vmul.f32 %v2101, %v1491
    %v2112 = vmul.f32 %v2104, %v1491
    %v2113 = vsub.f32 %v2073, %v2105
    %v2114 = vsub.f32 %v2074, %v2106
    %v2115 = vsub.f32 %v2075, %v2107
    %v2116 = vsub.f32 %v2076, %v2108
    %v2117 = vsub.f32 %v2077, %v2109
    %v2118 = vsub.f32 %v2078, %v2110
    %v2119 = vsub.f32 %v2079, %v2111
    %v2120 = vsub.f32 %v2080, %v2112
    %v2121 = vmul.f32 %v2113, %v2113
    %v2122 = vmul.f32 %v2114, %v2114
    %v2123 = vmul.f32 %v2115, %v2115
    %v2124 = vmul.f32 %v2116, %v2116
    %v2125 = vmul.f32 %v2117, %v2117
    %v2126 = vmul.f32 %v2118, %v2118
    %v2127 = vmul.f32 %v2119, %v2119
    %v2128 = vmul.f32 %v2120, %v2120
    %v2129 = vsel %vm268, %v2121, 0.0
    %2130 = vadd.xlane.f32.xlu0 %v2129
    %v2131 = vpop.xlane.xlu0 %2130
    %v2132 = vsel %vm268, %v2122, 0.0
    %2133 = vadd.xlane.f32.xlu0 %v2132
    %v2134 = vpop.xlane.xlu0 %2133
    %v2135 = vsel %vm268, %v2123, 0.0
    %2136 = vadd.xlane.f32.xlu0 %v2135
    %v2137 = vpop.xlane.xlu0 %2136
    %v2138 = vsel %vm268, %v2124, 0.0
    %2139 = vadd.xlane.f32.xlu0 %v2138
    %v2140 = vpop.xlane.xlu0 %2139
    %v2141 = vsel %vm268, %v2125, 0.0
    %2142 = vadd.xlane.f32.xlu0 %v2141
    %v2143 = vpop.xlane.xlu0 %2142
    %v2144 = vsel %vm268, %v2126, 0.0
    %2145 = vadd.xlane.f32.xlu0 %v2144
    %v2146 = vpop.xlane.xlu0 %2145
    %v2147 = vsel %vm268, %v2127, 0.0
    %2148 = vadd.xlane.f32.xlu0 %v2147
    %v2149 = vpop.xlane.xlu0 %2148
    %v2150 = vsel %vm268, %v2128, 0.0
    %2151 = vadd.xlane.f32.xlu0 %v2150
    %v2152 = vpop.xlane.xlu0 %2151
    %v2153 = vmul.f32 %v2131, %v1491
    %v2154 = vmul.f32 %v2134, %v1491
    %v2155 = vmul.f32 %v2137, %v1491
    %v2156 = vmul.f32 %v2140, %v1491
    %v2157 = vmul.f32 %v2143, %v1491
    %v2158 = vmul.f32 %v2146, %v1491
    %v2159 = vmul.f32 %v2149, %v1491
    %v2160 = vmul.f32 %v2152, %v1491
    %v2161 = vadd.f32 %v2153, 1e-05
    %v2162 = vadd.f32 %v2154, 1e-05
    %v2163 = vadd.f32 %v2155, 1e-05
    %v2164 = vadd.f32 %v2156, 1e-05
    %v2165 = vadd.f32 %v2157, 1e-05
    %v2166 = vadd.f32 %v2158, 1e-05
    %v2167 = vadd.f32 %v2159, 1e-05
    %v2168 = vadd.f32 %v2160, 1e-05
    %v2169 = vrsqrt.pop %v2161
    %v2170 = vrsqrt.pop %v2162
    %v2171 = vrsqrt.pop %v2163
    %v2172 = vrsqrt.pop %v2164
    %v2173 = vrsqrt.pop %v2165
    %v2174 = vrsqrt.pop %v2166
    %v2175 = vrsqrt.pop %v2167
    %v2176 = vrsqrt.pop %v2168
    %v2177 = vmul.f32 %v2113, %v2169
    %v2178 = vmul.f32 %v2114, %v2170
    %v2179 = vmul.f32 %v2115, %v2171
    %v2180 = vmul.f32 %v2116, %v2172
    %v2181 = vmul.f32 %v2117, %v2173
    %v2182 = vmul.f32 %v2118, %v2174
    %v2183 = vmul.f32 %v2119, %v2175
    %v2184 = vmul.f32 %v2120, %v2176
    %v2185 = vld [vmem:[%s7 + $0xa] sm:$0x1]
    %v2186 = vlaneseq
    %v2187 = vshrl.u32 %v2186, 7
    %v2188 = vsub.s32 0, %v2187
    %v2189 = vrot.slane %v2185, %v2188
    %v2190 = vmul.f32 %v2177, %v2189
    %v2191 = vmul.f32 %v2178, %v2189
    %v2192 = vmul.f32 %v2179, %v2189
    %v2193 = vmul.f32 %v2180, %v2189
    %v2194 = vmul.f32 %v2181, %v2189
    %v2195 = vmul.f32 %v2182, %v2189
    %v2196 = vmul.f32 %v2183, %v2189
    %v2197 = vmul.f32 %v2184, %v2189
    %v2198 = vld [vmem:[%s7 + $0xb] sm:$0x1]
    %v2199 = vlaneseq
    %v2200 = vshrl.u32 %v2199, 7
    %v2201 = vsub.s32 0, %v2200
    %v2202 = vrot.slane %v2198, %v2201
    %v2203 = vadd.f32 %v2190, %v2202
    %v2204 = vadd.f32 %v2191, %v2202
    %v2205 = vadd.f32 %v2192, %v2202
    %v2206 = vadd.f32 %v2193, %v2202
    %v2207 = vadd.f32 %v2194, %v2202
    %v2208 = vadd.f32 %v2195, %v2202
    %v2209 = vadd.f32 %v2196, %v2202
    %v2210 = vadd.f32 %v2197, %v2202
    %v2211 = vpack.c.bf16 %v2204, %v2203
    %v2212 = vpack.c.bf16 %v2206, %v2205
    %v2213 = vpack.c.bf16 %v2208, %v2207
    %v2214 = vpack.c.bf16 %v2210, %v2209
    %s2215 = scalar_lea.vmem %s3, 160
    %v2216 = vld [vmem:[%s2215] sm:$0xf]
    %v2217 = vld [vmem:[%s2215 + $0x4] sm:$0xf]
    %v2218 = vld [vmem:[%s2215 + $0x8] sm:$0xf]
    %v2219 = vld [vmem:[%s2215 + $0xc] sm:$0xf]
    %v2220 = vld [vmem:[%s2215 + $0x10] sm:$0xf]
    %v2221 = vld [vmem:[%s2215 + $0x14] sm:$0xf]
    %v2222 = vld [vmem:[%s2215 + $0x18] sm:$0xf]
    %v2223 = vld [vmem:[%s2215 + $0x1c] sm:$0xf]
    %v2224 = vld [vmem:[%s7 + $0xc] sm:$0x1]
    %v2225 = vlaneseq
    %v2226 = vshrl.u32 %v2225, 7
    %v2227 = vsub.s32 0, %v2226
    %v2228 = vrot.slane %v2224, %v2227
    %v2237 = vunpack.c.l.b16 %v2216
    %v2238 = vunpack.c.l.b16 %v2217
    %v2239 = vunpack.c.l.b16 %v2218
    %v2240 = vunpack.c.l.b16 %v2219
    %v2241 = vunpack.c.l.b16 %v2220
    %v2242 = vunpack.c.l.b16 %v2221
    %v2243 = vunpack.c.l.b16 %v2222
    %v2244 = vunpack.c.l.b16 %v2223
    %v2245 = vpack.c.b16 %v2238, %v2237
    %v2246 = vpack.c.b16 %v2240, %v2239
    %v2247 = vpack.c.b16 %v2242, %v2241
    %v2248 = vpack.c.b16 %v2244, %v2243
    %v2254 = vsel %vm268, %v2211, 0
    %v2257 = vsel %vm268, %v2212, 0
    %v2260 = vsel %vm268, %v2213, 0
    %v2263 = vsel %vm268, %v2214, 0
    %2265 = vmatprep.subr.bf16.mxu0 0
    %2266 = vmatpush1.bf16.msra.mxu0 %v2245
    %2267 = vmatprep.subr.bf16.mxu0 0
    %2268 = vmatpush1.bf16.msra.mxu0 %v2246
    %2269 = vmatprep.subr.bf16.mxu0 0
    %2270 = vmatpush1.bf16.msra.mxu0 %v2247
    %2271 = vmatprep.subr.bf16.mxu0 0
    %2272 = vmatpush1.bf16.msra.mxu0 %v2248
    %2273 = vmatprep.subr.bf16.mxu0 0
    %2274 = vmatpush1.bf16.msra.mxu0 0
    %2275 = vmatprep.subr.bf16.mxu0 0
    %2276 = vmatpush1.bf16.msra.mxu0 0
    %2277 = vmatprep.subr.bf16.mxu0 0
    %2278 = vmatpush1.bf16.msra.mxu0 0
    %2279 = vmatprep.subr.bf16.mxu0 0
    %2280 = vmatpush1.bf16.msra.mxu0 0
    %2281 = vmatprep.subr.bf16.mxu0 0
    %2282 = vmatpush1.bf16.msra.mxu0 0
    %2283 = vmatprep.subr.bf16.mxu0 0
    %2284 = vmatpush1.bf16.msra.mxu0 0
    %2285 = vmatprep.subr.bf16.mxu0 0
    %2286 = vmatpush1.bf16.msra.mxu0 0
    %2287 = vmatprep.subr.bf16.mxu0 0
    %2288 = vmatpush1.bf16.msra.mxu0 0
    %2289 = vmatprep.subr.bf16.mxu0 0
    %2290 = vmatpush1.bf16.msra.mxu0 0
    %2291 = vmatprep.subr.bf16.mxu0 0
    %2292 = vmatpush1.bf16.msra.mxu0 0
    %2293 = vmatprep.subr.bf16.mxu0 0
    %2294 = vmatpush1.bf16.msra.mxu0 0
    %2295 = vmatprep.subr.bf16.mxu0 0
    %2296 = vmatpush1.bf16.msra.mxu0 0
    %2297 = vmatprep.mubr.bf16.mxu0 0
    %2298 = vmatmul.mubr.bf16.gmra.mrb[0].mxu0 %v2254
    %v2299 = vpop.f32.mrb[0].mxu0
    %v2300 = vadd.f32 %v2228, %v2299
    %v2301 = vpop.f32.mrb[0].mxu0
    %v2302 = vpop.f32.mrb[0].mxu0
    %v2303 = vadd.f32 %v2228, %v2302
    %v2304 = vpop.f32.mrb[0].mxu0
    %2305 = vmatprep.mubr.bf16.mxu0 0
    %2306 = vmatmul.mubr.bf16.gmra.mrb[0].mxu0 %v2257
    %v2307 = vpop.f32.mrb[0].mxu0
    %v2308 = vadd.f32 %v2228, %v2307
    %v2309 = vpop.f32.mrb[0].mxu0
    %v2310 = vpop.f32.mrb[0].mxu0
    %v2311 = vadd.f32 %v2228, %v2310
    %v2312 = vpop.f32.mrb[0].mxu0
    %2313 = vmatprep.mubr.bf16.mxu0 0
    %2314 = vmatmul.mubr.bf16.gmra.mrb[0].mxu0 %v2260
    %v2315 = vpop.f32.mrb[0].mxu0
    %v2316 = vadd.f32 %v2228, %v2315
    %v2317 = vpop.f32.mrb[0].mxu0
    %v2318 = vpop.f32.mrb[0].mxu0
    %v2319 = vadd.f32 %v2228, %v2318
    %v2320 = vpop.f32.mrb[0].mxu0
    %2321 = vmatprep.mubr.bf16.mxu0 0
    %2322 = vmatmul.mubr.bf16.gmra.mrb[0].mxu0 %v2263
    %v2323 = vpop.f32.mrb[0].mxu0
    %v2324 = vadd.f32 %v2228, %v2323
    %v2325 = vpop.f32.mrb[0].mxu0
    %v2326 = vpop.f32.mrb[0].mxu0
    %v2327 = vadd.f32 %v2228, %v2326
    %v2328 = vpop.f32.mrb[0].mxu0
    %2329 = vdwg.mxu0
    %s2330 = scalar_lea.vmem %s3, 192
    %v2331 = vld [vmem:[%s2330] sm:$0xf]
    %v2332 = vld [vmem:[%s2330 + $0x4] sm:$0xf]
    %v2333 = vld [vmem:[%s2330 + $0x8] sm:$0xf]
    %v2334 = vld [vmem:[%s2330 + $0xc] sm:$0xf]
    %v2335 = vld [vmem:[%s2330 + $0x10] sm:$0xf]
    %v2336 = vld [vmem:[%s2330 + $0x14] sm:$0xf]
    %v2337 = vld [vmem:[%s2330 + $0x18] sm:$0xf]
    %v2338 = vld [vmem:[%s2330 + $0x1c] sm:$0xf]
    %v2339 = vld [vmem:[%s7 + $0xd] sm:$0x1]
    %v2340 = vlaneseq
    %v2341 = vshrl.u32 %v2340, 7
    %v2342 = vsub.s32 0, %v2341
    %v2343 = vrot.slane %v2339, %v2342
    %v2352 = vunpack.c.l.b16 %v2331
    %v2353 = vunpack.c.l.b16 %v2332
    %v2354 = vunpack.c.l.b16 %v2333
    %v2355 = vunpack.c.l.b16 %v2334
    %v2356 = vunpack.c.l.b16 %v2335
    %v2357 = vunpack.c.l.b16 %v2336
    %v2358 = vunpack.c.l.b16 %v2337
    %v2359 = vunpack.c.l.b16 %v2338
    %v2360 = vpack.c.b16 %v2353, %v2352
    %v2361 = vpack.c.b16 %v2355, %v2354
    %v2362 = vpack.c.b16 %v2357, %v2356
    %v2363 = vpack.c.b16 %v2359, %v2358
    %2368 = vmatprep.subr.bf16.mxu0 0
    %2369 = vmatpush1.bf16.msra.mxu0 %v2360
    %2370 = vmatprep.subr.bf16.mxu0 0
    %2371 = vmatpush1.bf16.msra.mxu0 %v2361
    %2372 = vmatprep.subr.bf16.mxu0 0
    %2373 = vmatpush1.bf16.msra.mxu0 %v2362
    %2374 = vmatprep.subr.bf16.mxu0 0
    %2375 = vmatpush1.bf16.msra.mxu0 %v2363
    %2376 = vmatprep.subr.bf16.mxu0 0
    %2377 = vmatpush1.bf16.msra.mxu0 0
    %2378 = vmatprep.subr.bf16.mxu0 0
    %2379 = vmatpush1.bf16.msra.mxu0 0
    %2380 = vmatprep.subr.bf16.mxu0 0
    %2381 = vmatpush1.bf16.msra.mxu0 0
    %2382 = vmatprep.subr.bf16.mxu0 0
    %2383 = vmatpush1.bf16.msra.mxu0 0
    %2384 = vmatprep.subr.bf16.mxu0 0
    %2385 = vmatpush1.bf16.msra.mxu0 0
    %2386 = vmatprep.subr.bf16.mxu0 0
    %2387 = vmatpush1.bf16.msra.mxu0 0
    %2388 = vmatprep.subr.bf16.mxu0 0
    %2389 = vmatpush1.bf16.msra.mxu0 0
    %2390 = vmatprep.subr.bf16.mxu0 0
    %2391 = vmatpush1.bf16.msra.mxu0 0
    %2392 = vmatprep.subr.bf16.mxu0 0
    %2393 = vmatpush1.bf16.msra.mxu0 0
    %2394 = vmatprep.subr.bf16.mxu0 0
    %2395 = vmatpush1.bf16.msra.mxu0 0
    %2396 = vmatprep.subr.bf16.mxu0 0
    %2397 = vmatpush1.bf16.msra.mxu0 0
    %2398 = vmatprep.subr.bf16.mxu0 0
    %2399 = vmatpush1.bf16.msra.mxu0 0
    %2400 = vmatprep.mubr.bf16.mxu0 0
    %2401 = vmatmul.mubr.bf16.gmra.mrb[0].mxu0 %v2254
    %v2402 = vpop.f32.mrb[0].mxu0
    %v2403 = vadd.f32 %v2343, %v2402
    %v2404 = vpop.f32.mrb[0].mxu0
    %v2405 = vpop.f32.mrb[0].mxu0
    %v2406 = vadd.f32 %v2343, %v2405
    %v2407 = vpop.f32.mrb[0].mxu0
    %2408 = vmatprep.mubr.bf16.mxu0 0
    %2409 = vmatmul.mubr.bf16.gmra.mrb[0].mxu0 %v2257
    %v2410 = vpop.f32.mrb[0].mxu0
    %v2411 = vadd.f32 %v2343, %v2410
    %v2412 = vpop.f32.mrb[0].mxu0
    %v2413 = vpop.f32.mrb[0].mxu0
    %v2414 = vadd.f32 %v2343, %v2413
    %v2415 = vpop.f32.mrb[0].mxu0
    %2416 = vmatprep.mubr.bf16.mxu0 0
    %2417 = vmatmul.mubr.bf16.gmra.mrb[0].mxu0 %v2260
    %v2418 = vpop.f32.mrb[0].mxu0
    %v2419 = vadd.f32 %v2343, %v2418
    %v2420 = vpop.f32.mrb[0].mxu0
    %v2421 = vpop.f32.mrb[0].mxu0
    %v2422 = vadd.f32 %v2343, %v2421
    %v2423 = vpop.f32.mrb[0].mxu0
    %2424 = vmatprep.mubr.bf16.mxu0 0
    %2425 = vmatmul.mubr.bf16.gmra.mrb[0].mxu0 %v2263
    %v2426 = vpop.f32.mrb[0].mxu0
    %v2427 = vadd.f32 %v2343, %v2426
    %v2428 = vpop.f32.mrb[0].mxu0
    %v2429 = vpop.f32.mrb[0].mxu0
    %v2430 = vadd.f32 %v2343, %v2429
    %v2431 = vpop.f32.mrb[0].mxu0
    %2432 = vdwg.mxu0
    %v2433 = vxor.u32 %v2403, 2147483648
    %v2434 = vxor.u32 %v2406, 2147483648
    %v2435 = vxor.u32 %v2411, 2147483648
    %v2436 = vxor.u32 %v2414, 2147483648
    %v2437 = vxor.u32 %v2419, 2147483648
    %v2438 = vxor.u32 %v2422, 2147483648
    %v2439 = vxor.u32 %v2427, 2147483648
    %v2440 = vxor.u32 %v2430, 2147483648
    %v2441 = vmul.f32 %v2433, 1.442695
    %v2442 = vpow.pop %v2441
    %v2443 = vmul.f32 %v2434, 1.442695
    %v2444 = vpow.pop %v2443
    %v2445 = vmul.f32 %v2435, 1.442695
    %v2446 = vpow.pop %v2445
    %v2447 = vmul.f32 %v2436, 1.442695
    %v2448 = vpow.pop %v2447
    %v2449 = vmul.f32 %v2437, 1.442695
    %v2450 = vpow.pop %v2449
    %v2451 = vmul.f32 %v2438, 1.442695
    %v2452 = vpow.pop %v2451
    %v2453 = vmul.f32 %v2439, 1.442695
    %v2454 = vpow.pop %v2453
    %v2455 = vmul.f32 %v2440, 1.442695
    %v2456 = vpow.pop %v2455
    %v2457 = vadd.f32 %v2442, 1.0
    %v2458 = vadd.f32 %v2444, 1.0
    %v2459 = vadd.f32 %v2446, 1.0
    %v2460 = vadd.f32 %v2448, 1.0
    %v2461 = vadd.f32 %v2450, 1.0
    %v2462 = vadd.f32 %v2452, 1.0
    %v2463 = vadd.f32 %v2454, 1.0
    %v2464 = vadd.f32 %v2456, 1.0
    %v2465 = vrcp.pop %v2457
    %v2466 = vmul.f32 1.0, %v2465
    %v2467 = vrcp.pop %v2458
    %v2468 = vmul.f32 1.0, %v2467
    %v2469 = vrcp.pop %v2459
    %v2470 = vmul.f32 1.0, %v2469
    %v2471 = vrcp.pop %v2460
    %v2472 = vmul.f32 1.0, %v2471
    %v2473 = vrcp.pop %v2461
    %v2474 = vmul.f32 1.0, %v2473
    %v2475 = vrcp.pop %v2462
    %v2476 = vmul.f32 1.0, %v2475
    %v2477 = vrcp.pop %v2463
    %v2478 = vmul.f32 1.0, %v2477
    %v2479 = vrcp.pop %v2464
    %v2480 = vmul.f32 1.0, %v2479
    %v2481 = vmul.f32 %v2300, %v2466
    %v2482 = vmul.f32 %v2303, %v2468
    %v2483 = vmul.f32 %v2308, %v2470
    %v2484 = vmul.f32 %v2311, %v2472
    %v2485 = vmul.f32 %v2316, %v2474
    %v2486 = vmul.f32 %v2319, %v2476
    %v2487 = vmul.f32 %v2324, %v2478
    %v2488 = vmul.f32 %v2327, %v2480
    %v2489 = vpack.c.bf16 %v2482, %v2481
    %v2490 = vpack.c.bf16 %v2484, %v2483
    %v2491 = vpack.c.bf16 %v2486, %v2485
    %v2492 = vpack.c.bf16 %v2488, %v2487
    %v2493 = vld [vmem:[%s7 + $0x20] sm:$0x1]
    %v2494 = vld [vmem:[#allocation5] sm:$0xf]
    %v2495 = vld [vmem:[#allocation5 + $0x4] sm:$0xf]
    %v2496 = vld [vmem:[#allocation5 + $0x8] sm:$0xf]
    %v2497 = vld [vmem:[#allocation5 + $0xc] sm:$0xf]
    %v2498 = vld [vmem:[#allocation5 + $0x10] sm:$0xf]
    %v2499 = vld [vmem:[#allocation5 + $0x14] sm:$0xf]
    %v2500 = vld [vmem:[#allocation5 + $0x18] sm:$0xf]
    %v2501 = vld [vmem:[#allocation5 + $0x1c] sm:$0xf]
    %v2510 = vunpack.c.l.b16 %v2494
    %v2511 = vunpack.c.l.b16 %v2495
    %v2512 = vunpack.c.l.b16 %v2496
    %v2513 = vunpack.c.l.b16 %v2497
    %v2514 = vunpack.c.l.b16 %v2498
    %v2515 = vunpack.c.l.b16 %v2499
    %v2516 = vunpack.c.l.b16 %v2500
    %v2517 = vunpack.c.l.b16 %v2501
    %v2518 = vpack.c.b16 %v2511, %v2510
    %v2519 = vpack.c.b16 %v2513, %v2512
    %v2520 = vpack.c.b16 %v2515, %v2514
    %v2521 = vpack.c.b16 %v2517, %v2516
    %v2523 = vsel %vm268, %v2518, 0
    %v2526 = vsel %vm268, %v2519, 0
    %v2529 = vsel %vm268, %v2520, 0
    %v2532 = vsel %vm268, %v2521, 0
    %2534 = vmatprep.subr.bf16.mxu0 0
    %2535 = vmatpush1.bf16.msra.mxu0 %v2489
    %2536 = vmatprep.subr.bf16.mxu0 0
    %2537 = vmatpush1.bf16.msra.mxu0 %v2490
    %2538 = vmatprep.subr.bf16.mxu0 0
    %2539 = vmatpush1.bf16.msra.mxu0 %v2491
    %2540 = vmatprep.subr.bf16.mxu0 0
    %2541 = vmatpush1.bf16.msra.mxu0 %v2492
    %2542 = vmatprep.subr.bf16.mxu0 0
    %2543 = vmatpush1.bf16.msra.mxu0 0
    %2544 = vmatprep.subr.bf16.mxu0 0
    %2545 = vmatpush1.bf16.msra.mxu0 0
    %2546 = vmatprep.subr.bf16.mxu0 0
    %2547 = vmatpush1.bf16.msra.mxu0 0
    %2548 = vmatprep.subr.bf16.mxu0 0
    %2549 = vmatpush1.bf16.msra.mxu0 0
    %2550 = vmatprep.subr.bf16.mxu0 0
    %2551 = vmatpush1.bf16.msra.mxu0 0
    %2552 = vmatprep.subr.bf16.mxu0 0
    %2553 = vmatpush1.bf16.msra.mxu0 0
    %2554 = vmatprep.subr.bf16.mxu0 0
    %2555 = vmatpush1.bf16.msra.mxu0 0
    %2556 = vmatprep.subr.bf16.mxu0 0
    %2557 = vmatpush1.bf16.msra.mxu0 0
    %2558 = vmatprep.subr.bf16.mxu0 0
    %2559 = vmatpush1.bf16.msra.mxu0 0
    %2560 = vmatprep.subr.bf16.mxu0 0
    %2561 = vmatpush1.bf16.msra.mxu0 0
    %2562 = vmatprep.subr.bf16.mxu0 0
    %2563 = vmatpush1.bf16.msra.mxu0 0
    %2564 = vmatprep.subr.bf16.mxu0 0
    %2565 = vmatpush1.bf16.msra.mxu0 0
    %2566 = vmatprep.mubr.bf16.mxu0 0
    %2567 = vmatmul.mubr.bf16.gmra.mrb[0].mxu0 %v2523
    %v2568 = vpop.f32.mrb[0].mxu0
    %v2569 = vadd.f32 0.0, %v2568
    %v2570 = vpop.f32.mrb[0].mxu0
    %v2571 = vpop.f32.mrb[0].mxu0
    %v2572 = vadd.f32 0.0, %v2571
    %v2573 = vpop.f32.mrb[0].mxu0
    %2574 = vmatprep.mubr.bf16.mxu0 0
    %2575 = vmatmul.mubr.bf16.gmra.mrb[0].mxu0 %v2526
    %v2576 = vpop.f32.mrb[0].mxu0
    %v2577 = vadd.f32 0.0, %v2576
    %v2578 = vpop.f32.mrb[0].mxu0
    %v2579 = vpop.f32.mrb[0].mxu0
    %v2580 = vadd.f32 0.0, %v2579
    %v2581 = vpop.f32.mrb[0].mxu0
    %2582 = vmatprep.mubr.bf16.mxu0 0
    %2583 = vmatmul.mubr.bf16.gmra.mrb[0].mxu0 %v2529
    %v2584 = vpop.f32.mrb[0].mxu0
    %v2585 = vadd.f32 0.0, %v2584
    %v2586 = vpop.f32.mrb[0].mxu0
    %v2587 = vpop.f32.mrb[0].mxu0
    %v2588 = vadd.f32 0.0, %v2587
    %v2589 = vpop.f32.mrb[0].mxu0
    %2590 = vmatprep.mubr.bf16.mxu0 0
    %2591 = vmatmul.mubr.bf16.gmra.mrb[0].mxu0 %v2532
    %v2592 = vpop.f32.mrb[0].mxu0
    %v2593 = vadd.f32 0.0, %v2592
    %v2594 = vpop.f32.mrb[0].mxu0
    %v2595 = vpop.f32.mrb[0].mxu0
    %v2596 = vadd.f32 0.0, %v2595
    %v2597 = vpop.f32.mrb[0].mxu0
    %2598 = vdwg.mxu0
    %v2599 = vlaneseq
    %v2600 = vshrl.u32 %v2599, 7
    %v2601 = vsub.s32 0, %v2600
    %v2602 = vrot.slane %v2493, %v2601
    %v2603 = vmul.f32 %v2569, %v2602
    %v2604 = vmul.f32 %v2572, %v2602
    %v2605 = vmul.f32 %v2577, %v2602
    %v2606 = vmul.f32 %v2580, %v2602
    %v2607 = vmul.f32 %v2585, %v2602
    %v2608 = vmul.f32 %v2588, %v2602
    %v2609 = vmul.f32 %v2593, %v2602
    %v2610 = vmul.f32 %v2596, %v2602
    %v2611 = vadd.f32 %v2603, 0.0
    %v2612 = vadd.f32 %v2604, 0.0
    %v2613 = vadd.f32 %v2605, 0.0
    %v2614 = vadd.f32 %v2606, 0.0
    %v2615 = vadd.f32 %v2607, 0.0
    %v2616 = vadd.f32 %v2608, 0.0
    %v2617 = vadd.f32 %v2609, 0.0
    %v2618 = vadd.f32 %v2610, 0.0
    %v2619 = vld [vmem:[%s7 + $0x21] sm:$0x1]
    %s2620 = scalar_lea.vmem [#allocation5], 32
    %v2621 = vld [vmem:[%s2620] sm:$0xf]
    %v2622 = vld [vmem:[%s2620 + $0x4] sm:$0xf]
    %v2623 = vld [vmem:[%s2620 + $0x8] sm:$0xf]
    %v2624 = vld [vmem:[%s2620 + $0xc] sm:$0xf]
    %v2625 = vld [vmem:[%s2620 + $0x10] sm:$0xf]
    %v2626 = vld [vmem:[%s2620 + $0x14] sm:$0xf]
    %v2627 = vld [vmem:[%s2620 + $0x18] sm:$0xf]
    %v2628 = vld [vmem:[%s2620 + $0x1c] sm:$0xf]
    %v2637 = vunpack.c.l.b16 %v2621
    %v2638 = vunpack.c.l.b16 %v2622
    %v2639 = vunpack.c.l.b16 %v2623
    %v2640 = vunpack.c.l.b16 %v2624
    %v2641 = vunpack.c.l.b16 %v2625
    %v2642 = vunpack.c.l.b16 %v2626
    %v2643 = vunpack.c.l.b16 %v2627
    %v2644 = vunpack.c.l.b16 %v2628
    %v2645 = vpack.c.b16 %v2638, %v2637
    %v2646 = vpack.c.b16 %v2640, %v2639
    %v2647 = vpack.c.b16 %v2642, %v2641
    %v2648 = vpack.c.b16 %v2644, %v2643
    %v2650 = vsel %vm268, %v2645, 0
    %v2653 = vsel %vm268, %v2646, 0
    %v2656 = vsel %vm268, %v2647, 0
    %v2659 = vsel %vm268, %v2648, 0
    %2661 = vmatprep.subr.bf16.mxu0 0
    %2662 = vmatpush1.bf16.msra.mxu0 %v2489
    %2663 = vmatprep.subr.bf16.mxu0 0
    %2664 = vmatpush1.bf16.msra.mxu0 %v2490
    %2665 = vmatprep.subr.bf16.mxu0 0
    %2666 = vmatpush1.bf16.msra.mxu0 %v2491
    %2667 = vmatprep.subr.bf16.mxu0 0
    %2668 = vmatpush1.bf16.msra.mxu0 %v2492
    %2669 = vmatprep.subr.bf16.mxu0 0
    %2670 = vmatpush1.bf16.msra.mxu0 0
    %2671 = vmatprep.subr.bf16.mxu0 0
    %2672 = vmatpush1.bf16.msra.mxu0 0
    %2673 = vmatprep.subr.bf16.mxu0 0
    %2674 = vmatpush1.bf16.msra.mxu0 0
    %2675 = vmatprep.subr.bf16.mxu0 0
    %2676 = vmatpush1.bf16.msra.mxu0 0
    %2677 = vmatprep.subr.bf16.mxu0 0
    %2678 = vmatpush1.bf16.msra.mxu0 0
    %2679 = vmatprep.subr.bf16.mxu0 0
    %2680 = vmatpush1.bf16.msra.mxu0 0
    %2681 = vmatprep.subr.bf16.mxu0 0
    %2682 = vmatpush1.bf16.msra.mxu0 0
    %2683 = vmatprep.subr.bf16.mxu0 0
    %2684 = vmatpush1.bf16.msra.mxu0 0
    %2685 = vmatprep.subr.bf16.mxu0 0
    %2686 = vmatpush1.bf16.msra.mxu0 0
    %2687 = vmatprep.subr.bf16.mxu0 0
    %2688 = vmatpush1.bf16.msra.mxu0 0
    %2689 = vmatprep.subr.bf16.mxu0 0
    %2690 = vmatpush1.bf16.msra.mxu0 0
    %2691 = vmatprep.subr.bf16.mxu0 0
    %2692 = vmatpush1.bf16.msra.mxu0 0
    %2693 = vmatprep.mubr.bf16.mxu0 0
    %2694 = vmatmul.mubr.bf16.gmra.mrb[0].mxu0 %v2650
    %v2695 = vpop.f32.mrb[0].mxu0
    %v2696 = vadd.f32 0.0, %v2695
    %v2697 = vpop.f32.mrb[0].mxu0
    %v2698 = vpop.f32.mrb[0].mxu0
    %v2699 = vadd.f32 0.0, %v2698
    %v2700 = vpop.f32.mrb[0].mxu0
    %2701 = vmatprep.mubr.bf16.mxu0 0
    %2702 = vmatmul.mubr.bf16.gmra.mrb[0].mxu0 %v2653
    %v2703 = vpop.f32.mrb[0].mxu0
    %v2704 = vadd.f32 0.0, %v2703
    %v2705 = vpop.f32.mrb[0].mxu0
    %v2706 = vpop.f32.mrb[0].mxu0
    %v2707 = vadd.f32 0.0, %v2706
    %v2708 = vpop.f32.mrb[0].mxu0
    %2709 = vmatprep.mubr.bf16.mxu0 0
    %2710 = vmatmul.mubr.bf16.gmra.mrb[0].mxu0 %v2656
    %v2711 = vpop.f32.mrb[0].mxu0
    %v2712 = vadd.f32 0.0, %v2711
    %v2713 = vpop.f32.mrb[0].mxu0
    %v2714 = vpop.f32.mrb[0].mxu0
    %v2715 = vadd.f32 0.0, %v2714
    %v2716 = vpop.f32.mrb[0].mxu0
    %2717 = vmatprep.mubr.bf16.mxu0 0
    %2718 = vmatmul.mubr.bf16.gmra.mrb[0].mxu0 %v2659
    %v2719 = vpop.f32.mrb[0].mxu0
    %v2720 = vadd.f32 0.0, %v2719
    %v2721 = vpop.f32.mrb[0].mxu0
    %v2722 = vpop.f32.mrb[0].mxu0
    %v2723 = vadd.f32 0.0, %v2722
    %v2724 = vpop.f32.mrb[0].mxu0
    %2725 = vdwg.mxu0
    %v2726 = vlaneseq
    %v2727 = vshrl.u32 %v2726, 7
    %v2728 = vsub.s32 0, %v2727
    %v2729 = vrot.slane %v2619, %v2728
    %v2730 = vmul.f32 %v2696, %v2729
    %v2731 = vmul.f32 %v2699, %v2729
    %v2732 = vmul.f32 %v2704, %v2729
    %v2733 = vmul.f32 %v2707, %v2729
    %v2734 = vmul.f32 %v2712, %v2729
    %v2735 = vmul.f32 %v2715, %v2729
    %v2736 = vmul.f32 %v2720, %v2729
    %v2737 = vmul.f32 %v2723, %v2729
    %v2738 = vadd.f32 %v2611, %v2730
    %v2739 = vadd.f32 %v2612, %v2731
    %v2740 = vadd.f32 %v2613, %v2732
    %v2741 = vadd.f32 %v2614, %v2733
    %v2742 = vadd.f32 %v2615, %v2734
    %v2743 = vadd.f32 %v2616, %v2735
    %v2744 = vadd.f32 %v2617, %v2736
    %v2745 = vadd.f32 %v2618, %v2737
    %v2746 = vld [vmem:[%s7 + $0x22] sm:$0x1]
    %s2747 = scalar_lea.vmem [#allocation5], 64
    %v2748 = vld [vmem:[%s2747] sm:$0xf]
    %v2749 = vld [vmem:[%s2747 + $0x4] sm:$0xf]
    %v2750 = vld [vmem:[%s2747 + $0x8] sm:$0xf]
    %v2751 = vld [vmem:[%s2747 + $0xc] sm:$0xf]
    %v2752 = vld [vmem:[%s2747 + $0x10] sm:$0xf]
    %v2753 = vld [vmem:[%s2747 + $0x14] sm:$0xf]
    %v2754 = vld [vmem:[%s2747 + $0x18] sm:$0xf]
    %v2755 = vld [vmem:[%s2747 + $0x1c] sm:$0xf]
    %v2764 = vunpack.c.l.b16 %v2748
    %v2765 = vunpack.c.l.b16 %v2749
    %v2766 = vunpack.c.l.b16 %v2750
    %v2767 = vunpack.c.l.b16 %v2751
    %v2768 = vunpack.c.l.b16 %v2752
    %v2769 = vunpack.c.l.b16 %v2753
    %v2770 = vunpack.c.l.b16 %v2754
    %v2771 = vunpack.c.l.b16 %v2755
    %v2772 = vpack.c.b16 %v2765, %v2764
    %v2773 = vpack.c.b16 %v2767, %v2766
    %v2774 = vpack.c.b16 %v2769, %v2768
    %v2775 = vpack.c.b16 %v2771, %v2770
    %v2777 = vsel %vm268, %v2772, 0
    %v2780 = vsel %vm268, %v2773, 0
    %v2783 = vsel %vm268, %v2774, 0
    %v2786 = vsel %vm268, %v2775, 0
    %2788 = vmatprep.subr.bf16.mxu0 0
    %2789 = vmatpush1.bf16.msra.mxu0 %v2489
    %2790 = vmatprep.subr.bf16.mxu0 0
    %2791 = vmatpush1.bf16.msra.mxu0 %v2490
    %2792 = vmatprep.subr.bf16.mxu0 0
    %2793 = vmatpush1.bf16.msra.mxu0 %v2491
    %2794 = vmatprep.subr.bf16.mxu0 0
    %2795 = vmatpush1.bf16.msra.mxu0 %v2492
    %2796 = vmatprep.subr.bf16.mxu0 0
    %2797 = vmatpush1.bf16.msra.mxu0 0
    %2798 = vmatprep.subr.bf16.mxu0 0
    %2799 = vmatpush1.bf16.msra.mxu0 0
    %2800 = vmatprep.subr.bf16.mxu0 0
    %2801 = vmatpush1.bf16.msra.mxu0 0
    %2802 = vmatprep.subr.bf16.mxu0 0
    %2803 = vmatpush1.bf16.msra.mxu0 0
    %2804 = vmatprep.subr.bf16.mxu0 0
    %2805 = vmatpush1.bf16.msra.mxu0 0
    %2806 = vmatprep.subr.bf16.mxu0 0
    %2807 = vmatpush1.bf16.msra.mxu0 0
    %2808 = vmatprep.subr.bf16.mxu0 0
    %2809 = vmatpush1.bf16.msra.mxu0 0
    %2810 = vmatprep.subr.bf16.mxu0 0
    %2811 = vmatpush1.bf16.msra.mxu0 0
    %2812 = vmatprep.subr.bf16.mxu0 0
    %2813 = vmatpush1.bf16.msra.mxu0 0
    %2814 = vmatprep.subr.bf16.mxu0 0
    %2815 = vmatpush1.bf16.msra.mxu0 0
    %2816 = vmatprep.subr.bf16.mxu0 0
    %2817 = vmatpush1.bf16.msra.mxu0 0
    %2818 = vmatprep.subr.bf16.mxu0 0
    %2819 = vmatpush1.bf16.msra.mxu0 0
    %2820 = vmatprep.mubr.bf16.mxu0 0
    %2821 = vmatmul.mubr.bf16.gmra.mrb[0].mxu0 %v2777
    %v2822 = vpop.f32.mrb[0].mxu0
    %v2823 = vadd.f32 0.0, %v2822
    %v2824 = vpop.f32.mrb[0].mxu0
    %v2825 = vpop.f32.mrb[0].mxu0
    %v2826 = vadd.f32 0.0, %v2825
    %v2827 = vpop.f32.mrb[0].mxu0
    %2828 = vmatprep.mubr.bf16.mxu0 0
    %2829 = vmatmul.mubr.bf16.gmra.mrb[0].mxu0 %v2780
    %v2830 = vpop.f32.mrb[0].mxu0
    %v2831 = vadd.f32 0.0, %v2830
    %v2832 = vpop.f32.mrb[0].mxu0
    %v2833 = vpop.f32.mrb[0].mxu0
    %v2834 = vadd.f32 0.0, %v2833
    %v2835 = vpop.f32.mrb[0].mxu0
    %2836 = vmatprep.mubr.bf16.mxu0 0
    %2837 = vmatmul.mubr.bf16.gmra.mrb[0].mxu0 %v2783
    %v2838 = vpop.f32.mrb[0].mxu0
    %v2839 = vadd.f32 0.0, %v2838
    %v2840 = vpop.f32.mrb[0].mxu0
    %v2841 = vpop.f32.mrb[0].mxu0
    %v2842 = vadd.f32 0.0, %v2841
    %v2843 = vpop.f32.mrb[0].mxu0
    %2844 = vmatprep.mubr.bf16.mxu0 0
    %2845 = vmatmul.mubr.bf16.gmra.mrb[0].mxu0 %v2786
    %v2846 = vpop.f32.mrb[0].mxu0
    %v2847 = vadd.f32 0.0, %v2846
    %v2848 = vpop.f32.mrb[0].mxu0
    %v2849 = vpop.f32.mrb[0].mxu0
    %v2850 = vadd.f32 0.0, %v2849
    %v2851 = vpop.f32.mrb[0].mxu0
    %2852 = vdwg.mxu0
    %v2853 = vlaneseq
    %v2854 = vshrl.u32 %v2853, 7
    %v2855 = vsub.s32 0, %v2854
    %v2856 = vrot.slane %v2746, %v2855
    %v2857 = vmul.f32 %v2823, %v2856
    %v2858 = vmul.f32 %v2826, %v2856
    %v2859 = vmul.f32 %v2831, %v2856
    %v2860 = vmul.f32 %v2834, %v2856
    %v2861 = vmul.f32 %v2839, %v2856
    %v2862 = vmul.f32 %v2842, %v2856
    %v2863 = vmul.f32 %v2847, %v2856
    %v2864 = vmul.f32 %v2850, %v2856
    %v2865 = vadd.f32 %v2738, %v2857
    %v2866 = vadd.f32 %v2739, %v2858
    %v2867 = vadd.f32 %v2740, %v2859
    %v2868 = vadd.f32 %v2741, %v2860
    %v2869 = vadd.f32 %v2742, %v2861
    %v2870 = vadd.f32 %v2743, %v2862
    %v2871 = vadd.f32 %v2744, %v2863
    %v2872 = vadd.f32 %v2745, %v2864
    %v2873 = vld [vmem:[%s7 + $0x23] sm:$0x1]
    %s2874 = scalar_lea.vmem [#allocation5], 96
    %v2875 = vld [vmem:[%s2874] sm:$0xf]
    %v2876 = vld [vmem:[%s2874 + $0x4] sm:$0xf]
    %v2877 = vld [vmem:[%s2874 + $0x8] sm:$0xf]
    %v2878 = vld [vmem:[%s2874 + $0xc] sm:$0xf]
    %v2879 = vld [vmem:[%s2874 + $0x10] sm:$0xf]
    %v2880 = vld [vmem:[%s2874 + $0x14] sm:$0xf]
    %v2881 = vld [vmem:[%s2874 + $0x18] sm:$0xf]
    %v2882 = vld [vmem:[%s2874 + $0x1c] sm:$0xf]
    %v2891 = vunpack.c.l.b16 %v2875
    %v2892 = vunpack.c.l.b16 %v2876
    %v2893 = vunpack.c.l.b16 %v2877
    %v2894 = vunpack.c.l.b16 %v2878
    %v2895 = vunpack.c.l.b16 %v2879
    %v2896 = vunpack.c.l.b16 %v2880
    %v2897 = vunpack.c.l.b16 %v2881
    %v2898 = vunpack.c.l.b16 %v2882
    %v2899 = vpack.c.b16 %v2892, %v2891
    %v2900 = vpack.c.b16 %v2894, %v2893
    %v2901 = vpack.c.b16 %v2896, %v2895
    %v2902 = vpack.c.b16 %v2898, %v2897
    %v2904 = vsel %vm268, %v2899, 0
    %v2907 = vsel %vm268, %v2900, 0
    %v2910 = vsel %vm268, %v2901, 0
    %v2913 = vsel %vm268, %v2902, 0
    %2915 = vmatprep.subr.bf16.mxu0 0
    %2916 = vmatpush1.bf16.msra.mxu0 %v2489
    %2917 = vmatprep.subr.bf16.mxu0 0
    %2918 = vmatpush1.bf16.msra.mxu0 %v2490
    %2919 = vmatprep.subr.bf16.mxu0 0
    %2920 = vmatpush1.bf16.msra.mxu0 %v2491
    %2921 = vmatprep.subr.bf16.mxu0 0
    %2922 = vmatpush1.bf16.msra.mxu0 %v2492
    %2923 = vmatprep.subr.bf16.mxu0 0
    %2924 = vmatpush1.bf16.msra.mxu0 0
    %2925 = vmatprep.subr.bf16.mxu0 0
    %2926 = vmatpush1.bf16.msra.mxu0 0
    %2927 = vmatprep.subr.bf16.mxu0 0
    %2928 = vmatpush1.bf16.msra.mxu0 0
    %2929 = vmatprep.subr.bf16.mxu0 0
    %2930 = vmatpush1.bf16.msra.mxu0 0
    %2931 = vmatprep.subr.bf16.mxu0 0
    %2932 = vmatpush1.bf16.msra.mxu0 0
    %2933 = vmatprep.subr.bf16.mxu0 0
    %2934 = vmatpush1.bf16.msra.mxu0 0
    %2935 = vmatprep.subr.bf16.mxu0 0
    %2936 = vmatpush1.bf16.msra.mxu0 0
    %2937 = vmatprep.subr.bf16.mxu0 0
    %2938 = vmatpush1.bf16.msra.mxu0 0
    %2939 = vmatprep.subr.bf16.mxu0 0
    %2940 = vmatpush1.bf16.msra.mxu0 0
    %2941 = vmatprep.subr.bf16.mxu0 0
    %2942 = vmatpush1.bf16.msra.mxu0 0
    %2943 = vmatprep.subr.bf16.mxu0 0
    %2944 = vmatpush1.bf16.msra.mxu0 0
    %2945 = vmatprep.subr.bf16.mxu0 0
    %2946 = vmatpush1.bf16.msra.mxu0 0
    %2947 = vmatprep.mubr.bf16.mxu0 0
    %2948 = vmatmul.mubr.bf16.gmra.mrb[0].mxu0 %v2904
    %v2949 = vpop.f32.mrb[0].mxu0
    %v2950 = vadd.f32 0.0, %v2949
    %v2951 = vpop.f32.mrb[0].mxu0
    %v2952 = vpop.f32.mrb[0].mxu0
    %v2953 = vadd.f32 0.0, %v2952
    %v2954 = vpop.f32.mrb[0].mxu0
    %2955 = vmatprep.mubr.bf16.mxu0 0
    %2956 = vmatmul.mubr.bf16.gmra.mrb[0].mxu0 %v2907
    %v2957 = vpop.f32.mrb[0].mxu0
    %v2958 = vadd.f32 0.0, %v2957
    %v2959 = vpop.f32.mrb[0].mxu0
    %v2960 = vpop.f32.mrb[0].mxu0
    %v2961 = vadd.f32 0.0, %v2960
    %v2962 = vpop.f32.mrb[0].mxu0
    %2963 = vmatprep.mubr.bf16.mxu0 0
    %2964 = vmatmul.mubr.bf16.gmra.mrb[0].mxu0 %v2910
    %v2965 = vpop.f32.mrb[0].mxu0
    %v2966 = vadd.f32 0.0, %v2965
    %v2967 = vpop.f32.mrb[0].mxu0
    %v2968 = vpop.f32.mrb[0].mxu0
    %v2969 = vadd.f32 0.0, %v2968
    %v2970 = vpop.f32.mrb[0].mxu0
    %2971 = vmatprep.mubr.bf16.mxu0 0
    %2972 = vmatmul.mubr.bf16.gmra.mrb[0].mxu0 %v2913
    %v2973 = vpop.f32.mrb[0].mxu0
    %v2974 = vadd.f32 0.0, %v2973
    %v2975 = vpop.f32.mrb[0].mxu0
    %v2976 = vpop.f32.mrb[0].mxu0
    %v2977 = vadd.f32 0.0, %v2976
    %v2978 = vpop.f32.mrb[0].mxu0
    %2979 = vdwg.mxu0
    %v2980 = vlaneseq
    %v2981 = vshrl.u32 %v2980, 7
    %v2982 = vsub.s32 0, %v2981
    %v2983 = vrot.slane %v2873, %v2982
    %v2984 = vmul.f32 %v2950, %v2983
    %v2985 = vmul.f32 %v2953, %v2983
    %v2986 = vmul.f32 %v2958, %v2983
    %v2987 = vmul.f32 %v2961, %v2983
    %v2988 = vmul.f32 %v2966, %v2983
    %v2989 = vmul.f32 %v2969, %v2983
    %v2990 = vmul.f32 %v2974, %v2983
    %v2991 = vmul.f32 %v2977, %v2983
    %v2992 = vadd.f32 %v2865, %v2984
    %v2993 = vadd.f32 %v2866, %v2985
    %v2994 = vadd.f32 %v2867, %v2986
    %v2995 = vadd.f32 %v2868, %v2987
    %v2996 = vadd.f32 %v2869, %v2988
    %v2997 = vadd.f32 %v2870, %v2989
    %v2998 = vadd.f32 %v2871, %v2990
    %v2999 = vadd.f32 %v2872, %v2991
    %v3000 = vld [vmem:[%s7 + $0x24] sm:$0x1]
    %s3001 = scalar_lea.vmem [#allocation5], 128
    %v3002 = vld [vmem:[%s3001] sm:$0xf]
    %v3003 = vld [vmem:[%s3001 + $0x4] sm:$0xf]
    %v3004 = vld [vmem:[%s3001 + $0x8] sm:$0xf]
    %v3005 = vld [vmem:[%s3001 + $0xc] sm:$0xf]
    %v3006 = vld [vmem:[%s3001 + $0x10] sm:$0xf]
    %v3007 = vld [vmem:[%s3001 + $0x14] sm:$0xf]
    %v3008 = vld [vmem:[%s3001 + $0x18] sm:$0xf]
    %v3009 = vld [vmem:[%s3001 + $0x1c] sm:$0xf]
    %v3018 = vunpack.c.l.b16 %v3002
    %v3019 = vunpack.c.l.b16 %v3003
    %v3020 = vunpack.c.l.b16 %v3004
    %v3021 = vunpack.c.l.b16 %v3005
    %v3022 = vunpack.c.l.b16 %v3006
    %v3023 = vunpack.c.l.b16 %v3007
    %v3024 = vunpack.c.l.b16 %v3008
    %v3025 = vunpack.c.l.b16 %v3009
    %v3026 = vpack.c.b16 %v3019, %v3018
    %v3027 = vpack.c.b16 %v3021, %v3020
    %v3028 = vpack.c.b16 %v3023, %v3022
    %v3029 = vpack.c.b16 %v3025, %v3024
    %v3031 = vsel %vm268, %v3026, 0
    %v3034 = vsel %vm268, %v3027, 0
    %v3037 = vsel %vm268, %v3028, 0
    %v3040 = vsel %vm268, %v3029, 0
    %3042 = vmatprep.subr.bf16.mxu0 0
    %3043 = vmatpush1.bf16.msra.mxu0 %v2489
    %3044 = vmatprep.subr.bf16.mxu0 0
    %3045 = vmatpush1.bf16.msra.mxu0 %v2490
    %3046 = vmatprep.subr.bf16.mxu0 0
    %3047 = vmatpush1.bf16.msra.mxu0 %v2491
    %3048 = vmatprep.subr.bf16.mxu0 0
    %3049 = vmatpush1.bf16.msra.mxu0 %v2492
    %3050 = vmatprep.subr.bf16.mxu0 0
    %3051 = vmatpush1.bf16.msra.mxu0 0
    %3052 = vmatprep.subr.bf16.mxu0 0
    %3053 = vmatpush1.bf16.msra.mxu0 0
    %3054 = vmatprep.subr.bf16.mxu0 0
    %3055 = vmatpush1.bf16.msra.mxu0 0
    %3056 = vmatprep.subr.bf16.mxu0 0
    %3057 = vmatpush1.bf16.msra.mxu0 0
    %3058 = vmatprep.subr.bf16.mxu0 0
    %3059 = vmatpush1.bf16.msra.mxu0 0
    %3060 = vmatprep.subr.bf16.mxu0 0
    %3061 = vmatpush1.bf16.msra.mxu0 0
    %3062 = vmatprep.subr.bf16.mxu0 0
    %3063 = vmatpush1.bf16.msra.mxu0 0
    %3064 = vmatprep.subr.bf16.mxu0 0
    %3065 = vmatpush1.bf16.msra.mxu0 0
    %3066 = vmatprep.subr.bf16.mxu0 0
    %3067 = vmatpush1.bf16.msra.mxu0 0
    %3068 = vmatprep.subr.bf16.mxu0 0
    %3069 = vmatpush1.bf16.msra.mxu0 0
    %3070 = vmatprep.subr.bf16.mxu0 0
    %3071 = vmatpush1.bf16.msra.mxu0 0
    %3072 = vmatprep.subr.bf16.mxu0 0
    %3073 = vmatpush1.bf16.msra.mxu0 0
    %3074 = vmatprep.mubr.bf16.mxu0 0
    %3075 = vmatmul.mubr.bf16.gmra.mrb[0].mxu0 %v3031
    %v3076 = vpop.f32.mrb[0].mxu0
    %v3077 = vadd.f32 0.0, %v3076
    %v3078 = vpop.f32.mrb[0].mxu0
    %v3079 = vpop.f32.mrb[0].mxu0
    %v3080 = vadd.f32 0.0, %v3079
    %v3081 = vpop.f32.mrb[0].mxu0
    %3082 = vmatprep.mubr.bf16.mxu0 0
    %3083 = vmatmul.mubr.bf16.gmra.mrb[0].mxu0 %v3034
    %v3084 = vpop.f32.mrb[0].mxu0
    %v3085 = vadd.f32 0.0, %v3084
    %v3086 = vpop.f32.mrb[0].mxu0
    %v3087 = vpop.f32.mrb[0].mxu0
    %v3088 = vadd.f32 0.0, %v3087
    %v3089 = vpop.f32.mrb[0].mxu0
    %3090 = vmatprep.mubr.bf16.mxu0 0
    %3091 = vmatmul.mubr.bf16.gmra.mrb[0].mxu0 %v3037
    %v3092 = vpop.f32.mrb[0].mxu0
    %v3093 = vadd.f32 0.0, %v3092
    %v3094 = vpop.f32.mrb[0].mxu0
    %v3095 = vpop.f32.mrb[0].mxu0
    %v3096 = vadd.f32 0.0, %v3095
    %v3097 = vpop.f32.mrb[0].mxu0
    %3098 = vmatprep.mubr.bf16.mxu0 0
    %3099 = vmatmul.mubr.bf16.gmra.mrb[0].mxu0 %v3040
    %v3100 = vpop.f32.mrb[0].mxu0
    %v3101 = vadd.f32 0.0, %v3100
    %v3102 = vpop.f32.mrb[0].mxu0
    %v3103 = vpop.f32.mrb[0].mxu0
    %v3104 = vadd.f32 0.0, %v3103
    %v3105 = vpop.f32.mrb[0].mxu0
    %3106 = vdwg.mxu0
    %v3107 = vlaneseq
    %v3108 = vshrl.u32 %v3107, 7
    %v3109 = vsub.s32 0, %v3108
    %v3110 = vrot.slane %v3000, %v3109
    %v3111 = vmul.f32 %v3077, %v3110
    %v3112 = vmul.f32 %v3080, %v3110
    %v3113 = vmul.f32 %v3085, %v3110
    %v3114 = vmul.f32 %v3088, %v3110
    %v3115 = vmul.f32 %v3093, %v3110
    %v3116 = vmul.f32 %v3096, %v3110
    %v3117 = vmul.f32 %v3101, %v3110
    %v3118 = vmul.f32 %v3104, %v3110
    %v3119 = vadd.f32 %v2992, %v3111
    %v3120 = vadd.f32 %v2993, %v3112
    %v3121 = vadd.f32 %v2994, %v3113
    %v3122 = vadd.f32 %v2995, %v3114
    %v3123 = vadd.f32 %v2996, %v3115
    %v3124 = vadd.f32 %v2997, %v3116
    %v3125 = vadd.f32 %v2998, %v3117
    %v3126 = vadd.f32 %v2999, %v3118
    %v3127 = vld [vmem:[%s7 + $0x25] sm:$0x1]
    %s3128 = scalar_lea.vmem [#allocation5], 160
    %v3129 = vld [vmem:[%s3128] sm:$0xf]
    %v3130 = vld [vmem:[%s3128 + $0x4] sm:$0xf]
    %v3131 = vld [vmem:[%s3128 + $0x8] sm:$0xf]
    %v3132 = vld [vmem:[%s3128 + $0xc] sm:$0xf]
    %v3133 = vld [vmem:[%s3128 + $0x10] sm:$0xf]
    %v3134 = vld [vmem:[%s3128 + $0x14] sm:$0xf]
    %v3135 = vld [vmem:[%s3128 + $0x18] sm:$0xf]
    %v3136 = vld [vmem:[%s3128 + $0x1c] sm:$0xf]
    %v3145 = vunpack.c.l.b16 %v3129
    %v3146 = vunpack.c.l.b16 %v3130
    %v3147 = vunpack.c.l.b16 %v3131
    %v3148 = vunpack.c.l.b16 %v3132
    %v3149 = vunpack.c.l.b16 %v3133
    %v3150 = vunpack.c.l.b16 %v3134
    %v3151 = vunpack.c.l.b16 %v3135
    %v3152 = vunpack.c.l.b16 %v3136
    %v3153 = vpack.c.b16 %v3146, %v3145
    %v3154 = vpack.c.b16 %v3148, %v3147
    %v3155 = vpack.c.b16 %v3150, %v3149
    %v3156 = vpack.c.b16 %v3152, %v3151
    %v3158 = vsel %vm268, %v3153, 0
    %v3161 = vsel %vm268, %v3154, 0
    %v3164 = vsel %vm268, %v3155, 0
    %v3167 = vsel %vm268, %v3156, 0
    %3169 = vmatprep.subr.bf16.mxu0 0
    %3170 = vmatpush1.bf16.msra.mxu0 %v2489
    %3171 = vmatprep.subr.bf16.mxu0 0
    %3172 = vmatpush1.bf16.msra.mxu0 %v2490
    %3173 = vmatprep.subr.bf16.mxu0 0
    %3174 = vmatpush1.bf16.msra.mxu0 %v2491
    %3175 = vmatprep.subr.bf16.mxu0 0
    %3176 = vmatpush1.bf16.msra.mxu0 %v2492
    %3177 = vmatprep.subr.bf16.mxu0 0
    %3178 = vmatpush1.bf16.msra.mxu0 0
    %3179 = vmatprep.subr.bf16.mxu0 0
    %3180 = vmatpush1.bf16.msra.mxu0 0
    %3181 = vmatprep.subr.bf16.mxu0 0
    %3182 = vmatpush1.bf16.msra.mxu0 0
    %3183 = vmatprep.subr.bf16.mxu0 0
    %3184 = vmatpush1.bf16.msra.mxu0 0
    %3185 = vmatprep.subr.bf16.mxu0 0
    %3186 = vmatpush1.bf16.msra.mxu0 0
    %3187 = vmatprep.subr.bf16.mxu0 0
    %3188 = vmatpush1.bf16.msra.mxu0 0
    %3189 = vmatprep.subr.bf16.mxu0 0
    %3190 = vmatpush1.bf16.msra.mxu0 0
    %3191 = vmatprep.subr.bf16.mxu0 0
    %3192 = vmatpush1.bf16.msra.mxu0 0
    %3193 = vmatprep.subr.bf16.mxu0 0
    %3194 = vmatpush1.bf16.msra.mxu0 0
    %3195 = vmatprep.subr.bf16.mxu0 0
    %3196 = vmatpush1.bf16.msra.mxu0 0
    %3197 = vmatprep.subr.bf16.mxu0 0
    %3198 = vmatpush1.bf16.msra.mxu0 0
    %3199 = vmatprep.subr.bf16.mxu0 0
    %3200 = vmatpush1.bf16.msra.mxu0 0
    %3201 = vmatprep.mubr.bf16.mxu0 0
    %3202 = vmatmul.mubr.bf16.gmra.mrb[0].mxu0 %v3158
    %v3203 = vpop.f32.mrb[0].mxu0
    %v3204 = vadd.f32 0.0, %v3203
    %v3205 = vpop.f32.mrb[0].mxu0
    %v3206 = vpop.f32.mrb[0].mxu0
    %v3207 = vadd.f32 0.0, %v3206
    %v3208 = vpop.f32.mrb[0].mxu0
    %3209 = vmatprep.mubr.bf16.mxu0 0
    %3210 = vmatmul.mubr.bf16.gmra.mrb[0].mxu0 %v3161
    %v3211 = vpop.f32.mrb[0].mxu0
    %v3212 = vadd.f32 0.0, %v3211
    %v3213 = vpop.f32.mrb[0].mxu0
    %v3214 = vpop.f32.mrb[0].mxu0
    %v3215 = vadd.f32 0.0, %v3214
    %v3216 = vpop.f32.mrb[0].mxu0
    %3217 = vmatprep.mubr.bf16.mxu0 0
    %3218 = vmatmul.mubr.bf16.gmra.mrb[0].mxu0 %v3164
    %v3219 = vpop.f32.mrb[0].mxu0
    %v3220 = vadd.f32 0.0, %v3219
    %v3221 = vpop.f32.mrb[0].mxu0
    %v3222 = vpop.f32.mrb[0].mxu0
    %v3223 = vadd.f32 0.0, %v3222
    %v3224 = vpop.f32.mrb[0].mxu0
    %3225 = vmatprep.mubr.bf16.mxu0 0
    %3226 = vmatmul.mubr.bf16.gmra.mrb[0].mxu0 %v3167
    %v3227 = vpop.f32.mrb[0].mxu0
    %v3228 = vadd.f32 0.0, %v3227
    %v3229 = vpop.f32.mrb[0].mxu0
    %v3230 = vpop.f32.mrb[0].mxu0
    %v3231 = vadd.f32 0.0, %v3230
    %v3232 = vpop.f32.mrb[0].mxu0
    %3233 = vdwg.mxu0
    %v3234 = vlaneseq
    %v3235 = vshrl.u32 %v3234, 7
    %v3236 = vsub.s32 0, %v3235
    %v3237 = vrot.slane %v3127, %v3236
    %v3238 = vmul.f32 %v3204, %v3237
    %v3239 = vmul.f32 %v3207, %v3237
    %v3240 = vmul.f32 %v3212, %v3237
    %v3241 = vmul.f32 %v3215, %v3237
    %v3242 = vmul.f32 %v3220, %v3237
    %v3243 = vmul.f32 %v3223, %v3237
    %v3244 = vmul.f32 %v3228, %v3237
    %v3245 = vmul.f32 %v3231, %v3237
    %v3246 = vadd.f32 %v3119, %v3238
    %v3247 = vadd.f32 %v3120, %v3239
    %v3248 = vadd.f32 %v3121, %v3240
    %v3249 = vadd.f32 %v3122, %v3241
    %v3250 = vadd.f32 %v3123, %v3242
    %v3251 = vadd.f32 %v3124, %v3243
    %v3252 = vadd.f32 %v3125, %v3244
    %v3253 = vadd.f32 %v3126, %v3245
    %v3254 = vld [vmem:[%s7 + $0x26] sm:$0x1]
    %s3255 = scalar_lea.vmem [#allocation5], 192
    %v3256 = vld [vmem:[%s3255] sm:$0xf]
    %v3257 = vld [vmem:[%s3255 + $0x4] sm:$0xf]
    %v3258 = vld [vmem:[%s3255 + $0x8] sm:$0xf]
    %v3259 = vld [vmem:[%s3255 + $0xc] sm:$0xf]
    %v3260 = vld [vmem:[%s3255 + $0x10] sm:$0xf]
    %v3261 = vld [vmem:[%s3255 + $0x14] sm:$0xf]
    %v3262 = vld [vmem:[%s3255 + $0x18] sm:$0xf]
    %v3263 = vld [vmem:[%s3255 + $0x1c] sm:$0xf]
    %v3272 = vunpack.c.l.b16 %v3256
    %v3273 = vunpack.c.l.b16 %v3257
    %v3274 = vunpack.c.l.b16 %v3258
    %v3275 = vunpack.c.l.b16 %v3259
    %v3276 = vunpack.c.l.b16 %v3260
    %v3277 = vunpack.c.l.b16 %v3261
    %v3278 = vunpack.c.l.b16 %v3262
    %v3279 = vunpack.c.l.b16 %v3263
    %v3280 = vpack.c.b16 %v3273, %v3272
    %v3281 = vpack.c.b16 %v3275, %v3274
    %v3282 = vpack.c.b16 %v3277, %v3276
    %v3283 = vpack.c.b16 %v3279, %v3278
    %v3285 = vsel %vm268, %v3280, 0
    %v3288 = vsel %vm268, %v3281, 0
    %v3291 = vsel %vm268, %v3282, 0
    %v3294 = vsel %vm268, %v3283, 0
    %3296 = vmatprep.subr.bf16.mxu0 0
    %3297 = vmatpush1.bf16.msra.mxu0 %v2489
    %3298 = vmatprep.subr.bf16.mxu0 0
    %3299 = vmatpush1.bf16.msra.mxu0 %v2490
    %3300 = vmatprep.subr.bf16.mxu0 0
    %3301 = vmatpush1.bf16.msra.mxu0 %v2491
    %3302 = vmatprep.subr.bf16.mxu0 0
    %3303 = vmatpush1.bf16.msra.mxu0 %v2492
    %3304 = vmatprep.subr.bf16.mxu0 0
    %3305 = vmatpush1.bf16.msra.mxu0 0
    %3306 = vmatprep.subr.bf16.mxu0 0
    %3307 = vmatpush1.bf16.msra.mxu0 0
    %3308 = vmatprep.subr.bf16.mxu0 0
    %3309 = vmatpush1.bf16.msra.mxu0 0
    %3310 = vmatprep.subr.bf16.mxu0 0
    %3311 = vmatpush1.bf16.msra.mxu0 0
    %3312 = vmatprep.subr.bf16.mxu0 0
    %3313 = vmatpush1.bf16.msra.mxu0 0
    %3314 = vmatprep.subr.bf16.mxu0 0
    %3315 = vmatpush1.bf16.msra.mxu0 0
    %3316 = vmatprep.subr.bf16.mxu0 0
    %3317 = vmatpush1.bf16.msra.mxu0 0
    %3318 = vmatprep.subr.bf16.mxu0 0
    %3319 = vmatpush1.bf16.msra.mxu0 0
    %3320 = vmatprep.subr.bf16.mxu0 0
    %3321 = vmatpush1.bf16.msra.mxu0 0
    %3322 = vmatprep.subr.bf16.mxu0 0
    %3323 = vmatpush1.bf16.msra.mxu0 0
    %3324 = vmatprep.subr.bf16.mxu0 0
    %3325 = vmatpush1.bf16.msra.mxu0 0
    %3326 = vmatprep.subr.bf16.mxu0 0
    %3327 = vmatpush1.bf16.msra.mxu0 0
    %3328 = vmatprep.mubr.bf16.mxu0 0
    %3329 = vmatmul.mubr.bf16.gmra.mrb[0].mxu0 %v3285
    %v3330 = vpop.f32.mrb[0].mxu0
    %v3331 = vadd.f32 0.0, %v3330
    %v3332 = vpop.f32.mrb[0].mxu0
    %v3333 = vpop.f32.mrb[0].mxu0
    %v3334 = vadd.f32 0.0, %v3333
    %v3335 = vpop.f32.mrb[0].mxu0
    %3336 = vmatprep.mubr.bf16.mxu0 0
    %3337 = vmatmul.mubr.bf16.gmra.mrb[0].mxu0 %v3288
    %v3338 = vpop.f32.mrb[0].mxu0
    %v3339 = vadd.f32 0.0, %v3338
    %v3340 = vpop.f32.mrb[0].mxu0
    %v3341 = vpop.f32.mrb[0].mxu0
    %v3342 = vadd.f32 0.0, %v3341
    %v3343 = vpop.f32.mrb[0].mxu0
    %3344 = vmatprep.mubr.bf16.mxu0 0
    %3345 = vmatmul.mubr.bf16.gmra.mrb[0].mxu0 %v3291
    %v3346 = vpop.f32.mrb[0].mxu0
    %v3347 = vadd.f32 0.0, %v3346
    %v3348 = vpop.f32.mrb[0].mxu0
    %v3349 = vpop.f32.mrb[0].mxu0
    %v3350 = vadd.f32 0.0, %v3349
    %v3351 = vpop.f32.mrb[0].mxu0
    %3352 = vmatprep.mubr.bf16.mxu0 0
    %3353 = vmatmul.mubr.bf16.gmra.mrb[0].mxu0 %v3294
    %v3354 = vpop.f32.mrb[0].mxu0
    %v3355 = vadd.f32 0.0, %v3354
    %v3356 = vpop.f32.mrb[0].mxu0
    %v3357 = vpop.f32.mrb[0].mxu0
    %v3358 = vadd.f32 0.0, %v3357
    %v3359 = vpop.f32.mrb[0].mxu0
    %3360 = vdwg.mxu0
    %v3361 = vlaneseq
    %v3362 = vshrl.u32 %v3361, 7
    %v3363 = vsub.s32 0, %v3362
    %v3364 = vrot.slane %v3254, %v3363
    %v3365 = vmul.f32 %v3331, %v3364
    %v3366 = vmul.f32 %v3334, %v3364
    %v3367 = vmul.f32 %v3339, %v3364
    %v3368 = vmul.f32 %v3342, %v3364
    %v3369 = vmul.f32 %v3347, %v3364
    %v3370 = vmul.f32 %v3350, %v3364
    %v3371 = vmul.f32 %v3355, %v3364
    %v3372 = vmul.f32 %v3358, %v3364
    %v3373 = vadd.f32 %v3246, %v3365
    %v3374 = vadd.f32 %v3247, %v3366
    %v3375 = vadd.f32 %v3248, %v3367
    %v3376 = vadd.f32 %v3249, %v3368
    %v3377 = vadd.f32 %v3250, %v3369
    %v3378 = vadd.f32 %v3251, %v3370
    %v3379 = vadd.f32 %v3252, %v3371
    %v3380 = vadd.f32 %v3253, %v3372
    %v3381 = vld [vmem:[%s7 + $0x27] sm:$0x1]
    %s3382 = scalar_lea.vmem [#allocation5], 224
    %v3383 = vld [vmem:[%s3382] sm:$0xf]
    %v3384 = vld [vmem:[%s3382 + $0x4] sm:$0xf]
    %v3385 = vld [vmem:[%s3382 + $0x8] sm:$0xf]
    %v3386 = vld [vmem:[%s3382 + $0xc] sm:$0xf]
    %v3387 = vld [vmem:[%s3382 + $0x10] sm:$0xf]
    %v3388 = vld [vmem:[%s3382 + $0x14] sm:$0xf]
    %v3389 = vld [vmem:[%s3382 + $0x18] sm:$0xf]
    %v3390 = vld [vmem:[%s3382 + $0x1c] sm:$0xf]
    %v3399 = vunpack.c.l.b16 %v3383
    %v3400 = vunpack.c.l.b16 %v3384
    %v3401 = vunpack.c.l.b16 %v3385
    %v3402 = vunpack.c.l.b16 %v3386
    %v3403 = vunpack.c.l.b16 %v3387
    %v3404 = vunpack.c.l.b16 %v3388
    %v3405 = vunpack.c.l.b16 %v3389
    %v3406 = vunpack.c.l.b16 %v3390
    %v3407 = vpack.c.b16 %v3400, %v3399
    %v3408 = vpack.c.b16 %v3402, %v3401
    %v3409 = vpack.c.b16 %v3404, %v3403
    %v3410 = vpack.c.b16 %v3406, %v3405
    %v3412 = vsel %vm268, %v3407, 0
    %v3415 = vsel %vm268, %v3408, 0
    %v3418 = vsel %vm268, %v3409, 0
    %v3421 = vsel %vm268, %v3410, 0
    %3423 = vmatprep.subr.bf16.mxu0 0
    %3424 = vmatpush1.bf16.msra.mxu0 %v2489
    %3425 = vmatprep.subr.bf16.mxu0 0
    %3426 = vmatpush1.bf16.msra.mxu0 %v2490
    %3427 = vmatprep.subr.bf16.mxu0 0
    %3428 = vmatpush1.bf16.msra.mxu0 %v2491
    %3429 = vmatprep.subr.bf16.mxu0 0
    %3430 = vmatpush1.bf16.msra.mxu0 %v2492
    %3431 = vmatprep.subr.bf16.mxu0 0
    %3432 = vmatpush1.bf16.msra.mxu0 0
    %3433 = vmatprep.subr.bf16.mxu0 0
    %3434 = vmatpush1.bf16.msra.mxu0 0
    %3435 = vmatprep.subr.bf16.mxu0 0
    %3436 = vmatpush1.bf16.msra.mxu0 0
    %3437 = vmatprep.subr.bf16.mxu0 0
    %3438 = vmatpush1.bf16.msra.mxu0 0
    %3439 = vmatprep.subr.bf16.mxu0 0
    %3440 = vmatpush1.bf16.msra.mxu0 0
    %3441 = vmatprep.subr.bf16.mxu0 0
    %3442 = vmatpush1.bf16.msra.mxu0 0
    %3443 = vmatprep.subr.bf16.mxu0 0
    %3444 = vmatpush1.bf16.msra.mxu0 0
    %3445 = vmatprep.subr.bf16.mxu0 0
    %3446 = vmatpush1.bf16.msra.mxu0 0
    %3447 = vmatprep.subr.bf16.mxu0 0
    %3448 = vmatpush1.bf16.msra.mxu0 0
    %3449 = vmatprep.subr.bf16.mxu0 0
    %3450 = vmatpush1.bf16.msra.mxu0 0
    %3451 = vmatprep.subr.bf16.mxu0 0
    %3452 = vmatpush1.bf16.msra.mxu0 0
    %3453 = vmatprep.subr.bf16.mxu0 0
    %3454 = vmatpush1.bf16.msra.mxu0 0
    %3455 = vmatprep.mubr.bf16.mxu0 0
    %3456 = vmatmul.mubr.bf16.gmra.mrb[0].mxu0 %v3412
    %v3457 = vpop.f32.mrb[0].mxu0
    %v3458 = vadd.f32 0.0, %v3457
    %v3459 = vpop.f32.mrb[0].mxu0
    %v3460 = vpop.f32.mrb[0].mxu0
    %v3461 = vadd.f32 0.0, %v3460
    %v3462 = vpop.f32.mrb[0].mxu0
    %3463 = vmatprep.mubr.bf16.mxu0 0
    %3464 = vmatmul.mubr.bf16.gmra.mrb[0].mxu0 %v3415
    %v3465 = vpop.f32.mrb[0].mxu0
    %v3466 = vadd.f32 0.0, %v3465
    %v3467 = vpop.f32.mrb[0].mxu0
    %v3468 = vpop.f32.mrb[0].mxu0
    %v3469 = vadd.f32 0.0, %v3468
    %v3470 = vpop.f32.mrb[0].mxu0
    %3471 = vmatprep.mubr.bf16.mxu0 0
    %3472 = vmatmul.mubr.bf16.gmra.mrb[0].mxu0 %v3418
    %v3473 = vpop.f32.mrb[0].mxu0
    %v3474 = vadd.f32 0.0, %v3473
    %v3475 = vpop.f32.mrb[0].mxu0
    %v3476 = vpop.f32.mrb[0].mxu0
    %v3477 = vadd.f32 0.0, %v3476
    %v3478 = vpop.f32.mrb[0].mxu0
    %3479 = vmatprep.mubr.bf16.mxu0 0
    %3480 = vmatmul.mubr.bf16.gmra.mrb[0].mxu0 %v3421
    %v3481 = vpop.f32.mrb[0].mxu0
    %v3482 = vadd.f32 0.0, %v3481
    %v3483 = vpop.f32.mrb[0].mxu0
    %v3484 = vpop.f32.mrb[0].mxu0
    %v3485 = vadd.f32 0.0, %v3484
    %v3486 = vpop.f32.mrb[0].mxu0
    %3487 = vdwg.mxu0
    %v3488 = vlaneseq
    %v3489 = vshrl.u32 %v3488, 7
    %v3490 = vsub.s32 0, %v3489
    %v3491 = vrot.slane %v3381, %v3490
    %v3492 = vmul.f32 %v3458, %v3491
    %v3493 = vmul.f32 %v3461, %v3491
    %v3494 = vmul.f32 %v3466, %v3491
    %v3495 = vmul.f32 %v3469, %v3491
    %v3496 = vmul.f32 %v3474, %v3491
    %v3497 = vmul.f32 %v3477, %v3491
    %v3498 = vmul.f32 %v3482, %v3491
    %v3499 = vmul.f32 %v3485, %v3491
    %v3500 = vadd.f32 %v3373, %v3492
    %v3501 = vadd.f32 %v3374, %v3493
    %v3502 = vadd.f32 %v3375, %v3494
    %v3503 = vadd.f32 %v3376, %v3495
    %v3504 = vadd.f32 %v3377, %v3496
    %v3505 = vadd.f32 %v3378, %v3497
    %v3506 = vadd.f32 %v3379, %v3498
    %v3507 = vadd.f32 %v3380, %v3499
    %v3508 = vld [vmem:[%s7 + $0x28] sm:$0x1]
    %s3509 = scalar_lea.vmem [#allocation5], 256
    %v3510 = vld [vmem:[%s3509] sm:$0xf]
    %v3511 = vld [vmem:[%s3509 + $0x4] sm:$0xf]
    %v3512 = vld [vmem:[%s3509 + $0x8] sm:$0xf]
    %v3513 = vld [vmem:[%s3509 + $0xc] sm:$0xf]
    %v3514 = vld [vmem:[%s3509 + $0x10] sm:$0xf]
    %v3515 = vld [vmem:[%s3509 + $0x14] sm:$0xf]
    %v3516 = vld [vmem:[%s3509 + $0x18] sm:$0xf]
    %v3517 = vld [vmem:[%s3509 + $0x1c] sm:$0xf]
    %v3526 = vunpack.c.l.b16 %v3510
    %v3527 = vunpack.c.l.b16 %v3511
    %v3528 = vunpack.c.l.b16 %v3512
    %v3529 = vunpack.c.l.b16 %v3513
    %v3530 = vunpack.c.l.b16 %v3514
    %v3531 = vunpack.c.l.b16 %v3515
    %v3532 = vunpack.c.l.b16 %v3516
    %v3533 = vunpack.c.l.b16 %v3517
    %v3534 = vpack.c.b16 %v3527, %v3526
    %v3535 = vpack.c.b16 %v3529, %v3528
    %v3536 = vpack.c.b16 %v3531, %v3530
    %v3537 = vpack.c.b16 %v3533, %v3532
    %v3539 = vsel %vm268, %v3534, 0
    %v3542 = vsel %vm268, %v3535, 0
    %v3545 = vsel %vm268, %v3536, 0
    %v3548 = vsel %vm268, %v3537, 0
    %3550 = vmatprep.subr.bf16.mxu0 0
    %3551 = vmatpush1.bf16.msra.mxu0 %v2489
    %3552 = vmatprep.subr.bf16.mxu0 0
    %3553 = vmatpush1.bf16.msra.mxu0 %v2490
    %3554 = vmatprep.subr.bf16.mxu0 0
    %3555 = vmatpush1.bf16.msra.mxu0 %v2491
    %3556 = vmatprep.subr.bf16.mxu0 0
    %3557 = vmatpush1.bf16.msra.mxu0 %v2492
    %3558 = vmatprep.subr.bf16.mxu0 0
    %3559 = vmatpush1.bf16.msra.mxu0 0
    %3560 = vmatprep.subr.bf16.mxu0 0
    %3561 = vmatpush1.bf16.msra.mxu0 0
    %3562 = vmatprep.subr.bf16.mxu0 0
    %3563 = vmatpush1.bf16.msra.mxu0 0
    %3564 = vmatprep.subr.bf16.mxu0 0
    %3565 = vmatpush1.bf16.msra.mxu0 0
    %3566 = vmatprep.subr.bf16.mxu0 0
    %3567 = vmatpush1.bf16.msra.mxu0 0
    %3568 = vmatprep.subr.bf16.mxu0 0
    %3569 = vmatpush1.bf16.msra.mxu0 0
    %3570 = vmatprep.subr.bf16.mxu0 0
    %3571 = vmatpush1.bf16.msra.mxu0 0
    %3572 = vmatprep.subr.bf16.mxu0 0
    %3573 = vmatpush1.bf16.msra.mxu0 0
    %3574 = vmatprep.subr.bf16.mxu0 0
    %3575 = vmatpush1.bf16.msra.mxu0 0
    %3576 = vmatprep.subr.bf16.mxu0 0
    %3577 = vmatpush1.bf16.msra.mxu0 0
    %3578 = vmatprep.subr.bf16.mxu0 0
    %3579 = vmatpush1.bf16.msra.mxu0 0
    %3580 = vmatprep.subr.bf16.mxu0 0
    %3581 = vmatpush1.bf16.msra.mxu0 0
    %3582 = vmatprep.mubr.bf16.mxu0 0
    %3583 = vmatmul.mubr.bf16.gmra.mrb[0].mxu0 %v3539
    %v3584 = vpop.f32.mrb[0].mxu0
    %v3585 = vadd.f32 0.0, %v3584
    %v3586 = vpop.f32.mrb[0].mxu0
    %v3587 = vpop.f32.mrb[0].mxu0
    %v3588 = vadd.f32 0.0, %v3587
    %v3589 = vpop.f32.mrb[0].mxu0
    %3590 = vmatprep.mubr.bf16.mxu0 0
    %3591 = vmatmul.mubr.bf16.gmra.mrb[0].mxu0 %v3542
    %v3592 = vpop.f32.mrb[0].mxu0
    %v3593 = vadd.f32 0.0, %v3592
    %v3594 = vpop.f32.mrb[0].mxu0
    %v3595 = vpop.f32.mrb[0].mxu0
    %v3596 = vadd.f32 0.0, %v3595
    %v3597 = vpop.f32.mrb[0].mxu0
    %3598 = vmatprep.mubr.bf16.mxu0 0
    %3599 = vmatmul.mubr.bf16.gmra.mrb[0].mxu0 %v3545
    %v3600 = vpop.f32.mrb[0].mxu0
    %v3601 = vadd.f32 0.0, %v3600
    %v3602 = vpop.f32.mrb[0].mxu0
    %v3603 = vpop.f32.mrb[0].mxu0
    %v3604 = vadd.f32 0.0, %v3603
    %v3605 = vpop.f32.mrb[0].mxu0
    %3606 = vmatprep.mubr.bf16.mxu0 0
    %3607 = vmatmul.mubr.bf16.gmra.mrb[0].mxu0 %v3548
    %v3608 = vpop.f32.mrb[0].mxu0
    %v3609 = vadd.f32 0.0, %v3608
    %v3610 = vpop.f32.mrb[0].mxu0
    %v3611 = vpop.f32.mrb[0].mxu0
    %v3612 = vadd.f32 0.0, %v3611
    %v3613 = vpop.f32.mrb[0].mxu0
    %3614 = vdwg.mxu0
    %v3615 = vlaneseq
    %v3616 = vshrl.u32 %v3615, 7
    %v3617 = vsub.s32 0, %v3616
    %v3618 = vrot.slane %v3508, %v3617
    %v3619 = vmul.f32 %v3585, %v3618
    %v3620 = vmul.f32 %v3588, %v3618
    %v3621 = vmul.f32 %v3593, %v3618
    %v3622 = vmul.f32 %v3596, %v3618
    %v3623 = vmul.f32 %v3601, %v3618
    %v3624 = vmul.f32 %v3604, %v3618
    %v3625 = vmul.f32 %v3609, %v3618
    %v3626 = vmul.f32 %v3612, %v3618
    %v3627 = vadd.f32 %v3500, %v3619
    %v3628 = vadd.f32 %v3501, %v3620
    %v3629 = vadd.f32 %v3502, %v3621
    %v3630 = vadd.f32 %v3503, %v3622
    %v3631 = vadd.f32 %v3504, %v3623
    %v3632 = vadd.f32 %v3505, %v3624
    %v3633 = vadd.f32 %v3506, %v3625
    %v3634 = vadd.f32 %v3507, %v3626
    %v3635 = vld [vmem:[%s7 + $0x29] sm:$0x1]
    %s3636 = scalar_lea.vmem [#allocation5], 288
    %v3637 = vld [vmem:[%s3636] sm:$0xf]
    %v3638 = vld [vmem:[%s3636 + $0x4] sm:$0xf]
    %v3639 = vld [vmem:[%s3636 + $0x8] sm:$0xf]
    %v3640 = vld [vmem:[%s3636 + $0xc] sm:$0xf]
    %v3641 = vld [vmem:[%s3636 + $0x10] sm:$0xf]
    %v3642 = vld [vmem:[%s3636 + $0x14] sm:$0xf]
    %v3643 = vld [vmem:[%s3636 + $0x18] sm:$0xf]
    %v3644 = vld [vmem:[%s3636 + $0x1c] sm:$0xf]
    %v3653 = vunpack.c.l.b16 %v3637
    %v3654 = vunpack.c.l.b16 %v3638
    %v3655 = vunpack.c.l.b16 %v3639
    %v3656 = vunpack.c.l.b16 %v3640
    %v3657 = vunpack.c.l.b16 %v3641
    %v3658 = vunpack.c.l.b16 %v3642
    %v3659 = vunpack.c.l.b16 %v3643
    %v3660 = vunpack.c.l.b16 %v3644
    %v3661 = vpack.c.b16 %v3654, %v3653
    %v3662 = vpack.c.b16 %v3656, %v3655
    %v3663 = vpack.c.b16 %v3658, %v3657
    %v3664 = vpack.c.b16 %v3660, %v3659
    %v3666 = vsel %vm268, %v3661, 0
    %v3669 = vsel %vm268, %v3662, 0
    %v3672 = vsel %vm268, %v3663, 0
    %v3675 = vsel %vm268, %v3664, 0
    %3677 = vmatprep.subr.bf16.mxu0 0
    %3678 = vmatpush1.bf16.msra.mxu0 %v2489
    %3679 = vmatprep.subr.bf16.mxu0 0
    %3680 = vmatpush1.bf16.msra.mxu0 %v2490
    %3681 = vmatprep.subr.bf16.mxu0 0
    %3682 = vmatpush1.bf16.msra.mxu0 %v2491
    %3683 = vmatprep.subr.bf16.mxu0 0
    %3684 = vmatpush1.bf16.msra.mxu0 %v2492
    %3685 = vmatprep.subr.bf16.mxu0 0
    %3686 = vmatpush1.bf16.msra.mxu0 0
    %3687 = vmatprep.subr.bf16.mxu0 0
    %3688 = vmatpush1.bf16.msra.mxu0 0
    %3689 = vmatprep.subr.bf16.mxu0 0
    %3690 = vmatpush1.bf16.msra.mxu0 0
    %3691 = vmatprep.subr.bf16.mxu0 0
    %3692 = vmatpush1.bf16.msra.mxu0 0
    %3693 = vmatprep.subr.bf16.mxu0 0
    %3694 = vmatpush1.bf16.msra.mxu0 0
    %3695 = vmatprep.subr.bf16.mxu0 0
    %3696 = vmatpush1.bf16.msra.mxu0 0
    %3697 = vmatprep.subr.bf16.mxu0 0
    %3698 = vmatpush1.bf16.msra.mxu0 0
    %3699 = vmatprep.subr.bf16.mxu0 0
    %3700 = vmatpush1.bf16.msra.mxu0 0
    %3701 = vmatprep.subr.bf16.mxu0 0
    %3702 = vmatpush1.bf16.msra.mxu0 0
    %3703 = vmatprep.subr.bf16.mxu0 0
    %3704 = vmatpush1.bf16.msra.mxu0 0
    %3705 = vmatprep.subr.bf16.mxu0 0
    %3706 = vmatpush1.bf16.msra.mxu0 0
    %3707 = vmatprep.subr.bf16.mxu0 0
    %3708 = vmatpush1.bf16.msra.mxu0 0
    %3709 = vmatprep.mubr.bf16.mxu0 0
    %3710 = vmatmul.mubr.bf16.gmra.mrb[0].mxu0 %v3666
    %v3711 = vpop.f32.mrb[0].mxu0
    %v3712 = vadd.f32 0.0, %v3711
    %v3713 = vpop.f32.mrb[0].mxu0
    %v3714 = vpop.f32.mrb[0].mxu0
    %v3715 = vadd.f32 0.0, %v3714
    %v3716 = vpop.f32.mrb[0].mxu0
    %3717 = vmatprep.mubr.bf16.mxu0 0
    %3718 = vmatmul.mubr.bf16.gmra.mrb[0].mxu0 %v3669
    %v3719 = vpop.f32.mrb[0].mxu0
    %v3720 = vadd.f32 0.0, %v3719
    %v3721 = vpop.f32.mrb[0].mxu0
    %v3722 = vpop.f32.mrb[0].mxu0
    %v3723 = vadd.f32 0.0, %v3722
    %v3724 = vpop.f32.mrb[0].mxu0
    %3725 = vmatprep.mubr.bf16.mxu0 0
    %3726 = vmatmul.mubr.bf16.gmra.mrb[0].mxu0 %v3672
    %v3727 = vpop.f32.mrb[0].mxu0
    %v3728 = vadd.f32 0.0, %v3727
    %v3729 = vpop.f32.mrb[0].mxu0
    %v3730 = vpop.f32.mrb[0].mxu0
    %v3731 = vadd.f32 0.0, %v3730
    %v3732 = vpop.f32.mrb[0].mxu0
    %3733 = vmatprep.mubr.bf16.mxu0 0
    %3734 = vmatmul.mubr.bf16.gmra.mrb[0].mxu0 %v3675
    %v3735 = vpop.f32.mrb[0].mxu0
    %v3736 = vadd.f32 0.0, %v3735
    %v3737 = vpop.f32.mrb[0].mxu0
    %v3738 = vpop.f32.mrb[0].mxu0
    %v3739 = vadd.f32 0.0, %v3738
    %v3740 = vpop.f32.mrb[0].mxu0
    %3741 = vdwg.mxu0
    %v3742 = vlaneseq
    %v3743 = vshrl.u32 %v3742, 7
    %v3744 = vsub.s32 0, %v3743
    %v3745 = vrot.slane %v3635, %v3744
    %v3746 = vmul.f32 %v3712, %v3745
    %v3747 = vmul.f32 %v3715, %v3745
    %v3748 = vmul.f32 %v3720, %v3745
    %v3749 = vmul.f32 %v3723, %v3745
    %v3750 = vmul.f32 %v3728, %v3745
    %v3751 = vmul.f32 %v3731, %v3745
    %v3752 = vmul.f32 %v3736, %v3745
    %v3753 = vmul.f32 %v3739, %v3745
    %v3754 = vadd.f32 %v3627, %v3746
    %v3755 = vadd.f32 %v3628, %v3747
    %v3756 = vadd.f32 %v3629, %v3748
    %v3757 = vadd.f32 %v3630, %v3749
    %v3758 = vadd.f32 %v3631, %v3750
    %v3759 = vadd.f32 %v3632, %v3751
    %v3760 = vadd.f32 %v3633, %v3752
    %v3761 = vadd.f32 %v3634, %v3753
    %v3762 = vld [vmem:[%s7 + $0x2a] sm:$0x1]
    %s3763 = scalar_lea.vmem [#allocation5], 320
    %v3764 = vld [vmem:[%s3763] sm:$0xf]
    %v3765 = vld [vmem:[%s3763 + $0x4] sm:$0xf]
    %v3766 = vld [vmem:[%s3763 + $0x8] sm:$0xf]
    %v3767 = vld [vmem:[%s3763 + $0xc] sm:$0xf]
    %v3768 = vld [vmem:[%s3763 + $0x10] sm:$0xf]
    %v3769 = vld [vmem:[%s3763 + $0x14] sm:$0xf]
    %v3770 = vld [vmem:[%s3763 + $0x18] sm:$0xf]
    %v3771 = vld [vmem:[%s3763 + $0x1c] sm:$0xf]
    %v3780 = vunpack.c.l.b16 %v3764
    %v3781 = vunpack.c.l.b16 %v3765
    %v3782 = vunpack.c.l.b16 %v3766
    %v3783 = vunpack.c.l.b16 %v3767
    %v3784 = vunpack.c.l.b16 %v3768
    %v3785 = vunpack.c.l.b16 %v3769
    %v3786 = vunpack.c.l.b16 %v3770
    %v3787 = vunpack.c.l.b16 %v3771
    %v3788 = vpack.c.b16 %v3781, %v3780
    %v3789 = vpack.c.b16 %v3783, %v3782
    %v3790 = vpack.c.b16 %v3785, %v3784
    %v3791 = vpack.c.b16 %v3787, %v3786
    %v3793 = vsel %vm268, %v3788, 0
    %v3796 = vsel %vm268, %v3789, 0
    %v3799 = vsel %vm268, %v3790, 0
    %v3802 = vsel %vm268, %v3791, 0
    %3804 = vmatprep.subr.bf16.mxu0 0
    %3805 = vmatpush1.bf16.msra.mxu0 %v2489
    %3806 = vmatprep.subr.bf16.mxu0 0
    %3807 = vmatpush1.bf16.msra.mxu0 %v2490
    %3808 = vmatprep.subr.bf16.mxu0 0
    %3809 = vmatpush1.bf16.msra.mxu0 %v2491
    %3810 = vmatprep.subr.bf16.mxu0 0
    %3811 = vmatpush1.bf16.msra.mxu0 %v2492
    %3812 = vmatprep.subr.bf16.mxu0 0
    %3813 = vmatpush1.bf16.msra.mxu0 0
    %3814 = vmatprep.subr.bf16.mxu0 0
    %3815 = vmatpush1.bf16.msra.mxu0 0
    %3816 = vmatprep.subr.bf16.mxu0 0
    %3817 = vmatpush1.bf16.msra.mxu0 0
    %3818 = vmatprep.subr.bf16.mxu0 0
    %3819 = vmatpush1.bf16.msra.mxu0 0
    %3820 = vmatprep.subr.bf16.mxu0 0
    %3821 = vmatpush1.bf16.msra.mxu0 0
    %3822 = vmatprep.subr.bf16.mxu0 0
    %3823 = vmatpush1.bf16.msra.mxu0 0
    %3824 = vmatprep.subr.bf16.mxu0 0
    %3825 = vmatpush1.bf16.msra.mxu0 0
    %3826 = vmatprep.subr.bf16.mxu0 0
    %3827 = vmatpush1.bf16.msra.mxu0 0
    %3828 = vmatprep.subr.bf16.mxu0 0
    %3829 = vmatpush1.bf16.msra.mxu0 0
    %3830 = vmatprep.subr.bf16.mxu0 0
    %3831 = vmatpush1.bf16.msra.mxu0 0
    %3832 = vmatprep.subr.bf16.mxu0 0
    %3833 = vmatpush1.bf16.msra.mxu0 0
    %3834 = vmatprep.subr.bf16.mxu0 0
    %3835 = vmatpush1.bf16.msra.mxu0 0
    %3836 = vmatprep.mubr.bf16.mxu0 0
    %3837 = vmatmul.mubr.bf16.gmra.mrb[0].mxu0 %v3793
    %v3838 = vpop.f32.mrb[0].mxu0
    %v3839 = vadd.f32 0.0, %v3838
    %v3840 = vpop.f32.mrb[0].mxu0
    %v3841 = vpop.f32.mrb[0].mxu0
    %v3842 = vadd.f32 0.0, %v3841
    %v3843 = vpop.f32.mrb[0].mxu0
    %3844 = vmatprep.mubr.bf16.mxu0 0
    %3845 = vmatmul.mubr.bf16.gmra.mrb[0].mxu0 %v3796
    %v3846 = vpop.f32.mrb[0].mxu0
    %v3847 = vadd.f32 0.0, %v3846
    %v3848 = vpop.f32.mrb[0].mxu0
    %v3849 = vpop.f32.mrb[0].mxu0
    %v3850 = vadd.f32 0.0, %v3849
    %v3851 = vpop.f32.mrb[0].mxu0
    %3852 = vmatprep.mubr.bf16.mxu0 0
    %3853 = vmatmul.mubr.bf16.gmra.mrb[0].mxu0 %v3799
    %v3854 = vpop.f32.mrb[0].mxu0
    %v3855 = vadd.f32 0.0, %v3854
    %v3856 = vpop.f32.mrb[0].mxu0
    %v3857 = vpop.f32.mrb[0].mxu0
    %v3858 = vadd.f32 0.0, %v3857
    %v3859 = vpop.f32.mrb[0].mxu0
    %3860 = vmatprep.mubr.bf16.mxu0 0
    %3861 = vmatmul.mubr.bf16.gmra.mrb[0].mxu0 %v3802
    %v3862 = vpop.f32.mrb[0].mxu0
    %v3863 = vadd.f32 0.0, %v3862
    %v3864 = vpop.f32.mrb[0].mxu0
    %v3865 = vpop.f32.mrb[0].mxu0
    %v3866 = vadd.f32 0.0, %v3865
    %v3867 = vpop.f32.mrb[0].mxu0
    %3868 = vdwg.mxu0
    %v3869 = vlaneseq
    %v3870 = vshrl.u32 %v3869, 7
    %v3871 = vsub.s32 0, %v3870
    %v3872 = vrot.slane %v3762, %v3871
    %v3873 = vmul.f32 %v3839, %v3872
    %v3874 = vmul.f32 %v3842, %v3872
    %v3875 = vmul.f32 %v3847, %v3872
    %v3876 = vmul.f32 %v3850, %v3872
    %v3877 = vmul.f32 %v3855, %v3872
    %v3878 = vmul.f32 %v3858, %v3872
    %v3879 = vmul.f32 %v3863, %v3872
    %v3880 = vmul.f32 %v3866, %v3872
    %v3881 = vadd.f32 %v3754, %v3873
    %v3882 = vadd.f32 %v3755, %v3874
    %v3883 = vadd.f32 %v3756, %v3875
    %v3884 = vadd.f32 %v3757, %v3876
    %v3885 = vadd.f32 %v3758, %v3877
    %v3886 = vadd.f32 %v3759, %v3878
    %v3887 = vadd.f32 %v3760, %v3879
    %v3888 = vadd.f32 %v3761, %v3880
    %v3889 = vld [vmem:[%s7 + $0x2b] sm:$0x1]
    %s3890 = scalar_lea.vmem [#allocation5], 352
    %v3891 = vld [vmem:[%s3890] sm:$0xf]
    %v3892 = vld [vmem:[%s3890 + $0x4] sm:$0xf]
    %v3893 = vld [vmem:[%s3890 + $0x8] sm:$0xf]
    %v3894 = vld [vmem:[%s3890 + $0xc] sm:$0xf]
    %v3895 = vld [vmem:[%s3890 + $0x10] sm:$0xf]
    %v3896 = vld [vmem:[%s3890 + $0x14] sm:$0xf]
    %v3897 = vld [vmem:[%s3890 + $0x18] sm:$0xf]
    %v3898 = vld [vmem:[%s3890 + $0x1c] sm:$0xf]
    %v3907 = vunpack.c.l.b16 %v3891
    %v3908 = vunpack.c.l.b16 %v3892
    %v3909 = vunpack.c.l.b16 %v3893
    %v3910 = vunpack.c.l.b16 %v3894
    %v3911 = vunpack.c.l.b16 %v3895
    %v3912 = vunpack.c.l.b16 %v3896
    %v3913 = vunpack.c.l.b16 %v3897
    %v3914 = vunpack.c.l.b16 %v3898
    %v3915 = vpack.c.b16 %v3908, %v3907
    %v3916 = vpack.c.b16 %v3910, %v3909
    %v3917 = vpack.c.b16 %v3912, %v3911
    %v3918 = vpack.c.b16 %v3914, %v3913
    %v3920 = vsel %vm268, %v3915, 0
    %v3923 = vsel %vm268, %v3916, 0
    %v3926 = vsel %vm268, %v3917, 0
    %v3929 = vsel %vm268, %v3918, 0
    %3931 = vmatprep.subr.bf16.mxu0 0
    %3932 = vmatpush1.bf16.msra.mxu0 %v2489
    %3933 = vmatprep.subr.bf16.mxu0 0
    %3934 = vmatpush1.bf16.msra.mxu0 %v2490
    %3935 = vmatprep.subr.bf16.mxu0 0
    %3936 = vmatpush1.bf16.msra.mxu0 %v2491
    %3937 = vmatprep.subr.bf16.mxu0 0
    %3938 = vmatpush1.bf16.msra.mxu0 %v2492
    %3939 = vmatprep.subr.bf16.mxu0 0
    %3940 = vmatpush1.bf16.msra.mxu0 0
    %3941 = vmatprep.subr.bf16.mxu0 0
    %3942 = vmatpush1.bf16.msra.mxu0 0
    %3943 = vmatprep.subr.bf16.mxu0 0
    %3944 = vmatpush1.bf16.msra.mxu0 0
    %3945 = vmatprep.subr.bf16.mxu0 0
    %3946 = vmatpush1.bf16.msra.mxu0 0
    %3947 = vmatprep.subr.bf16.mxu0 0
    %3948 = vmatpush1.bf16.msra.mxu0 0
    %3949 = vmatprep.subr.bf16.mxu0 0
    %3950 = vmatpush1.bf16.msra.mxu0 0
    %3951 = vmatprep.subr.bf16.mxu0 0
    %3952 = vmatpush1.bf16.msra.mxu0 0
    %3953 = vmatprep.subr.bf16.mxu0 0
    %3954 = vmatpush1.bf16.msra.mxu0 0
    %3955 = vmatprep.subr.bf16.mxu0 0
    %3956 = vmatpush1.bf16.msra.mxu0 0
    %3957 = vmatprep.subr.bf16.mxu0 0
    %3958 = vmatpush1.bf16.msra.mxu0 0
    %3959 = vmatprep.subr.bf16.mxu0 0
    %3960 = vmatpush1.bf16.msra.mxu0 0
    %3961 = vmatprep.subr.bf16.mxu0 0
    %3962 = vmatpush1.bf16.msra.mxu0 0
    %3963 = vmatprep.mubr.bf16.mxu0 0
    %3964 = vmatmul.mubr.bf16.gmra.mrb[0].mxu0 %v3920
    %v3965 = vpop.f32.mrb[0].mxu0
    %v3966 = vadd.f32 0.0, %v3965
    %v3967 = vpop.f32.mrb[0].mxu0
    %v3968 = vpop.f32.mrb[0].mxu0
    %v3969 = vadd.f32 0.0, %v3968
    %v3970 = vpop.f32.mrb[0].mxu0
    %3971 = vmatprep.mubr.bf16.mxu0 0
    %3972 = vmatmul.mubr.bf16.gmra.mrb[0].mxu0 %v3923
    %v3973 = vpop.f32.mrb[0].mxu0
    %v3974 = vadd.f32 0.0, %v3973
    %v3975 = vpop.f32.mrb[0].mxu0
    %v3976 = vpop.f32.mrb[0].mxu0
    %v3977 = vadd.f32 0.0, %v3976
    %v3978 = vpop.f32.mrb[0].mxu0
    %3979 = vmatprep.mubr.bf16.mxu0 0
    %3980 = vmatmul.mubr.bf16.gmra.mrb[0].mxu0 %v3926
    %v3981 = vpop.f32.mrb[0].mxu0
    %v3982 = vadd.f32 0.0, %v3981
    %v3983 = vpop.f32.mrb[0].mxu0
    %v3984 = vpop.f32.mrb[0].mxu0
    %v3985 = vadd.f32 0.0, %v3984
    %v3986 = vpop.f32.mrb[0].mxu0
    %3987 = vmatprep.mubr.bf16.mxu0 0
    %3988 = vmatmul.mubr.bf16.gmra.mrb[0].mxu0 %v3929
    %v3989 = vpop.f32.mrb[0].mxu0
    %v3990 = vadd.f32 0.0, %v3989
    %v3991 = vpop.f32.mrb[0].mxu0
    %v3992 = vpop.f32.mrb[0].mxu0
    %v3993 = vadd.f32 0.0, %v3992
    %v3994 = vpop.f32.mrb[0].mxu0
    %3995 = vdwg.mxu0
    %v3996 = vlaneseq
    %v3997 = vshrl.u32 %v3996, 7
    %v3998 = vsub.s32 0, %v3997
    %v3999 = vrot.slane %v3889, %v3998
    %v4000 = vmul.f32 %v3966, %v3999
    %v4001 = vmul.f32 %v3969, %v3999
    %v4002 = vmul.f32 %v3974, %v3999
    %v4003 = vmul.f32 %v3977, %v3999
    %v4004 = vmul.f32 %v3982, %v3999
    %v4005 = vmul.f32 %v3985, %v3999
    %v4006 = vmul.f32 %v3990, %v3999
    %v4007 = vmul.f32 %v3993, %v3999
    %v4008 = vadd.f32 %v3881, %v4000
    %v4009 = vadd.f32 %v3882, %v4001
    %v4010 = vadd.f32 %v3883, %v4002
    %v4011 = vadd.f32 %v3884, %v4003
    %v4012 = vadd.f32 %v3885, %v4004
    %v4013 = vadd.f32 %v3886, %v4005
    %v4014 = vadd.f32 %v3887, %v4006
    %v4015 = vadd.f32 %v3888, %v4007
    %v4016 = vld [vmem:[%s7 + $0x2c] sm:$0x1]
    %s4017 = scalar_lea.vmem [#allocation5], 384
    %v4018 = vld [vmem:[%s4017] sm:$0xf]
    %v4019 = vld [vmem:[%s4017 + $0x4] sm:$0xf]
    %v4020 = vld [vmem:[%s4017 + $0x8] sm:$0xf]
    %v4021 = vld [vmem:[%s4017 + $0xc] sm:$0xf]
    %v4022 = vld [vmem:[%s4017 + $0x10] sm:$0xf]
    %v4023 = vld [vmem:[%s4017 + $0x14] sm:$0xf]
    %v4024 = vld [vmem:[%s4017 + $0x18] sm:$0xf]
    %v4025 = vld [vmem:[%s4017 + $0x1c] sm:$0xf]
    %v4034 = vunpack.c.l.b16 %v4018
    %v4035 = vunpack.c.l.b16 %v4019
    %v4036 = vunpack.c.l.b16 %v4020
    %v4037 = vunpack.c.l.b16 %v4021
    %v4038 = vunpack.c.l.b16 %v4022
    %v4039 = vunpack.c.l.b16 %v4023
    %v4040 = vunpack.c.l.b16 %v4024
    %v4041 = vunpack.c.l.b16 %v4025
    %v4042 = vpack.c.b16 %v4035, %v4034
    %v4043 = vpack.c.b16 %v4037, %v4036
    %v4044 = vpack.c.b16 %v4039, %v4038
    %v4045 = vpack.c.b16 %v4041, %v4040
    %v4047 = vsel %vm268, %v4042, 0
    %v4050 = vsel %vm268, %v4043, 0
    %v4053 = vsel %vm268, %v4044, 0
    %v4056 = vsel %vm268, %v4045, 0
    %4058 = vmatprep.subr.bf16.mxu0 0
    %4059 = vmatpush1.bf16.msra.mxu0 %v2489
    %4060 = vmatprep.subr.bf16.mxu0 0
    %4061 = vmatpush1.bf16.msra.mxu0 %v2490
    %4062 = vmatprep.subr.bf16.mxu0 0
    %4063 = vmatpush1.bf16.msra.mxu0 %v2491
    %4064 = vmatprep.subr.bf16.mxu0 0
    %4065 = vmatpush1.bf16.msra.mxu0 %v2492
    %4066 = vmatprep.subr.bf16.mxu0 0
    %4067 = vmatpush1.bf16.msra.mxu0 0
    %4068 = vmatprep.subr.bf16.mxu0 0
    %4069 = vmatpush1.bf16.msra.mxu0 0
    %4070 = vmatprep.subr.bf16.mxu0 0
    %4071 = vmatpush1.bf16.msra.mxu0 0
    %4072 = vmatprep.subr.bf16.mxu0 0
    %4073 = vmatpush1.bf16.msra.mxu0 0
    %4074 = vmatprep.subr.bf16.mxu0 0
    %4075 = vmatpush1.bf16.msra.mxu0 0
    %4076 = vmatprep.subr.bf16.mxu0 0
    %4077 = vmatpush1.bf16.msra.mxu0 0
    %4078 = vmatprep.subr.bf16.mxu0 0
    %4079 = vmatpush1.bf16.msra.mxu0 0
    %4080 = vmatprep.subr.bf16.mxu0 0
    %4081 = vmatpush1.bf16.msra.mxu0 0
    %4082 = vmatprep.subr.bf16.mxu0 0
    %4083 = vmatpush1.bf16.msra.mxu0 0
    %4084 = vmatprep.subr.bf16.mxu0 0
    %4085 = vmatpush1.bf16.msra.mxu0 0
    %4086 = vmatprep.subr.bf16.mxu0 0
    %4087 = vmatpush1.bf16.msra.mxu0 0
    %4088 = vmatprep.subr.bf16.mxu0 0
    %4089 = vmatpush1.bf16.msra.mxu0 0
    %4090 = vmatprep.mubr.bf16.mxu0 0
    %4091 = vmatmul.mubr.bf16.gmra.mrb[0].mxu0 %v4047
    %v4092 = vpop.f32.mrb[0].mxu0
    %v4093 = vadd.f32 0.0, %v4092
    %v4094 = vpop.f32.mrb[0].mxu0
    %v4095 = vpop.f32.mrb[0].mxu0
    %v4096 = vadd.f32 0.0, %v4095
    %v4097 = vpop.f32.mrb[0].mxu0
    %4098 = vmatprep.mubr.bf16.mxu0 0
    %4099 = vmatmul.mubr.bf16.gmra.mrb[0].mxu0 %v4050
    %v4100 = vpop.f32.mrb[0].mxu0
    %v4101 = vadd.f32 0.0, %v4100
    %v4102 = vpop.f32.mrb[0].mxu0
    %v4103 = vpop.f32.mrb[0].mxu0
    %v4104 = vadd.f32 0.0, %v4103
    %v4105 = vpop.f32.mrb[0].mxu0
    %4106 = vmatprep.mubr.bf16.mxu0 0
    %4107 = vmatmul.mubr.bf16.gmra.mrb[0].mxu0 %v4053
    %v4108 = vpop.f32.mrb[0].mxu0
    %v4109 = vadd.f32 0.0, %v4108
    %v4110 = vpop.f32.mrb[0].mxu0
    %v4111 = vpop.f32.mrb[0].mxu0
    %v4112 = vadd.f32 0.0, %v4111
    %v4113 = vpop.f32.mrb[0].mxu0
    %4114 = vmatprep.mubr.bf16.mxu0 0
    %4115 = vmatmul.mubr.bf16.gmra.mrb[0].mxu0 %v4056
    %v4116 = vpop.f32.mrb[0].mxu0
    %v4117 = vadd.f32 0.0, %v4116
    %v4118 = vpop.f32.mrb[0].mxu0
    %v4119 = vpop.f32.mrb[0].mxu0
    %v4120 = vadd.f32 0.0, %v4119
    %v4121 = vpop.f32.mrb[0].mxu0
    %4122 = vdwg.mxu0
    %v4123 = vlaneseq
    %v4124 = vshrl.u32 %v4123, 7
    %v4125 = vsub.s32 0, %v4124
    %v4126 = vrot.slane %v4016, %v4125
    %v4127 = vmul.f32 %v4093, %v4126
    %v4128 = vmul.f32 %v4096, %v4126
    %v4129 = vmul.f32 %v4101, %v4126
    %v4130 = vmul.f32 %v4104, %v4126
    %v4131 = vmul.f32 %v4109, %v4126
    %v4132 = vmul.f32 %v4112, %v4126
    %v4133 = vmul.f32 %v4117, %v4126
    %v4134 = vmul.f32 %v4120, %v4126
    %v4135 = vadd.f32 %v4008, %v4127
    %v4136 = vadd.f32 %v4009, %v4128
    %v4137 = vadd.f32 %v4010, %v4129
    %v4138 = vadd.f32 %v4011, %v4130
    %v4139 = vadd.f32 %v4012, %v4131
    %v4140 = vadd.f32 %v4013, %v4132
    %v4141 = vadd.f32 %v4014, %v4133
    %v4142 = vadd.f32 %v4015, %v4134
    %v4143 = vld [vmem:[%s7 + $0x2d] sm:$0x1]
    %s4144 = scalar_lea.vmem [#allocation5], 416
    %v4145 = vld [vmem:[%s4144] sm:$0xf]
    %v4146 = vld [vmem:[%s4144 + $0x4] sm:$0xf]
    %v4147 = vld [vmem:[%s4144 + $0x8] sm:$0xf]
    %v4148 = vld [vmem:[%s4144 + $0xc] sm:$0xf]
    %v4149 = vld [vmem:[%s4144 + $0x10] sm:$0xf]
    %v4150 = vld [vmem:[%s4144 + $0x14] sm:$0xf]
    %v4151 = vld [vmem:[%s4144 + $0x18] sm:$0xf]
    %v4152 = vld [vmem:[%s4144 + $0x1c] sm:$0xf]
    %v4161 = vunpack.c.l.b16 %v4145
    %v4162 = vunpack.c.l.b16 %v4146
    %v4163 = vunpack.c.l.b16 %v4147
    %v4164 = vunpack.c.l.b16 %v4148
    %v4165 = vunpack.c.l.b16 %v4149
    %v4166 = vunpack.c.l.b16 %v4150
    %v4167 = vunpack.c.l.b16 %v4151
    %v4168 = vunpack.c.l.b16 %v4152
    %v4169 = vpack.c.b16 %v4162, %v4161
    %v4170 = vpack.c.b16 %v4164, %v4163
    %v4171 = vpack.c.b16 %v4166, %v4165
    %v4172 = vpack.c.b16 %v4168, %v4167
    %v4174 = vsel %vm268, %v4169, 0
    %v4177 = vsel %vm268, %v4170, 0
    %v4180 = vsel %vm268, %v4171, 0
    %v4183 = vsel %vm268, %v4172, 0
    %4185 = vmatprep.subr.bf16.mxu0 0
    %4186 = vmatpush1.bf16.msra.mxu0 %v2489
    %4187 = vmatprep.subr.bf16.mxu0 0
    %4188 = vmatpush1.bf16.msra.mxu0 %v2490
    %4189 = vmatprep.subr.bf16.mxu0 0
    %4190 = vmatpush1.bf16.msra.mxu0 %v2491
    %4191 = vmatprep.subr.bf16.mxu0 0
    %4192 = vmatpush1.bf16.msra.mxu0 %v2492
    %4193 = vmatprep.subr.bf16.mxu0 0
    %4194 = vmatpush1.bf16.msra.mxu0 0
    %4195 = vmatprep.subr.bf16.mxu0 0
    %4196 = vmatpush1.bf16.msra.mxu0 0
    %4197 = vmatprep.subr.bf16.mxu0 0
    %4198 = vmatpush1.bf16.msra.mxu0 0
    %4199 = vmatprep.subr.bf16.mxu0 0
    %4200 = vmatpush1.bf16.msra.mxu0 0
    %4201 = vmatprep.subr.bf16.mxu0 0
    %4202 = vmatpush1.bf16.msra.mxu0 0
    %4203 = vmatprep.subr.bf16.mxu0 0
    %4204 = vmatpush1.bf16.msra.mxu0 0
    %4205 = vmatprep.subr.bf16.mxu0 0
    %4206 = vmatpush1.bf16.msra.mxu0 0
    %4207 = vmatprep.subr.bf16.mxu0 0
    %4208 = vmatpush1.bf16.msra.mxu0 0
    %4209 = vmatprep.subr.bf16.mxu0 0
    %4210 = vmatpush1.bf16.msra.mxu0 0
    %4211 = vmatprep.subr.bf16.mxu0 0
    %4212 = vmatpush1.bf16.msra.mxu0 0
    %4213 = vmatprep.subr.bf16.mxu0 0
    %4214 = vmatpush1.bf16.msra.mxu0 0
    %4215 = vmatprep.subr.bf16.mxu0 0
    %4216 = vmatpush1.bf16.msra.mxu0 0
    %4217 = vmatprep.mubr.bf16.mxu0 0
    %4218 = vmatmul.mubr.bf16.gmra.mrb[0].mxu0 %v4174
    %v4219 = vpop.f32.mrb[0].mxu0
    %v4220 = vadd.f32 0.0, %v4219
    %v4221 = vpop.f32.mrb[0].mxu0
    %v4222 = vpop.f32.mrb[0].mxu0
    %v4223 = vadd.f32 0.0, %v4222
    %v4224 = vpop.f32.mrb[0].mxu0
    %4225 = vmatprep.mubr.bf16.mxu0 0
    %4226 = vmatmul.mubr.bf16.gmra.mrb[0].mxu0 %v4177
    %v4227 = vpop.f32.mrb[0].mxu0
    %v4228 = vadd.f32 0.0, %v4227
    %v4229 = vpop.f32.mrb[0].mxu0
    %v4230 = vpop.f32.mrb[0].mxu0
    %v4231 = vadd.f32 0.0, %v4230
    %v4232 = vpop.f32.mrb[0].mxu0
    %4233 = vmatprep.mubr.bf16.mxu0 0
    %4234 = vmatmul.mubr.bf16.gmra.mrb[0].mxu0 %v4180
    %v4235 = vpop.f32.mrb[0].mxu0
    %v4236 = vadd.f32 0.0, %v4235
    %v4237 = vpop.f32.mrb[0].mxu0
    %v4238 = vpop.f32.mrb[0].mxu0
    %v4239 = vadd.f32 0.0, %v4238
    %v4240 = vpop.f32.mrb[0].mxu0
    %4241 = vmatprep.mubr.bf16.mxu0 0
    %4242 = vmatmul.mubr.bf16.gmra.mrb[0].mxu0 %v4183
    %v4243 = vpop.f32.mrb[0].mxu0
    %v4244 = vadd.f32 0.0, %v4243
    %v4245 = vpop.f32.mrb[0].mxu0
    %v4246 = vpop.f32.mrb[0].mxu0
    %v4247 = vadd.f32 0.0, %v4246
    %v4248 = vpop.f32.mrb[0].mxu0
    %4249 = vdwg.mxu0
    %v4250 = vlaneseq
    %v4251 = vshrl.u32 %v4250, 7
    %v4252 = vsub.s32 0, %v4251
    %v4253 = vrot.slane %v4143, %v4252
    %v4254 = vmul.f32 %v4220, %v4253
    %v4255 = vmul.f32 %v4223, %v4253
    %v4256 = vmul.f32 %v4228, %v4253
    %v4257 = vmul.f32 %v4231, %v4253
    %v4258 = vmul.f32 %v4236, %v4253
    %v4259 = vmul.f32 %v4239, %v4253
    %v4260 = vmul.f32 %v4244, %v4253
    %v4261 = vmul.f32 %v4247, %v4253
    %v4262 = vadd.f32 %v4135, %v4254
    %v4263 = vadd.f32 %v4136, %v4255
    %v4264 = vadd.f32 %v4137, %v4256
    %v4265 = vadd.f32 %v4138, %v4257
    %v4266 = vadd.f32 %v4139, %v4258
    %v4267 = vadd.f32 %v4140, %v4259
    %v4268 = vadd.f32 %v4141, %v4260
    %v4269 = vadd.f32 %v4142, %v4261
    %v4270 = vld [vmem:[%s7 + $0x2e] sm:$0x1]
    %s4271 = scalar_lea.vmem [#allocation5], 448
    %v4272 = vld [vmem:[%s4271] sm:$0xf]
    %v4273 = vld [vmem:[%s4271 + $0x4] sm:$0xf]
    %v4274 = vld [vmem:[%s4271 + $0x8] sm:$0xf]
    %v4275 = vld [vmem:[%s4271 + $0xc] sm:$0xf]
    %v4276 = vld [vmem:[%s4271 + $0x10] sm:$0xf]
    %v4277 = vld [vmem:[%s4271 + $0x14] sm:$0xf]
    %v4278 = vld [vmem:[%s4271 + $0x18] sm:$0xf]
    %v4279 = vld [vmem:[%s4271 + $0x1c] sm:$0xf]
    %v4288 = vunpack.c.l.b16 %v4272
    %v4289 = vunpack.c.l.b16 %v4273
    %v4290 = vunpack.c.l.b16 %v4274
    %v4291 = vunpack.c.l.b16 %v4275
    %v4292 = vunpack.c.l.b16 %v4276
    %v4293 = vunpack.c.l.b16 %v4277
    %v4294 = vunpack.c.l.b16 %v4278
    %v4295 = vunpack.c.l.b16 %v4279
    %v4296 = vpack.c.b16 %v4289, %v4288
    %v4297 = vpack.c.b16 %v4291, %v4290
    %v4298 = vpack.c.b16 %v4293, %v4292
    %v4299 = vpack.c.b16 %v4295, %v4294
    %v4301 = vsel %vm268, %v4296, 0
    %v4304 = vsel %vm268, %v4297, 0
    %v4307 = vsel %vm268, %v4298, 0
    %v4310 = vsel %vm268, %v4299, 0
    %4312 = vmatprep.subr.bf16.mxu0 0
    %4313 = vmatpush1.bf16.msra.mxu0 %v2489
    %4314 = vmatprep.subr.bf16.mxu0 0
    %4315 = vmatpush1.bf16.msra.mxu0 %v2490
    %4316 = vmatprep.subr.bf16.mxu0 0
    %4317 = vmatpush1.bf16.msra.mxu0 %v2491
    %4318 = vmatprep.subr.bf16.mxu0 0
    %4319 = vmatpush1.bf16.msra.mxu0 %v2492
    %4320 = vmatprep.subr.bf16.mxu0 0
    %4321 = vmatpush1.bf16.msra.mxu0 0
    %4322 = vmatprep.subr.bf16.mxu0 0
    %4323 = vmatpush1.bf16.msra.mxu0 0
    %4324 = vmatprep.subr.bf16.mxu0 0
    %4325 = vmatpush1.bf16.msra.mxu0 0
    %4326 = vmatprep.subr.bf16.mxu0 0
    %4327 = vmatpush1.bf16.msra.mxu0 0
    %4328 = vmatprep.subr.bf16.mxu0 0
    %4329 = vmatpush1.bf16.msra.mxu0 0
    %4330 = vmatprep.subr.bf16.mxu0 0
    %4331 = vmatpush1.bf16.msra.mxu0 0
    %4332 = vmatprep.subr.bf16.mxu0 0
    %4333 = vmatpush1.bf16.msra.mxu0 0
    %4334 = vmatprep.subr.bf16.mxu0 0
    %4335 = vmatpush1.bf16.msra.mxu0 0
    %4336 = vmatprep.subr.bf16.mxu0 0
    %4337 = vmatpush1.bf16.msra.mxu0 0
    %4338 = vmatprep.subr.bf16.mxu0 0
    %4339 = vmatpush1.bf16.msra.mxu0 0
    %4340 = vmatprep.subr.bf16.mxu0 0
    %4341 = vmatpush1.bf16.msra.mxu0 0
    %4342 = vmatprep.subr.bf16.mxu0 0
    %4343 = vmatpush1.bf16.msra.mxu0 0
    %4344 = vmatprep.mubr.bf16.mxu0 0
    %4345 = vmatmul.mubr.bf16.gmra.mrb[0].mxu0 %v4301
    %v4346 = vpop.f32.mrb[0].mxu0
    %v4347 = vadd.f32 0.0, %v4346
    %v4348 = vpop.f32.mrb[0].mxu0
    %v4349 = vpop.f32.mrb[0].mxu0
    %v4350 = vadd.f32 0.0, %v4349
    %v4351 = vpop.f32.mrb[0].mxu0
    %4352 = vmatprep.mubr.bf16.mxu0 0
    %4353 = vmatmul.mubr.bf16.gmra.mrb[0].mxu0 %v4304
    %v4354 = vpop.f32.mrb[0].mxu0
    %v4355 = vadd.f32 0.0, %v4354
    %v4356 = vpop.f32.mrb[0].mxu0
    %v4357 = vpop.f32.mrb[0].mxu0
    %v4358 = vadd.f32 0.0, %v4357
    %v4359 = vpop.f32.mrb[0].mxu0
    %4360 = vmatprep.mubr.bf16.mxu0 0
    %4361 = vmatmul.mubr.bf16.gmra.mrb[0].mxu0 %v4307
    %v4362 = vpop.f32.mrb[0].mxu0
    %v4363 = vadd.f32 0.0, %v4362
    %v4364 = vpop.f32.mrb[0].mxu0
    %v4365 = vpop.f32.mrb[0].mxu0
    %v4366 = vadd.f32 0.0, %v4365
    %v4367 = vpop.f32.mrb[0].mxu0
    %4368 = vmatprep.mubr.bf16.mxu0 0
    %4369 = vmatmul.mubr.bf16.gmra.mrb[0].mxu0 %v4310
    %v4370 = vpop.f32.mrb[0].mxu0
    %v4371 = vadd.f32 0.0, %v4370
    %v4372 = vpop.f32.mrb[0].mxu0
    %v4373 = vpop.f32.mrb[0].mxu0
    %v4374 = vadd.f32 0.0, %v4373
    %v4375 = vpop.f32.mrb[0].mxu0
    %4376 = vdwg.mxu0
    %v4377 = vlaneseq
    %v4378 = vshrl.u32 %v4377, 7
    %v4379 = vsub.s32 0, %v4378
    %v4380 = vrot.slane %v4270, %v4379
    %v4381 = vmul.f32 %v4347, %v4380
    %v4382 = vmul.f32 %v4350, %v4380
    %v4383 = vmul.f32 %v4355, %v4380
    %v4384 = vmul.f32 %v4358, %v4380
    %v4385 = vmul.f32 %v4363, %v4380
    %v4386 = vmul.f32 %v4366, %v4380
    %v4387 = vmul.f32 %v4371, %v4380
    %v4388 = vmul.f32 %v4374, %v4380
    %v4389 = vadd.f32 %v4262, %v4381
    %v4390 = vadd.f32 %v4263, %v4382
    %v4391 = vadd.f32 %v4264, %v4383
    %v4392 = vadd.f32 %v4265, %v4384
    %v4393 = vadd.f32 %v4266, %v4385
    %v4394 = vadd.f32 %v4267, %v4386
    %v4395 = vadd.f32 %v4268, %v4387
    %v4396 = vadd.f32 %v4269, %v4388
    %v4397 = vld [vmem:[%s7 + $0x2f] sm:$0x1]
    %s4398 = scalar_lea.vmem [#allocation5], 480
    %v4399 = vld [vmem:[%s4398] sm:$0xf]
    %v4400 = vld [vmem:[%s4398 + $0x4] sm:$0xf]
    %v4401 = vld [vmem:[%s4398 + $0x8] sm:$0xf]
    %v4402 = vld [vmem:[%s4398 + $0xc] sm:$0xf]
    %v4403 = vld [vmem:[%s4398 + $0x10] sm:$0xf]
    %v4404 = vld [vmem:[%s4398 + $0x14] sm:$0xf]
    %v4405 = vld [vmem:[%s4398 + $0x18] sm:$0xf]
    %v4406 = vld [vmem:[%s4398 + $0x1c] sm:$0xf]
    %v4415 = vunpack.c.l.b16 %v4399
    %v4416 = vunpack.c.l.b16 %v4400
    %v4417 = vunpack.c.l.b16 %v4401
    %v4418 = vunpack.c.l.b16 %v4402
    %v4419 = vunpack.c.l.b16 %v4403
    %v4420 = vunpack.c.l.b16 %v4404
    %v4421 = vunpack.c.l.b16 %v4405
    %v4422 = vunpack.c.l.b16 %v4406
    %v4423 = vpack.c.b16 %v4416, %v4415
    %v4424 = vpack.c.b16 %v4418, %v4417
    %v4425 = vpack.c.b16 %v4420, %v4419
    %v4426 = vpack.c.b16 %v4422, %v4421
    %v4428 = vsel %vm268, %v4423, 0
    %v4431 = vsel %vm268, %v4424, 0
    %v4434 = vsel %vm268, %v4425, 0
    %v4437 = vsel %vm268, %v4426, 0
    %4439 = vmatprep.subr.bf16.mxu0 0
    %4440 = vmatpush1.bf16.msra.mxu0 %v2489
    %4441 = vmatprep.subr.bf16.mxu0 0
    %4442 = vmatpush1.bf16.msra.mxu0 %v2490
    %4443 = vmatprep.subr.bf16.mxu0 0
    %4444 = vmatpush1.bf16.msra.mxu0 %v2491
    %4445 = vmatprep.subr.bf16.mxu0 0
    %4446 = vmatpush1.bf16.msra.mxu0 %v2492
    %4447 = vmatprep.subr.bf16.mxu0 0
    %4448 = vmatpush1.bf16.msra.mxu0 0
    %4449 = vmatprep.subr.bf16.mxu0 0
    %4450 = vmatpush1.bf16.msra.mxu0 0
    %4451 = vmatprep.subr.bf16.mxu0 0
    %4452 = vmatpush1.bf16.msra.mxu0 0
    %4453 = vmatprep.subr.bf16.mxu0 0
    %4454 = vmatpush1.bf16.msra.mxu0 0
    %4455 = vmatprep.subr.bf16.mxu0 0
    %4456 = vmatpush1.bf16.msra.mxu0 0
    %4457 = vmatprep.subr.bf16.mxu0 0
    %4458 = vmatpush1.bf16.msra.mxu0 0
    %4459 = vmatprep.subr.bf16.mxu0 0
    %4460 = vmatpush1.bf16.msra.mxu0 0
    %4461 = vmatprep.subr.bf16.mxu0 0
    %4462 = vmatpush1.bf16.msra.mxu0 0
    %4463 = vmatprep.subr.bf16.mxu0 0
    %4464 = vmatpush1.bf16.msra.mxu0 0
    %4465 = vmatprep.subr.bf16.mxu0 0
    %4466 = vmatpush1.bf16.msra.mxu0 0
    %4467 = vmatprep.subr.bf16.mxu0 0
    %4468 = vmatpush1.bf16.msra.mxu0 0
    %4469 = vmatprep.subr.bf16.mxu0 0
    %4470 = vmatpush1.bf16.msra.mxu0 0
    %4471 = vmatprep.mubr.bf16.mxu0 0
    %4472 = vmatmul.mubr.bf16.gmra.mrb[0].mxu0 %v4428
    %v4473 = vpop.f32.mrb[0].mxu0
    %v4474 = vadd.f32 0.0, %v4473
    %v4475 = vpop.f32.mrb[0].mxu0
    %v4476 = vpop.f32.mrb[0].mxu0
    %v4477 = vadd.f32 0.0, %v4476
    %v4478 = vpop.f32.mrb[0].mxu0
    %4479 = vmatprep.mubr.bf16.mxu0 0
    %4480 = vmatmul.mubr.bf16.gmra.mrb[0].mxu0 %v4431
    %v4481 = vpop.f32.mrb[0].mxu0
    %v4482 = vadd.f32 0.0, %v4481
    %v4483 = vpop.f32.mrb[0].mxu0
    %v4484 = vpop.f32.mrb[0].mxu0
    %v4485 = vadd.f32 0.0, %v4484
    %v4486 = vpop.f32.mrb[0].mxu0
    %4487 = vmatprep.mubr.bf16.mxu0 0
    %4488 = vmatmul.mubr.bf16.gmra.mrb[0].mxu0 %v4434
    %v4489 = vpop.f32.mrb[0].mxu0
    %v4490 = vadd.f32 0.0, %v4489
    %v4491 = vpop.f32.mrb[0].mxu0
    %v4492 = vpop.f32.mrb[0].mxu0
    %v4493 = vadd.f32 0.0, %v4492
    %v4494 = vpop.f32.mrb[0].mxu0
    %4495 = vmatprep.mubr.bf16.mxu0 0
    %4496 = vmatmul.mubr.bf16.gmra.mrb[0].mxu0 %v4437
    %v4497 = vpop.f32.mrb[0].mxu0
    %v4498 = vadd.f32 0.0, %v4497
    %v4499 = vpop.f32.mrb[0].mxu0
    %v4500 = vpop.f32.mrb[0].mxu0
    %v4501 = vadd.f32 0.0, %v4500
    %v4502 = vpop.f32.mrb[0].mxu0
    %4503 = vdwg.mxu0
    %v4504 = vlaneseq
    %v4505 = vshrl.u32 %v4504, 7
    %v4506 = vsub.s32 0, %v4505
    %v4507 = vrot.slane %v4397, %v4506
    %v4508 = vmul.f32 %v4474, %v4507
    %v4509 = vmul.f32 %v4477, %v4507
    %v4510 = vmul.f32 %v4482, %v4507
    %v4511 = vmul.f32 %v4485, %v4507
    %v4512 = vmul.f32 %v4490, %v4507
    %v4513 = vmul.f32 %v4493, %v4507
    %v4514 = vmul.f32 %v4498, %v4507
    %v4515 = vmul.f32 %v4501, %v4507
    %v4516 = vadd.f32 %v4389, %v4508
    %v4517 = vadd.f32 %v4390, %v4509
    %v4518 = vadd.f32 %v4391, %v4510
    %v4519 = vadd.f32 %v4392, %v4511
    %v4520 = vadd.f32 %v4393, %v4512
    %v4521 = vadd.f32 %v4394, %v4513
    %v4522 = vadd.f32 %v4395, %v4514
    %v4523 = vadd.f32 %v4396, %v4515
    %v4524 = vld [vmem:[%s7 + $0x30] sm:$0x1]
    %s4525 = scalar_lea.vmem [#allocation5], 512
    %v4526 = vld [vmem:[%s4525] sm:$0xf]
    %v4527 = vld [vmem:[%s4525 + $0x4] sm:$0xf]
    %v4528 = vld [vmem:[%s4525 + $0x8] sm:$0xf]
    %v4529 = vld [vmem:[%s4525 + $0xc] sm:$0xf]
    %v4530 = vld [vmem:[%s4525 + $0x10] sm:$0xf]
    %v4531 = vld [vmem:[%s4525 + $0x14] sm:$0xf]
    %v4532 = vld [vmem:[%s4525 + $0x18] sm:$0xf]
    %v4533 = vld [vmem:[%s4525 + $0x1c] sm:$0xf]
    %v4542 = vunpack.c.l.b16 %v4526
    %v4543 = vunpack.c.l.b16 %v4527
    %v4544 = vunpack.c.l.b16 %v4528
    %v4545 = vunpack.c.l.b16 %v4529
    %v4546 = vunpack.c.l.b16 %v4530
    %v4547 = vunpack.c.l.b16 %v4531
    %v4548 = vunpack.c.l.b16 %v4532
    %v4549 = vunpack.c.l.b16 %v4533
    %v4550 = vpack.c.b16 %v4543, %v4542
    %v4551 = vpack.c.b16 %v4545, %v4544
    %v4552 = vpack.c.b16 %v4547, %v4546
    %v4553 = vpack.c.b16 %v4549, %v4548
    %v4555 = vsel %vm268, %v4550, 0
    %v4558 = vsel %vm268, %v4551, 0
    %v4561 = vsel %vm268, %v4552, 0
    %v4564 = vsel %vm268, %v4553, 0
    %4566 = vmatprep.subr.bf16.mxu0 0
    %4567 = vmatpush1.bf16.msra.mxu0 %v2489
    %4568 = vmatprep.subr.bf16.mxu0 0
    %4569 = vmatpush1.bf16.msra.mxu0 %v2490
    %4570 = vmatprep.subr.bf16.mxu0 0
    %4571 = vmatpush1.bf16.msra.mxu0 %v2491
    %4572 = vmatprep.subr.bf16.mxu0 0
    %4573 = vmatpush1.bf16.msra.mxu0 %v2492
    %4574 = vmatprep.subr.bf16.mxu0 0
    %4575 = vmatpush1.bf16.msra.mxu0 0
    %4576 = vmatprep.subr.bf16.mxu0 0
    %4577 = vmatpush1.bf16.msra.mxu0 0
    %4578 = vmatprep.subr.bf16.mxu0 0
    %4579 = vmatpush1.bf16.msra.mxu0 0
    %4580 = vmatprep.subr.bf16.mxu0 0
    %4581 = vmatpush1.bf16.msra.mxu0 0
    %4582 = vmatprep.subr.bf16.mxu0 0
    %4583 = vmatpush1.bf16.msra.mxu0 0
    %4584 = vmatprep.subr.bf16.mxu0 0
    %4585 = vmatpush1.bf16.msra.mxu0 0
    %4586 = vmatprep.subr.bf16.mxu0 0
    %4587 = vmatpush1.bf16.msra.mxu0 0
    %4588 = vmatprep.subr.bf16.mxu0 0
    %4589 = vmatpush1.bf16.msra.mxu0 0
    %4590 = vmatprep.subr.bf16.mxu0 0
    %4591 = vmatpush1.bf16.msra.mxu0 0
    %4592 = vmatprep.subr.bf16.mxu0 0
    %4593 = vmatpush1.bf16.msra.mxu0 0
    %4594 = vmatprep.subr.bf16.mxu0 0
    %4595 = vmatpush1.bf16.msra.mxu0 0
    %4596 = vmatprep.subr.bf16.mxu0 0
    %4597 = vmatpush1.bf16.msra.mxu0 0
    %4598 = vmatprep.mubr.bf16.mxu0 0
    %4599 = vmatmul.mubr.bf16.gmra.mrb[0].mxu0 %v4555
    %v4600 = vpop.f32.mrb[0].mxu0
    %v4601 = vadd.f32 0.0, %v4600
    %v4602 = vpop.f32.mrb[0].mxu0
    %v4603 = vpop.f32.mrb[0].mxu0
    %v4604 = vadd.f32 0.0, %v4603
    %v4605 = vpop.f32.mrb[0].mxu0
    %4606 = vmatprep.mubr.bf16.mxu0 0
    %4607 = vmatmul.mubr.bf16.gmra.mrb[0].mxu0 %v4558
    %v4608 = vpop.f32.mrb[0].mxu0
    %v4609 = vadd.f32 0.0, %v4608
    %v4610 = vpop.f32.mrb[0].mxu0
    %v4611 = vpop.f32.mrb[0].mxu0
    %v4612 = vadd.f32 0.0, %v4611
    %v4613 = vpop.f32.mrb[0].mxu0
    %4614 = vmatprep.mubr.bf16.mxu0 0
    %4615 = vmatmul.mubr.bf16.gmra.mrb[0].mxu0 %v4561
    %v4616 = vpop.f32.mrb[0].mxu0
    %v4617 = vadd.f32 0.0, %v4616
    %v4618 = vpop.f32.mrb[0].mxu0
    %v4619 = vpop.f32.mrb[0].mxu0
    %v4620 = vadd.f32 0.0, %v4619
    %v4621 = vpop.f32.mrb[0].mxu0
    %4622 = vmatprep.mubr.bf16.mxu0 0
    %4623 = vmatmul.mubr.bf16.gmra.mrb[0].mxu0 %v4564
    %v4624 = vpop.f32.mrb[0].mxu0
    %v4625 = vadd.f32 0.0, %v4624
    %v4626 = vpop.f32.mrb[0].mxu0
    %v4627 = vpop.f32.mrb[0].mxu0
    %v4628 = vadd.f32 0.0, %v4627
    %v4629 = vpop.f32.mrb[0].mxu0
    %4630 = vdwg.mxu0
    %v4631 = vlaneseq
    %v4632 = vshrl.u32 %v4631, 7
    %v4633 = vsub.s32 0, %v4632
    %v4634 = vrot.slane %v4524, %v4633
    %v4635 = vmul.f32 %v4601, %v4634
    %v4636 = vmul.f32 %v4604, %v4634
    %v4637 = vmul.f32 %v4609, %v4634
    %v4638 = vmul.f32 %v4612, %v4634
    %v4639 = vmul.f32 %v4617, %v4634
    %v4640 = vmul.f32 %v4620, %v4634
    %v4641 = vmul.f32 %v4625, %v4634
    %v4642 = vmul.f32 %v4628, %v4634
    %v4643 = vadd.f32 %v4516, %v4635
    %v4644 = vadd.f32 %v4517, %v4636
    %v4645 = vadd.f32 %v4518, %v4637
    %v4646 = vadd.f32 %v4519, %v4638
    %v4647 = vadd.f32 %v4520, %v4639
    %v4648 = vadd.f32 %v4521, %v4640
    %v4649 = vadd.f32 %v4522, %v4641
    %v4650 = vadd.f32 %v4523, %v4642
    %v4651 = vld [vmem:[%s7 + $0x31] sm:$0x1]
    %s4652 = scalar_lea.vmem [#allocation5], 544
    %v4653 = vld [vmem:[%s4652] sm:$0xf]
    %v4654 = vld [vmem:[%s4652 + $0x4] sm:$0xf]
    %v4655 = vld [vmem:[%s4652 + $0x8] sm:$0xf]
    %v4656 = vld [vmem:[%s4652 + $0xc] sm:$0xf]
    %v4657 = vld [vmem:[%s4652 + $0x10] sm:$0xf]
    %v4658 = vld [vmem:[%s4652 + $0x14] sm:$0xf]
    %v4659 = vld [vmem:[%s4652 + $0x18] sm:$0xf]
    %v4660 = vld [vmem:[%s4652 + $0x1c] sm:$0xf]
    %v4669 = vunpack.c.l.b16 %v4653
    %v4670 = vunpack.c.l.b16 %v4654
    %v4671 = vunpack.c.l.b16 %v4655
    %v4672 = vunpack.c.l.b16 %v4656
    %v4673 = vunpack.c.l.b16 %v4657
    %v4674 = vunpack.c.l.b16 %v4658
    %v4675 = vunpack.c.l.b16 %v4659
    %v4676 = vunpack.c.l.b16 %v4660
    %v4677 = vpack.c.b16 %v4670, %v4669
    %v4678 = vpack.c.b16 %v4672, %v4671
    %v4679 = vpack.c.b16 %v4674, %v4673
    %v4680 = vpack.c.b16 %v4676, %v4675
    %v4682 = vsel %vm268, %v4677, 0
    %v4685 = vsel %vm268, %v4678, 0
    %v4688 = vsel %vm268, %v4679, 0
    %v4691 = vsel %vm268, %v4680, 0
    %4693 = vmatprep.subr.bf16.mxu0 0
    %4694 = vmatpush1.bf16.msra.mxu0 %v2489
    %4695 = vmatprep.subr.bf16.mxu0 0
    %4696 = vmatpush1.bf16.msra.mxu0 %v2490
    %4697 = vmatprep.subr.bf16.mxu0 0
    %4698 = vmatpush1.bf16.msra.mxu0 %v2491
    %4699 = vmatprep.subr.bf16.mxu0 0
    %4700 = vmatpush1.bf16.msra.mxu0 %v2492
    %4701 = vmatprep.subr.bf16.mxu0 0
    %4702 = vmatpush1.bf16.msra.mxu0 0
    %4703 = vmatprep.subr.bf16.mxu0 0
    %4704 = vmatpush1.bf16.msra.mxu0 0
    %4705 = vmatprep.subr.bf16.mxu0 0
    %4706 = vmatpush1.bf16.msra.mxu0 0
    %4707 = vmatprep.subr.bf16.mxu0 0
    %4708 = vmatpush1.bf16.msra.mxu0 0
    %4709 = vmatprep.subr.bf16.mxu0 0
    %4710 = vmatpush1.bf16.msra.mxu0 0
    %4711 = vmatprep.subr.bf16.mxu0 0
    %4712 = vmatpush1.bf16.msra.mxu0 0
    %4713 = vmatprep.subr.bf16.mxu0 0
    %4714 = vmatpush1.bf16.msra.mxu0 0
    %4715 = vmatprep.subr.bf16.mxu0 0
    %4716 = vmatpush1.bf16.msra.mxu0 0
    %4717 = vmatprep.subr.bf16.mxu0 0
    %4718 = vmatpush1.bf16.msra.mxu0 0
    %4719 = vmatprep.subr.bf16.mxu0 0
    %4720 = vmatpush1.bf16.msra.mxu0 0
    %4721 = vmatprep.subr.bf16.mxu0 0
    %4722 = vmatpush1.bf16.msra.mxu0 0
    %4723 = vmatprep.subr.bf16.mxu0 0
    %4724 = vmatpush1.bf16.msra.mxu0 0
    %4725 = vmatprep.mubr.bf16.mxu0 0
    %4726 = vmatmul.mubr.bf16.gmra.mrb[0].mxu0 %v4682
    %v4727 = vpop.f32.mrb[0].mxu0
    %v4728 = vadd.f32 0.0, %v4727
    %v4729 = vpop.f32.mrb[0].mxu0
    %v4730 = vpop.f32.mrb[0].mxu0
    %v4731 = vadd.f32 0.0, %v4730
    %v4732 = vpop.f32.mrb[0].mxu0
    %4733 = vmatprep.mubr.bf16.mxu0 0
    %4734 = vmatmul.mubr.bf16.gmra.mrb[0].mxu0 %v4685
    %v4735 = vpop.f32.mrb[0].mxu0
    %v4736 = vadd.f32 0.0, %v4735
    %v4737 = vpop.f32.mrb[0].mxu0
    %v4738 = vpop.f32.mrb[0].mxu0
    %v4739 = vadd.f32 0.0, %v4738
    %v4740 = vpop.f32.mrb[0].mxu0
    %4741 = vmatprep.mubr.bf16.mxu0 0
    %4742 = vmatmul.mubr.bf16.gmra.mrb[0].mxu0 %v4688
    %v4743 = vpop.f32.mrb[0].mxu0
    %v4744 = vadd.f32 0.0, %v4743
    %v4745 = vpop.f32.mrb[0].mxu0
    %v4746 = vpop.f32.mrb[0].mxu0
    %v4747 = vadd.f32 0.0, %v4746
    %v4748 = vpop.f32.mrb[0].mxu0
    %4749 = vmatprep.mubr.bf16.mxu0 0
    %4750 = vmatmul.mubr.bf16.gmra.mrb[0].mxu0 %v4691
    %v4751 = vpop.f32.mrb[0].mxu0
    %v4752 = vadd.f32 0.0, %v4751
    %v4753 = vpop.f32.mrb[0].mxu0
    %v4754 = vpop.f32.mrb[0].mxu0
    %v4755 = vadd.f32 0.0, %v4754
    %v4756 = vpop.f32.mrb[0].mxu0
    %4757 = vdwg.mxu0
    %v4758 = vlaneseq
    %v4759 = vshrl.u32 %v4758, 7
    %v4760 = vsub.s32 0, %v4759
    %v4761 = vrot.slane %v4651, %v4760
    %v4762 = vmul.f32 %v4728, %v4761
    %v4763 = vmul.f32 %v4731, %v4761
    %v4764 = vmul.f32 %v4736, %v4761
    %v4765 = vmul.f32 %v4739, %v4761
    %v4766 = vmul.f32 %v4744, %v4761
    %v4767 = vmul.f32 %v4747, %v4761
    %v4768 = vmul.f32 %v4752, %v4761
    %v4769 = vmul.f32 %v4755, %v4761
    %v4770 = vadd.f32 %v4643, %v4762
    %v4771 = vadd.f32 %v4644, %v4763
    %v4772 = vadd.f32 %v4645, %v4764
    %v4773 = vadd.f32 %v4646, %v4765
    %v4774 = vadd.f32 %v4647, %v4766
    %v4775 = vadd.f32 %v4648, %v4767
    %v4776 = vadd.f32 %v4649, %v4768
    %v4777 = vadd.f32 %v4650, %v4769
    %v4778 = vld [vmem:[%s7 + $0x32] sm:$0x1]
    %s4779 = scalar_lea.vmem [#allocation5], 576
    %v4780 = vld [vmem:[%s4779] sm:$0xf]
    %v4781 = vld [vmem:[%s4779 + $0x4] sm:$0xf]
    %v4782 = vld [vmem:[%s4779 + $0x8] sm:$0xf]
    %v4783 = vld [vmem:[%s4779 + $0xc] sm:$0xf]
    %v4784 = vld [vmem:[%s4779 + $0x10] sm:$0xf]
    %v4785 = vld [vmem:[%s4779 + $0x14] sm:$0xf]
    %v4786 = vld [vmem:[%s4779 + $0x18] sm:$0xf]
    %v4787 = vld [vmem:[%s4779 + $0x1c] sm:$0xf]
    %v4796 = vunpack.c.l.b16 %v4780
    %v4797 = vunpack.c.l.b16 %v4781
    %v4798 = vunpack.c.l.b16 %v4782
    %v4799 = vunpack.c.l.b16 %v4783
    %v4800 = vunpack.c.l.b16 %v4784
    %v4801 = vunpack.c.l.b16 %v4785
    %v4802 = vunpack.c.l.b16 %v4786
    %v4803 = vunpack.c.l.b16 %v4787
    %v4804 = vpack.c.b16 %v4797, %v4796
    %v4805 = vpack.c.b16 %v4799, %v4798
    %v4806 = vpack.c.b16 %v4801, %v4800
    %v4807 = vpack.c.b16 %v4803, %v4802
    %v4809 = vsel %vm268, %v4804, 0
    %v4812 = vsel %vm268, %v4805, 0
    %v4815 = vsel %vm268, %v4806, 0
    %v4818 = vsel %vm268, %v4807, 0
    %4820 = vmatprep.subr.bf16.mxu0 0
    %4821 = vmatpush1.bf16.msra.mxu0 %v2489
    %4822 = vmatprep.subr.bf16.mxu0 0
    %4823 = vmatpush1.bf16.msra.mxu0 %v2490
    %4824 = vmatprep.subr.bf16.mxu0 0
    %4825 = vmatpush1.bf16.msra.mxu0 %v2491
    %4826 = vmatprep.subr.bf16.mxu0 0
    %4827 = vmatpush1.bf16.msra.mxu0 %v2492
    %4828 = vmatprep.subr.bf16.mxu0 0
    %4829 = vmatpush1.bf16.msra.mxu0 0
    %4830 = vmatprep.subr.bf16.mxu0 0
    %4831 = vmatpush1.bf16.msra.mxu0 0
    %4832 = vmatprep.subr.bf16.mxu0 0
    %4833 = vmatpush1.bf16.msra.mxu0 0
    %4834 = vmatprep.subr.bf16.mxu0 0
    %4835 = vmatpush1.bf16.msra.mxu0 0
    %4836 = vmatprep.subr.bf16.mxu0 0
    %4837 = vmatpush1.bf16.msra.mxu0 0
    %4838 = vmatprep.subr.bf16.mxu0 0
    %4839 = vmatpush1.bf16.msra.mxu0 0
    %4840 = vmatprep.subr.bf16.mxu0 0
    %4841 = vmatpush1.bf16.msra.mxu0 0
    %4842 = vmatprep.subr.bf16.mxu0 0
    %4843 = vmatpush1.bf16.msra.mxu0 0
    %4844 = vmatprep.subr.bf16.mxu0 0
    %4845 = vmatpush1.bf16.msra.mxu0 0
    %4846 = vmatprep.subr.bf16.mxu0 0
    %4847 = vmatpush1.bf16.msra.mxu0 0
    %4848 = vmatprep.subr.bf16.mxu0 0
    %4849 = vmatpush1.bf16.msra.mxu0 0
    %4850 = vmatprep.subr.bf16.mxu0 0
    %4851 = vmatpush1.bf16.msra.mxu0 0
    %4852 = vmatprep.mubr.bf16.mxu0 0
    %4853 = vmatmul.mubr.bf16.gmra.mrb[0].mxu0 %v4809
    %v4854 = vpop.f32.mrb[0].mxu0
    %v4855 = vadd.f32 0.0, %v4854
    %v4856 = vpop.f32.mrb[0].mxu0
    %v4857 = vpop.f32.mrb[0].mxu0
    %v4858 = vadd.f32 0.0, %v4857
    %v4859 = vpop.f32.mrb[0].mxu0
    %4860 = vmatprep.mubr.bf16.mxu0 0
    %4861 = vmatmul.mubr.bf16.gmra.mrb[0].mxu0 %v4812
    %v4862 = vpop.f32.mrb[0].mxu0
    %v4863 = vadd.f32 0.0, %v4862
    %v4864 = vpop.f32.mrb[0].mxu0
    %v4865 = vpop.f32.mrb[0].mxu0
    %v4866 = vadd.f32 0.0, %v4865
    %v4867 = vpop.f32.mrb[0].mxu0
    %4868 = vmatprep.mubr.bf16.mxu0 0
    %4869 = vmatmul.mubr.bf16.gmra.mrb[0].mxu0 %v4815
    %v4870 = vpop.f32.mrb[0].mxu0
    %v4871 = vadd.f32 0.0, %v4870
    %v4872 = vpop.f32.mrb[0].mxu0
    %v4873 = vpop.f32.mrb[0].mxu0
    %v4874 = vadd.f32 0.0, %v4873
    %v4875 = vpop.f32.mrb[0].mxu0
    %4876 = vmatprep.mubr.bf16.mxu0 0
    %4877 = vmatmul.mubr.bf16.gmra.mrb[0].mxu0 %v4818
    %v4878 = vpop.f32.mrb[0].mxu0
    %v4879 = vadd.f32 0.0, %v4878
    %v4880 = vpop.f32.mrb[0].mxu0
    %v4881 = vpop.f32.mrb[0].mxu0
    %v4882 = vadd.f32 0.0, %v4881
    %v4883 = vpop.f32.mrb[0].mxu0
    %4884 = vdwg.mxu0
    %v4885 = vlaneseq
    %v4886 = vshrl.u32 %v4885, 7
    %v4887 = vsub.s32 0, %v4886
    %v4888 = vrot.slane %v4778, %v4887
    %v4889 = vmul.f32 %v4855, %v4888
    %v4890 = vmul.f32 %v4858, %v4888
    %v4891 = vmul.f32 %v4863, %v4888
    %v4892 = vmul.f32 %v4866, %v4888
    %v4893 = vmul.f32 %v4871, %v4888
    %v4894 = vmul.f32 %v4874, %v4888
    %v4895 = vmul.f32 %v4879, %v4888
    %v4896 = vmul.f32 %v4882, %v4888
    %v4897 = vadd.f32 %v4770, %v4889
    %v4898 = vadd.f32 %v4771, %v4890
    %v4899 = vadd.f32 %v4772, %v4891
    %v4900 = vadd.f32 %v4773, %v4892
    %v4901 = vadd.f32 %v4774, %v4893
    %v4902 = vadd.f32 %v4775, %v4894
    %v4903 = vadd.f32 %v4776, %v4895
    %v4904 = vadd.f32 %v4777, %v4896
    %v4905 = vld [vmem:[%s7 + $0x33] sm:$0x1]
    %s4906 = scalar_lea.vmem [#allocation5], 608
    %v4907 = vld [vmem:[%s4906] sm:$0xf]
    %v4908 = vld [vmem:[%s4906 + $0x4] sm:$0xf]
    %v4909 = vld [vmem:[%s4906 + $0x8] sm:$0xf]
    %v4910 = vld [vmem:[%s4906 + $0xc] sm:$0xf]
    %v4911 = vld [vmem:[%s4906 + $0x10] sm:$0xf]
    %v4912 = vld [vmem:[%s4906 + $0x14] sm:$0xf]
    %v4913 = vld [vmem:[%s4906 + $0x18] sm:$0xf]
    %v4914 = vld [vmem:[%s4906 + $0x1c] sm:$0xf]
    %v4923 = vunpack.c.l.b16 %v4907
    %v4924 = vunpack.c.l.b16 %v4908
    %v4925 = vunpack.c.l.b16 %v4909
    %v4926 = vunpack.c.l.b16 %v4910
    %v4927 = vunpack.c.l.b16 %v4911
    %v4928 = vunpack.c.l.b16 %v4912
    %v4929 = vunpack.c.l.b16 %v4913
    %v4930 = vunpack.c.l.b16 %v4914
    %v4931 = vpack.c.b16 %v4924, %v4923
    %v4932 = vpack.c.b16 %v4926, %v4925
    %v4933 = vpack.c.b16 %v4928, %v4927
    %v4934 = vpack.c.b16 %v4930, %v4929
    %v4936 = vsel %vm268, %v4931, 0
    %v4939 = vsel %vm268, %v4932, 0
    %v4942 = vsel %vm268, %v4933, 0
    %v4945 = vsel %vm268, %v4934, 0
    %4947 = vmatprep.subr.bf16.mxu0 0
    %4948 = vmatpush1.bf16.msra.mxu0 %v2489
    %4949 = vmatprep.subr.bf16.mxu0 0
    %4950 = vmatpush1.bf16.msra.mxu0 %v2490
    %4951 = vmatprep.subr.bf16.mxu0 0
    %4952 = vmatpush1.bf16.msra.mxu0 %v2491
    %4953 = vmatprep.subr.bf16.mxu0 0
    %4954 = vmatpush1.bf16.msra.mxu0 %v2492
    %4955 = vmatprep.subr.bf16.mxu0 0
    %4956 = vmatpush1.bf16.msra.mxu0 0
    %4957 = vmatprep.subr.bf16.mxu0 0
    %4958 = vmatpush1.bf16.msra.mxu0 0
    %4959 = vmatprep.subr.bf16.mxu0 0
    %4960 = vmatpush1.bf16.msra.mxu0 0
    %4961 = vmatprep.subr.bf16.mxu0 0
    %4962 = vmatpush1.bf16.msra.mxu0 0
    %4963 = vmatprep.subr.bf16.mxu0 0
    %4964 = vmatpush1.bf16.msra.mxu0 0
    %4965 = vmatprep.subr.bf16.mxu0 0
    %4966 = vmatpush1.bf16.msra.mxu0 0
    %4967 = vmatprep.subr.bf16.mxu0 0
    %4968 = vmatpush1.bf16.msra.mxu0 0
    %4969 = vmatprep.subr.bf16.mxu0 0
    %4970 = vmatpush1.bf16.msra.mxu0 0
    %4971 = vmatprep.subr.bf16.mxu0 0
    %4972 = vmatpush1.bf16.msra.mxu0 0
    %4973 = vmatprep.subr.bf16.mxu0 0
    %4974 = vmatpush1.bf16.msra.mxu0 0
    %4975 = vmatprep.subr.bf16.mxu0 0
    %4976 = vmatpush1.bf16.msra.mxu0 0
    %4977 = vmatprep.subr.bf16.mxu0 0
    %4978 = vmatpush1.bf16.msra.mxu0 0
    %4979 = vmatprep.mubr.bf16.mxu0 0
    %4980 = vmatmul.mubr.bf16.gmra.mrb[0].mxu0 %v4936
    %v4981 = vpop.f32.mrb[0].mxu0
    %v4982 = vadd.f32 0.0, %v4981
    %v4983 = vpop.f32.mrb[0].mxu0
    %v4984 = vpop.f32.mrb[0].mxu0
    %v4985 = vadd.f32 0.0, %v4984
    %v4986 = vpop.f32.mrb[0].mxu0
    %4987 = vmatprep.mubr.bf16.mxu0 0
    %4988 = vmatmul.mubr.bf16.gmra.mrb[0].mxu0 %v4939
    %v4989 = vpop.f32.mrb[0].mxu0
    %v4990 = vadd.f32 0.0, %v4989
    %v4991 = vpop.f32.mrb[0].mxu0
    %v4992 = vpop.f32.mrb[0].mxu0
    %v4993 = vadd.f32 0.0, %v4992
    %v4994 = vpop.f32.mrb[0].mxu0
    %4995 = vmatprep.mubr.bf16.mxu0 0
    %4996 = vmatmul.mubr.bf16.gmra.mrb[0].mxu0 %v4942
    %v4997 = vpop.f32.mrb[0].mxu0
    %v4998 = vadd.f32 0.0, %v4997
    %v4999 = vpop.f32.mrb[0].mxu0
    %v5000 = vpop.f32.mrb[0].mxu0
    %v5001 = vadd.f32 0.0, %v5000
    %v5002 = vpop.f32.mrb[0].mxu0
    %5003 = vmatprep.mubr.bf16.mxu0 0
    %5004 = vmatmul.mubr.bf16.gmra.mrb[0].mxu0 %v4945
    %v5005 = vpop.f32.mrb[0].mxu0
    %v5006 = vadd.f32 0.0, %v5005
    %v5007 = vpop.f32.mrb[0].mxu0
    %v5008 = vpop.f32.mrb[0].mxu0
    %v5009 = vadd.f32 0.0, %v5008
    %v5010 = vpop.f32.mrb[0].mxu0
    %5011 = vdwg.mxu0
    %v5012 = vlaneseq
    %v5013 = vshrl.u32 %v5012, 7
    %v5014 = vsub.s32 0, %v5013
    %v5015 = vrot.slane %v4905, %v5014
    %v5016 = vmul.f32 %v4982, %v5015
    %v5017 = vmul.f32 %v4985, %v5015
    %v5018 = vmul.f32 %v4990, %v5015
    %v5019 = vmul.f32 %v4993, %v5015
    %v5020 = vmul.f32 %v4998, %v5015
    %v5021 = vmul.f32 %v5001, %v5015
    %v5022 = vmul.f32 %v5006, %v5015
    %v5023 = vmul.f32 %v5009, %v5015
    %v5024 = vadd.f32 %v4897, %v5016
    %v5025 = vadd.f32 %v4898, %v5017
    %v5026 = vadd.f32 %v4899, %v5018
    %v5027 = vadd.f32 %v4900, %v5019
    %v5028 = vadd.f32 %v4901, %v5020
    %v5029 = vadd.f32 %v4902, %v5021
    %v5030 = vadd.f32 %v4903, %v5022
    %v5031 = vadd.f32 %v4904, %v5023
    %v5032 = vld [vmem:[%s7 + $0x34] sm:$0x1]
    %s5033 = scalar_lea.vmem [#allocation5], 640
    %v5034 = vld [vmem:[%s5033] sm:$0xf]
    %v5035 = vld [vmem:[%s5033 + $0x4] sm:$0xf]
    %v5036 = vld [vmem:[%s5033 + $0x8] sm:$0xf]
    %v5037 = vld [vmem:[%s5033 + $0xc] sm:$0xf]
    %v5038 = vld [vmem:[%s5033 + $0x10] sm:$0xf]
    %v5039 = vld [vmem:[%s5033 + $0x14] sm:$0xf]
    %v5040 = vld [vmem:[%s5033 + $0x18] sm:$0xf]
    %v5041 = vld [vmem:[%s5033 + $0x1c] sm:$0xf]
    %v5050 = vunpack.c.l.b16 %v5034
    %v5051 = vunpack.c.l.b16 %v5035
    %v5052 = vunpack.c.l.b16 %v5036
    %v5053 = vunpack.c.l.b16 %v5037
    %v5054 = vunpack.c.l.b16 %v5038
    %v5055 = vunpack.c.l.b16 %v5039
    %v5056 = vunpack.c.l.b16 %v5040
    %v5057 = vunpack.c.l.b16 %v5041
    %v5058 = vpack.c.b16 %v5051, %v5050
    %v5059 = vpack.c.b16 %v5053, %v5052
    %v5060 = vpack.c.b16 %v5055, %v5054
    %v5061 = vpack.c.b16 %v5057, %v5056
    %v5063 = vsel %vm268, %v5058, 0
    %v5066 = vsel %vm268, %v5059, 0
    %v5069 = vsel %vm268, %v5060, 0
    %v5072 = vsel %vm268, %v5061, 0
    %5074 = vmatprep.subr.bf16.mxu0 0
    %5075 = vmatpush1.bf16.msra.mxu0 %v2489
    %5076 = vmatprep.subr.bf16.mxu0 0
    %5077 = vmatpush1.bf16.msra.mxu0 %v2490
    %5078 = vmatprep.subr.bf16.mxu0 0
    %5079 = vmatpush1.bf16.msra.mxu0 %v2491
    %5080 = vmatprep.subr.bf16.mxu0 0
    %5081 = vmatpush1.bf16.msra.mxu0 %v2492
    %5082 = vmatprep.subr.bf16.mxu0 0
    %5083 = vmatpush1.bf16.msra.mxu0 0
    %5084 = vmatprep.subr.bf16.mxu0 0
    %5085 = vmatpush1.bf16.msra.mxu0 0
    %5086 = vmatprep.subr.bf16.mxu0 0
    %5087 = vmatpush1.bf16.msra.mxu0 0
    %5088 = vmatprep.subr.bf16.mxu0 0
    %5089 = vmatpush1.bf16.msra.mxu0 0
    %5090 = vmatprep.subr.bf16.mxu0 0
    %5091 = vmatpush1.bf16.msra.mxu0 0
    %5092 = vmatprep.subr.bf16.mxu0 0
    %5093 = vmatpush1.bf16.msra.mxu0 0
    %5094 = vmatprep.subr.bf16.mxu0 0
    %5095 = vmatpush1.bf16.msra.mxu0 0
    %5096 = vmatprep.subr.bf16.mxu0 0
    %5097 = vmatpush1.bf16.msra.mxu0 0
    %5098 = vmatprep.subr.bf16.mxu0 0
    %5099 = vmatpush1.bf16.msra.mxu0 0
    %5100 = vmatprep.subr.bf16.mxu0 0
    %5101 = vmatpush1.bf16.msra.mxu0 0
    %5102 = vmatprep.subr.bf16.mxu0 0
    %5103 = vmatpush1.bf16.msra.mxu0 0
    %5104 = vmatprep.subr.bf16.mxu0 0
    %5105 = vmatpush1.bf16.msra.mxu0 0
    %5106 = vmatprep.mubr.bf16.mxu0 0
    %5107 = vmatmul.mubr.bf16.gmra.mrb[0].mxu0 %v5063
    %v5108 = vpop.f32.mrb[0].mxu0
    %v5109 = vadd.f32 0.0, %v5108
    %v5110 = vpop.f32.mrb[0].mxu0
    %v5111 = vpop.f32.mrb[0].mxu0
    %v5112 = vadd.f32 0.0, %v5111
    %v5113 = vpop.f32.mrb[0].mxu0
    %5114 = vmatprep.mubr.bf16.mxu0 0
    %5115 = vmatmul.mubr.bf16.gmra.mrb[0].mxu0 %v5066
    %v5116 = vpop.f32.mrb[0].mxu0
    %v5117 = vadd.f32 0.0, %v5116
    %v5118 = vpop.f32.mrb[0].mxu0
    %v5119 = vpop.f32.mrb[0].mxu0
    %v5120 = vadd.f32 0.0, %v5119
    %v5121 = vpop.f32.mrb[0].mxu0
    %5122 = vmatprep.mubr.bf16.mxu0 0
    %5123 = vmatmul.mubr.bf16.gmra.mrb[0].mxu0 %v5069
    %v5124 = vpop.f32.mrb[0].mxu0
    %v5125 = vadd.f32 0.0, %v5124
    %v5126 = vpop.f32.mrb[0].mxu0
    %v5127 = vpop.f32.mrb[0].mxu0
    %v5128 = vadd.f32 0.0, %v5127
    %v5129 = vpop.f32.mrb[0].mxu0
    %5130 = vmatprep.mubr.bf16.mxu0 0
    %5131 = vmatmul.mubr.bf16.gmra.mrb[0].mxu0 %v5072
    %v5132 = vpop.f32.mrb[0].mxu0
    %v5133 = vadd.f32 0.0, %v5132
    %v5134 = vpop.f32.mrb[0].mxu0
    %v5135 = vpop.f32.mrb[0].mxu0
    %v5136 = vadd.f32 0.0, %v5135
    %v5137 = vpop.f32.mrb[0].mxu0
    %5138 = vdwg.mxu0
    %v5139 = vlaneseq
    %v5140 = vshrl.u32 %v5139, 7
    %v5141 = vsub.s32 0, %v5140
    %v5142 = vrot.slane %v5032, %v5141
    %v5143 = vmul.f32 %v5109, %v5142
    %v5144 = vmul.f32 %v5112, %v5142
    %v5145 = vmul.f32 %v5117, %v5142
    %v5146 = vmul.f32 %v5120, %v5142
    %v5147 = vmul.f32 %v5125, %v5142
    %v5148 = vmul.f32 %v5128, %v5142
    %v5149 = vmul.f32 %v5133, %v5142
    %v5150 = vmul.f32 %v5136, %v5142
    %v5151 = vadd.f32 %v5024, %v5143
    %v5152 = vadd.f32 %v5025, %v5144
    %v5153 = vadd.f32 %v5026, %v5145
    %v5154 = vadd.f32 %v5027, %v5146
    %v5155 = vadd.f32 %v5028, %v5147
    %v5156 = vadd.f32 %v5029, %v5148
    %v5157 = vadd.f32 %v5030, %v5149
    %v5158 = vadd.f32 %v5031, %v5150
    %v5159 = vld [vmem:[%s7 + $0x35] sm:$0x1]
    %s5160 = scalar_lea.vmem [#allocation5], 672
    %v5161 = vld [vmem:[%s5160] sm:$0xf]
    %v5162 = vld [vmem:[%s5160 + $0x4] sm:$0xf]
    %v5163 = vld [vmem:[%s5160 + $0x8] sm:$0xf]
    %v5164 = vld [vmem:[%s5160 + $0xc] sm:$0xf]
    %v5165 = vld [vmem:[%s5160 + $0x10] sm:$0xf]
    %v5166 = vld [vmem:[%s5160 + $0x14] sm:$0xf]
    %v5167 = vld [vmem:[%s5160 + $0x18] sm:$0xf]
    %v5168 = vld [vmem:[%s5160 + $0x1c] sm:$0xf]
    %v5177 = vunpack.c.l.b16 %v5161
    %v5178 = vunpack.c.l.b16 %v5162
    %v5179 = vunpack.c.l.b16 %v5163
    %v5180 = vunpack.c.l.b16 %v5164
    %v5181 = vunpack.c.l.b16 %v5165
    %v5182 = vunpack.c.l.b16 %v5166
    %v5183 = vunpack.c.l.b16 %v5167
    %v5184 = vunpack.c.l.b16 %v5168
    %v5185 = vpack.c.b16 %v5178, %v5177
    %v5186 = vpack.c.b16 %v5180, %v5179
    %v5187 = vpack.c.b16 %v5182, %v5181
    %v5188 = vpack.c.b16 %v5184, %v5183
    %v5190 = vsel %vm268, %v5185, 0
    %v5193 = vsel %vm268, %v5186, 0
    %v5196 = vsel %vm268, %v5187, 0
    %v5199 = vsel %vm268, %v5188, 0
    %5201 = vmatprep.subr.bf16.mxu0 0
    %5202 = vmatpush1.bf16.msra.mxu0 %v2489
    %5203 = vmatprep.subr.bf16.mxu0 0
    %5204 = vmatpush1.bf16.msra.mxu0 %v2490
    %5205 = vmatprep.subr.bf16.mxu0 0
    %5206 = vmatpush1.bf16.msra.mxu0 %v2491
    %5207 = vmatprep.subr.bf16.mxu0 0
    %5208 = vmatpush1.bf16.msra.mxu0 %v2492
    %5209 = vmatprep.subr.bf16.mxu0 0
    %5210 = vmatpush1.bf16.msra.mxu0 0
    %5211 = vmatprep.subr.bf16.mxu0 0
    %5212 = vmatpush1.bf16.msra.mxu0 0
    %5213 = vmatprep.subr.bf16.mxu0 0
    %5214 = vmatpush1.bf16.msra.mxu0 0
    %5215 = vmatprep.subr.bf16.mxu0 0
    %5216 = vmatpush1.bf16.msra.mxu0 0
    %5217 = vmatprep.subr.bf16.mxu0 0
    %5218 = vmatpush1.bf16.msra.mxu0 0
    %5219 = vmatprep.subr.bf16.mxu0 0
    %5220 = vmatpush1.bf16.msra.mxu0 0
    %5221 = vmatprep.subr.bf16.mxu0 0
    %5222 = vmatpush1.bf16.msra.mxu0 0
    %5223 = vmatprep.subr.bf16.mxu0 0
    %5224 = vmatpush1.bf16.msra.mxu0 0
    %5225 = vmatprep.subr.bf16.mxu0 0
    %5226 = vmatpush1.bf16.msra.mxu0 0
    %5227 = vmatprep.subr.bf16.mxu0 0
    %5228 = vmatpush1.bf16.msra.mxu0 0
    %5229 = vmatprep.subr.bf16.mxu0 0
    %5230 = vmatpush1.bf16.msra.mxu0 0
    %5231 = vmatprep.subr.bf16.mxu0 0
    %5232 = vmatpush1.bf16.msra.mxu0 0
    %5233 = vmatprep.mubr.bf16.mxu0 0
    %5234 = vmatmul.mubr.bf16.gmra.mrb[0].mxu0 %v5190
    %v5235 = vpop.f32.mrb[0].mxu0
    %v5236 = vadd.f32 0.0, %v5235
    %v5237 = vpop.f32.mrb[0].mxu0
    %v5238 = vpop.f32.mrb[0].mxu0
    %v5239 = vadd.f32 0.0, %v5238
    %v5240 = vpop.f32.mrb[0].mxu0
    %5241 = vmatprep.mubr.bf16.mxu0 0
    %5242 = vmatmul.mubr.bf16.gmra.mrb[0].mxu0 %v5193
    %v5243 = vpop.f32.mrb[0].mxu0
    %v5244 = vadd.f32 0.0, %v5243
    %v5245 = vpop.f32.mrb[0].mxu0
    %v5246 = vpop.f32.mrb[0].mxu0
    %v5247 = vadd.f32 0.0, %v5246
    %v5248 = vpop.f32.mrb[0].mxu0
    %5249 = vmatprep.mubr.bf16.mxu0 0
    %5250 = vmatmul.mubr.bf16.gmra.mrb[0].mxu0 %v5196
    %v5251 = vpop.f32.mrb[0].mxu0
    %v5252 = vadd.f32 0.0, %v5251
    %v5253 = vpop.f32.mrb[0].mxu0
    %v5254 = vpop.f32.mrb[0].mxu0
    %v5255 = vadd.f32 0.0, %v5254
    %v5256 = vpop.f32.mrb[0].mxu0
    %5257 = vmatprep.mubr.bf16.mxu0 0
    %5258 = vmatmul.mubr.bf16.gmra.mrb[0].mxu0 %v5199
    %v5259 = vpop.f32.mrb[0].mxu0
    %v5260 = vadd.f32 0.0, %v5259
    %v5261 = vpop.f32.mrb[0].mxu0
    %v5262 = vpop.f32.mrb[0].mxu0
    %v5263 = vadd.f32 0.0, %v5262
    %v5264 = vpop.f32.mrb[0].mxu0
    %5265 = vdwg.mxu0
    %v5266 = vlaneseq
    %v5267 = vshrl.u32 %v5266, 7
    %v5268 = vsub.s32 0, %v5267
    %v5269 = vrot.slane %v5159, %v5268
    %v5270 = vmul.f32 %v5236, %v5269
    %v5271 = vmul.f32 %v5239, %v5269
    %v5272 = vmul.f32 %v5244, %v5269
    %v5273 = vmul.f32 %v5247, %v5269
    %v5274 = vmul.f32 %v5252, %v5269
    %v5275 = vmul.f32 %v5255, %v5269
    %v5276 = vmul.f32 %v5260, %v5269
    %v5277 = vmul.f32 %v5263, %v5269
    %v5278 = vadd.f32 %v5151, %v5270
    %v5279 = vadd.f32 %v5152, %v5271
    %v5280 = vadd.f32 %v5153, %v5272
    %v5281 = vadd.f32 %v5154, %v5273
    %v5282 = vadd.f32 %v5155, %v5274
    %v5283 = vadd.f32 %v5156, %v5275
    %v5284 = vadd.f32 %v5157, %v5276
    %v5285 = vadd.f32 %v5158, %v5277
    %v5286 = vld [vmem:[%s7 + $0x36] sm:$0x1]
    %s5287 = scalar_lea.vmem [#allocation5], 704
    %v5288 = vld [vmem:[%s5287] sm:$0xf]
    %v5289 = vld [vmem:[%s5287 + $0x4] sm:$0xf]
    %v5290 = vld [vmem:[%s5287 + $0x8] sm:$0xf]
    %v5291 = vld [vmem:[%s5287 + $0xc] sm:$0xf]
    %v5292 = vld [vmem:[%s5287 + $0x10] sm:$0xf]
    %v5293 = vld [vmem:[%s5287 + $0x14] sm:$0xf]
    %v5294 = vld [vmem:[%s5287 + $0x18] sm:$0xf]
    %v5295 = vld [vmem:[%s5287 + $0x1c] sm:$0xf]
    %v5304 = vunpack.c.l.b16 %v5288
    %v5305 = vunpack.c.l.b16 %v5289
    %v5306 = vunpack.c.l.b16 %v5290
    %v5307 = vunpack.c.l.b16 %v5291
    %v5308 = vunpack.c.l.b16 %v5292
    %v5309 = vunpack.c.l.b16 %v5293
    %v5310 = vunpack.c.l.b16 %v5294
    %v5311 = vunpack.c.l.b16 %v5295
    %v5312 = vpack.c.b16 %v5305, %v5304
    %v5313 = vpack.c.b16 %v5307, %v5306
    %v5314 = vpack.c.b16 %v5309, %v5308
    %v5315 = vpack.c.b16 %v5311, %v5310
    %v5317 = vsel %vm268, %v5312, 0
    %v5320 = vsel %vm268, %v5313, 0
    %v5323 = vsel %vm268, %v5314, 0
    %v5326 = vsel %vm268, %v5315, 0
    %5328 = vmatprep.subr.bf16.mxu0 0
    %5329 = vmatpush1.bf16.msra.mxu0 %v2489
    %5330 = vmatprep.subr.bf16.mxu0 0
    %5331 = vmatpush1.bf16.msra.mxu0 %v2490
    %5332 = vmatprep.subr.bf16.mxu0 0
    %5333 = vmatpush1.bf16.msra.mxu0 %v2491
    %5334 = vmatprep.subr.bf16.mxu0 0
    %5335 = vmatpush1.bf16.msra.mxu0 %v2492
    %5336 = vmatprep.subr.bf16.mxu0 0
    %5337 = vmatpush1.bf16.msra.mxu0 0
    %5338 = vmatprep.subr.bf16.mxu0 0
    %5339 = vmatpush1.bf16.msra.mxu0 0
    %5340 = vmatprep.subr.bf16.mxu0 0
    %5341 = vmatpush1.bf16.msra.mxu0 0
    %5342 = vmatprep.subr.bf16.mxu0 0
    %5343 = vmatpush1.bf16.msra.mxu0 0
    %5344 = vmatprep.subr.bf16.mxu0 0
    %5345 = vmatpush1.bf16.msra.mxu0 0
    %5346 = vmatprep.subr.bf16.mxu0 0
    %5347 = vmatpush1.bf16.msra.mxu0 0
    %5348 = vmatprep.subr.bf16.mxu0 0
    %5349 = vmatpush1.bf16.msra.mxu0 0
    %5350 = vmatprep.subr.bf16.mxu0 0
    %5351 = vmatpush1.bf16.msra.mxu0 0
    %5352 = vmatprep.subr.bf16.mxu0 0
    %5353 = vmatpush1.bf16.msra.mxu0 0
    %5354 = vmatprep.subr.bf16.mxu0 0
    %5355 = vmatpush1.bf16.msra.mxu0 0
    %5356 = vmatprep.subr.bf16.mxu0 0
    %5357 = vmatpush1.bf16.msra.mxu0 0
    %5358 = vmatprep.subr.bf16.mxu0 0
    %5359 = vmatpush1.bf16.msra.mxu0 0
    %5360 = vmatprep.mubr.bf16.mxu0 0
    %5361 = vmatmul.mubr.bf16.gmra.mrb[0].mxu0 %v5317
    %v5362 = vpop.f32.mrb[0].mxu0
    %v5363 = vadd.f32 0.0, %v5362
    %v5364 = vpop.f32.mrb[0].mxu0
    %v5365 = vpop.f32.mrb[0].mxu0
    %v5366 = vadd.f32 0.0, %v5365
    %v5367 = vpop.f32.mrb[0].mxu0
    %5368 = vmatprep.mubr.bf16.mxu0 0
    %5369 = vmatmul.mubr.bf16.gmra.mrb[0].mxu0 %v5320
    %v5370 = vpop.f32.mrb[0].mxu0
    %v5371 = vadd.f32 0.0, %v5370
    %v5372 = vpop.f32.mrb[0].mxu0
    %v5373 = vpop.f32.mrb[0].mxu0
    %v5374 = vadd.f32 0.0, %v5373
    %v5375 = vpop.f32.mrb[0].mxu0
    %5376 = vmatprep.mubr.bf16.mxu0 0
    %5377 = vmatmul.mubr.bf16.gmra.mrb[0].mxu0 %v5323
    %v5378 = vpop.f32.mrb[0].mxu0
    %v5379 = vadd.f32 0.0, %v5378
    %v5380 = vpop.f32.mrb[0].mxu0
    %v5381 = vpop.f32.mrb[0].mxu0
    %v5382 = vadd.f32 0.0, %v5381
    %v5383 = vpop.f32.mrb[0].mxu0
    %5384 = vmatprep.mubr.bf16.mxu0 0
    %5385 = vmatmul.mubr.bf16.gmra.mrb[0].mxu0 %v5326
    %v5386 = vpop.f32.mrb[0].mxu0
    %v5387 = vadd.f32 0.0, %v5386
    %v5388 = vpop.f32.mrb[0].mxu0
    %v5389 = vpop.f32.mrb[0].mxu0
    %v5390 = vadd.f32 0.0, %v5389
    %v5391 = vpop.f32.mrb[0].mxu0
    %5392 = vdwg.mxu0
    %v5393 = vlaneseq
    %v5394 = vshrl.u32 %v5393, 7
    %v5395 = vsub.s32 0, %v5394
    %v5396 = vrot.slane %v5286, %v5395
    %v5397 = vmul.f32 %v5363, %v5396
    %v5398 = vmul.f32 %v5366, %v5396
    %v5399 = vmul.f32 %v5371, %v5396
    %v5400 = vmul.f32 %v5374, %v5396
    %v5401 = vmul.f32 %v5379, %v5396
    %v5402 = vmul.f32 %v5382, %v5396
    %v5403 = vmul.f32 %v5387, %v5396
    %v5404 = vmul.f32 %v5390, %v5396
    %v5405 = vadd.f32 %v5278, %v5397
    %v5406 = vadd.f32 %v5279, %v5398
    %v5407 = vadd.f32 %v5280, %v5399
    %v5408 = vadd.f32 %v5281, %v5400
    %v5409 = vadd.f32 %v5282, %v5401
    %v5410 = vadd.f32 %v5283, %v5402
    %v5411 = vadd.f32 %v5284, %v5403
    %v5412 = vadd.f32 %v5285, %v5404
    %v5413 = vld [vmem:[%s7 + $0x37] sm:$0x1]
    %s5414 = scalar_lea.vmem [#allocation5], 736
    %v5415 = vld [vmem:[%s5414] sm:$0xf]
    %v5416 = vld [vmem:[%s5414 + $0x4] sm:$0xf]
    %v5417 = vld [vmem:[%s5414 + $0x8] sm:$0xf]
    %v5418 = vld [vmem:[%s5414 + $0xc] sm:$0xf]
    %v5419 = vld [vmem:[%s5414 + $0x10] sm:$0xf]
    %v5420 = vld [vmem:[%s5414 + $0x14] sm:$0xf]
    %v5421 = vld [vmem:[%s5414 + $0x18] sm:$0xf]
    %v5422 = vld [vmem:[%s5414 + $0x1c] sm:$0xf]
    %v5431 = vunpack.c.l.b16 %v5415
    %v5432 = vunpack.c.l.b16 %v5416
    %v5433 = vunpack.c.l.b16 %v5417
    %v5434 = vunpack.c.l.b16 %v5418
    %v5435 = vunpack.c.l.b16 %v5419
    %v5436 = vunpack.c.l.b16 %v5420
    %v5437 = vunpack.c.l.b16 %v5421
    %v5438 = vunpack.c.l.b16 %v5422
    %v5439 = vpack.c.b16 %v5432, %v5431
    %v5440 = vpack.c.b16 %v5434, %v5433
    %v5441 = vpack.c.b16 %v5436, %v5435
    %v5442 = vpack.c.b16 %v5438, %v5437
    %v5444 = vsel %vm268, %v5439, 0
    %v5447 = vsel %vm268, %v5440, 0
    %v5450 = vsel %vm268, %v5441, 0
    %v5453 = vsel %vm268, %v5442, 0
    %5455 = vmatprep.subr.bf16.mxu0 0
    %5456 = vmatpush1.bf16.msra.mxu0 %v2489
    %5457 = vmatprep.subr.bf16.mxu0 0
    %5458 = vmatpush1.bf16.msra.mxu0 %v2490
    %5459 = vmatprep.subr.bf16.mxu0 0
    %5460 = vmatpush1.bf16.msra.mxu0 %v2491
    %5461 = vmatprep.subr.bf16.mxu0 0
    %5462 = vmatpush1.bf16.msra.mxu0 %v2492
    %5463 = vmatprep.subr.bf16.mxu0 0
    %5464 = vmatpush1.bf16.msra.mxu0 0
    %5465 = vmatprep.subr.bf16.mxu0 0
    %5466 = vmatpush1.bf16.msra.mxu0 0
    %5467 = vmatprep.subr.bf16.mxu0 0
    %5468 = vmatpush1.bf16.msra.mxu0 0
    %5469 = vmatprep.subr.bf16.mxu0 0
    %5470 = vmatpush1.bf16.msra.mxu0 0
    %5471 = vmatprep.subr.bf16.mxu0 0
    %5472 = vmatpush1.bf16.msra.mxu0 0
    %5473 = vmatprep.subr.bf16.mxu0 0
    %5474 = vmatpush1.bf16.msra.mxu0 0
    %5475 = vmatprep.subr.bf16.mxu0 0
    %5476 = vmatpush1.bf16.msra.mxu0 0
    %5477 = vmatprep.subr.bf16.mxu0 0
    %5478 = vmatpush1.bf16.msra.mxu0 0
    %5479 = vmatprep.subr.bf16.mxu0 0
    %5480 = vmatpush1.bf16.msra.mxu0 0
    %5481 = vmatprep.subr.bf16.mxu0 0
    %5482 = vmatpush1.bf16.msra.mxu0 0
    %5483 = vmatprep.subr.bf16.mxu0 0
    %5484 = vmatpush1.bf16.msra.mxu0 0
    %5485 = vmatprep.subr.bf16.mxu0 0
    %5486 = vmatpush1.bf16.msra.mxu0 0
    %5487 = vmatprep.mubr.bf16.mxu0 0
    %5488 = vmatmul.mubr.bf16.gmra.mrb[0].mxu0 %v5444
    %v5489 = vpop.f32.mrb[0].mxu0
    %v5490 = vadd.f32 0.0, %v5489
    %v5491 = vpop.f32.mrb[0].mxu0
    %v5492 = vpop.f32.mrb[0].mxu0
    %v5493 = vadd.f32 0.0, %v5492
    %v5494 = vpop.f32.mrb[0].mxu0
    %5495 = vmatprep.mubr.bf16.mxu0 0
    %5496 = vmatmul.mubr.bf16.gmra.mrb[0].mxu0 %v5447
    %v5497 = vpop.f32.mrb[0].mxu0
    %v5498 = vadd.f32 0.0, %v5497
    %v5499 = vpop.f32.mrb[0].mxu0
    %v5500 = vpop.f32.mrb[0].mxu0
    %v5501 = vadd.f32 0.0, %v5500
    %v5502 = vpop.f32.mrb[0].mxu0
    %5503 = vmatprep.mubr.bf16.mxu0 0
    %5504 = vmatmul.mubr.bf16.gmra.mrb[0].mxu0 %v5450
    %v5505 = vpop.f32.mrb[0].mxu0
    %v5506 = vadd.f32 0.0, %v5505
    %v5507 = vpop.f32.mrb[0].mxu0
    %v5508 = vpop.f32.mrb[0].mxu0
    %v5509 = vadd.f32 0.0, %v5508
    %v5510 = vpop.f32.mrb[0].mxu0
    %5511 = vmatprep.mubr.bf16.mxu0 0
    %5512 = vmatmul.mubr.bf16.gmra.mrb[0].mxu0 %v5453
    %v5513 = vpop.f32.mrb[0].mxu0
    %v5514 = vadd.f32 0.0, %v5513
    %v5515 = vpop.f32.mrb[0].mxu0
    %v5516 = vpop.f32.mrb[0].mxu0
    %v5517 = vadd.f32 0.0, %v5516
    %v5518 = vpop.f32.mrb[0].mxu0
    %5519 = vdwg.mxu0
    %v5520 = vlaneseq
    %v5521 = vshrl.u32 %v5520, 7
    %v5522 = vsub.s32 0, %v5521
    %v5523 = vrot.slane %v5413, %v5522
    %v5524 = vmul.f32 %v5490, %v5523
    %v5525 = vmul.f32 %v5493, %v5523
    %v5526 = vmul.f32 %v5498, %v5523
    %v5527 = vmul.f32 %v5501, %v5523
    %v5528 = vmul.f32 %v5506, %v5523
    %v5529 = vmul.f32 %v5509, %v5523
    %v5530 = vmul.f32 %v5514, %v5523
    %v5531 = vmul.f32 %v5517, %v5523
    %v5532 = vadd.f32 %v5405, %v5524
    %v5533 = vadd.f32 %v5406, %v5525
    %v5534 = vadd.f32 %v5407, %v5526
    %v5535 = vadd.f32 %v5408, %v5527
    %v5536 = vadd.f32 %v5409, %v5528
    %v5537 = vadd.f32 %v5410, %v5529
    %v5538 = vadd.f32 %v5411, %v5530
    %v5539 = vadd.f32 %v5412, %v5531
    %v5540 = vld [vmem:[%s7 + $0x38] sm:$0x1]
    %s5541 = scalar_lea.vmem [#allocation5], 768
    %v5542 = vld [vmem:[%s5541] sm:$0xf]
    %v5543 = vld [vmem:[%s5541 + $0x4] sm:$0xf]
    %v5544 = vld [vmem:[%s5541 + $0x8] sm:$0xf]
    %v5545 = vld [vmem:[%s5541 + $0xc] sm:$0xf]
    %v5546 = vld [vmem:[%s5541 + $0x10] sm:$0xf]
    %v5547 = vld [vmem:[%s5541 + $0x14] sm:$0xf]
    %v5548 = vld [vmem:[%s5541 + $0x18] sm:$0xf]
    %v5549 = vld [vmem:[%s5541 + $0x1c] sm:$0xf]
    %v5558 = vunpack.c.l.b16 %v5542
    %v5559 = vunpack.c.l.b16 %v5543
    %v5560 = vunpack.c.l.b16 %v5544
    %v5561 = vunpack.c.l.b16 %v5545
    %v5562 = vunpack.c.l.b16 %v5546
    %v5563 = vunpack.c.l.b16 %v5547
    %v5564 = vunpack.c.l.b16 %v5548
    %v5565 = vunpack.c.l.b16 %v5549
    %v5566 = vpack.c.b16 %v5559, %v5558
    %v5567 = vpack.c.b16 %v5561, %v5560
    %v5568 = vpack.c.b16 %v5563, %v5562
    %v5569 = vpack.c.b16 %v5565, %v5564
    %v5571 = vsel %vm268, %v5566, 0
    %v5574 = vsel %vm268, %v5567, 0
    %v5577 = vsel %vm268, %v5568, 0
    %v5580 = vsel %vm268, %v5569, 0
    %5582 = vmatprep.subr.bf16.mxu0 0
    %5583 = vmatpush1.bf16.msra.mxu0 %v2489
    %5584 = vmatprep.subr.bf16.mxu0 0
    %5585 = vmatpush1.bf16.msra.mxu0 %v2490
    %5586 = vmatprep.subr.bf16.mxu0 0
    %5587 = vmatpush1.bf16.msra.mxu0 %v2491
    %5588 = vmatprep.subr.bf16.mxu0 0
    %5589 = vmatpush1.bf16.msra.mxu0 %v2492
    %5590 = vmatprep.subr.bf16.mxu0 0
    %5591 = vmatpush1.bf16.msra.mxu0 0
    %5592 = vmatprep.subr.bf16.mxu0 0
    %5593 = vmatpush1.bf16.msra.mxu0 0
    %5594 = vmatprep.subr.bf16.mxu0 0
    %5595 = vmatpush1.bf16.msra.mxu0 0
    %5596 = vmatprep.subr.bf16.mxu0 0
    %5597 = vmatpush1.bf16.msra.mxu0 0
    %5598 = vmatprep.subr.bf16.mxu0 0
    %5599 = vmatpush1.bf16.msra.mxu0 0
    %5600 = vmatprep.subr.bf16.mxu0 0
    %5601 = vmatpush1.bf16.msra.mxu0 0
    %5602 = vmatprep.subr.bf16.mxu0 0
    %5603 = vmatpush1.bf16.msra.mxu0 0
    %5604 = vmatprep.subr.bf16.mxu0 0
    %5605 = vmatpush1.bf16.msra.mxu0 0
    %5606 = vmatprep.subr.bf16.mxu0 0
    %5607 = vmatpush1.bf16.msra.mxu0 0
    %5608 = vmatprep.subr.bf16.mxu0 0
    %5609 = vmatpush1.bf16.msra.mxu0 0
    %5610 = vmatprep.subr.bf16.mxu0 0
    %5611 = vmatpush1.bf16.msra.mxu0 0
    %5612 = vmatprep.subr.bf16.mxu0 0
    %5613 = vmatpush1.bf16.msra.mxu0 0
    %5614 = vmatprep.mubr.bf16.mxu0 0
    %5615 = vmatmul.mubr.bf16.gmra.mrb[0].mxu0 %v5571
    %v5616 = vpop.f32.mrb[0].mxu0
    %v5617 = vadd.f32 0.0, %v5616
    %v5618 = vpop.f32.mrb[0].mxu0
    %v5619 = vpop.f32.mrb[0].mxu0
    %v5620 = vadd.f32 0.0, %v5619
    %v5621 = vpop.f32.mrb[0].mxu0
    %5622 = vmatprep.mubr.bf16.mxu0 0
    %5623 = vmatmul.mubr.bf16.gmra.mrb[0].mxu0 %v5574
    %v5624 = vpop.f32.mrb[0].mxu0
    %v5625 = vadd.f32 0.0, %v5624
    %v5626 = vpop.f32.mrb[0].mxu0
    %v5627 = vpop.f32.mrb[0].mxu0
    %v5628 = vadd.f32 0.0, %v5627
    %v5629 = vpop.f32.mrb[0].mxu0
    %5630 = vmatprep.mubr.bf16.mxu0 0
    %5631 = vmatmul.mubr.bf16.gmra.mrb[0].mxu0 %v5577
    %v5632 = vpop.f32.mrb[0].mxu0
    %v5633 = vadd.f32 0.0, %v5632
    %v5634 = vpop.f32.mrb[0].mxu0
    %v5635 = vpop.f32.mrb[0].mxu0
    %v5636 = vadd.f32 0.0, %v5635
    %v5637 = vpop.f32.mrb[0].mxu0
    %5638 = vmatprep.mubr.bf16.mxu0 0
    %5639 = vmatmul.mubr.bf16.gmra.mrb[0].mxu0 %v5580
    %v5640 = vpop.f32.mrb[0].mxu0
    %v5641 = vadd.f32 0.0, %v5640
    %v5642 = vpop.f32.mrb[0].mxu0
    %v5643 = vpop.f32.mrb[0].mxu0
    %v5644 = vadd.f32 0.0, %v5643
    %v5645 = vpop.f32.mrb[0].mxu0
    %5646 = vdwg.mxu0
    %v5647 = vlaneseq
    %v5648 = vshrl.u32 %v5647, 7
    %v5649 = vsub.s32 0, %v5648
    %v5650 = vrot.slane %v5540, %v5649
    %v5651 = vmul.f32 %v5617, %v5650
    %v5652 = vmul.f32 %v5620, %v5650
    %v5653 = vmul.f32 %v5625, %v5650
    %v5654 = vmul.f32 %v5628, %v5650
    %v5655 = vmul.f32 %v5633, %v5650
    %v5656 = vmul.f32 %v5636, %v5650
    %v5657 = vmul.f32 %v5641, %v5650
    %v5658 = vmul.f32 %v5644, %v5650
    %v5659 = vadd.f32 %v5532, %v5651
    %v5660 = vadd.f32 %v5533, %v5652
    %v5661 = vadd.f32 %v5534, %v5653
    %v5662 = vadd.f32 %v5535, %v5654
    %v5663 = vadd.f32 %v5536, %v5655
    %v5664 = vadd.f32 %v5537, %v5656
    %v5665 = vadd.f32 %v5538, %v5657
    %v5666 = vadd.f32 %v5539, %v5658
    %v5667 = vld [vmem:[%s7 + $0x39] sm:$0x1]
    %s5668 = scalar_lea.vmem [#allocation5], 800
    %v5669 = vld [vmem:[%s5668] sm:$0xf]
    %v5670 = vld [vmem:[%s5668 + $0x4] sm:$0xf]
    %v5671 = vld [vmem:[%s5668 + $0x8] sm:$0xf]
    %v5672 = vld [vmem:[%s5668 + $0xc] sm:$0xf]
    %v5673 = vld [vmem:[%s5668 + $0x10] sm:$0xf]
    %v5674 = vld [vmem:[%s5668 + $0x14] sm:$0xf]
    %v5675 = vld [vmem:[%s5668 + $0x18] sm:$0xf]
    %v5676 = vld [vmem:[%s5668 + $0x1c] sm:$0xf]
    %v5685 = vunpack.c.l.b16 %v5669
    %v5686 = vunpack.c.l.b16 %v5670
    %v5687 = vunpack.c.l.b16 %v5671
    %v5688 = vunpack.c.l.b16 %v5672
    %v5689 = vunpack.c.l.b16 %v5673
    %v5690 = vunpack.c.l.b16 %v5674
    %v5691 = vunpack.c.l.b16 %v5675
    %v5692 = vunpack.c.l.b16 %v5676
    %v5693 = vpack.c.b16 %v5686, %v5685
    %v5694 = vpack.c.b16 %v5688, %v5687
    %v5695 = vpack.c.b16 %v5690, %v5689
    %v5696 = vpack.c.b16 %v5692, %v5691
    %v5698 = vsel %vm268, %v5693, 0
    %v5701 = vsel %vm268, %v5694, 0
    %v5704 = vsel %vm268, %v5695, 0
    %v5707 = vsel %vm268, %v5696, 0
    %5709 = vmatprep.subr.bf16.mxu0 0
    %5710 = vmatpush1.bf16.msra.mxu0 %v2489
    %5711 = vmatprep.subr.bf16.mxu0 0
    %5712 = vmatpush1.bf16.msra.mxu0 %v2490
    %5713 = vmatprep.subr.bf16.mxu0 0
    %5714 = vmatpush1.bf16.msra.mxu0 %v2491
    %5715 = vmatprep.subr.bf16.mxu0 0
    %5716 = vmatpush1.bf16.msra.mxu0 %v2492
    %5717 = vmatprep.subr.bf16.mxu0 0
    %5718 = vmatpush1.bf16.msra.mxu0 0
    %5719 = vmatprep.subr.bf16.mxu0 0
    %5720 = vmatpush1.bf16.msra.mxu0 0
    %5721 = vmatprep.subr.bf16.mxu0 0
    %5722 = vmatpush1.bf16.msra.mxu0 0
    %5723 = vmatprep.subr.bf16.mxu0 0
    %5724 = vmatpush1.bf16.msra.mxu0 0
    %5725 = vmatprep.subr.bf16.mxu0 0
    %5726 = vmatpush1.bf16.msra.mxu0 0
    %5727 = vmatprep.subr.bf16.mxu0 0
    %5728 = vmatpush1.bf16.msra.mxu0 0
    %5729 = vmatprep.subr.bf16.mxu0 0
    %5730 = vmatpush1.bf16.msra.mxu0 0
    %5731 = vmatprep.subr.bf16.mxu0 0
    %5732 = vmatpush1.bf16.msra.mxu0 0
    %5733 = vmatprep.subr.bf16.mxu0 0
    %5734 = vmatpush1.bf16.msra.mxu0 0
    %5735 = vmatprep.subr.bf16.mxu0 0
    %5736 = vmatpush1.bf16.msra.mxu0 0
    %5737 = vmatprep.subr.bf16.mxu0 0
    %5738 = vmatpush1.bf16.msra.mxu0 0
    %5739 = vmatprep.subr.bf16.mxu0 0
    %5740 = vmatpush1.bf16.msra.mxu0 0
    %5741 = vmatprep.mubr.bf16.mxu0 0
    %5742 = vmatmul.mubr.bf16.gmra.mrb[0].mxu0 %v5698
    %v5743 = vpop.f32.mrb[0].mxu0
    %v5744 = vadd.f32 0.0, %v5743
    %v5745 = vpop.f32.mrb[0].mxu0
    %v5746 = vpop.f32.mrb[0].mxu0
    %v5747 = vadd.f32 0.0, %v5746
    %v5748 = vpop.f32.mrb[0].mxu0
    %5749 = vmatprep.mubr.bf16.mxu0 0
    %5750 = vmatmul.mubr.bf16.gmra.mrb[0].mxu0 %v5701
    %v5751 = vpop.f32.mrb[0].mxu0
    %v5752 = vadd.f32 0.0, %v5751
    %v5753 = vpop.f32.mrb[0].mxu0
    %v5754 = vpop.f32.mrb[0].mxu0
    %v5755 = vadd.f32 0.0, %v5754
    %v5756 = vpop.f32.mrb[0].mxu0
    %5757 = vmatprep.mubr.bf16.mxu0 0
    %5758 = vmatmul.mubr.bf16.gmra.mrb[0].mxu0 %v5704
    %v5759 = vpop.f32.mrb[0].mxu0
    %v5760 = vadd.f32 0.0, %v5759
    %v5761 = vpop.f32.mrb[0].mxu0
    %v5762 = vpop.f32.mrb[0].mxu0
    %v5763 = vadd.f32 0.0, %v5762
    %v5764 = vpop.f32.mrb[0].mxu0
    %5765 = vmatprep.mubr.bf16.mxu0 0
    %5766 = vmatmul.mubr.bf16.gmra.mrb[0].mxu0 %v5707
    %v5767 = vpop.f32.mrb[0].mxu0
    %v5768 = vadd.f32 0.0, %v5767
    %v5769 = vpop.f32.mrb[0].mxu0
    %v5770 = vpop.f32.mrb[0].mxu0
    %v5771 = vadd.f32 0.0, %v5770
    %v5772 = vpop.f32.mrb[0].mxu0
    %5773 = vdwg.mxu0
    %v5774 = vlaneseq
    %v5775 = vshrl.u32 %v5774, 7
    %v5776 = vsub.s32 0, %v5775
    %v5777 = vrot.slane %v5667, %v5776
    %v5778 = vmul.f32 %v5744, %v5777
    %v5779 = vmul.f32 %v5747, %v5777
    %v5780 = vmul.f32 %v5752, %v5777
    %v5781 = vmul.f32 %v5755, %v5777
    %v5782 = vmul.f32 %v5760, %v5777
    %v5783 = vmul.f32 %v5763, %v5777
    %v5784 = vmul.f32 %v5768, %v5777
    %v5785 = vmul.f32 %v5771, %v5777
    %v5786 = vadd.f32 %v5659, %v5778
    %v5787 = vadd.f32 %v5660, %v5779
    %v5788 = vadd.f32 %v5661, %v5780
    %v5789 = vadd.f32 %v5662, %v5781
    %v5790 = vadd.f32 %v5663, %v5782
    %v5791 = vadd.f32 %v5664, %v5783
    %v5792 = vadd.f32 %v5665, %v5784
    %v5793 = vadd.f32 %v5666, %v5785
    %v5794 = vld [vmem:[%s7 + $0x3a] sm:$0x1]
    %s5795 = scalar_lea.vmem [#allocation5], 832
    %v5796 = vld [vmem:[%s5795] sm:$0xf]
    %v5797 = vld [vmem:[%s5795 + $0x4] sm:$0xf]
    %v5798 = vld [vmem:[%s5795 + $0x8] sm:$0xf]
    %v5799 = vld [vmem:[%s5795 + $0xc] sm:$0xf]
    %v5800 = vld [vmem:[%s5795 + $0x10] sm:$0xf]
    %v5801 = vld [vmem:[%s5795 + $0x14] sm:$0xf]
    %v5802 = vld [vmem:[%s5795 + $0x18] sm:$0xf]
    %v5803 = vld [vmem:[%s5795 + $0x1c] sm:$0xf]
    %v5812 = vunpack.c.l.b16 %v5796
    %v5813 = vunpack.c.l.b16 %v5797
    %v5814 = vunpack.c.l.b16 %v5798
    %v5815 = vunpack.c.l.b16 %v5799
    %v5816 = vunpack.c.l.b16 %v5800
    %v5817 = vunpack.c.l.b16 %v5801
    %v5818 = vunpack.c.l.b16 %v5802
    %v5819 = vunpack.c.l.b16 %v5803
    %v5820 = vpack.c.b16 %v5813, %v5812
    %v5821 = vpack.c.b16 %v5815, %v5814
    %v5822 = vpack.c.b16 %v5817, %v5816
    %v5823 = vpack.c.b16 %v5819, %v5818
    %v5825 = vsel %vm268, %v5820, 0
    %v5828 = vsel %vm268, %v5821, 0
    %v5831 = vsel %vm268, %v5822, 0
    %v5834 = vsel %vm268, %v5823, 0
    %5836 = vmatprep.subr.bf16.mxu0 0
    %5837 = vmatpush1.bf16.msra.mxu0 %v2489
    %5838 = vmatprep.subr.bf16.mxu0 0
    %5839 = vmatpush1.bf16.msra.mxu0 %v2490
    %5840 = vmatprep.subr.bf16.mxu0 0
    %5841 = vmatpush1.bf16.msra.mxu0 %v2491
    %5842 = vmatprep.subr.bf16.mxu0 0
    %5843 = vmatpush1.bf16.msra.mxu0 %v2492
    %5844 = vmatprep.subr.bf16.mxu0 0
    %5845 = vmatpush1.bf16.msra.mxu0 0
    %5846 = vmatprep.subr.bf16.mxu0 0
    %5847 = vmatpush1.bf16.msra.mxu0 0
    %5848 = vmatprep.subr.bf16.mxu0 0
    %5849 = vmatpush1.bf16.msra.mxu0 0
    %5850 = vmatprep.subr.bf16.mxu0 0
    %5851 = vmatpush1.bf16.msra.mxu0 0
    %5852 = vmatprep.subr.bf16.mxu0 0
    %5853 = vmatpush1.bf16.msra.mxu0 0
    %5854 = vmatprep.subr.bf16.mxu0 0
    %5855 = vmatpush1.bf16.msra.mxu0 0
    %5856 = vmatprep.subr.bf16.mxu0 0
    %5857 = vmatpush1.bf16.msra.mxu0 0
    %5858 = vmatprep.subr.bf16.mxu0 0
    %5859 = vmatpush1.bf16.msra.mxu0 0
    %5860 = vmatprep.subr.bf16.mxu0 0
    %5861 = vmatpush1.bf16.msra.mxu0 0
    %5862 = vmatprep.subr.bf16.mxu0 0
    %5863 = vmatpush1.bf16.msra.mxu0 0
    %5864 = vmatprep.subr.bf16.mxu0 0
    %5865 = vmatpush1.bf16.msra.mxu0 0
    %5866 = vmatprep.subr.bf16.mxu0 0
    %5867 = vmatpush1.bf16.msra.mxu0 0
    %5868 = vmatprep.mubr.bf16.mxu0 0
    %5869 = vmatmul.mubr.bf16.gmra.mrb[0].mxu0 %v5825
    %v5870 = vpop.f32.mrb[0].mxu0
    %v5871 = vadd.f32 0.0, %v5870
    %v5872 = vpop.f32.mrb[0].mxu0
    %v5873 = vpop.f32.mrb[0].mxu0
    %v5874 = vadd.f32 0.0, %v5873
    %v5875 = vpop.f32.mrb[0].mxu0
    %5876 = vmatprep.mubr.bf16.mxu0 0
    %5877 = vmatmul.mubr.bf16.gmra.mrb[0].mxu0 %v5828
    %v5878 = vpop.f32.mrb[0].mxu0
    %v5879 = vadd.f32 0.0, %v5878
    %v5880 = vpop.f32.mrb[0].mxu0
    %v5881 = vpop.f32.mrb[0].mxu0
    %v5882 = vadd.f32 0.0, %v5881
    %v5883 = vpop.f32.mrb[0].mxu0
    %5884 = vmatprep.mubr.bf16.mxu0 0
    %5885 = vmatmul.mubr.bf16.gmra.mrb[0].mxu0 %v5831
    %v5886 = vpop.f32.mrb[0].mxu0
    %v5887 = vadd.f32 0.0, %v5886
    %v5888 = vpop.f32.mrb[0].mxu0
    %v5889 = vpop.f32.mrb[0].mxu0
    %v5890 = vadd.f32 0.0, %v5889
    %v5891 = vpop.f32.mrb[0].mxu0
    %5892 = vmatprep.mubr.bf16.mxu0 0
    %5893 = vmatmul.mubr.bf16.gmra.mrb[0].mxu0 %v5834
    %v5894 = vpop.f32.mrb[0].mxu0
    %v5895 = vadd.f32 0.0, %v5894
    %v5896 = vpop.f32.mrb[0].mxu0
    %v5897 = vpop.f32.mrb[0].mxu0
    %v5898 = vadd.f32 0.0, %v5897
    %v5899 = vpop.f32.mrb[0].mxu0
    %5900 = vdwg.mxu0
    %v5901 = vlaneseq
    %v5902 = vshrl.u32 %v5901, 7
    %v5903 = vsub.s32 0, %v5902
    %v5904 = vrot.slane %v5794, %v5903
    %v5905 = vmul.f32 %v5871, %v5904
    %v5906 = vmul.f32 %v5874, %v5904
    %v5907 = vmul.f32 %v5879, %v5904
    %v5908 = vmul.f32 %v5882, %v5904
    %v5909 = vmul.f32 %v5887, %v5904
    %v5910 = vmul.f32 %v5890, %v5904
    %v5911 = vmul.f32 %v5895, %v5904
    %v5912 = vmul.f32 %v5898, %v5904
    %v5913 = vadd.f32 %v5786, %v5905
    %v5914 = vadd.f32 %v5787, %v5906
    %v5915 = vadd.f32 %v5788, %v5907
    %v5916 = vadd.f32 %v5789, %v5908
    %v5917 = vadd.f32 %v5790, %v5909
    %v5918 = vadd.f32 %v5791, %v5910
    %v5919 = vadd.f32 %v5792, %v5911
    %v5920 = vadd.f32 %v5793, %v5912
    %v5921 = vld [vmem:[%s7 + $0x3b] sm:$0x1]
    %s5922 = scalar_lea.vmem [#allocation5], 864
    %v5923 = vld [vmem:[%s5922] sm:$0xf]
    %v5924 = vld [vmem:[%s5922 + $0x4] sm:$0xf]
    %v5925 = vld [vmem:[%s5922 + $0x8] sm:$0xf]
    %v5926 = vld [vmem:[%s5922 + $0xc] sm:$0xf]
    %v5927 = vld [vmem:[%s5922 + $0x10] sm:$0xf]
    %v5928 = vld [vmem:[%s5922 + $0x14] sm:$0xf]
    %v5929 = vld [vmem:[%s5922 + $0x18] sm:$0xf]
    %v5930 = vld [vmem:[%s5922 + $0x1c] sm:$0xf]
    %v5939 = vunpack.c.l.b16 %v5923
    %v5940 = vunpack.c.l.b16 %v5924
    %v5941 = vunpack.c.l.b16 %v5925
    %v5942 = vunpack.c.l.b16 %v5926
    %v5943 = vunpack.c.l.b16 %v5927
    %v5944 = vunpack.c.l.b16 %v5928
    %v5945 = vunpack.c.l.b16 %v5929
    %v5946 = vunpack.c.l.b16 %v5930
    %v5947 = vpack.c.b16 %v5940, %v5939
    %v5948 = vpack.c.b16 %v5942, %v5941
    %v5949 = vpack.c.b16 %v5944, %v5943
    %v5950 = vpack.c.b16 %v5946, %v5945
    %v5952 = vsel %vm268, %v5947, 0
    %v5955 = vsel %vm268, %v5948, 0
    %v5958 = vsel %vm268, %v5949, 0
    %v5961 = vsel %vm268, %v5950, 0
    %5963 = vmatprep.subr.bf16.mxu0 0
    %5964 = vmatpush1.bf16.msra.mxu0 %v2489
    %5965 = vmatprep.subr.bf16.mxu0 0
    %5966 = vmatpush1.bf16.msra.mxu0 %v2490
    %5967 = vmatprep.subr.bf16.mxu0 0
    %5968 = vmatpush1.bf16.msra.mxu0 %v2491
    %5969 = vmatprep.subr.bf16.mxu0 0
    %5970 = vmatpush1.bf16.msra.mxu0 %v2492
    %5971 = vmatprep.subr.bf16.mxu0 0
    %5972 = vmatpush1.bf16.msra.mxu0 0
    %5973 = vmatprep.subr.bf16.mxu0 0
    %5974 = vmatpush1.bf16.msra.mxu0 0
    %5975 = vmatprep.subr.bf16.mxu0 0
    %5976 = vmatpush1.bf16.msra.mxu0 0
    %5977 = vmatprep.subr.bf16.mxu0 0
    %5978 = vmatpush1.bf16.msra.mxu0 0
    %5979 = vmatprep.subr.bf16.mxu0 0
    %5980 = vmatpush1.bf16.msra.mxu0 0
    %5981 = vmatprep.subr.bf16.mxu0 0
    %5982 = vmatpush1.bf16.msra.mxu0 0
    %5983 = vmatprep.subr.bf16.mxu0 0
    %5984 = vmatpush1.bf16.msra.mxu0 0
    %5985 = vmatprep.subr.bf16.mxu0 0
    %5986 = vmatpush1.bf16.msra.mxu0 0
    %5987 = vmatprep.subr.bf16.mxu0 0
    %5988 = vmatpush1.bf16.msra.mxu0 0
    %5989 = vmatprep.subr.bf16.mxu0 0
    %5990 = vmatpush1.bf16.msra.mxu0 0
    %5991 = vmatprep.subr.bf16.mxu0 0
    %5992 = vmatpush1.bf16.msra.mxu0 0
    %5993 = vmatprep.subr.bf16.mxu0 0
    %5994 = vmatpush1.bf16.msra.mxu0 0
    %5995 = vmatprep.mubr.bf16.mxu0 0
    %5996 = vmatmul.mubr.bf16.gmra.mrb[0].mxu0 %v5952
    %v5997 = vpop.f32.mrb[0].mxu0
    %v5998 = vadd.f32 0.0, %v5997
    %v5999 = vpop.f32.mrb[0].mxu0
    %v6000 = vpop.f32.mrb[0].mxu0
    %v6001 = vadd.f32 0.0, %v6000
    %v6002 = vpop.f32.mrb[0].mxu0
    %6003 = vmatprep.mubr.bf16.mxu0 0
    %6004 = vmatmul.mubr.bf16.gmra.mrb[0].mxu0 %v5955
    %v6005 = vpop.f32.mrb[0].mxu0
    %v6006 = vadd.f32 0.0, %v6005
    %v6007 = vpop.f32.mrb[0].mxu0
    %v6008 = vpop.f32.mrb[0].mxu0
    %v6009 = vadd.f32 0.0, %v6008
    %v6010 = vpop.f32.mrb[0].mxu0
    %6011 = vmatprep.mubr.bf16.mxu0 0
    %6012 = vmatmul.mubr.bf16.gmra.mrb[0].mxu0 %v5958
    %v6013 = vpop.f32.mrb[0].mxu0
    %v6014 = vadd.f32 0.0, %v6013
    %v6015 = vpop.f32.mrb[0].mxu0
    %v6016 = vpop.f32.mrb[0].mxu0
    %v6017 = vadd.f32 0.0, %v6016
    %v6018 = vpop.f32.mrb[0].mxu0
    %6019 = vmatprep.mubr.bf16.mxu0 0
    %6020 = vmatmul.mubr.bf16.gmra.mrb[0].mxu0 %v5961
    %v6021 = vpop.f32.mrb[0].mxu0
    %v6022 = vadd.f32 0.0, %v6021
    %v6023 = vpop.f32.mrb[0].mxu0
    %v6024 = vpop.f32.mrb[0].mxu0
    %v6025 = vadd.f32 0.0, %v6024
    %v6026 = vpop.f32.mrb[0].mxu0
    %6027 = vdwg.mxu0
    %v6028 = vlaneseq
    %v6029 = vshrl.u32 %v6028, 7
    %v6030 = vsub.s32 0, %v6029
    %v6031 = vrot.slane %v5921, %v6030
    %v6032 = vmul.f32 %v5998, %v6031
    %v6033 = vmul.f32 %v6001, %v6031
    %v6034 = vmul.f32 %v6006, %v6031
    %v6035 = vmul.f32 %v6009, %v6031
    %v6036 = vmul.f32 %v6014, %v6031
    %v6037 = vmul.f32 %v6017, %v6031
    %v6038 = vmul.f32 %v6022, %v6031
    %v6039 = vmul.f32 %v6025, %v6031
    %v6040 = vadd.f32 %v5913, %v6032
    %v6041 = vadd.f32 %v5914, %v6033
    %v6042 = vadd.f32 %v5915, %v6034
    %v6043 = vadd.f32 %v5916, %v6035
    %v6044 = vadd.f32 %v5917, %v6036
    %v6045 = vadd.f32 %v5918, %v6037
    %v6046 = vadd.f32 %v5919, %v6038
    %v6047 = vadd.f32 %v5920, %v6039
    %v6048 = vld [vmem:[%s7 + $0x3c] sm:$0x1]
    %s6049 = scalar_lea.vmem [#allocation5], 896
    %v6050 = vld [vmem:[%s6049] sm:$0xf]
    %v6051 = vld [vmem:[%s6049 + $0x4] sm:$0xf]
    %v6052 = vld [vmem:[%s6049 + $0x8] sm:$0xf]
    %v6053 = vld [vmem:[%s6049 + $0xc] sm:$0xf]
    %v6054 = vld [vmem:[%s6049 + $0x10] sm:$0xf]
    %v6055 = vld [vmem:[%s6049 + $0x14] sm:$0xf]
    %v6056 = vld [vmem:[%s6049 + $0x18] sm:$0xf]
    %v6057 = vld [vmem:[%s6049 + $0x1c] sm:$0xf]
    %v6066 = vunpack.c.l.b16 %v6050
    %v6067 = vunpack.c.l.b16 %v6051
    %v6068 = vunpack.c.l.b16 %v6052
    %v6069 = vunpack.c.l.b16 %v6053
    %v6070 = vunpack.c.l.b16 %v6054
    %v6071 = vunpack.c.l.b16 %v6055
    %v6072 = vunpack.c.l.b16 %v6056
    %v6073 = vunpack.c.l.b16 %v6057
    %v6074 = vpack.c.b16 %v6067, %v6066
    %v6075 = vpack.c.b16 %v6069, %v6068
    %v6076 = vpack.c.b16 %v6071, %v6070
    %v6077 = vpack.c.b16 %v6073, %v6072
    %v6079 = vsel %vm268, %v6074, 0
    %v6082 = vsel %vm268, %v6075, 0
    %v6085 = vsel %vm268, %v6076, 0
    %v6088 = vsel %vm268, %v6077, 0
    %6090 = vmatprep.subr.bf16.mxu0 0
    %6091 = vmatpush1.bf16.msra.mxu0 %v2489
    %6092 = vmatprep.subr.bf16.mxu0 0
    %6093 = vmatpush1.bf16.msra.mxu0 %v2490
    %6094 = vmatprep.subr.bf16.mxu0 0
    %6095 = vmatpush1.bf16.msra.mxu0 %v2491
    %6096 = vmatprep.subr.bf16.mxu0 0
    %6097 = vmatpush1.bf16.msra.mxu0 %v2492
    %6098 = vmatprep.subr.bf16.mxu0 0
    %6099 = vmatpush1.bf16.msra.mxu0 0
    %6100 = vmatprep.subr.bf16.mxu0 0
    %6101 = vmatpush1.bf16.msra.mxu0 0
    %6102 = vmatprep.subr.bf16.mxu0 0
    %6103 = vmatpush1.bf16.msra.mxu0 0
    %6104 = vmatprep.subr.bf16.mxu0 0
    %6105 = vmatpush1.bf16.msra.mxu0 0
    %6106 = vmatprep.subr.bf16.mxu0 0
    %6107 = vmatpush1.bf16.msra.mxu0 0
    %6108 = vmatprep.subr.bf16.mxu0 0
    %6109 = vmatpush1.bf16.msra.mxu0 0
    %6110 = vmatprep.subr.bf16.mxu0 0
    %6111 = vmatpush1.bf16.msra.mxu0 0
    %6112 = vmatprep.subr.bf16.mxu0 0
    %6113 = vmatpush1.bf16.msra.mxu0 0
    %6114 = vmatprep.subr.bf16.mxu0 0
    %6115 = vmatpush1.bf16.msra.mxu0 0
    %6116 = vmatprep.subr.bf16.mxu0 0
    %6117 = vmatpush1.bf16.msra.mxu0 0
    %6118 = vmatprep.subr.bf16.mxu0 0
    %6119 = vmatpush1.bf16.msra.mxu0 0
    %6120 = vmatprep.subr.bf16.mxu0 0
    %6121 = vmatpush1.bf16.msra.mxu0 0
    %6122 = vmatprep.mubr.bf16.mxu0 0
    %6123 = vmatmul.mubr.bf16.gmra.mrb[0].mxu0 %v6079
    %v6124 = vpop.f32.mrb[0].mxu0
    %v6125 = vadd.f32 0.0, %v6124
    %v6126 = vpop.f32.mrb[0].mxu0
    %v6127 = vpop.f32.mrb[0].mxu0
    %v6128 = vadd.f32 0.0, %v6127
    %v6129 = vpop.f32.mrb[0].mxu0
    %6130 = vmatprep.mubr.bf16.mxu0 0
    %6131 = vmatmul.mubr.bf16.gmra.mrb[0].mxu0 %v6082
    %v6132 = vpop.f32.mrb[0].mxu0
    %v6133 = vadd.f32 0.0, %v6132
    %v6134 = vpop.f32.mrb[0].mxu0
    %v6135 = vpop.f32.mrb[0].mxu0
    %v6136 = vadd.f32 0.0, %v6135
    %v6137 = vpop.f32.mrb[0].mxu0
    %6138 = vmatprep.mubr.bf16.mxu0 0
    %6139 = vmatmul.mubr.bf16.gmra.mrb[0].mxu0 %v6085
    %v6140 = vpop.f32.mrb[0].mxu0
    %v6141 = vadd.f32 0.0, %v6140
    %v6142 = vpop.f32.mrb[0].mxu0
    %v6143 = vpop.f32.mrb[0].mxu0
    %v6144 = vadd.f32 0.0, %v6143
    %v6145 = vpop.f32.mrb[0].mxu0
    %6146 = vmatprep.mubr.bf16.mxu0 0
    %6147 = vmatmul.mubr.bf16.gmra.mrb[0].mxu0 %v6088
    %v6148 = vpop.f32.mrb[0].mxu0
    %v6149 = vadd.f32 0.0, %v6148
    %v6150 = vpop.f32.mrb[0].mxu0
    %v6151 = vpop.f32.mrb[0].mxu0
    %v6152 = vadd.f32 0.0, %v6151
    %v6153 = vpop.f32.mrb[0].mxu0
    %6154 = vdwg.mxu0
    %v6155 = vlaneseq
    %v6156 = vshrl.u32 %v6155, 7
    %v6157 = vsub.s32 0, %v6156
    %v6158 = vrot.slane %v6048, %v6157
    %v6159 = vmul.f32 %v6125, %v6158
    %v6160 = vmul.f32 %v6128, %v6158
    %v6161 = vmul.f32 %v6133, %v6158
    %v6162 = vmul.f32 %v6136, %v6158
    %v6163 = vmul.f32 %v6141, %v6158
    %v6164 = vmul.f32 %v6144, %v6158
    %v6165 = vmul.f32 %v6149, %v6158
    %v6166 = vmul.f32 %v6152, %v6158
    %v6167 = vadd.f32 %v6040, %v6159
    %v6168 = vadd.f32 %v6041, %v6160
    %v6169 = vadd.f32 %v6042, %v6161
    %v6170 = vadd.f32 %v6043, %v6162
    %v6171 = vadd.f32 %v6044, %v6163
    %v6172 = vadd.f32 %v6045, %v6164
    %v6173 = vadd.f32 %v6046, %v6165
    %v6174 = vadd.f32 %v6047, %v6166
    %v6175 = vld [vmem:[%s7 + $0x3d] sm:$0x1]
    %s6176 = scalar_lea.vmem [#allocation5], 928
    %v6177 = vld [vmem:[%s6176] sm:$0xf]
    %v6178 = vld [vmem:[%s6176 + $0x4] sm:$0xf]
    %v6179 = vld [vmem:[%s6176 + $0x8] sm:$0xf]
    %v6180 = vld [vmem:[%s6176 + $0xc] sm:$0xf]
    %v6181 = vld [vmem:[%s6176 + $0x10] sm:$0xf]
    %v6182 = vld [vmem:[%s6176 + $0x14] sm:$0xf]
    %v6183 = vld [vmem:[%s6176 + $0x18] sm:$0xf]
    %v6184 = vld [vmem:[%s6176 + $0x1c] sm:$0xf]
    %v6193 = vunpack.c.l.b16 %v6177
    %v6194 = vunpack.c.l.b16 %v6178
    %v6195 = vunpack.c.l.b16 %v6179
    %v6196 = vunpack.c.l.b16 %v6180
    %v6197 = vunpack.c.l.b16 %v6181
    %v6198 = vunpack.c.l.b16 %v6182
    %v6199 = vunpack.c.l.b16 %v6183
    %v6200 = vunpack.c.l.b16 %v6184
    %v6201 = vpack.c.b16 %v6194, %v6193
    %v6202 = vpack.c.b16 %v6196, %v6195
    %v6203 = vpack.c.b16 %v6198, %v6197
    %v6204 = vpack.c.b16 %v6200, %v6199
    %v6206 = vsel %vm268, %v6201, 0
    %v6209 = vsel %vm268, %v6202, 0
    %v6212 = vsel %vm268, %v6203, 0
    %v6215 = vsel %vm268, %v6204, 0
    %6217 = vmatprep.subr.bf16.mxu0 0
    %6218 = vmatpush1.bf16.msra.mxu0 %v2489
    %6219 = vmatprep.subr.bf16.mxu0 0
    %6220 = vmatpush1.bf16.msra.mxu0 %v2490
    %6221 = vmatprep.subr.bf16.mxu0 0
    %6222 = vmatpush1.bf16.msra.mxu0 %v2491
    %6223 = vmatprep.subr.bf16.mxu0 0
    %6224 = vmatpush1.bf16.msra.mxu0 %v2492
    %6225 = vmatprep.subr.bf16.mxu0 0
    %6226 = vmatpush1.bf16.msra.mxu0 0
    %6227 = vmatprep.subr.bf16.mxu0 0
    %6228 = vmatpush1.bf16.msra.mxu0 0
    %6229 = vmatprep.subr.bf16.mxu0 0
    %6230 = vmatpush1.bf16.msra.mxu0 0
    %6231 = vmatprep.subr.bf16.mxu0 0
    %6232 = vmatpush1.bf16.msra.mxu0 0
    %6233 = vmatprep.subr.bf16.mxu0 0
    %6234 = vmatpush1.bf16.msra.mxu0 0
    %6235 = vmatprep.subr.bf16.mxu0 0
    %6236 = vmatpush1.bf16.msra.mxu0 0
    %6237 = vmatprep.subr.bf16.mxu0 0
    %6238 = vmatpush1.bf16.msra.mxu0 0
    %6239 = vmatprep.subr.bf16.mxu0 0
    %6240 = vmatpush1.bf16.msra.mxu0 0
    %6241 = vmatprep.subr.bf16.mxu0 0
    %6242 = vmatpush1.bf16.msra.mxu0 0
    %6243 = vmatprep.subr.bf16.mxu0 0
    %6244 = vmatpush1.bf16.msra.mxu0 0
    %6245 = vmatprep.subr.bf16.mxu0 0
    %6246 = vmatpush1.bf16.msra.mxu0 0
    %6247 = vmatprep.subr.bf16.mxu0 0
    %6248 = vmatpush1.bf16.msra.mxu0 0
    %6249 = vmatprep.mubr.bf16.mxu0 0
    %6250 = vmatmul.mubr.bf16.gmra.mrb[0].mxu0 %v6206
    %v6251 = vpop.f32.mrb[0].mxu0
    %v6252 = vadd.f32 0.0, %v6251
    %v6253 = vpop.f32.mrb[0].mxu0
    %v6254 = vpop.f32.mrb[0].mxu0
    %v6255 = vadd.f32 0.0, %v6254
    %v6256 = vpop.f32.mrb[0].mxu0
    %6257 = vmatprep.mubr.bf16.mxu0 0
    %6258 = vmatmul.mubr.bf16.gmra.mrb[0].mxu0 %v6209
    %v6259 = vpop.f32.mrb[0].mxu0
    %v6260 = vadd.f32 0.0, %v6259
    %v6261 = vpop.f32.mrb[0].mxu0
    %v6262 = vpop.f32.mrb[0].mxu0
    %v6263 = vadd.f32 0.0, %v6262
    %v6264 = vpop.f32.mrb[0].mxu0
    %6265 = vmatprep.mubr.bf16.mxu0 0
    %6266 = vmatmul.mubr.bf16.gmra.mrb[0].mxu0 %v6212
    %v6267 = vpop.f32.mrb[0].mxu0
    %v6268 = vadd.f32 0.0, %v6267
    %v6269 = vpop.f32.mrb[0].mxu0
    %v6270 = vpop.f32.mrb[0].mxu0
    %v6271 = vadd.f32 0.0, %v6270
    %v6272 = vpop.f32.mrb[0].mxu0
    %6273 = vmatprep.mubr.bf16.mxu0 0
    %6274 = vmatmul.mubr.bf16.gmra.mrb[0].mxu0 %v6215
    %v6275 = vpop.f32.mrb[0].mxu0
    %v6276 = vadd.f32 0.0, %v6275
    %v6277 = vpop.f32.mrb[0].mxu0
    %v6278 = vpop.f32.mrb[0].mxu0
    %v6279 = vadd.f32 0.0, %v6278
    %v6280 = vpop.f32.mrb[0].mxu0
    %6281 = vdwg.mxu0
    %v6282 = vlaneseq
    %v6283 = vshrl.u32 %v6282, 7
    %v6284 = vsub.s32 0, %v6283
    %v6285 = vrot.slane %v6175, %v6284
    %v6286 = vmul.f32 %v6252, %v6285
    %v6287 = vmul.f32 %v6255, %v6285
    %v6288 = vmul.f32 %v6260, %v6285
    %v6289 = vmul.f32 %v6263, %v6285
    %v6290 = vmul.f32 %v6268, %v6285
    %v6291 = vmul.f32 %v6271, %v6285
    %v6292 = vmul.f32 %v6276, %v6285
    %v6293 = vmul.f32 %v6279, %v6285
    %v6294 = vadd.f32 %v6167, %v6286
    %v6295 = vadd.f32 %v6168, %v6287
    %v6296 = vadd.f32 %v6169, %v6288
    %v6297 = vadd.f32 %v6170, %v6289
    %v6298 = vadd.f32 %v6171, %v6290
    %v6299 = vadd.f32 %v6172, %v6291
    %v6300 = vadd.f32 %v6173, %v6292
    %v6301 = vadd.f32 %v6174, %v6293
    %v6302 = vld [vmem:[%s7 + $0x3e] sm:$0x1]
    %s6303 = scalar_lea.vmem [#allocation5], 960
    %v6304 = vld [vmem:[%s6303] sm:$0xf]
    %v6305 = vld [vmem:[%s6303 + $0x4] sm:$0xf]
    %v6306 = vld [vmem:[%s6303 + $0x8] sm:$0xf]
    %v6307 = vld [vmem:[%s6303 + $0xc] sm:$0xf]
    %v6308 = vld [vmem:[%s6303 + $0x10] sm:$0xf]
    %v6309 = vld [vmem:[%s6303 + $0x14] sm:$0xf]
    %v6310 = vld [vmem:[%s6303 + $0x18] sm:$0xf]
    %v6311 = vld [vmem:[%s6303 + $0x1c] sm:$0xf]
    %v6320 = vunpack.c.l.b16 %v6304
    %v6321 = vunpack.c.l.b16 %v6305
    %v6322 = vunpack.c.l.b16 %v6306
    %v6323 = vunpack.c.l.b16 %v6307
    %v6324 = vunpack.c.l.b16 %v6308
    %v6325 = vunpack.c.l.b16 %v6309
    %v6326 = vunpack.c.l.b16 %v6310
    %v6327 = vunpack.c.l.b16 %v6311
    %v6328 = vpack.c.b16 %v6321, %v6320
    %v6329 = vpack.c.b16 %v6323, %v6322
    %v6330 = vpack.c.b16 %v6325, %v6324
    %v6331 = vpack.c.b16 %v6327, %v6326
    %v6333 = vsel %vm268, %v6328, 0
    %v6336 = vsel %vm268, %v6329, 0
    %v6339 = vsel %vm268, %v6330, 0
    %v6342 = vsel %vm268, %v6331, 0
    %6344 = vmatprep.subr.bf16.mxu0 0
    %6345 = vmatpush1.bf16.msra.mxu0 %v2489
    %6346 = vmatprep.subr.bf16.mxu0 0
    %6347 = vmatpush1.bf16.msra.mxu0 %v2490
    %6348 = vmatprep.subr.bf16.mxu0 0
    %6349 = vmatpush1.bf16.msra.mxu0 %v2491
    %6350 = vmatprep.subr.bf16.mxu0 0
    %6351 = vmatpush1.bf16.msra.mxu0 %v2492
    %6352 = vmatprep.subr.bf16.mxu0 0
    %6353 = vmatpush1.bf16.msra.mxu0 0
    %6354 = vmatprep.subr.bf16.mxu0 0
    %6355 = vmatpush1.bf16.msra.mxu0 0
    %6356 = vmatprep.subr.bf16.mxu0 0
    %6357 = vmatpush1.bf16.msra.mxu0 0
    %6358 = vmatprep.subr.bf16.mxu0 0
    %6359 = vmatpush1.bf16.msra.mxu0 0
    %6360 = vmatprep.subr.bf16.mxu0 0
    %6361 = vmatpush1.bf16.msra.mxu0 0
    %6362 = vmatprep.subr.bf16.mxu0 0
    %6363 = vmatpush1.bf16.msra.mxu0 0
    %6364 = vmatprep.subr.bf16.mxu0 0
    %6365 = vmatpush1.bf16.msra.mxu0 0
    %6366 = vmatprep.subr.bf16.mxu0 0
    %6367 = vmatpush1.bf16.msra.mxu0 0
    %6368 = vmatprep.subr.bf16.mxu0 0
    %6369 = vmatpush1.bf16.msra.mxu0 0
    %6370 = vmatprep.subr.bf16.mxu0 0
    %6371 = vmatpush1.bf16.msra.mxu0 0
    %6372 = vmatprep.subr.bf16.mxu0 0
    %6373 = vmatpush1.bf16.msra.mxu0 0
    %6374 = vmatprep.subr.bf16.mxu0 0
    %6375 = vmatpush1.bf16.msra.mxu0 0
    %6376 = vmatprep.mubr.bf16.mxu0 0
    %6377 = vmatmul.mubr.bf16.gmra.mrb[0].mxu0 %v6333
    %v6378 = vpop.f32.mrb[0].mxu0
    %v6379 = vadd.f32 0.0, %v6378
    %v6380 = vpop.f32.mrb[0].mxu0
    %v6381 = vpop.f32.mrb[0].mxu0
    %v6382 = vadd.f32 0.0, %v6381
    %v6383 = vpop.f32.mrb[0].mxu0
    %6384 = vmatprep.mubr.bf16.mxu0 0
    %6385 = vmatmul.mubr.bf16.gmra.mrb[0].mxu0 %v6336
    %v6386 = vpop.f32.mrb[0].mxu0
    %v6387 = vadd.f32 0.0, %v6386
    %v6388 = vpop.f32.mrb[0].mxu0
    %v6389 = vpop.f32.mrb[0].mxu0
    %v6390 = vadd.f32 0.0, %v6389
    %v6391 = vpop.f32.mrb[0].mxu0
    %6392 = vmatprep.mubr.bf16.mxu0 0
    %6393 = vmatmul.mubr.bf16.gmra.mrb[0].mxu0 %v6339
    %v6394 = vpop.f32.mrb[0].mxu0
    %v6395 = vadd.f32 0.0, %v6394
    %v6396 = vpop.f32.mrb[0].mxu0
    %v6397 = vpop.f32.mrb[0].mxu0
    %v6398 = vadd.f32 0.0, %v6397
    %v6399 = vpop.f32.mrb[0].mxu0
    %6400 = vmatprep.mubr.bf16.mxu0 0
    %6401 = vmatmul.mubr.bf16.gmra.mrb[0].mxu0 %v6342
    %v6402 = vpop.f32.mrb[0].mxu0
    %v6403 = vadd.f32 0.0, %v6402
    %v6404 = vpop.f32.mrb[0].mxu0
    %v6405 = vpop.f32.mrb[0].mxu0
    %v6406 = vadd.f32 0.0, %v6405
    %v6407 = vpop.f32.mrb[0].mxu0
    %6408 = vdwg.mxu0
    %v6409 = vlaneseq
    %v6410 = vshrl.u32 %v6409, 7
    %v6411 = vsub.s32 0, %v6410
    %v6412 = vrot.slane %v6302, %v6411
    %v6413 = vmul.f32 %v6379, %v6412
    %v6414 = vmul.f32 %v6382, %v6412
    %v6415 = vmul.f32 %v6387, %v6412
    %v6416 = vmul.f32 %v6390, %v6412
    %v6417 = vmul.f32 %v6395, %v6412
    %v6418 = vmul.f32 %v6398, %v6412
    %v6419 = vmul.f32 %v6403, %v6412
    %v6420 = vmul.f32 %v6406, %v6412
    %v6421 = vadd.f32 %v6294, %v6413
    %v6422 = vadd.f32 %v6295, %v6414
    %v6423 = vadd.f32 %v6296, %v6415
    %v6424 = vadd.f32 %v6297, %v6416
    %v6425 = vadd.f32 %v6298, %v6417
    %v6426 = vadd.f32 %v6299, %v6418
    %v6427 = vadd.f32 %v6300, %v6419
    %v6428 = vadd.f32 %v6301, %v6420
    %v6429 = vld [vmem:[%s7 + $0xe] sm:$0x1]
    %v6430 = vlaneseq
    %v6431 = vshrl.u32 %v6430, 7
    %v6432 = vsub.s32 0, %v6431
    %v6433 = vrot.slane %v6429, %v6432
    %v6434 = vadd.f32 %v6421, %v6433
    %v6435 = vadd.f32 %v6422, %v6433
    %v6436 = vadd.f32 %v6423, %v6433
    %v6437 = vadd.f32 %v6424, %v6433
    %v6438 = vadd.f32 %v6425, %v6433
    %v6439 = vadd.f32 %v6426, %v6433
    %v6440 = vadd.f32 %v6427, %v6433
    %v6441 = vadd.f32 %v6428, %v6433
    %v6442 = vld [vmem:[%s7 + $0xf] sm:$0x1]
    %v6443 = vlaneseq
    %v6444 = vshrl.u32 %v6443, 7
    %v6445 = vsub.s32 0, %v6444
    %v6446 = vrot.slane %v6442, %v6445
    %v6447 = vmul.f32 %v6434, %v6446
    %v6448 = vmul.f32 %v6435, %v6446
    %v6449 = vmul.f32 %v6436, %v6446
    %v6450 = vmul.f32 %v6437, %v6446
    %v6451 = vmul.f32 %v6438, %v6446
    %v6452 = vmul.f32 %v6439, %v6446
    %v6453 = vmul.f32 %v6440, %v6446
    %v6454 = vmul.f32 %v6441, %v6446
    %v6455 = vld [vmem:[%s7 + $0x10] sm:$0x1]
    %v6456 = vlaneseq
    %v6457 = vshrl.u32 %v6456, 7
    %v6458 = vsub.s32 0, %v6457
    %v6459 = vrot.slane %v6455, %v6458
    %v6460 = vadd.f32 %v6447, %v6459
    %v6461 = vadd.f32 %v6448, %v6459
    %v6462 = vadd.f32 %v6449, %v6459
    %v6463 = vadd.f32 %v6450, %v6459
    %v6464 = vadd.f32 %v6451, %v6459
    %v6465 = vadd.f32 %v6452, %v6459
    %v6466 = vadd.f32 %v6453, %v6459
    %v6467 = vadd.f32 %v6454, %v6459
    %v6468 = vxor.u32 %v6460, 2147483648
    %v6469 = vxor.u32 %v6461, 2147483648
    %v6470 = vxor.u32 %v6462, 2147483648
    %v6471 = vxor.u32 %v6463, 2147483648
    %v6472 = vxor.u32 %v6464, 2147483648
    %v6473 = vxor.u32 %v6465, 2147483648
    %v6474 = vxor.u32 %v6466, 2147483648
    %v6475 = vxor.u32 %v6467, 2147483648
    %v6476 = vmul.f32 %v6468, 1.442695
    %v6477 = vpow.pop %v6476
    %v6478 = vmul.f32 %v6469, 1.442695
    %v6479 = vpow.pop %v6478
    %v6480 = vmul.f32 %v6470, 1.442695
    %v6481 = vpow.pop %v6480
    %v6482 = vmul.f32 %v6471, 1.442695
    %v6483 = vpow.pop %v6482
    %v6484 = vmul.f32 %v6472, 1.442695
    %v6485 = vpow.pop %v6484
    %v6486 = vmul.f32 %v6473, 1.442695
    %v6487 = vpow.pop %v6486
    %v6488 = vmul.f32 %v6474, 1.442695
    %v6489 = vpow.pop %v6488
    %v6490 = vmul.f32 %v6475, 1.442695
    %v6491 = vpow.pop %v6490
    %v6492 = vadd.f32 %v6477, 1.0
    %v6493 = vadd.f32 %v6479, 1.0
    %v6494 = vadd.f32 %v6481, 1.0
    %v6495 = vadd.f32 %v6483, 1.0
    %v6496 = vadd.f32 %v6485, 1.0
    %v6497 = vadd.f32 %v6487, 1.0
    %v6498 = vadd.f32 %v6489, 1.0
    %v6499 = vadd.f32 %v6491, 1.0
    %v6500 = vrcp.pop %v6492
    %v6501 = vmul.f32 1.0, %v6500
    %v6502 = vrcp.pop %v6493
    %v6503 = vmul.f32 1.0, %v6502
    %v6504 = vrcp.pop %v6494
    %v6505 = vmul.f32 1.0, %v6504
    %v6506 = vrcp.pop %v6495
    %v6507 = vmul.f32 1.0, %v6506
    %v6508 = vrcp.pop %v6496
    %v6509 = vmul.f32 1.0, %v6508
    %v6510 = vrcp.pop %v6497
    %v6511 = vmul.f32 1.0, %v6510
    %v6512 = vrcp.pop %v6498
    %v6513 = vmul.f32 1.0, %v6512
    %v6514 = vrcp.pop %v6499
    %v6515 = vmul.f32 1.0, %v6514
    %v6516 = vmul.f32 %v6460, %v6501
    %v6517 = vmul.f32 %v6461, %v6503
    %v6518 = vmul.f32 %v6462, %v6505
    %v6519 = vmul.f32 %v6463, %v6507
    %v6520 = vmul.f32 %v6464, %v6509
    %v6521 = vmul.f32 %v6465, %v6511
    %v6522 = vmul.f32 %v6466, %v6513
    %v6523 = vmul.f32 %v6467, %v6515
    %v6524 = vpack.c.bf16 %v6517, %v6516
    %v6525 = vpack.c.bf16 %v6519, %v6518
    %v6526 = vpack.c.bf16 %v6521, %v6520
    %v6527 = vpack.c.bf16 %v6523, %v6522
    %s6528 = scalar_lea.vmem %s3, 224
    %v6529 = vld [vmem:[%s6528] sm:$0xf]
    %v6530 = vld [vmem:[%s6528 + $0x4] sm:$0xf]
    %v6531 = vld [vmem:[%s6528 + $0x8] sm:$0xf]
    %v6532 = vld [vmem:[%s6528 + $0xc] sm:$0xf]
    %v6533 = vld [vmem:[%s6528 + $0x10] sm:$0xf]
    %v6534 = vld [vmem:[%s6528 + $0x14] sm:$0xf]
    %v6535 = vld [vmem:[%s6528 + $0x18] sm:$0xf]
    %v6536 = vld [vmem:[%s6528 + $0x1c] sm:$0xf]
    %v6537 = vld [vmem:[%s7 + $0x11] sm:$0x1]
    %v6538 = vlaneseq
    %v6539 = vshrl.u32 %v6538, 7
    %v6540 = vsub.s32 0, %v6539
    %v6541 = vrot.slane %v6537, %v6540
    %v6550 = vunpack.c.l.b16 %v6529
    %v6551 = vunpack.c.l.b16 %v6530
    %v6552 = vunpack.c.l.b16 %v6531
    %v6553 = vunpack.c.l.b16 %v6532
    %v6554 = vunpack.c.l.b16 %v6533
    %v6555 = vunpack.c.l.b16 %v6534
    %v6556 = vunpack.c.l.b16 %v6535
    %v6557 = vunpack.c.l.b16 %v6536
    %v6558 = vpack.c.b16 %v6551, %v6550
    %v6559 = vpack.c.b16 %v6553, %v6552
    %v6560 = vpack.c.b16 %v6555, %v6554
    %v6561 = vpack.c.b16 %v6557, %v6556
    %v6567 = vsel %vm268, %v6524, 0
    %v6570 = vsel %vm268, %v6525, 0
    %v6573 = vsel %vm268, %v6526, 0
    %v6576 = vsel %vm268, %v6527, 0
    %6578 = vmatprep.subr.bf16.mxu0 0
    %6579 = vmatpush1.bf16.msra.mxu0 %v6558
    %6580 = vmatprep.subr.bf16.mxu0 0
    %6581 = vmatpush1.bf16.msra.mxu0 %v6559
    %6582 = vmatprep.subr.bf16.mxu0 0
    %6583 = vmatpush1.bf16.msra.mxu0 %v6560
    %6584 = vmatprep.subr.bf16.mxu0 0
    %6585 = vmatpush1.bf16.msra.mxu0 %v6561
    %6586 = vmatprep.subr.bf16.mxu0 0
    %6587 = vmatpush1.bf16.msra.mxu0 0
    %6588 = vmatprep.subr.bf16.mxu0 0
    %6589 = vmatpush1.bf16.msra.mxu0 0
    %6590 = vmatprep.subr.bf16.mxu0 0
    %6591 = vmatpush1.bf16.msra.mxu0 0
    %6592 = vmatprep.subr.bf16.mxu0 0
    %6593 = vmatpush1.bf16.msra.mxu0 0
    %6594 = vmatprep.subr.bf16.mxu0 0
    %6595 = vmatpush1.bf16.msra.mxu0 0
    %6596 = vmatprep.subr.bf16.mxu0 0
    %6597 = vmatpush1.bf16.msra.mxu0 0
    %6598 = vmatprep.subr.bf16.mxu0 0
    %6599 = vmatpush1.bf16.msra.mxu0 0
    %6600 = vmatprep.subr.bf16.mxu0 0
    %6601 = vmatpush1.bf16.msra.mxu0 0
    %6602 = vmatprep.subr.bf16.mxu0 0
    %6603 = vmatpush1.bf16.msra.mxu0 0
    %6604 = vmatprep.subr.bf16.mxu0 0
    %6605 = vmatpush1.bf16.msra.mxu0 0
    %6606 = vmatprep.subr.bf16.mxu0 0
    %6607 = vmatpush1.bf16.msra.mxu0 0
    %6608 = vmatprep.subr.bf16.mxu0 0
    %6609 = vmatpush1.bf16.msra.mxu0 0
    %6610 = vmatprep.mubr.bf16.mxu0 0
    %6611 = vmatmul.mubr.bf16.gmra.mrb[0].mxu0 %v6567
    %v6612 = vpop.f32.mrb[0].mxu0
    %v6613 = vadd.f32 %v6541, %v6612
    %v6614 = vpop.f32.mrb[0].mxu0
    %v6615 = vpop.f32.mrb[0].mxu0
    %v6616 = vadd.f32 %v6541, %v6615
    %v6617 = vpop.f32.mrb[0].mxu0
    %6618 = vmatprep.mubr.bf16.mxu0 0
    %6619 = vmatmul.mubr.bf16.gmra.mrb[0].mxu0 %v6570
    %v6620 = vpop.f32.mrb[0].mxu0
    %v6621 = vadd.f32 %v6541, %v6620
    %v6622 = vpop.f32.mrb[0].mxu0
    %v6623 = vpop.f32.mrb[0].mxu0
    %v6624 = vadd.f32 %v6541, %v6623
    %v6625 = vpop.f32.mrb[0].mxu0
    %6626 = vmatprep.mubr.bf16.mxu0 0
    %6627 = vmatmul.mubr.bf16.gmra.mrb[0].mxu0 %v6573
    %v6628 = vpop.f32.mrb[0].mxu0
    %v6629 = vadd.f32 %v6541, %v6628
    %v6630 = vpop.f32.mrb[0].mxu0
    %v6631 = vpop.f32.mrb[0].mxu0
    %v6632 = vadd.f32 %v6541, %v6631
    %v6633 = vpop.f32.mrb[0].mxu0
    %6634 = vmatprep.mubr.bf16.mxu0 0
    %6635 = vmatmul.mubr.bf16.gmra.mrb[0].mxu0 %v6576
    %v6636 = vpop.f32.mrb[0].mxu0
    %v6637 = vadd.f32 %v6541, %v6636
    %v6638 = vpop.f32.mrb[0].mxu0
    %v6639 = vpop.f32.mrb[0].mxu0
    %v6640 = vadd.f32 %v6541, %v6639
    %v6641 = vpop.f32.mrb[0].mxu0
    %6642 = vdwg.mxu0
    %v6643 = vadd.f32 %v2203, %v6613
    %v6644 = vadd.f32 %v2204, %v6616
    %v6645 = vadd.f32 %v2205, %v6621
    %v6646 = vadd.f32 %v2206, %v6624
    %v6647 = vadd.f32 %v2207, %v6629
    %v6648 = vadd.f32 %v2208, %v6632
    %v6649 = vadd.f32 %v2209, %v6637
    %v6650 = vadd.f32 %v2210, %v6640
    %v6651 = vsel %vm268, %v6643, 0.0
    %6652 = vadd.xlane.f32.xlu0 %v6651
    %v6653 = vpop.xlane.xlu0 %6652
    %v6654 = vsel %vm268, %v6644, 0.0
    %6655 = vadd.xlane.f32.xlu0 %v6654
    %v6656 = vpop.xlane.xlu0 %6655
    %v6657 = vsel %vm268, %v6645, 0.0
    %6658 = vadd.xlane.f32.xlu0 %v6657
    %v6659 = vpop.xlane.xlu0 %6658
    %v6660 = vsel %vm268, %v6646, 0.0
    %6661 = vadd.xlane.f32.xlu0 %v6660
    %v6662 = vpop.xlane.xlu0 %6661
    %v6663 = vsel %vm268, %v6647, 0.0
    %6664 = vadd.xlane.f32.xlu0 %v6663
    %v6665 = vpop.xlane.xlu0 %6664
    %v6666 = vsel %vm268, %v6648, 0.0
    %6667 = vadd.xlane.f32.xlu0 %v6666
    %v6668 = vpop.xlane.xlu0 %6667
    %v6669 = vsel %vm268, %v6649, 0.0
    %6670 = vadd.xlane.f32.xlu0 %v6669
    %v6671 = vpop.xlane.xlu0 %6670
    %v6672 = vsel %vm268, %v6650, 0.0
    %6673 = vadd.xlane.f32.xlu0 %v6672
    %v6674 = vpop.xlane.xlu0 %6673
    %v6675 = vmul.f32 %v6653, %v1491
    %v6676 = vmul.f32 %v6656, %v1491
    %v6677 = vmul.f32 %v6659, %v1491
    %v6678 = vmul.f32 %v6662, %v1491
    %v6679 = vmul.f32 %v6665, %v1491
    %v6680 = vmul.f32 %v6668, %v1491
    %v6681 = vmul.f32 %v6671, %v1491
    %v6682 = vmul.f32 %v6674, %v1491
    %v6683 = vsub.f32 %v6643, %v6675
    %v6684 = vsub.f32 %v6644, %v6676
    %v6685 = vsub.f32 %v6645, %v6677
    %v6686 = vsub.f32 %v6646, %v6678
    %v6687 = vsub.f32 %v6647, %v6679
    %v6688 = vsub.f32 %v6648, %v6680
    %v6689 = vsub.f32 %v6649, %v6681
    %v6690 = vsub.f32 %v6650, %v6682
    %v6691 = vmul.f32 %v6683, %v6683
    %v6692 = vmul.f32 %v6684, %v6684
    %v6693 = vmul.f32 %v6685, %v6685
    %v6694 = vmul.f32 %v6686, %v6686
    %v6695 = vmul.f32 %v6687, %v6687
    %v6696 = vmul.f32 %v6688, %v6688
    %v6697 = vmul.f32 %v6689, %v6689
    %v6698 = vmul.f32 %v6690, %v6690
    %v6699 = vsel %vm268, %v6691, 0.0
    %6700 = vadd.xlane.f32.xlu0 %v6699
    %v6701 = vpop.xlane.xlu0 %6700
    %v6702 = vsel %vm268, %v6692, 0.0
    %6703 = vadd.xlane.f32.xlu0 %v6702
    %v6704 = vpop.xlane.xlu0 %6703
    %v6705 = vsel %vm268, %v6693, 0.0
    %6706 = vadd.xlane.f32.xlu0 %v6705
    %v6707 = vpop.xlane.xlu0 %6706
    %v6708 = vsel %vm268, %v6694, 0.0
    %6709 = vadd.xlane.f32.xlu0 %v6708
    %v6710 = vpop.xlane.xlu0 %6709
    %v6711 = vsel %vm268, %v6695, 0.0
    %6712 = vadd.xlane.f32.xlu0 %v6711
    %v6713 = vpop.xlane.xlu0 %6712
    %v6714 = vsel %vm268, %v6696, 0.0
    %6715 = vadd.xlane.f32.xlu0 %v6714
    %v6716 = vpop.xlane.xlu0 %6715
    %v6717 = vsel %vm268, %v6697, 0.0
    %6718 = vadd.xlane.f32.xlu0 %v6717
    %v6719 = vpop.xlane.xlu0 %6718
    %v6720 = vsel %vm268, %v6698, 0.0
    %6721 = vadd.xlane.f32.xlu0 %v6720
    %v6722 = vpop.xlane.xlu0 %6721
    %v6723 = vmul.f32 %v6701, %v1491
    %v6724 = vmul.f32 %v6704, %v1491
    %v6725 = vmul.f32 %v6707, %v1491
    %v6726 = vmul.f32 %v6710, %v1491
    %v6727 = vmul.f32 %v6713, %v1491
    %v6728 = vmul.f32 %v6716, %v1491
    %v6729 = vmul.f32 %v6719, %v1491
    %v6730 = vmul.f32 %v6722, %v1491
    %v6731 = vadd.f32 %v6723, 1e-05
    %v6732 = vadd.f32 %v6724, 1e-05
    %v6733 = vadd.f32 %v6725, 1e-05
    %v6734 = vadd.f32 %v6726, 1e-05
    %v6735 = vadd.f32 %v6727, 1e-05
    %v6736 = vadd.f32 %v6728, 1e-05
    %v6737 = vadd.f32 %v6729, 1e-05
    %v6738 = vadd.f32 %v6730, 1e-05
    %v6739 = vrsqrt.pop %v6731
    %v6740 = vrsqrt.pop %v6732
    %v6741 = vrsqrt.pop %v6733
    %v6742 = vrsqrt.pop %v6734
    %v6743 = vrsqrt.pop %v6735
    %v6744 = vrsqrt.pop %v6736
    %v6745 = vrsqrt.pop %v6737
    %v6746 = vrsqrt.pop %v6738
    %v6747 = vmul.f32 %v6683, %v6739
    %v6748 = vmul.f32 %v6684, %v6740
    %v6749 = vmul.f32 %v6685, %v6741
    %v6750 = vmul.f32 %v6686, %v6742
    %v6751 = vmul.f32 %v6687, %v6743
    %v6752 = vmul.f32 %v6688, %v6744
    %v6753 = vmul.f32 %v6689, %v6745
    %v6754 = vmul.f32 %v6690, %v6746
    %v6755 = vld [vmem:[%s7 + $0x12] sm:$0x1]
    %v6756 = vlaneseq
    %v6757 = vshrl.u32 %v6756, 7
    %v6758 = vsub.s32 0, %v6757
    %v6759 = vrot.slane %v6755, %v6758
    %v6760 = vmul.f32 %v6747, %v6759
    %v6761 = vmul.f32 %v6748, %v6759
    %v6762 = vmul.f32 %v6749, %v6759
    %v6763 = vmul.f32 %v6750, %v6759
    %v6764 = vmul.f32 %v6751, %v6759
    %v6765 = vmul.f32 %v6752, %v6759
    %v6766 = vmul.f32 %v6753, %v6759
    %v6767 = vmul.f32 %v6754, %v6759
    %v6768 = vld [vmem:[%s7 + $0x13] sm:$0x1]
    %v6769 = vlaneseq
    %v6770 = vshrl.u32 %v6769, 7
    %v6771 = vsub.s32 0, %v6770
    %v6772 = vrot.slane %v6768, %v6771
    %v6773 = vadd.f32 %v6760, %v6772
    %v6774 = vadd.f32 %v6761, %v6772
    %v6775 = vadd.f32 %v6762, %v6772
    %v6776 = vadd.f32 %v6763, %v6772
    %v6777 = vadd.f32 %v6764, %v6772
    %v6778 = vadd.f32 %v6765, %v6772
    %v6779 = vadd.f32 %v6766, %v6772
    %v6780 = vadd.f32 %v6767, %v6772
    %v6781 = vpack.c.bf16 %v6774, %v6773
    %v6782 = vpack.c.bf16 %v6776, %v6775
    %v6783 = vpack.c.bf16 %v6778, %v6777
    %v6784 = vpack.c.bf16 %v6780, %v6779
    %s6785 = scalar_lea.vmem %s4, 64
    %v6786 = vld [vmem:[%s6785] sm:$0xff]
    %v6787 = vld [vmem:[%s6785 + $0x8] sm:$0xff]
    %v6788 = vld [vmem:[%s6785 + $0x10] sm:$0xff]
    %v6789 = vld [vmem:[%s6785 + $0x18] sm:$0xff]
    %v6790 = vld [vmem:[%s6785 + $0x20] sm:$0xff]
    %v6791 = vld [vmem:[%s6785 + $0x28] sm:$0xff]
    %v6792 = vld [vmem:[%s6785 + $0x30] sm:$0xff]
    %v6793 = vld [vmem:[%s6785 + $0x38] sm:$0xff]
    %s6794 = scalar_lea.vmem %s8, 1
    %v6795 = vld [vmem:[%s6794] ss:$2 sm:$0x3]
    %v6797 = vlaneseq
    %v6798 = vshrl.u32 %v6797, 7
    %v6799 = vsub.s32 0, %v6798
    %v6800 = vrot.slane %v6795, %v6799
    %v6801 = vlaneseq
    %v6802 = vshrl.u32 %v6801, 7
    %v6803 = vsub.s32 1, %v6802
    %v6804 = vrot.slane %v6795, %v6803
    %v6815 = vunpack.c.l.b16 %v6786
    %v6816 = vunpack.c.h.b16 %v6786
    %v6817 = vunpack.c.l.b16 %v6787
    %v6818 = vunpack.c.h.b16 %v6787
    %v6819 = vunpack.c.l.b16 %v6788
    %v6820 = vunpack.c.h.b16 %v6788
    %v6821 = vunpack.c.l.b16 %v6789
    %v6822 = vunpack.c.h.b16 %v6789
    %v6823 = vunpack.c.l.b16 %v6790
    %v6824 = vunpack.c.h.b16 %v6790
    %v6825 = vunpack.c.l.b16 %v6791
    %v6826 = vunpack.c.h.b16 %v6791
    %v6827 = vunpack.c.l.b16 %v6792
    %v6828 = vunpack.c.h.b16 %v6792
    %v6829 = vunpack.c.l.b16 %v6793
    %v6830 = vunpack.c.h.b16 %v6793
    %v6831 = vpack.c.b16 %v6817, %v6815
    %v6832 = vpack.c.b16 %v6818, %v6816
    %v6833 = vpack.c.b16 %v6821, %v6819
    %v6834 = vpack.c.b16 %v6822, %v6820
    %v6835 = vpack.c.b16 %v6825, %v6823
    %v6836 = vpack.c.b16 %v6826, %v6824
    %v6837 = vpack.c.b16 %v6829, %v6827
    %v6838 = vpack.c.b16 %v6830, %v6828
    %v6848 = vsel %vm268, %v6781, 0
    %v6851 = vsel %vm268, %v6782, 0
    %v6854 = vsel %vm268, %v6783, 0
    %v6857 = vsel %vm268, %v6784, 0
    %6859 = vmatprep.subr.bf16.mxu0 %v6832
    %6860 = vmatpush1.bf16.msra.mxu0 %v6831
    %6861 = vmatprep.subr.bf16.mxu0 %v6834
    %6862 = vmatpush1.bf16.msra.mxu0 %v6833
    %6863 = vmatprep.subr.bf16.mxu0 %v6836
    %6864 = vmatpush1.bf16.msra.mxu0 %v6835
    %6865 = vmatprep.subr.bf16.mxu0 %v6838
    %6866 = vmatpush1.bf16.msra.mxu0 %v6837
    %6867 = vmatprep.subr.bf16.mxu0 0
    %6868 = vmatpush1.bf16.msra.mxu0 0
    %6869 = vmatprep.subr.bf16.mxu0 0
    %6870 = vmatpush1.bf16.msra.mxu0 0
    %6871 = vmatprep.subr.bf16.mxu0 0
    %6872 = vmatpush1.bf16.msra.mxu0 0
    %6873 = vmatprep.subr.bf16.mxu0 0
    %6874 = vmatpush1.bf16.msra.mxu0 0
    %6875 = vmatprep.subr.bf16.mxu0 0
    %6876 = vmatpush1.bf16.msra.mxu0 0
    %6877 = vmatprep.subr.bf16.mxu0 0
    %6878 = vmatpush1.bf16.msra.mxu0 0
    %6879 = vmatprep.subr.bf16.mxu0 0
    %6880 = vmatpush1.bf16.msra.mxu0 0
    %6881 = vmatprep.subr.bf16.mxu0 0
    %6882 = vmatpush1.bf16.msra.mxu0 0
    %6883 = vmatprep.subr.bf16.mxu0 0
    %6884 = vmatpush1.bf16.msra.mxu0 0
    %6885 = vmatprep.subr.bf16.mxu0 0
    %6886 = vmatpush1.bf16.msra.mxu0 0
    %6887 = vmatprep.subr.bf16.mxu0 0
    %6888 = vmatpush1.bf16.msra.mxu0 0
    %6889 = vmatprep.subr.bf16.mxu0 0
    %6890 = vmatpush1.bf16.msra.mxu0 0
    %6891 = vmatprep.mubr.bf16.mxu0 0
    %6892 = vmatmul.mubr.bf16.gmra.mrb[0].mxu0 %v6848
    %v6893 = vpop.f32.mrb[0].mxu0
    %v6894 = vadd.f32 %v6800, %v6893
    %v6895 = vpop.f32.mrb[0].mxu0
    %v6896 = vadd.f32 %v6804, %v6895
    %v6897 = vpop.f32.mrb[0].mxu0
    %v6898 = vadd.f32 %v6800, %v6897
    %v6899 = vpop.f32.mrb[0].mxu0
    %v6900 = vadd.f32 %v6804, %v6899
    %6901 = vmatprep.mubr.bf16.mxu0 0
    %6902 = vmatmul.mubr.bf16.gmra.mrb[0].mxu0 %v6851
    %v6903 = vpop.f32.mrb[0].mxu0
    %v6904 = vadd.f32 %v6800, %v6903
    %v6905 = vpop.f32.mrb[0].mxu0
    %v6906 = vadd.f32 %v6804, %v6905
    %v6907 = vpop.f32.mrb[0].mxu0
    %v6908 = vadd.f32 %v6800, %v6907
    %v6909 = vpop.f32.mrb[0].mxu0
    %v6910 = vadd.f32 %v6804, %v6909
    %6911 = vmatprep.mubr.bf16.mxu0 0
    %6912 = vmatmul.mubr.bf16.gmra.mrb[0].mxu0 %v6854
    %v6913 = vpop.f32.mrb[0].mxu0
    %v6914 = vadd.f32 %v6800, %v6913
    %v6915 = vpop.f32.mrb[0].mxu0
    %v6916 = vadd.f32 %v6804, %v6915
    %v6917 = vpop.f32.mrb[0].mxu0
    %v6918 = vadd.f32 %v6800, %v6917
    %v6919 = vpop.f32.mrb[0].mxu0
    %v6920 = vadd.f32 %v6804, %v6919
    %6921 = vmatprep.mubr.bf16.mxu0 0
    %6922 = vmatmul.mubr.bf16.gmra.mrb[0].mxu0 %v6857
    %v6923 = vpop.f32.mrb[0].mxu0
    %v6924 = vadd.f32 %v6800, %v6923
    %v6925 = vpop.f32.mrb[0].mxu0
    %v6926 = vadd.f32 %v6804, %v6925
    %v6927 = vpop.f32.mrb[0].mxu0
    %v6928 = vadd.f32 %v6800, %v6927
    %v6929 = vpop.f32.mrb[0].mxu0
    %v6930 = vadd.f32 %v6804, %v6929
    %6931 = vdwg.mxu0
    %v6932 = vxor.u32 %v6894, 2147483648
    %v6933 = vxor.u32 %v6896, 2147483648
    %v6934 = vxor.u32 %v6898, 2147483648
    %v6935 = vxor.u32 %v6900, 2147483648
    %v6936 = vxor.u32 %v6904, 2147483648
    %v6937 = vxor.u32 %v6906, 2147483648
    %v6938 = vxor.u32 %v6908, 2147483648
    %v6939 = vxor.u32 %v6910, 2147483648
    %v6940 = vxor.u32 %v6914, 2147483648
    %v6941 = vxor.u32 %v6916, 2147483648
    %v6942 = vxor.u32 %v6918, 2147483648
    %v6943 = vxor.u32 %v6920, 2147483648
    %v6944 = vxor.u32 %v6924, 2147483648
    %v6945 = vxor.u32 %v6926, 2147483648
    %v6946 = vxor.u32 %v6928, 2147483648
    %v6947 = vxor.u32 %v6930, 2147483648
    %v6948 = vmul.f32 %v6932, 1.442695
    %v6949 = vpow.pop %v6948
    %v6950 = vmul.f32 %v6933, 1.442695
    %v6951 = vpow.pop %v6950
    %v6952 = vmul.f32 %v6934, 1.442695
    %v6953 = vpow.pop %v6952
    %v6954 = vmul.f32 %v6935, 1.442695
    %v6955 = vpow.pop %v6954
    %v6956 = vmul.f32 %v6936, 1.442695
    %v6957 = vpow.pop %v6956
    %v6958 = vmul.f32 %v6937, 1.442695
    %v6959 = vpow.pop %v6958
    %v6960 = vmul.f32 %v6938, 1.442695
    %v6961 = vpow.pop %v6960
    %v6962 = vmul.f32 %v6939, 1.442695
    %v6963 = vpow.pop %v6962
    %v6964 = vmul.f32 %v6940, 1.442695
    %v6965 = vpow.pop %v6964
    %v6966 = vmul.f32 %v6941, 1.442695
    %v6967 = vpow.pop %v6966
    %v6968 = vmul.f32 %v6942, 1.442695
    %v6969 = vpow.pop %v6968
    %v6970 = vmul.f32 %v6943, 1.442695
    %v6971 = vpow.pop %v6970
    %v6972 = vmul.f32 %v6944, 1.442695
    %v6973 = vpow.pop %v6972
    %v6974 = vmul.f32 %v6945, 1.442695
    %v6975 = vpow.pop %v6974
    %v6976 = vmul.f32 %v6946, 1.442695
    %v6977 = vpow.pop %v6976
    %v6978 = vmul.f32 %v6947, 1.442695
    %v6979 = vpow.pop %v6978
    %v6980 = vadd.f32 %v6949, 1.0
    %v6981 = vadd.f32 %v6951, 1.0
    %v6982 = vadd.f32 %v6953, 1.0
    %v6983 = vadd.f32 %v6955, 1.0
    %v6984 = vadd.f32 %v6957, 1.0
    %v6985 = vadd.f32 %v6959, 1.0
    %v6986 = vadd.f32 %v6961, 1.0
    %v6987 = vadd.f32 %v6963, 1.0
    %v6988 = vadd.f32 %v6965, 1.0
    %v6989 = vadd.f32 %v6967, 1.0
    %v6990 = vadd.f32 %v6969, 1.0
    %v6991 = vadd.f32 %v6971, 1.0
    %v6992 = vadd.f32 %v6973, 1.0
    %v6993 = vadd.f32 %v6975, 1.0
    %v6994 = vadd.f32 %v6977, 1.0
    %v6995 = vadd.f32 %v6979, 1.0
    %v6996 = vrcp.pop %v6980
    %v6997 = vmul.f32 1.0, %v6996
    %v6998 = vrcp.pop %v6981
    %v6999 = vmul.f32 1.0, %v6998
    %v7000 = vrcp.pop %v6982
    %v7001 = vmul.f32 1.0, %v7000
    %v7002 = vrcp.pop %v6983
    %v7003 = vmul.f32 1.0, %v7002
    %v7004 = vrcp.pop %v6984
    %v7005 = vmul.f32 1.0, %v7004
    %v7006 = vrcp.pop %v6985
    %v7007 = vmul.f32 1.0, %v7006
    %v7008 = vrcp.pop %v6986
    %v7009 = vmul.f32 1.0, %v7008
    %v7010 = vrcp.pop %v6987
    %v7011 = vmul.f32 1.0, %v7010
    %v7012 = vrcp.pop %v6988
    %v7013 = vmul.f32 1.0, %v7012
    %v7014 = vrcp.pop %v6989
    %v7015 = vmul.f32 1.0, %v7014
    %v7016 = vrcp.pop %v6990
    %v7017 = vmul.f32 1.0, %v7016
    %v7018 = vrcp.pop %v6991
    %v7019 = vmul.f32 1.0, %v7018
    %v7020 = vrcp.pop %v6992
    %v7021 = vmul.f32 1.0, %v7020
    %v7022 = vrcp.pop %v6993
    %v7023 = vmul.f32 1.0, %v7022
    %v7024 = vrcp.pop %v6994
    %v7025 = vmul.f32 1.0, %v7024
    %v7026 = vrcp.pop %v6995
    %v7027 = vmul.f32 1.0, %v7026
    %v7028 = vmul.f32 %v6894, %v6997
    %v7029 = vmul.f32 %v6896, %v6999
    %v7030 = vmul.f32 %v6898, %v7001
    %v7031 = vmul.f32 %v6900, %v7003
    %v7032 = vmul.f32 %v6904, %v7005
    %v7033 = vmul.f32 %v6906, %v7007
    %v7034 = vmul.f32 %v6908, %v7009
    %v7035 = vmul.f32 %v6910, %v7011
    %v7036 = vmul.f32 %v6914, %v7013
    %v7037 = vmul.f32 %v6916, %v7015
    %v7038 = vmul.f32 %v6918, %v7017
    %v7039 = vmul.f32 %v6920, %v7019
    %v7040 = vmul.f32 %v6924, %v7021
    %v7041 = vmul.f32 %v6926, %v7023
    %v7042 = vmul.f32 %v6928, %v7025
    %v7043 = vmul.f32 %v6930, %v7027
    %v7044 = vpack.c.bf16 %v7030, %v7028
    %v7045 = vpack.c.bf16 %v7031, %v7029
    %v7046 = vpack.c.bf16 %v7034, %v7032
    %v7047 = vpack.c.bf16 %v7035, %v7033
    %v7048 = vpack.c.bf16 %v7038, %v7036
    %v7049 = vpack.c.bf16 %v7039, %v7037
    %v7050 = vpack.c.bf16 %v7042, %v7040
    %v7051 = vpack.c.bf16 %v7043, %v7041
    %s7052 = scalar_lea.vmem %s5, 128
    %v7053 = vld [vmem:[%s7052] sm:$0xf]
    %v7054 = vld [vmem:[%s7052 + $0x4] sm:$0xf]
    %v7055 = vld [vmem:[%s7052 + $0x8] sm:$0xf]
    %v7056 = vld [vmem:[%s7052 + $0xc] sm:$0xf]
    %v7057 = vld [vmem:[%s7052 + $0x10] sm:$0xf]
    %v7058 = vld [vmem:[%s7052 + $0x14] sm:$0xf]
    %v7059 = vld [vmem:[%s7052 + $0x18] sm:$0xf]
    %v7060 = vld [vmem:[%s7052 + $0x1c] sm:$0xf]
    %v7061 = vld [vmem:[%s7052 + $0x20] sm:$0xf]
    %v7062 = vld [vmem:[%s7052 + $0x24] sm:$0xf]
    %v7063 = vld [vmem:[%s7052 + $0x28] sm:$0xf]
    %v7064 = vld [vmem:[%s7052 + $0x2c] sm:$0xf]
    %v7065 = vld [vmem:[%s7052 + $0x30] sm:$0xf]
    %v7066 = vld [vmem:[%s7052 + $0x34] sm:$0xf]
    %v7067 = vld [vmem:[%s7052 + $0x38] sm:$0xf]
    %v7068 = vld [vmem:[%s7052 + $0x3c] sm:$0xf]
    %v7069 = vld [vmem:[%s7052 + $0x40] sm:$0xf]
    %v7070 = vld [vmem:[%s7052 + $0x44] sm:$0xf]
    %v7071 = vld [vmem:[%s7052 + $0x48] sm:$0xf]
    %v7072 = vld [vmem:[%s7052 + $0x4c] sm:$0xf]
    %v7073 = vld [vmem:[%s7052 + $0x50] sm:$0xf]
    %v7074 = vld [vmem:[%s7052 + $0x54] sm:$0xf]
    %v7075 = vld [vmem:[%s7052 + $0x58] sm:$0xf]
    %v7076 = vld [vmem:[%s7052 + $0x5c] sm:$0xf]
    %v7077 = vld [vmem:[%s7052 + $0x60] sm:$0xf]
    %v7078 = vld [vmem:[%s7052 + $0x64] sm:$0xf]
    %v7079 = vld [vmem:[%s7052 + $0x68] sm:$0xf]
    %v7080 = vld [vmem:[%s7052 + $0x6c] sm:$0xf]
    %v7081 = vld [vmem:[%s7052 + $0x70] sm:$0xf]
    %v7082 = vld [vmem:[%s7052 + $0x74] sm:$0xf]
    %v7083 = vld [vmem:[%s7052 + $0x78] sm:$0xf]
    %v7084 = vld [vmem:[%s7052 + $0x7c] sm:$0xf]
    %v7117 = vunpack.c.l.b16 %v7053
    %v7118 = vunpack.c.l.b16 %v7054
    %v7119 = vunpack.c.l.b16 %v7055
    %v7120 = vunpack.c.l.b16 %v7056
    %v7121 = vunpack.c.l.b16 %v7057
    %v7122 = vunpack.c.l.b16 %v7058
    %v7123 = vunpack.c.l.b16 %v7059
    %v7124 = vunpack.c.l.b16 %v7060
    %v7125 = vunpack.c.l.b16 %v7061
    %v7126 = vunpack.c.l.b16 %v7062
    %v7127 = vunpack.c.l.b16 %v7063
    %v7128 = vunpack.c.l.b16 %v7064
    %v7129 = vunpack.c.l.b16 %v7065
    %v7130 = vunpack.c.l.b16 %v7066
    %v7131 = vunpack.c.l.b16 %v7067
    %v7132 = vunpack.c.l.b16 %v7068
    %v7133 = vunpack.c.l.b16 %v7069
    %v7134 = vunpack.c.l.b16 %v7070
    %v7135 = vunpack.c.l.b16 %v7071
    %v7136 = vunpack.c.l.b16 %v7072
    %v7137 = vunpack.c.l.b16 %v7073
    %v7138 = vunpack.c.l.b16 %v7074
    %v7139 = vunpack.c.l.b16 %v7075
    %v7140 = vunpack.c.l.b16 %v7076
    %v7141 = vunpack.c.l.b16 %v7077
    %v7142 = vunpack.c.l.b16 %v7078
    %v7143 = vunpack.c.l.b16 %v7079
    %v7144 = vunpack.c.l.b16 %v7080
    %v7145 = vunpack.c.l.b16 %v7081
    %v7146 = vunpack.c.l.b16 %v7082
    %v7147 = vunpack.c.l.b16 %v7083
    %v7148 = vunpack.c.l.b16 %v7084
    %v7149 = vpack.c.b16 %v7118, %v7117
    %v7150 = vpack.c.b16 %v7120, %v7119
    %v7151 = vpack.c.b16 %v7122, %v7121
    %v7152 = vpack.c.b16 %v7124, %v7123
    %v7153 = vpack.c.b16 %v7126, %v7125
    %v7154 = vpack.c.b16 %v7128, %v7127
    %v7155 = vpack.c.b16 %v7130, %v7129
    %v7156 = vpack.c.b16 %v7132, %v7131
    %v7157 = vpack.c.b16 %v7134, %v7133
    %v7158 = vpack.c.b16 %v7136, %v7135
    %v7159 = vpack.c.b16 %v7138, %v7137
    %v7160 = vpack.c.b16 %v7140, %v7139
    %v7161 = vpack.c.b16 %v7142, %v7141
    %v7162 = vpack.c.b16 %v7144, %v7143
    %v7163 = vpack.c.b16 %v7146, %v7145
    %v7164 = vpack.c.b16 %v7148, %v7147
    %7181 = vmatprep.subr.bf16.mxu0 0
    %7182 = vmatpush1.bf16.msra.mxu0 %v7149
    %7183 = vmatprep.subr.bf16.mxu0 0
    %7184 = vmatpush1.bf16.msra.mxu0 %v7150
    %7185 = vmatprep.subr.bf16.mxu0 0
    %7186 = vmatpush1.bf16.msra.mxu0 %v7151
    %7187 = vmatprep.subr.bf16.mxu0 0
    %7188 = vmatpush1.bf16.msra.mxu0 %v7152
    %7189 = vmatprep.subr.bf16.mxu0 0
    %7190 = vmatpush1.bf16.msra.mxu0 %v7153
    %7191 = vmatprep.subr.bf16.mxu0 0
    %7192 = vmatpush1.bf16.msra.mxu0 %v7154
    %7193 = vmatprep.subr.bf16.mxu0 0
    %7194 = vmatpush1.bf16.msra.mxu0 %v7155
    %7195 = vmatprep.subr.bf16.mxu0 0
    %7196 = vmatpush1.bf16.msra.mxu0 %v7156
    %7197 = vmatprep.subr.bf16.mxu0 0
    %7198 = vmatpush1.bf16.msra.mxu0 %v7157
    %7199 = vmatprep.subr.bf16.mxu0 0
    %7200 = vmatpush1.bf16.msra.mxu0 %v7158
    %7201 = vmatprep.subr.bf16.mxu0 0
    %7202 = vmatpush1.bf16.msra.mxu0 %v7159
    %7203 = vmatprep.subr.bf16.mxu0 0
    %7204 = vmatpush1.bf16.msra.mxu0 %v7160
    %7205 = vmatprep.subr.bf16.mxu0 0
    %7206 = vmatpush1.bf16.msra.mxu0 %v7161
    %7207 = vmatprep.subr.bf16.mxu0 0
    %7208 = vmatpush1.bf16.msra.mxu0 %v7162
    %7209 = vmatprep.subr.bf16.mxu0 0
    %7210 = vmatpush1.bf16.msra.mxu0 %v7163
    %7211 = vmatprep.subr.bf16.mxu0 0
    %7212 = vmatpush1.bf16.msra.mxu0 %v7164
    %7213 = vmatprep.mubr.bf16.mxu0 %v7045
    %7214 = vmatmul.mubr.bf16.gmra.mrb[0].mxu0 %v7044
    %v7215 = vpop.f32.mrb[0].mxu0
    %v7216 = vadd.f32 0.0, %v7215
    %v7217 = vpop.f32.mrb[0].mxu0
    %v7218 = vpop.f32.mrb[0].mxu0
    %v7219 = vadd.f32 0.0, %v7218
    %v7220 = vpop.f32.mrb[0].mxu0
    %7221 = vmatprep.mubr.bf16.mxu0 %v7047
    %7222 = vmatmul.mubr.bf16.gmra.mrb[0].mxu0 %v7046
    %v7223 = vpop.f32.mrb[0].mxu0
    %v7224 = vadd.f32 0.0, %v7223
    %v7225 = vpop.f32.mrb[0].mxu0
    %v7226 = vpop.f32.mrb[0].mxu0
    %v7227 = vadd.f32 0.0, %v7226
    %v7228 = vpop.f32.mrb[0].mxu0
    %7229 = vmatprep.mubr.bf16.mxu0 %v7049
    %7230 = vmatmul.mubr.bf16.gmra.mrb[0].mxu0 %v7048
    %v7231 = vpop.f32.mrb[0].mxu0
    %v7232 = vadd.f32 0.0, %v7231
    %v7233 = vpop.f32.mrb[0].mxu0
    %v7234 = vpop.f32.mrb[0].mxu0
    %v7235 = vadd.f32 0.0, %v7234
    %v7236 = vpop.f32.mrb[0].mxu0
    %7237 = vmatprep.mubr.bf16.mxu0 %v7051
    %7238 = vmatmul.mubr.bf16.gmra.mrb[0].mxu0 %v7050
    %v7239 = vpop.f32.mrb[0].mxu0
    %v7240 = vadd.f32 0.0, %v7239
    %v7241 = vpop.f32.mrb[0].mxu0
    %v7242 = vpop.f32.mrb[0].mxu0
    %v7243 = vadd.f32 0.0, %v7242
    %v7244 = vpop.f32.mrb[0].mxu0
    %7245 = vdwg.mxu0
    %v7246 = vadd.f32 %v6773, %v7216
    %v7247 = vadd.f32 %v6774, %v7219
    %v7248 = vadd.f32 %v6775, %v7224
    %v7249 = vadd.f32 %v6776, %v7227
    %v7250 = vadd.f32 %v6777, %v7232
    %v7251 = vadd.f32 %v6778, %v7235
    %v7252 = vadd.f32 %v6779, %v7240
    %v7253 = vadd.f32 %v6780, %v7243
    %v7254 = vld [vmem:[%s7 + $0x14] sm:$0x1]
    %v7255 = vlaneseq
    %v7256 = vshrl.u32 %v7255, 7
    %v7257 = vsub.s32 0, %v7256
    %v7258 = vrot.slane %v7254, %v7257
    %v7259 = vadd.f32 %v7246, %v7258
    %v7260 = vadd.f32 %v7247, %v7258
    %v7261 = vadd.f32 %v7248, %v7258
    %v7262 = vadd.f32 %v7249, %v7258
    %v7263 = vadd.f32 %v7250, %v7258
    %v7264 = vadd.f32 %v7251, %v7258
    %v7265 = vadd.f32 %v7252, %v7258
    %v7266 = vadd.f32 %v7253, %v7258
    %v7267 = vsel %vm268, %v7259, 0.0
    %7268 = vadd.xlane.f32.xlu0 %v7267
    %v7269 = vpop.xlane.xlu0 %7268
    %v7270 = vsel %vm268, %v7260, 0.0
    %7271 = vadd.xlane.f32.xlu0 %v7270
    %v7272 = vpop.xlane.xlu0 %7271
    %v7273 = vsel %vm268, %v7261, 0.0
    %7274 = vadd.xlane.f32.xlu0 %v7273
    %v7275 = vpop.xlane.xlu0 %7274
    %v7276 = vsel %vm268, %v7262, 0.0
    %7277 = vadd.xlane.f32.xlu0 %v7276
    %v7278 = vpop.xlane.xlu0 %7277
    %v7279 = vsel %vm268, %v7263, 0.0
    %7280 = vadd.xlane.f32.xlu0 %v7279
    %v7281 = vpop.xlane.xlu0 %7280
    %v7282 = vsel %vm268, %v7264, 0.0
    %7283 = vadd.xlane.f32.xlu0 %v7282
    %v7284 = vpop.xlane.xlu0 %7283
    %v7285 = vsel %vm268, %v7265, 0.0
    %7286 = vadd.xlane.f32.xlu0 %v7285
    %v7287 = vpop.xlane.xlu0 %7286
    %v7288 = vsel %vm268, %v7266, 0.0
    %7289 = vadd.xlane.f32.xlu0 %v7288
    %v7290 = vpop.xlane.xlu0 %7289
    %v7291 = vmul.f32 %v7269, %v1491
    %v7292 = vmul.f32 %v7272, %v1491
    %v7293 = vmul.f32 %v7275, %v1491
    %v7294 = vmul.f32 %v7278, %v1491
    %v7295 = vmul.f32 %v7281, %v1491
    %v7296 = vmul.f32 %v7284, %v1491
    %v7297 = vmul.f32 %v7287, %v1491
    %v7298 = vmul.f32 %v7290, %v1491
    %v7299 = vsub.f32 %v7259, %v7291
    %v7300 = vsub.f32 %v7260, %v7292
    %v7301 = vsub.f32 %v7261, %v7293
    %v7302 = vsub.f32 %v7262, %v7294
    %v7303 = vsub.f32 %v7263, %v7295
    %v7304 = vsub.f32 %v7264, %v7296
    %v7305 = vsub.f32 %v7265, %v7297
    %v7306 = vsub.f32 %v7266, %v7298
    %v7307 = vmul.f32 %v7299, %v7299
    %v7308 = vmul.f32 %v7300, %v7300
    %v7309 = vmul.f32 %v7301, %v7301
    %v7310 = vmul.f32 %v7302, %v7302
    %v7311 = vmul.f32 %v7303, %v7303
    %v7312 = vmul.f32 %v7304, %v7304
    %v7313 = vmul.f32 %v7305, %v7305
    %v7314 = vmul.f32 %v7306, %v7306
    %v7315 = vsel %vm268, %v7307, 0.0
    %7316 = vadd.xlane.f32.xlu0 %v7315
    %v7317 = vpop.xlane.xlu0 %7316
    %v7318 = vsel %vm268, %v7308, 0.0
    %7319 = vadd.xlane.f32.xlu0 %v7318
    %v7320 = vpop.xlane.xlu0 %7319
    %v7321 = vsel %vm268, %v7309, 0.0
    %7322 = vadd.xlane.f32.xlu0 %v7321
    %v7323 = vpop.xlane.xlu0 %7322
    %v7324 = vsel %vm268, %v7310, 0.0
    %7325 = vadd.xlane.f32.xlu0 %v7324
    %v7326 = vpop.xlane.xlu0 %7325
    %v7327 = vsel %vm268, %v7311, 0.0
    %7328 = vadd.xlane.f32.xlu0 %v7327
    %v7329 = vpop.xlane.xlu0 %7328
    %v7330 = vsel %vm268, %v7312, 0.0
    %7331 = vadd.xlane.f32.xlu0 %v7330
    %v7332 = vpop.xlane.xlu0 %7331
    %v7333 = vsel %vm268, %v7313, 0.0
    %7334 = vadd.xlane.f32.xlu0 %v7333
    %v7335 = vpop.xlane.xlu0 %7334
    %v7336 = vsel %vm268, %v7314, 0.0
    %7337 = vadd.xlane.f32.xlu0 %v7336
    %v7338 = vpop.xlane.xlu0 %7337
    %v7339 = vmul.f32 %v7317, %v1491
    %v7340 = vmul.f32 %v7320, %v1491
    %v7341 = vmul.f32 %v7323, %v1491
    %v7342 = vmul.f32 %v7326, %v1491
    %v7343 = vmul.f32 %v7329, %v1491
    %v7344 = vmul.f32 %v7332, %v1491
    %v7345 = vmul.f32 %v7335, %v1491
    %v7346 = vmul.f32 %v7338, %v1491
    %v7347 = vadd.f32 %v7339, 1e-05
    %v7348 = vadd.f32 %v7340, 1e-05
    %v7349 = vadd.f32 %v7341, 1e-05
    %v7350 = vadd.f32 %v7342, 1e-05
    %v7351 = vadd.f32 %v7343, 1e-05
    %v7352 = vadd.f32 %v7344, 1e-05
    %v7353 = vadd.f32 %v7345, 1e-05
    %v7354 = vadd.f32 %v7346, 1e-05
    %v7355 = vrsqrt.pop %v7347
    %v7356 = vrsqrt.pop %v7348
    %v7357 = vrsqrt.pop %v7349
    %v7358 = vrsqrt.pop %v7350
    %v7359 = vrsqrt.pop %v7351
    %v7360 = vrsqrt.pop %v7352
    %v7361 = vrsqrt.pop %v7353
    %v7362 = vrsqrt.pop %v7354
    %v7363 = vmul.f32 %v7299, %v7355
    %v7364 = vmul.f32 %v7300, %v7356
    %v7365 = vmul.f32 %v7301, %v7357
    %v7366 = vmul.f32 %v7302, %v7358
    %v7367 = vmul.f32 %v7303, %v7359
    %v7368 = vmul.f32 %v7304, %v7360
    %v7369 = vmul.f32 %v7305, %v7361
    %v7370 = vmul.f32 %v7306, %v7362
    %v7371 = vld [vmem:[%s7 + $0x15] sm:$0x1]
    %v7372 = vlaneseq
    %v7373 = vshrl.u32 %v7372, 7
    %v7374 = vsub.s32 0, %v7373
    %v7375 = vrot.slane %v7371, %v7374
    %v7376 = vmul.f32 %v7363, %v7375
    %v7377 = vmul.f32 %v7364, %v7375
    %v7378 = vmul.f32 %v7365, %v7375
    %v7379 = vmul.f32 %v7366, %v7375
    %v7380 = vmul.f32 %v7367, %v7375
    %v7381 = vmul.f32 %v7368, %v7375
    %v7382 = vmul.f32 %v7369, %v7375
    %v7383 = vmul.f32 %v7370, %v7375
    %v7384 = vld [vmem:[%s7 + $0x16] sm:$0x1]
    %v7385 = vlaneseq
    %v7386 = vshrl.u32 %v7385, 7
    %v7387 = vsub.s32 0, %v7386
    %v7388 = vrot.slane %v7384, %v7387
    %v7389 = vadd.f32 %v7376, %v7388
    %v7390 = vadd.f32 %v7377, %v7388
    %v7391 = vadd.f32 %v7378, %v7388
    %v7392 = vadd.f32 %v7379, %v7388
    %v7393 = vadd.f32 %v7380, %v7388
    %v7394 = vadd.f32 %v7381, %v7388
    %v7395 = vadd.f32 %v7382, %v7388
    %v7396 = vadd.f32 %v7383, %v7388
    %v7397 = vmul.u32 %v783, 32
    %vm7398 = vcmp.ge.s32.totalorder %v781, %v7397
    %v7399 = vadd.s32 %v7397, 30
    %vm7400 = vcmp.lt.s32.totalorder %v781, %v7399
    %vm7401 = vmand %vm7398, %vm7400
    %v7402 = vsel %vm7401, 0.033333335, 0.0
    %v7404 = vsel %vm268, %v7402, 0
    %7406 = vmatprep.subr.mxu0 0.0
    %7407 = vmatpush1.msra.mxu0 %v7389
    %7408 = vmatprep.subr.mxu0 0.0
    %7409 = vmatpush1.msra.mxu0 %v7390
    %7410 = vmatprep.subr.mxu0 0.0
    %7411 = vmatpush1.msra.mxu0 %v7391
    %7412 = vmatprep.subr.mxu0 0.0
    %7413 = vmatpush1.msra.mxu0 %v7392
    %7414 = vmatprep.subr.mxu0 0.0
    %7415 = vmatpush1.msra.mxu0 %v7393
    %7416 = vmatprep.subr.mxu0 0.0
    %7417 = vmatpush1.msra.mxu0 %v7394
    %7418 = vmatprep.subr.mxu0 0.0
    %7419 = vmatpush1.msra.mxu0 %v7395
    %7420 = vmatprep.subr.mxu0 0.0
    %7421 = vmatpush1.msra.mxu0 %v7396
    %7422 = vmatprep.subr.mxu0 0.0
    %7423 = vmatpush1.msra.mxu0 0.0
    %7424 = vmatprep.subr.mxu0 0.0
    %7425 = vmatpush1.msra.mxu0 0.0
    %7426 = vmatprep.subr.mxu0 0.0
    %7427 = vmatpush1.msra.mxu0 0.0
    %7428 = vmatprep.subr.mxu0 0.0
    %7429 = vmatpush1.msra.mxu0 0.0
    %7430 = vmatprep.subr.mxu0 0.0
    %7431 = vmatpush1.msra.mxu0 0.0
    %7432 = vmatprep.subr.mxu0 0.0
    %7433 = vmatpush1.msra.mxu0 0.0
    %7434 = vmatprep.subr.mxu0 0.0
    %7435 = vmatpush1.msra.mxu0 0.0
    %7436 = vmatprep.subr.mxu0 0.0
    %7437 = vmatpush1.msra.mxu0 0.0
    %7438 = vmatprep.subr.mxu0 0.0
    %7439 = vmatpush1.msra.mxu0 0.0
    %7440 = vmatprep.subr.mxu0 0.0
    %7441 = vmatpush1.msra.mxu0 0.0
    %7442 = vmatprep.subr.mxu0 0.0
    %7443 = vmatpush1.msra.mxu0 0.0
    %7444 = vmatprep.subr.mxu0 0.0
    %7445 = vmatpush1.msra.mxu0 0.0
    %7446 = vmatprep.subr.mxu0 0.0
    %7447 = vmatpush1.msra.mxu0 0.0
    %7448 = vmatprep.subr.mxu0 0.0
    %7449 = vmatpush1.msra.mxu0 0.0
    %7450 = vmatprep.subr.mxu0 0.0
    %7451 = vmatpush1.msra.mxu0 0.0
    %7452 = vmatprep.subr.mxu0 0.0
    %7453 = vmatpush1.msra.mxu0 0.0
    %7454 = vmatprep.subr.mxu0 0.0
    %7455 = vmatpush1.msra.mxu0 0.0
    %7456 = vmatprep.subr.mxu0 0.0
    %7457 = vmatpush1.msra.mxu0 0.0
    %7458 = vmatprep.subr.mxu0 0.0
    %7459 = vmatpush1.msra.mxu0 0.0
    %7460 = vmatprep.subr.mxu0 0.0
    %7461 = vmatpush1.msra.mxu0 0.0
    %7462 = vmatprep.subr.mxu0 0.0
    %7463 = vmatpush1.msra.mxu0 0.0
    %7464 = vmatprep.subr.mxu0 0.0
    %7465 = vmatpush1.msra.mxu0 0.0
    %7466 = vmatprep.subr.mxu0 0.0
    %7467 = vmatpush1.msra.mxu0 0.0
    %7468 = vmatprep.subr.mxu0 0.0
    %7469 = vmatpush1.msra.mxu0 0.0
    %7470 = vmatprep.mubr.f32.mxu0 0.0
    %7471 = vmatmul.mubr.f32.gmra.mrb[0].mxu0 %v7404
    %v7472 = vpop.f32.mrb[0].mxu0
    %v7473 = vadd.f32 0.0, %v7472
    %v7474 = vpop.f32.mrb[0].mxu0
    %7475 = vdwg.mxu0
    %v7476 = vpack.c.bf16 %v7473, %v7473
    %s7477 = scalar_lea.vmem %s3, 256
    %v7478 = vld [vmem:[%s7477] sm:$0xf]
    %v7479 = vld [vmem:[%s7477 + $0x4] sm:$0xf]
    %v7480 = vld [vmem:[%s7477 + $0x8] sm:$0xf]
    %v7481 = vld [vmem:[%s7477 + $0xc] sm:$0xf]
    %v7482 = vld [vmem:[%s7477 + $0x10] sm:$0xf]
    %v7483 = vld [vmem:[%s7477 + $0x14] sm:$0xf]
    %v7484 = vld [vmem:[%s7477 + $0x18] sm:$0xf]
    %v7485 = vld [vmem:[%s7477 + $0x1c] sm:$0xf]
    %v7486 = vld [vmem:[%s7 + $0x17] sm:$0x1]
    %v7487 = vlaneseq
    %v7488 = vshrl.u32 %v7487, 7
    %v7489 = vsub.s32 0, %v7488
    %v7490 = vrot.slane %v7486, %v7489
    %v7499 = vunpack.c.l.b16 %v7478
    %v7500 = vunpack.c.l.b16 %v7479
    %v7501 = vunpack.c.l.b16 %v7480
    %v7502 = vunpack.c.l.b16 %v7481
    %v7503 = vunpack.c.l.b16 %v7482
    %v7504 = vunpack.c.l.b16 %v7483
    %v7505 = vunpack.c.l.b16 %v7484
    %v7506 = vunpack.c.l.b16 %v7485
    %v7507 = vpack.c.b16 %v7500, %v7499
    %v7508 = vpack.c.b16 %v7502, %v7501
    %v7509 = vpack.c.b16 %v7504, %v7503
    %v7510 = vpack.c.b16 %v7506, %v7505
    %v7516 = vsel %vm268, %v7476, 0
    %7518 = vmatprep.subr.bf16.mxu0 0
    %7519 = vmatpush1.bf16.msra.mxu0 %v7507
    %7520 = vmatprep.subr.bf16.mxu0 0
    %7521 = vmatpush1.bf16.msra.mxu0 %v7508
    %7522 = vmatprep.subr.bf16.mxu0 0
    %7523 = vmatpush1.bf16.msra.mxu0 %v7509
    %7524 = vmatprep.subr.bf16.mxu0 0
    %7525 = vmatpush1.bf16.msra.mxu0 %v7510
    %7526 = vmatprep.subr.bf16.mxu0 0
    %7527 = vmatpush1.bf16.msra.mxu0 0
    %7528 = vmatprep.subr.bf16.mxu0 0
    %7529 = vmatpush1.bf16.msra.mxu0 0
    %7530 = vmatprep.subr.bf16.mxu0 0
    %7531 = vmatpush1.bf16.msra.mxu0 0
    %7532 = vmatprep.subr.bf16.mxu0 0
    %7533 = vmatpush1.bf16.msra.mxu0 0
    %7534 = vmatprep.subr.bf16.mxu0 0
    %7535 = vmatpush1.bf16.msra.mxu0 0
    %7536 = vmatprep.subr.bf16.mxu0 0
    %7537 = vmatpush1.bf16.msra.mxu0 0
    %7538 = vmatprep.subr.bf16.mxu0 0
    %7539 = vmatpush1.bf16.msra.mxu0 0
    %7540 = vmatprep.subr.bf16.mxu0 0
    %7541 = vmatpush1.bf16.msra.mxu0 0
    %7542 = vmatprep.subr.bf16.mxu0 0
    %7543 = vmatpush1.bf16.msra.mxu0 0
    %7544 = vmatprep.subr.bf16.mxu0 0
    %7545 = vmatpush1.bf16.msra.mxu0 0
    %7546 = vmatprep.subr.bf16.mxu0 0
    %7547 = vmatpush1.bf16.msra.mxu0 0
    %7548 = vmatprep.subr.bf16.mxu0 0
    %7549 = vmatpush1.bf16.msra.mxu0 0
    %7550 = vmatprep.mubr.bf16.mxu0 0
    %7551 = vmatmul.mubr.bf16.gmra.mrb[0].mxu0 %v7516
    %v7552 = vpop.f32.mrb[0].mxu0
    %v7553 = vadd.f32 %v7490, %v7552
    %v7554 = vpop.f32.mrb[0].mxu0
    %v7555 = vpop.f32.mrb[0].mxu0
    %v7556 = vpop.f32.mrb[0].mxu0
    %7557 = vdwg.mxu0
    %v7558 = vpack.c.bf16 %v7553, %v7553
    %v7559 = vld [vmem:[#allocation7] sm:$0xf]
    %v7560 = vld [vmem:[#allocation7 + $0x4] sm:$0xf]
    %v7561 = vld [vmem:[#allocation7 + $0x8] sm:$0xf]
    %v7562 = vld [vmem:[#allocation7 + $0xc] sm:$0xf]
    %v7563 = vld [vmem:[#allocation7 + $0x10] sm:$0xf]
    %v7564 = vld [vmem:[#allocation7 + $0x14] sm:$0xf]
    %v7565 = vld [vmem:[#allocation7 + $0x18] sm:$0xf]
    %v7566 = vld [vmem:[#allocation7 + $0x1c] sm:$0xf]
    %v7575 = vunpack.c.l.b16 %v7559
    %v7576 = vunpack.c.l.b16 %v7560
    %v7577 = vunpack.c.l.b16 %v7561
    %v7578 = vunpack.c.l.b16 %v7562
    %v7579 = vunpack.c.l.b16 %v7563
    %v7580 = vunpack.c.l.b16 %v7564
    %v7581 = vunpack.c.l.b16 %v7565
    %v7582 = vunpack.c.l.b16 %v7566
    %v7583 = vpack.c.b16 %v7576, %v7575
    %v7584 = vpack.c.b16 %v7578, %v7577
    %v7585 = vpack.c.b16 %v7580, %v7579
    %v7586 = vpack.c.b16 %v7582, %v7581
    %v7592 = vsel %vm268, %v7558, 0
    %7594 = vmatprep.subr.bf16.mxu0 0
    %7595 = vmatpush1.bf16.msra.mxu0 %v7583
    %7596 = vmatprep.subr.bf16.mxu0 0
    %7597 = vmatpush1.bf16.msra.mxu0 %v7584
    %7598 = vmatprep.subr.bf16.mxu0 0
    %7599 = vmatpush1.bf16.msra.mxu0 %v7585
    %7600 = vmatprep.subr.bf16.mxu0 0
    %7601 = vmatpush1.bf16.msra.mxu0 %v7586
    %7602 = vmatprep.subr.bf16.mxu0 0
    %7603 = vmatpush1.bf16.msra.mxu0 0
    %7604 = vmatprep.subr.bf16.mxu0 0
    %7605 = vmatpush1.bf16.msra.mxu0 0
    %7606 = vmatprep.subr.bf16.mxu0 0
    %7607 = vmatpush1.bf16.msra.mxu0 0
    %7608 = vmatprep.subr.bf16.mxu0 0
    %7609 = vmatpush1.bf16.msra.mxu0 0
    %7610 = vmatprep.subr.bf16.mxu0 0
    %7611 = vmatpush1.bf16.msra.mxu0 0
    %7612 = vmatprep.subr.bf16.mxu0 0
    %7613 = vmatpush1.bf16.msra.mxu0 0
    %7614 = vmatprep.subr.bf16.mxu0 0
    %7615 = vmatpush1.bf16.msra.mxu0 0
    %7616 = vmatprep.subr.bf16.mxu0 0
    %7617 = vmatpush1.bf16.msra.mxu0 0
    %7618 = vmatprep.subr.bf16.mxu0 0
    %7619 = vmatpush1.bf16.msra.mxu0 0
    %7620 = vmatprep.subr.bf16.mxu0 0
    %7621 = vmatpush1.bf16.msra.mxu0 0
    %7622 = vmatprep.subr.bf16.mxu0 0
    %7623 = vmatpush1.bf16.msra.mxu0 0
    %7624 = vmatprep.subr.bf16.mxu0 0
    %7625 = vmatpush1.bf16.msra.mxu0 0
    %7626 = vmatprep.mubr.bf16.mxu0 0
    %7627 = vmatmul.mubr.bf16.gmra.mrb[0].mxu0 %v7592
    %v7628 = vpop.f32.mrb[0].mxu0
    %v7629 = vadd.f32 0.0, %v7628
    %v7630 = vpop.f32.mrb[0].mxu0
    %v7631 = vpop.f32.mrb[0].mxu0
    %v7632 = vpop.f32.mrb[0].mxu0
    %7633 = vdwg.mxu0
    %7634 = vst [vmem:[#allocation8] sm:$0x3] %v7629
    // Predicated region
    $region50: #{tran_medical_forward.1} parent=1 // pred_check
      _
    $region51: #{tran_medical_forward.1} parent=1 // pred_check_branch
      %7636 = sbr.rel (0) target = $region53
    $region52: #{tran_medical_forward.1} parent=1 // pred_region
      %s7638 = ssub.s32 32, 32
      %7639 = vsyncadd [#allocation4], %s7638
      %s7641 = sshll.u32 [#allocation8], 4
      %s7642 = int_to_ptr.vmem [resolvable:$true] %s7641
      %7644 = dma.vmem_to_hbm [thread:$0]  %s7642, 32, %s9, [#allocation4]
    $region53: #{tran_medical_forward.1} parent=1 // pred_fallthru
      _
    // Predicated region
    $region54: #{tran_medical_forward.1} parent=1 // pred_check
      _
    $region55: #{tran_medical_forward.1} parent=1 // pred_check_branch
      %7646 = sbr.rel (0) target = $region57
    $region56: #{tran_medical_forward.1} parent=1 // pred_region
      %7647 = dma.done [#allocation4], 32
    $region57: #{tran_medical_forward.1} parent=1 // pred_fallthru
      _
    %7648 = vsyncpa [#allocation3], 1
    %7649 = vsyncpa [#allocation6], 1
    %7650 = vsyncpa [#allocation4], 1

</llo_original>
